<compile_context>
chip_gen: v6e
topology: v6e:2x2x1
jax: 0.10.0
libtpu: 0.0.40
codegen_flags: <defaults>
</compile_context>

<pallas_src>
import jax
import jax.numpy as jnp
from jax import lax
from jax.experimental import pallas as pl
from jax.experimental.pallas import tpu as pltpu

N_TIME_POINTS = 10           # torch.linspace(0., 1., 10)
N_STEPS = N_TIME_POINTS - 1  # one DOPRI5 step per time interval
DT = 1.0 / N_STEPS

# Dormand-Prince 5(4) Butcher tableau with DT pre-folded in (5th-order
# solution weights; b2 = b7 = 0).
C21 = DT * (1.0 / 5.0)
C31, C32 = DT * (3.0 / 40.0), DT * (9.0 / 40.0)
C41, C42, C43 = DT * (44.0 / 45.0), DT * (-56.0 / 15.0), DT * (32.0 / 9.0)
C51, C52, C53, C54 = (DT * (19372.0 / 6561.0), DT * (-25360.0 / 2187.0),
                      DT * (64448.0 / 6561.0), DT * (-212.0 / 729.0))
C61, C62, C63, C64, C65 = (DT * (9017.0 / 3168.0), DT * (-355.0 / 33.0),
                           DT * (46732.0 / 5247.0), DT * (49.0 / 176.0),
                           DT * (-5103.0 / 18656.0))
CB1, CB3, CB4, CB5, CB6 = (DT * (35.0 / 384.0), DT * (500.0 / 1113.0),
                           DT * (125.0 / 192.0), DT * (-2187.0 / 6784.0),
                           DT * (11.0 / 84.0))


def make_ode_block_kernel(tile_b, hidden, matmul_dtype):
    """Builds the kernel for one (tile_b, hidden) batch tile."""

    def kernel(x_ref, w1_ref, b1_ref, w2_ref, b2_ref, out_ref):
        # Weights resident in vregs for the whole integration; optionally cast
        # to bf16 for the MXU fast path (accumulation stays f32).
        w1 = w1_ref[...].astype(matmul_dtype)
        w2 = w2_ref[...].astype(matmul_dtype)

        # Hoisted bias broadcasts (JAX does not CSE broadcast_in_dim).
        b1b = jnp.broadcast_to(b1_ref[...].astype(jnp.float32), (tile_b, hidden))
        b2b = jnp.broadcast_to(b2_ref[...].astype(jnp.float32), (tile_b, hidden))

        def f(y):
            h = jnp.tanh(
                jnp.dot(y.astype(matmul_dtype), w1,
                        preferred_element_type=jnp.float32) + b1b)
            return jnp.dot(h.astype(matmul_dtype), w2,
                           preferred_element_type=jnp.float32) + b2b

        def dopri5_step(_, y):
            k1 = f(y)
            k2 = f(y + C21 * k1)
            k3 = f(y + (C31 * k1 + C32 * k2))
            k4 = f(y + (C41 * k1 + C42 * k2 + C43 * k3))
            k5 = f(y + (C51 * k1 + C52 * k2 + C53 * k3 + C54 * k4))
            k6 = f(y + (C61 * k1 + C62 * k2 + C63 * k3 + C64 * k4 + C65 * k5))
            return y + (CB1 * k1 + CB3 * k3 + CB4 * k4 + CB5 * k5 + CB6 * k6)

        y0 = x_ref[...].astype(jnp.float32)
        # Statically unrolled 9-step integration (fixed trip count, small body).
        yT = lax.fori_loop(0, N_STEPS, dopri5_step, y0, unroll=True)
        out_ref[...] = yT.astype(out_ref.dtype)

    return kernel


def _pick_batch_tile(batch):
    """Batch tile: whole batch when small, else a sublane-aligned divisor."""
    if batch <= 128:
        return batch
    for tb in (512, 256, 128, 64, 32, 16, 8):
        if batch % tb == 0:
            return tb
    return batch


def ode_block(x, w1, b1, w2, b2, *, matmul_dtype=jnp.float32):
    """x: (B, H) f32. Returns the ODE state at t=1.0."""
    B, H = x.shape
    tb = _pick_batch_tile(B)
    num_tiles = B // tb

    b1_2d = b1.reshape(1, H)
    b2_2d = b2.reshape(1, H)

    grid_spec = pltpu.PrefetchScalarGridSpec(
        num_scalar_prefetch=0,
        grid=(num_tiles,),                               # batch tiles
        in_specs=[
            pl.BlockSpec((tb, H), lambda i: (i, 0)),     # x tile
            pl.BlockSpec((H, H), lambda i: (0, 0)),      # W1 (in, out), resident
            pl.BlockSpec((1, H), lambda i: (0, 0)),      # b1, resident
            pl.BlockSpec((H, H), lambda i: (0, 0)),      # W2 (in, out), resident
            pl.BlockSpec((1, H), lambda i: (0, 0)),      # b2, resident
        ],
        out_specs=pl.BlockSpec((tb, H), lambda i: (i, 0)),
    )

    return pl.pallas_call(
        make_ode_block_kernel(tb, H, matmul_dtype),
        out_shape=jax.ShapeDtypeStruct((B, H), jnp.float32),
        grid_spec=grid_spec,
        compiler_params=pltpu.CompilerParams(
            dimension_semantics=("parallel",)),          # megacore-shard batch
    )(x, w1, b1_2d, w2, b2_2d)


if __name__ == "__main__":
    B, H = 8, 32  # batch, hidden dim of the ODE state

    key = jax.random.PRNGKey(0)
    kx, k1, k2, k3, k4 = jax.random.split(key, 5)

    x = jax.random.normal(kx, (B, H), dtype=jnp.float32)
    # Deterministic parameter init (nn.Linear-like scale).
    scale = 1.0 / (H ** 0.5)
    w1 = jax.random.uniform(k1, (H, H), jnp.float32, -scale, scale)
    b1 = jax.random.uniform(k2, (H,), jnp.float32, -scale, scale)
    w2 = jax.random.uniform(k3, (H, H), jnp.float32, -scale, scale)
    b2 = jax.random.uniform(k4, (H,), jnp.float32, -scale, scale)

    out = ode_block(x, w1, b1, w2, b2)
    jax.block_until_ready(out)

    # Sanity: pure-JAX reference of the same fixed-step integrator.
    def f_ref(y):
        return jnp.tanh(y @ w1 + b1) @ w2 + b2

    y = x
    for _ in range(N_STEPS):
        k1_ = f_ref(y)
        k2_ = f_ref(y + C21 * k1_)
        k3_ = f_ref(y + (C31 * k1_ + C32 * k2_))
        k4_ = f_ref(y + (C41 * k1_ + C42 * k2_ + C43 * k3_))
        k5_ = f_ref(y + (C51 * k1_ + C52 * k2_ + C53 * k3_ + C54 * k4_))
        k6_ = f_ref(y + (C61 * k1_ + C62 * k2_ + C63 * k3_ + C64 * k4_ + C65 * k5_))
        y = y + (CB1 * k1_ + CB3 * k3_ + CB4 * k4_ + CB5 * k5_ + CB6 * k6_)

    assert jnp.allclose(out, y, atol=1e-4, rtol=1e-4), "mismatch vs reference"

    # bf16 matmul-input variant (v6e/v7x MXU fast path); f32 accumulate and
    # f32 stage combinations, so error stays small but tolerance is loosened.
    out_bf16 = ode_block(x, w1, b1, w2, b2, matmul_dtype=jnp.bfloat16)
    jax.block_until_ready(out_bf16)
    assert jnp.max(jnp.abs(out_bf16 - y)) < 0.25, "bf16 variant diverged"

    print("KERNEL_OK")
</pallas_src>

<mosaic_0001>
module attributes {stable_mosaic.version = 11 : i64} {
  func.func @kernel(%arg0: i32, %arg1: memref<8x32xf32, #tpu.memory_space<vmem>>, %arg2: memref<32x32xf32, #tpu.memory_space<vmem>>, %arg3: memref<1x32xf32, #tpu.memory_space<vmem>>, %arg4: memref<32x32xf32, #tpu.memory_space<vmem>>, %arg5: memref<1x32xf32, #tpu.memory_space<vmem>>, %arg6: memref<8x32xf32, #tpu.memory_space<vmem>>) attributes {dimension_semantics = [#tpu.dimension_semantics<parallel>], iteration_bounds = array<i64: 1>, scalar_prefetch = 0 : i64, scratch_operands = 0 : i64, tpu.core_type = #tpu.core_type<tc>, window_params = [{transform_indices = @transform_0, window_bounds = array<i64: 8, 32>}, {pipeline_mode = #tpu.pipeline_mode<synchronous>, transform_indices = @transform_1, window_bounds = array<i64: 32, 32>}, {pipeline_mode = #tpu.pipeline_mode<synchronous>, transform_indices = @transform_2, window_bounds = array<i64: 1, 32>}, {pipeline_mode = #tpu.pipeline_mode<synchronous>, transform_indices = @transform_3, window_bounds = array<i64: 32, 32>}, {pipeline_mode = #tpu.pipeline_mode<synchronous>, transform_indices = @transform_4, window_bounds = array<i64: 1, 32>}, {transform_indices = @transform_5, window_bounds = array<i64: 8, 32>}]} {
    %c0 = arith.constant 0 : index
    %c0_0 = arith.constant 0 : index
    %0 = vector.load %arg2[%c0, %c0_0] : memref<32x32xf32, #tpu.memory_space<vmem>>, vector<32x32xf32>
    %c0_1 = arith.constant 0 : index
    %c0_2 = arith.constant 0 : index
    %1 = vector.load %arg4[%c0_1, %c0_2] : memref<32x32xf32, #tpu.memory_space<vmem>>, vector<32x32xf32>
    %c0_3 = arith.constant 0 : index
    %c0_4 = arith.constant 0 : index
    %2 = vector.load %arg3[%c0_3, %c0_4] : memref<1x32xf32, #tpu.memory_space<vmem>>, vector<1x32xf32>
    %3 = vector.shape_cast %2 : vector<1x32xf32> to vector<1x32xf32>
    %4 = vector.broadcast %3 : vector<1x32xf32> to vector<8x32xf32>
    %c0_5 = arith.constant 0 : index
    %c0_6 = arith.constant 0 : index
    %5 = vector.load %arg5[%c0_5, %c0_6] : memref<1x32xf32, #tpu.memory_space<vmem>>, vector<1x32xf32>
    %6 = vector.shape_cast %5 : vector<1x32xf32> to vector<1x32xf32>
    %7 = vector.broadcast %6 : vector<1x32xf32> to vector<8x32xf32>
    %c0_7 = arith.constant 0 : index
    %c0_8 = arith.constant 0 : index
    %8 = vector.load %arg1[%c0_7, %c0_8] : memref<8x32xf32, #tpu.memory_space<vmem>>, vector<8x32xf32>
    %c0_i32 = arith.constant 0 : i32
    %cst = arith.constant dense<0.000000e+00> : vector<8x32xf32>
    %9 = tpu.matmul %8, %0, %cst {dimension_numbers = #tpu.dot_dimension_numbers<[1], [0], [0], [1], [0, 0, 1, 1], [], []>} : vector<8x32xf32>, vector<32x32xf32>, vector<8x32xf32> -> vector<8x32xf32>
    %10 = arith.addf %9, %4 : vector<8x32xf32>
    %11 = math.tanh %10 : vector<8x32xf32>
    %cst_9 = arith.constant dense<0.000000e+00> : vector<8x32xf32>
    %12 = tpu.matmul %11, %1, %cst_9 {dimension_numbers = #tpu.dot_dimension_numbers<[1], [0], [0], [1], [0, 0, 1, 1], [], []>} : vector<8x32xf32>, vector<32x32xf32>, vector<8x32xf32> -> vector<8x32xf32>
    %13 = arith.addf %12, %7 : vector<8x32xf32>
    %cst_10 = arith.constant 0.0222222228 : f32
    %14 = vector.broadcast %cst_10 : f32 to vector<8x32xf32>
    %15 = arith.mulf %14, %13 : vector<8x32xf32>
    %16 = arith.addf %8, %15 : vector<8x32xf32>
    %cst_11 = arith.constant dense<0.000000e+00> : vector<8x32xf32>
    %17 = tpu.matmul %16, %0, %cst_11 {dimension_numbers = #tpu.dot_dimension_numbers<[1], [0], [0], [1], [0, 0, 1, 1], [], []>} : vector<8x32xf32>, vector<32x32xf32>, vector<8x32xf32> -> vector<8x32xf32>
    %18 = arith.addf %17, %4 : vector<8x32xf32>
    %19 = math.tanh %18 : vector<8x32xf32>
    %cst_12 = arith.constant dense<0.000000e+00> : vector<8x32xf32>
    %20 = tpu.matmul %19, %1, %cst_12 {dimension_numbers = #tpu.dot_dimension_numbers<[1], [0], [0], [1], [0, 0, 1, 1], [], []>} : vector<8x32xf32>, vector<32x32xf32>, vector<8x32xf32> -> vector<8x32xf32>
    %21 = arith.addf %20, %7 : vector<8x32xf32>
    %cst_13 = arith.constant 0.00833333377 : f32
    %22 = vector.broadcast %cst_13 : f32 to vector<8x32xf32>
    %23 = arith.mulf %22, %13 : vector<8x32xf32>
    %cst_14 = arith.constant 2.500000e-02 : f32
    %24 = vector.broadcast %cst_14 : f32 to vector<8x32xf32>
    %25 = arith.mulf %24, %21 : vector<8x32xf32>
    %26 = arith.addf %23, %25 : vector<8x32xf32>
    %27 = arith.addf %8, %26 : vector<8x32xf32>
    %cst_15 = arith.constant dense<0.000000e+00> : vector<8x32xf32>
    %28 = tpu.matmul %27, %0, %cst_15 {dimension_numbers = #tpu.dot_dimension_numbers<[1], [0], [0], [1], [0, 0, 1, 1], [], []>} : vector<8x32xf32>, vector<32x32xf32>, vector<8x32xf32> -> vector<8x32xf32>
    %29 = arith.addf %28, %4 : vector<8x32xf32>
    %30 = math.tanh %29 : vector<8x32xf32>
    %cst_16 = arith.constant dense<0.000000e+00> : vector<8x32xf32>
    %31 = tpu.matmul %30, %1, %cst_16 {dimension_numbers = #tpu.dot_dimension_numbers<[1], [0], [0], [1], [0, 0, 1, 1], [], []>} : vector<8x32xf32>, vector<32x32xf32>, vector<8x32xf32> -> vector<8x32xf32>
    %32 = arith.addf %31, %7 : vector<8x32xf32>
    %cst_17 = arith.constant 0.108641975 : f32
    %33 = vector.broadcast %cst_17 : f32 to vector<8x32xf32>
    %34 = arith.mulf %33, %13 : vector<8x32xf32>
    %cst_18 = arith.constant -0.4148148 : f32
    %35 = vector.broadcast %cst_18 : f32 to vector<8x32xf32>
    %36 = arith.mulf %35, %21 : vector<8x32xf32>
    %37 = arith.addf %34, %36 : vector<8x32xf32>
    %cst_19 = arith.constant 0.395061731 : f32
    %38 = vector.broadcast %cst_19 : f32 to vector<8x32xf32>
    %39 = arith.mulf %38, %32 : vector<8x32xf32>
    %40 = arith.addf %37, %39 : vector<8x32xf32>
    %41 = arith.addf %8, %40 : vector<8x32xf32>
    %cst_20 = arith.constant dense<0.000000e+00> : vector<8x32xf32>
    %42 = tpu.matmul %41, %0, %cst_20 {dimension_numbers = #tpu.dot_dimension_numbers<[1], [0], [0], [1], [0, 0, 1, 1], [], []>} : vector<8x32xf32>, vector<32x32xf32>, vector<8x32xf32> -> vector<8x32xf32>
    %43 = arith.addf %42, %4 : vector<8x32xf32>
    %44 = math.tanh %43 : vector<8x32xf32>
    %cst_21 = arith.constant dense<0.000000e+00> : vector<8x32xf32>
    %45 = tpu.matmul %44, %1, %cst_21 {dimension_numbers = #tpu.dot_dimension_numbers<[1], [0], [0], [1], [0, 0, 1, 1], [], []>} : vector<8x32xf32>, vector<32x32xf32>, vector<8x32xf32> -> vector<8x32xf32>
    %46 = arith.addf %45, %7 : vector<8x32xf32>
    %cst_22 = arith.constant 0.328066528 : f32
    %47 = vector.broadcast %cst_22 : f32 to vector<8x32xf32>
    %48 = arith.mulf %47, %13 : vector<8x32xf32>
    %cst_23 = arith.constant -1.28842151 : f32
    %49 = vector.broadcast %cst_23 : f32 to vector<8x32xf32>
    %50 = arith.mulf %49, %21 : vector<8x32xf32>
    %51 = arith.addf %48, %50 : vector<8x32xf32>
    %cst_24 = arith.constant 1.09143257 : f32
    %52 = vector.broadcast %cst_24 : f32 to vector<8x32xf32>
    %53 = arith.mulf %52, %32 : vector<8x32xf32>
    %54 = arith.addf %51, %53 : vector<8x32xf32>
    %cst_25 = arith.constant -0.0323121473 : f32
    %55 = vector.broadcast %cst_25 : f32 to vector<8x32xf32>
    %56 = arith.mulf %55, %46 : vector<8x32xf32>
    %57 = arith.addf %54, %56 : vector<8x32xf32>
    %58 = arith.addf %8, %57 : vector<8x32xf32>
    %cst_26 = arith.constant dense<0.000000e+00> : vector<8x32xf32>
    %59 = tpu.matmul %58, %0, %cst_26 {dimension_numbers = #tpu.dot_dimension_numbers<[1], [0], [0], [1], [0, 0, 1, 1], [], []>} : vector<8x32xf32>, vector<32x32xf32>, vector<8x32xf32> -> vector<8x32xf32>
    %60 = arith.addf %59, %4 : vector<8x32xf32>
    %61 = math.tanh %60 : vector<8x32xf32>
    %cst_27 = arith.constant dense<0.000000e+00> : vector<8x32xf32>
    %62 = tpu.matmul %61, %1, %cst_27 {dimension_numbers = #tpu.dot_dimension_numbers<[1], [0], [0], [1], [0, 0, 1, 1], [], []>} : vector<8x32xf32>, vector<32x32xf32>, vector<8x32xf32> -> vector<8x32xf32>
    %63 = arith.addf %62, %7 : vector<8x32xf32>
    %cst_28 = arith.constant 0.316252798 : f32
    %64 = vector.broadcast %cst_28 : f32 to vector<8x32xf32>
    %65 = arith.mulf %64, %13 : vector<8x32xf32>
    %cst_29 = arith.constant -1.19528615 : f32
    %66 = vector.broadcast %cst_29 : f32 to vector<8x32xf32>
    %67 = arith.mulf %66, %21 : vector<8x32xf32>
    %68 = arith.addf %65, %67 : vector<8x32xf32>
    %cst_30 = arith.constant 0.989602506 : f32
    %69 = vector.broadcast %cst_30 : f32 to vector<8x32xf32>
    %70 = arith.mulf %69, %32 : vector<8x32xf32>
    %71 = arith.addf %68, %70 : vector<8x32xf32>
    %cst_31 = arith.constant 0.0309343431 : f32
    %72 = vector.broadcast %cst_31 : f32 to vector<8x32xf32>
    %73 = arith.mulf %72, %46 : vector<8x32xf32>
    %74 = arith.addf %71, %73 : vector<8x32xf32>
    %cst_32 = arith.constant -0.0303923674 : f32
    %75 = vector.broadcast %cst_32 : f32 to vector<8x32xf32>
    %76 = arith.mulf %75, %63 : vector<8x32xf32>
    %77 = arith.addf %74, %76 : vector<8x32xf32>
    %78 = arith.addf %8, %77 : vector<8x32xf32>
    %cst_33 = arith.constant dense<0.000000e+00> : vector<8x32xf32>
    %79 = tpu.matmul %78, %0, %cst_33 {dimension_numbers = #tpu.dot_dimension_numbers<[1], [0], [0], [1], [0, 0, 1, 1], [], []>} : vector<8x32xf32>, vector<32x32xf32>, vector<8x32xf32> -> vector<8x32xf32>
    %80 = arith.addf %79, %4 : vector<8x32xf32>
    %81 = math.tanh %80 : vector<8x32xf32>
    %cst_34 = arith.constant dense<0.000000e+00> : vector<8x32xf32>
    %82 = tpu.matmul %81, %1, %cst_34 {dimension_numbers = #tpu.dot_dimension_numbers<[1], [0], [0], [1], [0, 0, 1, 1], [], []>} : vector<8x32xf32>, vector<32x32xf32>, vector<8x32xf32> -> vector<8x32xf32>
    %83 = arith.addf %82, %7 : vector<8x32xf32>
    %cst_35 = arith.constant 0.0101273144 : f32
    %84 = vector.broadcast %cst_35 : f32 to vector<8x32xf32>
    %85 = arith.mulf %84, %13 : vector<8x32xf32>
    %cst_36 = arith.constant 0.0499151461 : f32
    %86 = vector.broadcast %cst_36 : f32 to vector<8x32xf32>
    %87 = arith.mulf %86, %32 : vector<8x32xf32>
    %88 = arith.addf %85, %87 : vector<8x32xf32>
    %cst_37 = arith.constant 0.0723379627 : f32
    %89 = vector.broadcast %cst_37 : f32 to vector<8x32xf32>
    %90 = arith.mulf %89, %46 : vector<8x32xf32>
    %91 = arith.addf %88, %90 : vector<8x32xf32>
    %cst_38 = arith.constant -0.0358195752 : f32
    %92 = vector.broadcast %cst_38 : f32 to vector<8x32xf32>
    %93 = arith.mulf %92, %63 : vector<8x32xf32>
    %94 = arith.addf %91, %93 : vector<8x32xf32>
    %cst_39 = arith.constant 0.0145502649 : f32
    %95 = vector.broadcast %cst_39 : f32 to vector<8x32xf32>
    %96 = arith.mulf %95, %83 : vector<8x32xf32>
    %97 = arith.addf %94, %96 : vector<8x32xf32>
    %98 = arith.addf %8, %97 : vector<8x32xf32>
    %c1_i32 = arith.constant 1 : i32
    %cst_40 = arith.constant dense<0.000000e+00> : vector<8x32xf32>
    %99 = tpu.matmul %98, %0, %cst_40 {dimension_numbers = #tpu.dot_dimension_numbers<[1], [0], [0], [1], [0, 0, 1, 1], [], []>} : vector<8x32xf32>, vector<32x32xf32>, vector<8x32xf32> -> vector<8x32xf32>
    %100 = arith.addf %99, %4 : vector<8x32xf32>
    %101 = math.tanh %100 : vector<8x32xf32>
    %cst_41 = arith.constant dense<0.000000e+00> : vector<8x32xf32>
    %102 = tpu.matmul %101, %1, %cst_41 {dimension_numbers = #tpu.dot_dimension_numbers<[1], [0], [0], [1], [0, 0, 1, 1], [], []>} : vector<8x32xf32>, vector<32x32xf32>, vector<8x32xf32> -> vector<8x32xf32>
    %103 = arith.addf %102, %7 : vector<8x32xf32>
    %cst_42 = arith.constant 0.0222222228 : f32
    %104 = vector.broadcast %cst_42 : f32 to vector<8x32xf32>
    %105 = arith.mulf %104, %103 : vector<8x32xf32>
    %106 = arith.addf %98, %105 : vector<8x32xf32>
    %cst_43 = arith.constant dense<0.000000e+00> : vector<8x32xf32>
    %107 = tpu.matmul %106, %0, %cst_43 {dimension_numbers = #tpu.dot_dimension_numbers<[1], [0], [0], [1], [0, 0, 1, 1], [], []>} : vector<8x32xf32>, vector<32x32xf32>, vector<8x32xf32> -> vector<8x32xf32>
    %108 = arith.addf %107, %4 : vector<8x32xf32>
    %109 = math.tanh %108 : vector<8x32xf32>
    %cst_44 = arith.constant dense<0.000000e+00> : vector<8x32xf32>
    %110 = tpu.matmul %109, %1, %cst_44 {dimension_numbers = #tpu.dot_dimension_numbers<[1], [0], [0], [1], [0, 0, 1, 1], [], []>} : vector<8x32xf32>, vector<32x32xf32>, vector<8x32xf32> -> vector<8x32xf32>
    %111 = arith.addf %110, %7 : vector<8x32xf32>
    %cst_45 = arith.constant 0.00833333377 : f32
    %112 = vector.broadcast %cst_45 : f32 to vector<8x32xf32>
    %113 = arith.mulf %112, %103 : vector<8x32xf32>
    %cst_46 = arith.constant 2.500000e-02 : f32
    %114 = vector.broadcast %cst_46 : f32 to vector<8x32xf32>
    %115 = arith.mulf %114, %111 : vector<8x32xf32>
    %116 = arith.addf %113, %115 : vector<8x32xf32>
    %117 = arith.addf %98, %116 : vector<8x32xf32>
    %cst_47 = arith.constant dense<0.000000e+00> : vector<8x32xf32>
    %118 = tpu.matmul %117, %0, %cst_47 {dimension_numbers = #tpu.dot_dimension_numbers<[1], [0], [0], [1], [0, 0, 1, 1], [], []>} : vector<8x32xf32>, vector<32x32xf32>, vector<8x32xf32> -> vector<8x32xf32>
    %119 = arith.addf %118, %4 : vector<8x32xf32>
    %120 = math.tanh %119 : vector<8x32xf32>
    %cst_48 = arith.constant dense<0.000000e+00> : vector<8x32xf32>
    %121 = tpu.matmul %120, %1, %cst_48 {dimension_numbers = #tpu.dot_dimension_numbers<[1], [0], [0], [1], [0, 0, 1, 1], [], []>} : vector<8x32xf32>, vector<32x32xf32>, vector<8x32xf32> -> vector<8x32xf32>
    %122 = arith.addf %121, %7 : vector<8x32xf32>
    %cst_49 = arith.constant 0.108641975 : f32
    %123 = vector.broadcast %cst_49 : f32 to vector<8x32xf32>
    %124 = arith.mulf %123, %103 : vector<8x32xf32>
    %cst_50 = arith.constant -0.4148148 : f32
    %125 = vector.broadcast %cst_50 : f32 to vector<8x32xf32>
    %126 = arith.mulf %125, %111 : vector<8x32xf32>
    %127 = arith.addf %124, %126 : vector<8x32xf32>
    %cst_51 = arith.constant 0.395061731 : f32
    %128 = vector.broadcast %cst_51 : f32 to vector<8x32xf32>
    %129 = arith.mulf %128, %122 : vector<8x32xf32>
    %130 = arith.addf %127, %129 : vector<8x32xf32>
    %131 = arith.addf %98, %130 : vector<8x32xf32>
    %cst_52 = arith.constant dense<0.000000e+00> : vector<8x32xf32>
    %132 = tpu.matmul %131, %0, %cst_52 {dimension_numbers = #tpu.dot_dimension_numbers<[1], [0], [0], [1], [0, 0, 1, 1], [], []>} : vector<8x32xf32>, vector<32x32xf32>, vector<8x32xf32> -> vector<8x32xf32>
    %133 = arith.addf %132, %4 : vector<8x32xf32>
    %134 = math.tanh %133 : vector<8x32xf32>
    %cst_53 = arith.constant dense<0.000000e+00> : vector<8x32xf32>
    %135 = tpu.matmul %134, %1, %cst_53 {dimension_numbers = #tpu.dot_dimension_numbers<[1], [0], [0], [1], [0, 0, 1, 1], [], []>} : vector<8x32xf32>, vector<32x32xf32>, vector<8x32xf32> -> vector<8x32xf32>
    %136 = arith.addf %135, %7 : vector<8x32xf32>
    %cst_54 = arith.constant 0.328066528 : f32
    %137 = vector.broadcast %cst_54 : f32 to vector<8x32xf32>
    %138 = arith.mulf %137, %103 : vector<8x32xf32>
    %cst_55 = arith.constant -1.28842151 : f32
    %139 = vector.broadcast %cst_55 : f32 to vector<8x32xf32>
    %140 = arith.mulf %139, %111 : vector<8x32xf32>
    %141 = arith.addf %138, %140 : vector<8x32xf32>
    %cst_56 = arith.constant 1.09143257 : f32
    %142 = vector.broadcast %cst_56 : f32 to vector<8x32xf32>
    %143 = arith.mulf %142, %122 : vector<8x32xf32>
    %144 = arith.addf %141, %143 : vector<8x32xf32>
    %cst_57 = arith.constant -0.0323121473 : f32
    %145 = vector.broadcast %cst_57 : f32 to vector<8x32xf32>
    %146 = arith.mulf %145, %136 : vector<8x32xf32>
    %147 = arith.addf %144, %146 : vector<8x32xf32>
    %148 = arith.addf %98, %147 : vector<8x32xf32>
    %cst_58 = arith.constant dense<0.000000e+00> : vector<8x32xf32>
    %149 = tpu.matmul %148, %0, %cst_58 {dimension_numbers = #tpu.dot_dimension_numbers<[1], [0], [0], [1], [0, 0, 1, 1], [], []>} : vector<8x32xf32>, vector<32x32xf32>, vector<8x32xf32> -> vector<8x32xf32>
    %150 = arith.addf %149, %4 : vector<8x32xf32>
    %151 = math.tanh %150 : vector<8x32xf32>
    %cst_59 = arith.constant dense<0.000000e+00> : vector<8x32xf32>
    %152 = tpu.matmul %151, %1, %cst_59 {dimension_numbers = #tpu.dot_dimension_numbers<[1], [0], [0], [1], [0, 0, 1, 1], [], []>} : vector<8x32xf32>, vector<32x32xf32>, vector<8x32xf32> -> vector<8x32xf32>
    %153 = arith.addf %152, %7 : vector<8x32xf32>
    %cst_60 = arith.constant 0.316252798 : f32
    %154 = vector.broadcast %cst_60 : f32 to vector<8x32xf32>
    %155 = arith.mulf %154, %103 : vector<8x32xf32>
    %cst_61 = arith.constant -1.19528615 : f32
    %156 = vector.broadcast %cst_61 : f32 to vector<8x32xf32>
    %157 = arith.mulf %156, %111 : vector<8x32xf32>
    %158 = arith.addf %155, %157 : vector<8x32xf32>
    %cst_62 = arith.constant 0.989602506 : f32
    %159 = vector.broadcast %cst_62 : f32 to vector<8x32xf32>
    %160 = arith.mulf %159, %122 : vector<8x32xf32>
    %161 = arith.addf %158, %160 : vector<8x32xf32>
    %cst_63 = arith.constant 0.0309343431 : f32
    %162 = vector.broadcast %cst_63 : f32 to vector<8x32xf32>
    %163 = arith.mulf %162, %136 : vector<8x32xf32>
    %164 = arith.addf %161, %163 : vector<8x32xf32>
    %cst_64 = arith.constant -0.0303923674 : f32
    %165 = vector.broadcast %cst_64 : f32 to vector<8x32xf32>
    %166 = arith.mulf %165, %153 : vector<8x32xf32>
    %167 = arith.addf %164, %166 : vector<8x32xf32>
    %168 = arith.addf %98, %167 : vector<8x32xf32>
    %cst_65 = arith.constant dense<0.000000e+00> : vector<8x32xf32>
    %169 = tpu.matmul %168, %0, %cst_65 {dimension_numbers = #tpu.dot_dimension_numbers<[1], [0], [0], [1], [0, 0, 1, 1], [], []>} : vector<8x32xf32>, vector<32x32xf32>, vector<8x32xf32> -> vector<8x32xf32>
    %170 = arith.addf %169, %4 : vector<8x32xf32>
    %171 = math.tanh %170 : vector<8x32xf32>
    %cst_66 = arith.constant dense<0.000000e+00> : vector<8x32xf32>
    %172 = tpu.matmul %171, %1, %cst_66 {dimension_numbers = #tpu.dot_dimension_numbers<[1], [0], [0], [1], [0, 0, 1, 1], [], []>} : vector<8x32xf32>, vector<32x32xf32>, vector<8x32xf32> -> vector<8x32xf32>
    %173 = arith.addf %172, %7 : vector<8x32xf32>
    %cst_67 = arith.constant 0.0101273144 : f32
    %174 = vector.broadcast %cst_67 : f32 to vector<8x32xf32>
    %175 = arith.mulf %174, %103 : vector<8x32xf32>
    %cst_68 = arith.constant 0.0499151461 : f32
    %176 = vector.broadcast %cst_68 : f32 to vector<8x32xf32>
    %177 = arith.mulf %176, %122 : vector<8x32xf32>
    %178 = arith.addf %175, %177 : vector<8x32xf32>
    %cst_69 = arith.constant 0.0723379627 : f32
    %179 = vector.broadcast %cst_69 : f32 to vector<8x32xf32>
    %180 = arith.mulf %179, %136 : vector<8x32xf32>
    %181 = arith.addf %178, %180 : vector<8x32xf32>
    %cst_70 = arith.constant -0.0358195752 : f32
    %182 = vector.broadcast %cst_70 : f32 to vector<8x32xf32>
    %183 = arith.mulf %182, %153 : vector<8x32xf32>
    %184 = arith.addf %181, %183 : vector<8x32xf32>
    %cst_71 = arith.constant 0.0145502649 : f32
    %185 = vector.broadcast %cst_71 : f32 to vector<8x32xf32>
    %186 = arith.mulf %185, %173 : vector<8x32xf32>
    %187 = arith.addf %184, %186 : vector<8x32xf32>
    %188 = arith.addf %98, %187 : vector<8x32xf32>
    %c2_i32 = arith.constant 2 : i32
    %cst_72 = arith.constant dense<0.000000e+00> : vector<8x32xf32>
    %189 = tpu.matmul %188, %0, %cst_72 {dimension_numbers = #tpu.dot_dimension_numbers<[1], [0], [0], [1], [0, 0, 1, 1], [], []>} : vector<8x32xf32>, vector<32x32xf32>, vector<8x32xf32> -> vector<8x32xf32>
    %190 = arith.addf %189, %4 : vector<8x32xf32>
    %191 = math.tanh %190 : vector<8x32xf32>
    %cst_73 = arith.constant dense<0.000000e+00> : vector<8x32xf32>
    %192 = tpu.matmul %191, %1, %cst_73 {dimension_numbers = #tpu.dot_dimension_numbers<[1], [0], [0], [1], [0, 0, 1, 1], [], []>} : vector<8x32xf32>, vector<32x32xf32>, vector<8x32xf32> -> vector<8x32xf32>
    %193 = arith.addf %192, %7 : vector<8x32xf32>
    %cst_74 = arith.constant 0.0222222228 : f32
    %194 = vector.broadcast %cst_74 : f32 to vector<8x32xf32>
    %195 = arith.mulf %194, %193 : vector<8x32xf32>
    %196 = arith.addf %188, %195 : vector<8x32xf32>
    %cst_75 = arith.constant dense<0.000000e+00> : vector<8x32xf32>
    %197 = tpu.matmul %196, %0, %cst_75 {dimension_numbers = #tpu.dot_dimension_numbers<[1], [0], [0], [1], [0, 0, 1, 1], [], []>} : vector<8x32xf32>, vector<32x32xf32>, vector<8x32xf32> -> vector<8x32xf32>
    %198 = arith.addf %197, %4 : vector<8x32xf32>
    %199 = math.tanh %198 : vector<8x32xf32>
    %cst_76 = arith.constant dense<0.000000e+00> : vector<8x32xf32>
    %200 = tpu.matmul %199, %1, %cst_76 {dimension_numbers = #tpu.dot_dimension_numbers<[1], [0], [0], [1], [0, 0, 1, 1], [], []>} : vector<8x32xf32>, vector<32x32xf32>, vector<8x32xf32> -> vector<8x32xf32>
    %201 = arith.addf %200, %7 : vector<8x32xf32>
    %cst_77 = arith.constant 0.00833333377 : f32
    %202 = vector.broadcast %cst_77 : f32 to vector<8x32xf32>
    %203 = arith.mulf %202, %193 : vector<8x32xf32>
    %cst_78 = arith.constant 2.500000e-02 : f32
    %204 = vector.broadcast %cst_78 : f32 to vector<8x32xf32>
    %205 = arith.mulf %204, %201 : vector<8x32xf32>
    %206 = arith.addf %203, %205 : vector<8x32xf32>
    %207 = arith.addf %188, %206 : vector<8x32xf32>
    %cst_79 = arith.constant dense<0.000000e+00> : vector<8x32xf32>
    %208 = tpu.matmul %207, %0, %cst_79 {dimension_numbers = #tpu.dot_dimension_numbers<[1], [0], [0], [1], [0, 0, 1, 1], [], []>} : vector<8x32xf32>, vector<32x32xf32>, vector<8x32xf32> -> vector<8x32xf32>
    %209 = arith.addf %208, %4 : vector<8x32xf32>
    %210 = math.tanh %209 : vector<8x32xf32>
    %cst_80 = arith.constant dense<0.000000e+00> : vector<8x32xf32>
    %211 = tpu.matmul %210, %1, %cst_80 {dimension_numbers = #tpu.dot_dimension_numbers<[1], [0], [0], [1], [0, 0, 1, 1], [], []>} : vector<8x32xf32>, vector<32x32xf32>, vector<8x32xf32> -> vector<8x32xf32>
    %212 = arith.addf %211, %7 : vector<8x32xf32>
    %cst_81 = arith.constant 0.108641975 : f32
    %213 = vector.broadcast %cst_81 : f32 to vector<8x32xf32>
    %214 = arith.mulf %213, %193 : vector<8x32xf32>
    %cst_82 = arith.constant -0.4148148 : f32
    %215 = vector.broadcast %cst_82 : f32 to vector<8x32xf32>
    %216 = arith.mulf %215, %201 : vector<8x32xf32>
    %217 = arith.addf %214, %216 : vector<8x32xf32>
    %cst_83 = arith.constant 0.395061731 : f32
    %218 = vector.broadcast %cst_83 : f32 to vector<8x32xf32>
    %219 = arith.mulf %218, %212 : vector<8x32xf32>
    %220 = arith.addf %217, %219 : vector<8x32xf32>
    %221 = arith.addf %188, %220 : vector<8x32xf32>
    %cst_84 = arith.constant dense<0.000000e+00> : vector<8x32xf32>
    %222 = tpu.matmul %221, %0, %cst_84 {dimension_numbers = #tpu.dot_dimension_numbers<[1], [0], [0], [1], [0, 0, 1, 1], [], []>} : vector<8x32xf32>, vector<32x32xf32>, vector<8x32xf32> -> vector<8x32xf32>
    %223 = arith.addf %222, %4 : vector<8x32xf32>
    %224 = math.tanh %223 : vector<8x32xf32>
    %cst_85 = arith.constant dense<0.000000e+00> : vector<8x32xf32>
    %225 = tpu.matmul %224, %1, %cst_85 {dimension_numbers = #tpu.dot_dimension_numbers<[1], [0], [0], [1], [0, 0, 1, 1], [], []>} : vector<8x32xf32>, vector<32x32xf32>, vector<8x32xf32> -> vector<8x32xf32>
    %226 = arith.addf %225, %7 : vector<8x32xf32>
    %cst_86 = arith.constant 0.328066528 : f32
    %227 = vector.broadcast %cst_86 : f32 to vector<8x32xf32>
    %228 = arith.mulf %227, %193 : vector<8x32xf32>
    %cst_87 = arith.constant -1.28842151 : f32
    %229 = vector.broadcast %cst_87 : f32 to vector<8x32xf32>
    %230 = arith.mulf %229, %201 : vector<8x32xf32>
    %231 = arith.addf %228, %230 : vector<8x32xf32>
    %cst_88 = arith.constant 1.09143257 : f32
    %232 = vector.broadcast %cst_88 : f32 to vector<8x32xf32>
    %233 = arith.mulf %232, %212 : vector<8x32xf32>
    %234 = arith.addf %231, %233 : vector<8x32xf32>
    %cst_89 = arith.constant -0.0323121473 : f32
    %235 = vector.broadcast %cst_89 : f32 to vector<8x32xf32>
    %236 = arith.mulf %235, %226 : vector<8x32xf32>
    %237 = arith.addf %234, %236 : vector<8x32xf32>
    %238 = arith.addf %188, %237 : vector<8x32xf32>
    %cst_90 = arith.constant dense<0.000000e+00> : vector<8x32xf32>
    %239 = tpu.matmul %238, %0, %cst_90 {dimension_numbers = #tpu.dot_dimension_numbers<[1], [0], [0], [1], [0, 0, 1, 1], [], []>} : vector<8x32xf32>, vector<32x32xf32>, vector<8x32xf32> -> vector<8x32xf32>
    %240 = arith.addf %239, %4 : vector<8x32xf32>
    %241 = math.tanh %240 : vector<8x32xf32>
    %cst_91 = arith.constant dense<0.000000e+00> : vector<8x32xf32>
    %242 = tpu.matmul %241, %1, %cst_91 {dimension_numbers = #tpu.dot_dimension_numbers<[1], [0], [0], [1], [0, 0, 1, 1], [], []>} : vector<8x32xf32>, vector<32x32xf32>, vector<8x32xf32> -> vector<8x32xf32>
    %243 = arith.addf %242, %7 : vector<8x32xf32>
    %cst_92 = arith.constant 0.316252798 : f32
    %244 = vector.broadcast %cst_92 : f32 to vector<8x32xf32>
    %245 = arith.mulf %244, %193 : vector<8x32xf32>
    %cst_93 = arith.constant -1.19528615 : f32
    %246 = vector.broadcast %cst_93 : f32 to vector<8x32xf32>
    %247 = arith.mulf %246, %201 : vector<8x32xf32>
    %248 = arith.addf %245, %247 : vector<8x32xf32>
    %cst_94 = arith.constant 0.989602506 : f32
    %249 = vector.broadcast %cst_94 : f32 to vector<8x32xf32>
    %250 = arith.mulf %249, %212 : vector<8x32xf32>
    %251 = arith.addf %248, %250 : vector<8x32xf32>
    %cst_95 = arith.constant 0.0309343431 : f32
    %252 = vector.broadcast %cst_95 : f32 to vector<8x32xf32>
    %253 = arith.mulf %252, %226 : vector<8x32xf32>
    %254 = arith.addf %251, %253 : vector<8x32xf32>
    %cst_96 = arith.constant -0.0303923674 : f32
    %255 = vector.broadcast %cst_96 : f32 to vector<8x32xf32>
    %256 = arith.mulf %255, %243 : vector<8x32xf32>
    %257 = arith.addf %254, %256 : vector<8x32xf32>
    %258 = arith.addf %188, %257 : vector<8x32xf32>
    %cst_97 = arith.constant dense<0.000000e+00> : vector<8x32xf32>
    %259 = tpu.matmul %258, %0, %cst_97 {dimension_numbers = #tpu.dot_dimension_numbers<[1], [0], [0], [1], [0, 0, 1, 1], [], []>} : vector<8x32xf32>, vector<32x32xf32>, vector<8x32xf32> -> vector<8x32xf32>
    %260 = arith.addf %259, %4 : vector<8x32xf32>
    %261 = math.tanh %260 : vector<8x32xf32>
    %cst_98 = arith.constant dense<0.000000e+00> : vector<8x32xf32>
    %262 = tpu.matmul %261, %1, %cst_98 {dimension_numbers = #tpu.dot_dimension_numbers<[1], [0], [0], [1], [0, 0, 1, 1], [], []>} : vector<8x32xf32>, vector<32x32xf32>, vector<8x32xf32> -> vector<8x32xf32>
    %263 = arith.addf %262, %7 : vector<8x32xf32>
    %cst_99 = arith.constant 0.0101273144 : f32
    %264 = vector.broadcast %cst_99 : f32 to vector<8x32xf32>
    %265 = arith.mulf %264, %193 : vector<8x32xf32>
    %cst_100 = arith.constant 0.0499151461 : f32
    %266 = vector.broadcast %cst_100 : f32 to vector<8x32xf32>
    %267 = arith.mulf %266, %212 : vector<8x32xf32>
    %268 = arith.addf %265, %267 : vector<8x32xf32>
    %cst_101 = arith.constant 0.0723379627 : f32
    %269 = vector.broadcast %cst_101 : f32 to vector<8x32xf32>
    %270 = arith.mulf %269, %226 : vector<8x32xf32>
    %271 = arith.addf %268, %270 : vector<8x32xf32>
    %cst_102 = arith.constant -0.0358195752 : f32
    %272 = vector.broadcast %cst_102 : f32 to vector<8x32xf32>
    %273 = arith.mulf %272, %243 : vector<8x32xf32>
    %274 = arith.addf %271, %273 : vector<8x32xf32>
    %cst_103 = arith.constant 0.0145502649 : f32
    %275 = vector.broadcast %cst_103 : f32 to vector<8x32xf32>
    %276 = arith.mulf %275, %263 : vector<8x32xf32>
    %277 = arith.addf %274, %276 : vector<8x32xf32>
    %278 = arith.addf %188, %277 : vector<8x32xf32>
    %c3_i32 = arith.constant 3 : i32
    %cst_104 = arith.constant dense<0.000000e+00> : vector<8x32xf32>
    %279 = tpu.matmul %278, %0, %cst_104 {dimension_numbers = #tpu.dot_dimension_numbers<[1], [0], [0], [1], [0, 0, 1, 1], [], []>} : vector<8x32xf32>, vector<32x32xf32>, vector<8x32xf32> -> vector<8x32xf32>
    %280 = arith.addf %279, %4 : vector<8x32xf32>
    %281 = math.tanh %280 : vector<8x32xf32>
    %cst_105 = arith.constant dense<0.000000e+00> : vector<8x32xf32>
    %282 = tpu.matmul %281, %1, %cst_105 {dimension_numbers = #tpu.dot_dimension_numbers<[1], [0], [0], [1], [0, 0, 1, 1], [], []>} : vector<8x32xf32>, vector<32x32xf32>, vector<8x32xf32> -> vector<8x32xf32>
    %283 = arith.addf %282, %7 : vector<8x32xf32>
    %cst_106 = arith.constant 0.0222222228 : f32
    %284 = vector.broadcast %cst_106 : f32 to vector<8x32xf32>
    %285 = arith.mulf %284, %283 : vector<8x32xf32>
    %286 = arith.addf %278, %285 : vector<8x32xf32>
    %cst_107 = arith.constant dense<0.000000e+00> : vector<8x32xf32>
    %287 = tpu.matmul %286, %0, %cst_107 {dimension_numbers = #tpu.dot_dimension_numbers<[1], [0], [0], [1], [0, 0, 1, 1], [], []>} : vector<8x32xf32>, vector<32x32xf32>, vector<8x32xf32> -> vector<8x32xf32>
    %288 = arith.addf %287, %4 : vector<8x32xf32>
    %289 = math.tanh %288 : vector<8x32xf32>
    %cst_108 = arith.constant dense<0.000000e+00> : vector<8x32xf32>
    %290 = tpu.matmul %289, %1, %cst_108 {dimension_numbers = #tpu.dot_dimension_numbers<[1], [0], [0], [1], [0, 0, 1, 1], [], []>} : vector<8x32xf32>, vector<32x32xf32>, vector<8x32xf32> -> vector<8x32xf32>
    %291 = arith.addf %290, %7 : vector<8x32xf32>
    %cst_109 = arith.constant 0.00833333377 : f32
    %292 = vector.broadcast %cst_109 : f32 to vector<8x32xf32>
    %293 = arith.mulf %292, %283 : vector<8x32xf32>
    %cst_110 = arith.constant 2.500000e-02 : f32
    %294 = vector.broadcast %cst_110 : f32 to vector<8x32xf32>
    %295 = arith.mulf %294, %291 : vector<8x32xf32>
    %296 = arith.addf %293, %295 : vector<8x32xf32>
    %297 = arith.addf %278, %296 : vector<8x32xf32>
    %cst_111 = arith.constant dense<0.000000e+00> : vector<8x32xf32>
    %298 = tpu.matmul %297, %0, %cst_111 {dimension_numbers = #tpu.dot_dimension_numbers<[1], [0], [0], [1], [0, 0, 1, 1], [], []>} : vector<8x32xf32>, vector<32x32xf32>, vector<8x32xf32> -> vector<8x32xf32>
    %299 = arith.addf %298, %4 : vector<8x32xf32>
    %300 = math.tanh %299 : vector<8x32xf32>
    %cst_112 = arith.constant dense<0.000000e+00> : vector<8x32xf32>
    %301 = tpu.matmul %300, %1, %cst_112 {dimension_numbers = #tpu.dot_dimension_numbers<[1], [0], [0], [1], [0, 0, 1, 1], [], []>} : vector<8x32xf32>, vector<32x32xf32>, vector<8x32xf32> -> vector<8x32xf32>
    %302 = arith.addf %301, %7 : vector<8x32xf32>
    %cst_113 = arith.constant 0.108641975 : f32
    %303 = vector.broadcast %cst_113 : f32 to vector<8x32xf32>
    %304 = arith.mulf %303, %283 : vector<8x32xf32>
    %cst_114 = arith.constant -0.4148148 : f32
    %305 = vector.broadcast %cst_114 : f32 to vector<8x32xf32>
    %306 = arith.mulf %305, %291 : vector<8x32xf32>
    %307 = arith.addf %304, %306 : vector<8x32xf32>
    %cst_115 = arith.constant 0.395061731 : f32
    %308 = vector.broadcast %cst_115 : f32 to vector<8x32xf32>
    %309 = arith.mulf %308, %302 : vector<8x32xf32>
    %310 = arith.addf %307, %309 : vector<8x32xf32>
    %311 = arith.addf %278, %310 : vector<8x32xf32>
    %cst_116 = arith.constant dense<0.000000e+00> : vector<8x32xf32>
    %312 = tpu.matmul %311, %0, %cst_116 {dimension_numbers = #tpu.dot_dimension_numbers<[1], [0], [0], [1], [0, 0, 1, 1], [], []>} : vector<8x32xf32>, vector<32x32xf32>, vector<8x32xf32> -> vector<8x32xf32>
    %313 = arith.addf %312, %4 : vector<8x32xf32>
    %314 = math.tanh %313 : vector<8x32xf32>
    %cst_117 = arith.constant dense<0.000000e+00> : vector<8x32xf32>
    %315 = tpu.matmul %314, %1, %cst_117 {dimension_numbers = #tpu.dot_dimension_numbers<[1], [0], [0], [1], [0, 0, 1, 1], [], []>} : vector<8x32xf32>, vector<32x32xf32>, vector<8x32xf32> -> vector<8x32xf32>
    %316 = arith.addf %315, %7 : vector<8x32xf32>
    %cst_118 = arith.constant 0.328066528 : f32
    %317 = vector.broadcast %cst_118 : f32 to vector<8x32xf32>
    %318 = arith.mulf %317, %283 : vector<8x32xf32>
    %cst_119 = arith.constant -1.28842151 : f32
    %319 = vector.broadcast %cst_119 : f32 to vector<8x32xf32>
    %320 = arith.mulf %319, %291 : vector<8x32xf32>
    %321 = arith.addf %318, %320 : vector<8x32xf32>
    %cst_120 = arith.constant 1.09143257 : f32
    %322 = vector.broadcast %cst_120 : f32 to vector<8x32xf32>
    %323 = arith.mulf %322, %302 : vector<8x32xf32>
    %324 = arith.addf %321, %323 : vector<8x32xf32>
    %cst_121 = arith.constant -0.0323121473 : f32
    %325 = vector.broadcast %cst_121 : f32 to vector<8x32xf32>
    %326 = arith.mulf %325, %316 : vector<8x32xf32>
    %327 = arith.addf %324, %326 : vector<8x32xf32>
    %328 = arith.addf %278, %327 : vector<8x32xf32>
    %cst_122 = arith.constant dense<0.000000e+00> : vector<8x32xf32>
    %329 = tpu.matmul %328, %0, %cst_122 {dimension_numbers = #tpu.dot_dimension_numbers<[1], [0], [0], [1], [0, 0, 1, 1], [], []>} : vector<8x32xf32>, vector<32x32xf32>, vector<8x32xf32> -> vector<8x32xf32>
    %330 = arith.addf %329, %4 : vector<8x32xf32>
    %331 = math.tanh %330 : vector<8x32xf32>
    %cst_123 = arith.constant dense<0.000000e+00> : vector<8x32xf32>
    %332 = tpu.matmul %331, %1, %cst_123 {dimension_numbers = #tpu.dot_dimension_numbers<[1], [0], [0], [1], [0, 0, 1, 1], [], []>} : vector<8x32xf32>, vector<32x32xf32>, vector<8x32xf32> -> vector<8x32xf32>
    %333 = arith.addf %332, %7 : vector<8x32xf32>
    %cst_124 = arith.constant 0.316252798 : f32
    %334 = vector.broadcast %cst_124 : f32 to vector<8x32xf32>
    %335 = arith.mulf %334, %283 : vector<8x32xf32>
    %cst_125 = arith.constant -1.19528615 : f32
    %336 = vector.broadcast %cst_125 : f32 to vector<8x32xf32>
    %337 = arith.mulf %336, %291 : vector<8x32xf32>
    %338 = arith.addf %335, %337 : vector<8x32xf32>
    %cst_126 = arith.constant 0.989602506 : f32
    %339 = vector.broadcast %cst_126 : f32 to vector<8x32xf32>
    %340 = arith.mulf %339, %302 : vector<8x32xf32>
    %341 = arith.addf %338, %340 : vector<8x32xf32>
    %cst_127 = arith.constant 0.0309343431 : f32
    %342 = vector.broadcast %cst_127 : f32 to vector<8x32xf32>
    %343 = arith.mulf %342, %316 : vector<8x32xf32>
    %344 = arith.addf %341, %343 : vector<8x32xf32>
    %cst_128 = arith.constant -0.0303923674 : f32
    %345 = vector.broadcast %cst_128 : f32 to vector<8x32xf32>
    %346 = arith.mulf %345, %333 : vector<8x32xf32>
    %347 = arith.addf %344, %346 : vector<8x32xf32>
    %348 = arith.addf %278, %347 : vector<8x32xf32>
    %cst_129 = arith.constant dense<0.000000e+00> : vector<8x32xf32>
    %349 = tpu.matmul %348, %0, %cst_129 {dimension_numbers = #tpu.dot_dimension_numbers<[1], [0], [0], [1], [0, 0, 1, 1], [], []>} : vector<8x32xf32>, vector<32x32xf32>, vector<8x32xf32> -> vector<8x32xf32>
    %350 = arith.addf %349, %4 : vector<8x32xf32>
    %351 = math.tanh %350 : vector<8x32xf32>
    %cst_130 = arith.constant dense<0.000000e+00> : vector<8x32xf32>
    %352 = tpu.matmul %351, %1, %cst_130 {dimension_numbers = #tpu.dot_dimension_numbers<[1], [0], [0], [1], [0, 0, 1, 1], [], []>} : vector<8x32xf32>, vector<32x32xf32>, vector<8x32xf32> -> vector<8x32xf32>
    %353 = arith.addf %352, %7 : vector<8x32xf32>
    %cst_131 = arith.constant 0.0101273144 : f32
    %354 = vector.broadcast %cst_131 : f32 to vector<8x32xf32>
    %355 = arith.mulf %354, %283 : vector<8x32xf32>
    %cst_132 = arith.constant 0.0499151461 : f32
    %356 = vector.broadcast %cst_132 : f32 to vector<8x32xf32>
    %357 = arith.mulf %356, %302 : vector<8x32xf32>
    %358 = arith.addf %355, %357 : vector<8x32xf32>
    %cst_133 = arith.constant 0.0723379627 : f32
    %359 = vector.broadcast %cst_133 : f32 to vector<8x32xf32>
    %360 = arith.mulf %359, %316 : vector<8x32xf32>
    %361 = arith.addf %358, %360 : vector<8x32xf32>
    %cst_134 = arith.constant -0.0358195752 : f32
    %362 = vector.broadcast %cst_134 : f32 to vector<8x32xf32>
    %363 = arith.mulf %362, %333 : vector<8x32xf32>
    %364 = arith.addf %361, %363 : vector<8x32xf32>
    %cst_135 = arith.constant 0.0145502649 : f32
    %365 = vector.broadcast %cst_135 : f32 to vector<8x32xf32>
    %366 = arith.mulf %365, %353 : vector<8x32xf32>
    %367 = arith.addf %364, %366 : vector<8x32xf32>
    %368 = arith.addf %278, %367 : vector<8x32xf32>
    %c4_i32 = arith.constant 4 : i32
    %cst_136 = arith.constant dense<0.000000e+00> : vector<8x32xf32>
    %369 = tpu.matmul %368, %0, %cst_136 {dimension_numbers = #tpu.dot_dimension_numbers<[1], [0], [0], [1], [0, 0, 1, 1], [], []>} : vector<8x32xf32>, vector<32x32xf32>, vector<8x32xf32> -> vector<8x32xf32>
    %370 = arith.addf %369, %4 : vector<8x32xf32>
    %371 = math.tanh %370 : vector<8x32xf32>
    %cst_137 = arith.constant dense<0.000000e+00> : vector<8x32xf32>
    %372 = tpu.matmul %371, %1, %cst_137 {dimension_numbers = #tpu.dot_dimension_numbers<[1], [0], [0], [1], [0, 0, 1, 1], [], []>} : vector<8x32xf32>, vector<32x32xf32>, vector<8x32xf32> -> vector<8x32xf32>
    %373 = arith.addf %372, %7 : vector<8x32xf32>
    %cst_138 = arith.constant 0.0222222228 : f32
    %374 = vector.broadcast %cst_138 : f32 to vector<8x32xf32>
    %375 = arith.mulf %374, %373 : vector<8x32xf32>
    %376 = arith.addf %368, %375 : vector<8x32xf32>
    %cst_139 = arith.constant dense<0.000000e+00> : vector<8x32xf32>
    %377 = tpu.matmul %376, %0, %cst_139 {dimension_numbers = #tpu.dot_dimension_numbers<[1], [0], [0], [1], [0, 0, 1, 1], [], []>} : vector<8x32xf32>, vector<32x32xf32>, vector<8x32xf32> -> vector<8x32xf32>
    %378 = arith.addf %377, %4 : vector<8x32xf32>
    %379 = math.tanh %378 : vector<8x32xf32>
    %cst_140 = arith.constant dense<0.000000e+00> : vector<8x32xf32>
    %380 = tpu.matmul %379, %1, %cst_140 {dimension_numbers = #tpu.dot_dimension_numbers<[1], [0], [0], [1], [0, 0, 1, 1], [], []>} : vector<8x32xf32>, vector<32x32xf32>, vector<8x32xf32> -> vector<8x32xf32>
    %381 = arith.addf %380, %7 : vector<8x32xf32>
    %cst_141 = arith.constant 0.00833333377 : f32
    %382 = vector.broadcast %cst_141 : f32 to vector<8x32xf32>
    %383 = arith.mulf %382, %373 : vector<8x32xf32>
    %cst_142 = arith.constant 2.500000e-02 : f32
    %384 = vector.broadcast %cst_142 : f32 to vector<8x32xf32>
    %385 = arith.mulf %384, %381 : vector<8x32xf32>
    %386 = arith.addf %383, %385 : vector<8x32xf32>
    %387 = arith.addf %368, %386 : vector<8x32xf32>
    %cst_143 = arith.constant dense<0.000000e+00> : vector<8x32xf32>
    %388 = tpu.matmul %387, %0, %cst_143 {dimension_numbers = #tpu.dot_dimension_numbers<[1], [0], [0], [1], [0, 0, 1, 1], [], []>} : vector<8x32xf32>, vector<32x32xf32>, vector<8x32xf32> -> vector<8x32xf32>
    %389 = arith.addf %388, %4 : vector<8x32xf32>
    %390 = math.tanh %389 : vector<8x32xf32>
    %cst_144 = arith.constant dense<0.000000e+00> : vector<8x32xf32>
    %391 = tpu.matmul %390, %1, %cst_144 {dimension_numbers = #tpu.dot_dimension_numbers<[1], [0], [0], [1], [0, 0, 1, 1], [], []>} : vector<8x32xf32>, vector<32x32xf32>, vector<8x32xf32> -> vector<8x32xf32>
    %392 = arith.addf %391, %7 : vector<8x32xf32>
    %cst_145 = arith.constant 0.108641975 : f32
    %393 = vector.broadcast %cst_145 : f32 to vector<8x32xf32>
    %394 = arith.mulf %393, %373 : vector<8x32xf32>
    %cst_146 = arith.constant -0.4148148 : f32
    %395 = vector.broadcast %cst_146 : f32 to vector<8x32xf32>
    %396 = arith.mulf %395, %381 : vector<8x32xf32>
    %397 = arith.addf %394, %396 : vector<8x32xf32>
    %cst_147 = arith.constant 0.395061731 : f32
    %398 = vector.broadcast %cst_147 : f32 to vector<8x32xf32>
    %399 = arith.mulf %398, %392 : vector<8x32xf32>
    %400 = arith.addf %397, %399 : vector<8x32xf32>
    %401 = arith.addf %368, %400 : vector<8x32xf32>
    %cst_148 = arith.constant dense<0.000000e+00> : vector<8x32xf32>
    %402 = tpu.matmul %401, %0, %cst_148 {dimension_numbers = #tpu.dot_dimension_numbers<[1], [0], [0], [1], [0, 0, 1, 1], [], []>} : vector<8x32xf32>, vector<32x32xf32>, vector<8x32xf32> -> vector<8x32xf32>
    %403 = arith.addf %402, %4 : vector<8x32xf32>
    %404 = math.tanh %403 : vector<8x32xf32>
    %cst_149 = arith.constant dense<0.000000e+00> : vector<8x32xf32>
    %405 = tpu.matmul %404, %1, %cst_149 {dimension_numbers = #tpu.dot_dimension_numbers<[1], [0], [0], [1], [0, 0, 1, 1], [], []>} : vector<8x32xf32>, vector<32x32xf32>, vector<8x32xf32> -> vector<8x32xf32>
    %406 = arith.addf %405, %7 : vector<8x32xf32>
    %cst_150 = arith.constant 0.328066528 : f32
    %407 = vector.broadcast %cst_150 : f32 to vector<8x32xf32>
    %408 = arith.mulf %407, %373 : vector<8x32xf32>
    %cst_151 = arith.constant -1.28842151 : f32
    %409 = vector.broadcast %cst_151 : f32 to vector<8x32xf32>
    %410 = arith.mulf %409, %381 : vector<8x32xf32>
    %411 = arith.addf %408, %410 : vector<8x32xf32>
    %cst_152 = arith.constant 1.09143257 : f32
    %412 = vector.broadcast %cst_152 : f32 to vector<8x32xf32>
    %413 = arith.mulf %412, %392 : vector<8x32xf32>
    %414 = arith.addf %411, %413 : vector<8x32xf32>
    %cst_153 = arith.constant -0.0323121473 : f32
    %415 = vector.broadcast %cst_153 : f32 to vector<8x32xf32>
    %416 = arith.mulf %415, %406 : vector<8x32xf32>
    %417 = arith.addf %414, %416 : vector<8x32xf32>
    %418 = arith.addf %368, %417 : vector<8x32xf32>
    %cst_154 = arith.constant dense<0.000000e+00> : vector<8x32xf32>
    %419 = tpu.matmul %418, %0, %cst_154 {dimension_numbers = #tpu.dot_dimension_numbers<[1], [0], [0], [1], [0, 0, 1, 1], [], []>} : vector<8x32xf32>, vector<32x32xf32>, vector<8x32xf32> -> vector<8x32xf32>
    %420 = arith.addf %419, %4 : vector<8x32xf32>
    %421 = math.tanh %420 : vector<8x32xf32>
    %cst_155 = arith.constant dense<0.000000e+00> : vector<8x32xf32>
    %422 = tpu.matmul %421, %1, %cst_155 {dimension_numbers = #tpu.dot_dimension_numbers<[1], [0], [0], [1], [0, 0, 1, 1], [], []>} : vector<8x32xf32>, vector<32x32xf32>, vector<8x32xf32> -> vector<8x32xf32>
    %423 = arith.addf %422, %7 : vector<8x32xf32>
    %cst_156 = arith.constant 0.316252798 : f32
    %424 = vector.broadcast %cst_156 : f32 to vector<8x32xf32>
    %425 = arith.mulf %424, %373 : vector<8x32xf32>
    %cst_157 = arith.constant -1.19528615 : f32
    %426 = vector.broadcast %cst_157 : f32 to vector<8x32xf32>
    %427 = arith.mulf %426, %381 : vector<8x32xf32>
    %428 = arith.addf %425, %427 : vector<8x32xf32>
    %cst_158 = arith.constant 0.989602506 : f32
    %429 = vector.broadcast %cst_158 : f32 to vector<8x32xf32>
    %430 = arith.mulf %429, %392 : vector<8x32xf32>
    %431 = arith.addf %428, %430 : vector<8x32xf32>
    %cst_159 = arith.constant 0.0309343431 : f32
    %432 = vector.broadcast %cst_159 : f32 to vector<8x32xf32>
    %433 = arith.mulf %432, %406 : vector<8x32xf32>
    %434 = arith.addf %431, %433 : vector<8x32xf32>
    %cst_160 = arith.constant -0.0303923674 : f32
    %435 = vector.broadcast %cst_160 : f32 to vector<8x32xf32>
    %436 = arith.mulf %435, %423 : vector<8x32xf32>
    %437 = arith.addf %434, %436 : vector<8x32xf32>
    %438 = arith.addf %368, %437 : vector<8x32xf32>
    %cst_161 = arith.constant dense<0.000000e+00> : vector<8x32xf32>
    %439 = tpu.matmul %438, %0, %cst_161 {dimension_numbers = #tpu.dot_dimension_numbers<[1], [0], [0], [1], [0, 0, 1, 1], [], []>} : vector<8x32xf32>, vector<32x32xf32>, vector<8x32xf32> -> vector<8x32xf32>
    %440 = arith.addf %439, %4 : vector<8x32xf32>
    %441 = math.tanh %440 : vector<8x32xf32>
    %cst_162 = arith.constant dense<0.000000e+00> : vector<8x32xf32>
    %442 = tpu.matmul %441, %1, %cst_162 {dimension_numbers = #tpu.dot_dimension_numbers<[1], [0], [0], [1], [0, 0, 1, 1], [], []>} : vector<8x32xf32>, vector<32x32xf32>, vector<8x32xf32> -> vector<8x32xf32>
    %443 = arith.addf %442, %7 : vector<8x32xf32>
    %cst_163 = arith.constant 0.0101273144 : f32
    %444 = vector.broadcast %cst_163 : f32 to vector<8x32xf32>
    %445 = arith.mulf %444, %373 : vector<8x32xf32>
    %cst_164 = arith.constant 0.0499151461 : f32
    %446 = vector.broadcast %cst_164 : f32 to vector<8x32xf32>
    %447 = arith.mulf %446, %392 : vector<8x32xf32>
    %448 = arith.addf %445, %447 : vector<8x32xf32>
    %cst_165 = arith.constant 0.0723379627 : f32
    %449 = vector.broadcast %cst_165 : f32 to vector<8x32xf32>
    %450 = arith.mulf %449, %406 : vector<8x32xf32>
    %451 = arith.addf %448, %450 : vector<8x32xf32>
    %cst_166 = arith.constant -0.0358195752 : f32
    %452 = vector.broadcast %cst_166 : f32 to vector<8x32xf32>
    %453 = arith.mulf %452, %423 : vector<8x32xf32>
    %454 = arith.addf %451, %453 : vector<8x32xf32>
    %cst_167 = arith.constant 0.0145502649 : f32
    %455 = vector.broadcast %cst_167 : f32 to vector<8x32xf32>
    %456 = arith.mulf %455, %443 : vector<8x32xf32>
    %457 = arith.addf %454, %456 : vector<8x32xf32>
    %458 = arith.addf %368, %457 : vector<8x32xf32>
    %c5_i32 = arith.constant 5 : i32
    %cst_168 = arith.constant dense<0.000000e+00> : vector<8x32xf32>
    %459 = tpu.matmul %458, %0, %cst_168 {dimension_numbers = #tpu.dot_dimension_numbers<[1], [0], [0], [1], [0, 0, 1, 1], [], []>} : vector<8x32xf32>, vector<32x32xf32>, vector<8x32xf32> -> vector<8x32xf32>
    %460 = arith.addf %459, %4 : vector<8x32xf32>
    %461 = math.tanh %460 : vector<8x32xf32>
    %cst_169 = arith.constant dense<0.000000e+00> : vector<8x32xf32>
    %462 = tpu.matmul %461, %1, %cst_169 {dimension_numbers = #tpu.dot_dimension_numbers<[1], [0], [0], [1], [0, 0, 1, 1], [], []>} : vector<8x32xf32>, vector<32x32xf32>, vector<8x32xf32> -> vector<8x32xf32>
    %463 = arith.addf %462, %7 : vector<8x32xf32>
    %cst_170 = arith.constant 0.0222222228 : f32
    %464 = vector.broadcast %cst_170 : f32 to vector<8x32xf32>
    %465 = arith.mulf %464, %463 : vector<8x32xf32>
    %466 = arith.addf %458, %465 : vector<8x32xf32>
    %cst_171 = arith.constant dense<0.000000e+00> : vector<8x32xf32>
    %467 = tpu.matmul %466, %0, %cst_171 {dimension_numbers = #tpu.dot_dimension_numbers<[1], [0], [0], [1], [0, 0, 1, 1], [], []>} : vector<8x32xf32>, vector<32x32xf32>, vector<8x32xf32> -> vector<8x32xf32>
    %468 = arith.addf %467, %4 : vector<8x32xf32>
    %469 = math.tanh %468 : vector<8x32xf32>
    %cst_172 = arith.constant dense<0.000000e+00> : vector<8x32xf32>
    %470 = tpu.matmul %469, %1, %cst_172 {dimension_numbers = #tpu.dot_dimension_numbers<[1], [0], [0], [1], [0, 0, 1, 1], [], []>} : vector<8x32xf32>, vector<32x32xf32>, vector<8x32xf32> -> vector<8x32xf32>
    %471 = arith.addf %470, %7 : vector<8x32xf32>
    %cst_173 = arith.constant 0.00833333377 : f32
    %472 = vector.broadcast %cst_173 : f32 to vector<8x32xf32>
    %473 = arith.mulf %472, %463 : vector<8x32xf32>
    %cst_174 = arith.constant 2.500000e-02 : f32
    %474 = vector.broadcast %cst_174 : f32 to vector<8x32xf32>
    %475 = arith.mulf %474, %471 : vector<8x32xf32>
    %476 = arith.addf %473, %475 : vector<8x32xf32>
    %477 = arith.addf %458, %476 : vector<8x32xf32>
    %cst_175 = arith.constant dense<0.000000e+00> : vector<8x32xf32>
    %478 = tpu.matmul %477, %0, %cst_175 {dimension_numbers = #tpu.dot_dimension_numbers<[1], [0], [0], [1], [0, 0, 1, 1], [], []>} : vector<8x32xf32>, vector<32x32xf32>, vector<8x32xf32> -> vector<8x32xf32>
    %479 = arith.addf %478, %4 : vector<8x32xf32>
    %480 = math.tanh %479 : vector<8x32xf32>
    %cst_176 = arith.constant dense<0.000000e+00> : vector<8x32xf32>
    %481 = tpu.matmul %480, %1, %cst_176 {dimension_numbers = #tpu.dot_dimension_numbers<[1], [0], [0], [1], [0, 0, 1, 1], [], []>} : vector<8x32xf32>, vector<32x32xf32>, vector<8x32xf32> -> vector<8x32xf32>
    %482 = arith.addf %481, %7 : vector<8x32xf32>
    %cst_177 = arith.constant 0.108641975 : f32
    %483 = vector.broadcast %cst_177 : f32 to vector<8x32xf32>
    %484 = arith.mulf %483, %463 : vector<8x32xf32>
    %cst_178 = arith.constant -0.4148148 : f32
    %485 = vector.broadcast %cst_178 : f32 to vector<8x32xf32>
    %486 = arith.mulf %485, %471 : vector<8x32xf32>
    %487 = arith.addf %484, %486 : vector<8x32xf32>
    %cst_179 = arith.constant 0.395061731 : f32
    %488 = vector.broadcast %cst_179 : f32 to vector<8x32xf32>
    %489 = arith.mulf %488, %482 : vector<8x32xf32>
    %490 = arith.addf %487, %489 : vector<8x32xf32>
    %491 = arith.addf %458, %490 : vector<8x32xf32>
    %cst_180 = arith.constant dense<0.000000e+00> : vector<8x32xf32>
    %492 = tpu.matmul %491, %0, %cst_180 {dimension_numbers = #tpu.dot_dimension_numbers<[1], [0], [0], [1], [0, 0, 1, 1], [], []>} : vector<8x32xf32>, vector<32x32xf32>, vector<8x32xf32> -> vector<8x32xf32>
    %493 = arith.addf %492, %4 : vector<8x32xf32>
    %494 = math.tanh %493 : vector<8x32xf32>
    %cst_181 = arith.constant dense<0.000000e+00> : vector<8x32xf32>
    %495 = tpu.matmul %494, %1, %cst_181 {dimension_numbers = #tpu.dot_dimension_numbers<[1], [0], [0], [1], [0, 0, 1, 1], [], []>} : vector<8x32xf32>, vector<32x32xf32>, vector<8x32xf32> -> vector<8x32xf32>
    %496 = arith.addf %495, %7 : vector<8x32xf32>
    %cst_182 = arith.constant 0.328066528 : f32
    %497 = vector.broadcast %cst_182 : f32 to vector<8x32xf32>
    %498 = arith.mulf %497, %463 : vector<8x32xf32>
    %cst_183 = arith.constant -1.28842151 : f32
    %499 = vector.broadcast %cst_183 : f32 to vector<8x32xf32>
    %500 = arith.mulf %499, %471 : vector<8x32xf32>
    %501 = arith.addf %498, %500 : vector<8x32xf32>
    %cst_184 = arith.constant 1.09143257 : f32
    %502 = vector.broadcast %cst_184 : f32 to vector<8x32xf32>
    %503 = arith.mulf %502, %482 : vector<8x32xf32>
    %504 = arith.addf %501, %503 : vector<8x32xf32>
    %cst_185 = arith.constant -0.0323121473 : f32
    %505 = vector.broadcast %cst_185 : f32 to vector<8x32xf32>
    %506 = arith.mulf %505, %496 : vector<8x32xf32>
    %507 = arith.addf %504, %506 : vector<8x32xf32>
    %508 = arith.addf %458, %507 : vector<8x32xf32>
    %cst_186 = arith.constant dense<0.000000e+00> : vector<8x32xf32>
    %509 = tpu.matmul %508, %0, %cst_186 {dimension_numbers = #tpu.dot_dimension_numbers<[1], [0], [0], [1], [0, 0, 1, 1], [], []>} : vector<8x32xf32>, vector<32x32xf32>, vector<8x32xf32> -> vector<8x32xf32>
    %510 = arith.addf %509, %4 : vector<8x32xf32>
    %511 = math.tanh %510 : vector<8x32xf32>
    %cst_187 = arith.constant dense<0.000000e+00> : vector<8x32xf32>
    %512 = tpu.matmul %511, %1, %cst_187 {dimension_numbers = #tpu.dot_dimension_numbers<[1], [0], [0], [1], [0, 0, 1, 1], [], []>} : vector<8x32xf32>, vector<32x32xf32>, vector<8x32xf32> -> vector<8x32xf32>
    %513 = arith.addf %512, %7 : vector<8x32xf32>
    %cst_188 = arith.constant 0.316252798 : f32
    %514 = vector.broadcast %cst_188 : f32 to vector<8x32xf32>
    %515 = arith.mulf %514, %463 : vector<8x32xf32>
    %cst_189 = arith.constant -1.19528615 : f32
    %516 = vector.broadcast %cst_189 : f32 to vector<8x32xf32>
    %517 = arith.mulf %516, %471 : vector<8x32xf32>
    %518 = arith.addf %515, %517 : vector<8x32xf32>
    %cst_190 = arith.constant 0.989602506 : f32
    %519 = vector.broadcast %cst_190 : f32 to vector<8x32xf32>
    %520 = arith.mulf %519, %482 : vector<8x32xf32>
    %521 = arith.addf %518, %520 : vector<8x32xf32>
    %cst_191 = arith.constant 0.0309343431 : f32
    %522 = vector.broadcast %cst_191 : f32 to vector<8x32xf32>
    %523 = arith.mulf %522, %496 : vector<8x32xf32>
    %524 = arith.addf %521, %523 : vector<8x32xf32>
    %cst_192 = arith.constant -0.0303923674 : f32
    %525 = vector.broadcast %cst_192 : f32 to vector<8x32xf32>
    %526 = arith.mulf %525, %513 : vector<8x32xf32>
    %527 = arith.addf %524, %526 : vector<8x32xf32>
    %528 = arith.addf %458, %527 : vector<8x32xf32>
    %cst_193 = arith.constant dense<0.000000e+00> : vector<8x32xf32>
    %529 = tpu.matmul %528, %0, %cst_193 {dimension_numbers = #tpu.dot_dimension_numbers<[1], [0], [0], [1], [0, 0, 1, 1], [], []>} : vector<8x32xf32>, vector<32x32xf32>, vector<8x32xf32> -> vector<8x32xf32>
    %530 = arith.addf %529, %4 : vector<8x32xf32>
    %531 = math.tanh %530 : vector<8x32xf32>
    %cst_194 = arith.constant dense<0.000000e+00> : vector<8x32xf32>
    %532 = tpu.matmul %531, %1, %cst_194 {dimension_numbers = #tpu.dot_dimension_numbers<[1], [0], [0], [1], [0, 0, 1, 1], [], []>} : vector<8x32xf32>, vector<32x32xf32>, vector<8x32xf32> -> vector<8x32xf32>
    %533 = arith.addf %532, %7 : vector<8x32xf32>
    %cst_195 = arith.constant 0.0101273144 : f32
    %534 = vector.broadcast %cst_195 : f32 to vector<8x32xf32>
    %535 = arith.mulf %534, %463 : vector<8x32xf32>
    %cst_196 = arith.constant 0.0499151461 : f32
    %536 = vector.broadcast %cst_196 : f32 to vector<8x32xf32>
    %537 = arith.mulf %536, %482 : vector<8x32xf32>
    %538 = arith.addf %535, %537 : vector<8x32xf32>
    %cst_197 = arith.constant 0.0723379627 : f32
    %539 = vector.broadcast %cst_197 : f32 to vector<8x32xf32>
    %540 = arith.mulf %539, %496 : vector<8x32xf32>
    %541 = arith.addf %538, %540 : vector<8x32xf32>
    %cst_198 = arith.constant -0.0358195752 : f32
    %542 = vector.broadcast %cst_198 : f32 to vector<8x32xf32>
    %543 = arith.mulf %542, %513 : vector<8x32xf32>
    %544 = arith.addf %541, %543 : vector<8x32xf32>
    %cst_199 = arith.constant 0.0145502649 : f32
    %545 = vector.broadcast %cst_199 : f32 to vector<8x32xf32>
    %546 = arith.mulf %545, %533 : vector<8x32xf32>
    %547 = arith.addf %544, %546 : vector<8x32xf32>
    %548 = arith.addf %458, %547 : vector<8x32xf32>
    %c6_i32 = arith.constant 6 : i32
    %cst_200 = arith.constant dense<0.000000e+00> : vector<8x32xf32>
    %549 = tpu.matmul %548, %0, %cst_200 {dimension_numbers = #tpu.dot_dimension_numbers<[1], [0], [0], [1], [0, 0, 1, 1], [], []>} : vector<8x32xf32>, vector<32x32xf32>, vector<8x32xf32> -> vector<8x32xf32>
    %550 = arith.addf %549, %4 : vector<8x32xf32>
    %551 = math.tanh %550 : vector<8x32xf32>
    %cst_201 = arith.constant dense<0.000000e+00> : vector<8x32xf32>
    %552 = tpu.matmul %551, %1, %cst_201 {dimension_numbers = #tpu.dot_dimension_numbers<[1], [0], [0], [1], [0, 0, 1, 1], [], []>} : vector<8x32xf32>, vector<32x32xf32>, vector<8x32xf32> -> vector<8x32xf32>
    %553 = arith.addf %552, %7 : vector<8x32xf32>
    %cst_202 = arith.constant 0.0222222228 : f32
    %554 = vector.broadcast %cst_202 : f32 to vector<8x32xf32>
    %555 = arith.mulf %554, %553 : vector<8x32xf32>
    %556 = arith.addf %548, %555 : vector<8x32xf32>
    %cst_203 = arith.constant dense<0.000000e+00> : vector<8x32xf32>
    %557 = tpu.matmul %556, %0, %cst_203 {dimension_numbers = #tpu.dot_dimension_numbers<[1], [0], [0], [1], [0, 0, 1, 1], [], []>} : vector<8x32xf32>, vector<32x32xf32>, vector<8x32xf32> -> vector<8x32xf32>
    %558 = arith.addf %557, %4 : vector<8x32xf32>
    %559 = math.tanh %558 : vector<8x32xf32>
    %cst_204 = arith.constant dense<0.000000e+00> : vector<8x32xf32>
    %560 = tpu.matmul %559, %1, %cst_204 {dimension_numbers = #tpu.dot_dimension_numbers<[1], [0], [0], [1], [0, 0, 1, 1], [], []>} : vector<8x32xf32>, vector<32x32xf32>, vector<8x32xf32> -> vector<8x32xf32>
    %561 = arith.addf %560, %7 : vector<8x32xf32>
    %cst_205 = arith.constant 0.00833333377 : f32
    %562 = vector.broadcast %cst_205 : f32 to vector<8x32xf32>
    %563 = arith.mulf %562, %553 : vector<8x32xf32>
    %cst_206 = arith.constant 2.500000e-02 : f32
    %564 = vector.broadcast %cst_206 : f32 to vector<8x32xf32>
    %565 = arith.mulf %564, %561 : vector<8x32xf32>
    %566 = arith.addf %563, %565 : vector<8x32xf32>
    %567 = arith.addf %548, %566 : vector<8x32xf32>
    %cst_207 = arith.constant dense<0.000000e+00> : vector<8x32xf32>
    %568 = tpu.matmul %567, %0, %cst_207 {dimension_numbers = #tpu.dot_dimension_numbers<[1], [0], [0], [1], [0, 0, 1, 1], [], []>} : vector<8x32xf32>, vector<32x32xf32>, vector<8x32xf32> -> vector<8x32xf32>
    %569 = arith.addf %568, %4 : vector<8x32xf32>
    %570 = math.tanh %569 : vector<8x32xf32>
    %cst_208 = arith.constant dense<0.000000e+00> : vector<8x32xf32>
    %571 = tpu.matmul %570, %1, %cst_208 {dimension_numbers = #tpu.dot_dimension_numbers<[1], [0], [0], [1], [0, 0, 1, 1], [], []>} : vector<8x32xf32>, vector<32x32xf32>, vector<8x32xf32> -> vector<8x32xf32>
    %572 = arith.addf %571, %7 : vector<8x32xf32>
    %cst_209 = arith.constant 0.108641975 : f32
    %573 = vector.broadcast %cst_209 : f32 to vector<8x32xf32>
    %574 = arith.mulf %573, %553 : vector<8x32xf32>
    %cst_210 = arith.constant -0.4148148 : f32
    %575 = vector.broadcast %cst_210 : f32 to vector<8x32xf32>
    %576 = arith.mulf %575, %561 : vector<8x32xf32>
    %577 = arith.addf %574, %576 : vector<8x32xf32>
    %cst_211 = arith.constant 0.395061731 : f32
    %578 = vector.broadcast %cst_211 : f32 to vector<8x32xf32>
    %579 = arith.mulf %578, %572 : vector<8x32xf32>
    %580 = arith.addf %577, %579 : vector<8x32xf32>
    %581 = arith.addf %548, %580 : vector<8x32xf32>
    %cst_212 = arith.constant dense<0.000000e+00> : vector<8x32xf32>
    %582 = tpu.matmul %581, %0, %cst_212 {dimension_numbers = #tpu.dot_dimension_numbers<[1], [0], [0], [1], [0, 0, 1, 1], [], []>} : vector<8x32xf32>, vector<32x32xf32>, vector<8x32xf32> -> vector<8x32xf32>
    %583 = arith.addf %582, %4 : vector<8x32xf32>
    %584 = math.tanh %583 : vector<8x32xf32>
    %cst_213 = arith.constant dense<0.000000e+00> : vector<8x32xf32>
    %585 = tpu.matmul %584, %1, %cst_213 {dimension_numbers = #tpu.dot_dimension_numbers<[1], [0], [0], [1], [0, 0, 1, 1], [], []>} : vector<8x32xf32>, vector<32x32xf32>, vector<8x32xf32> -> vector<8x32xf32>
    %586 = arith.addf %585, %7 : vector<8x32xf32>
    %cst_214 = arith.constant 0.328066528 : f32
    %587 = vector.broadcast %cst_214 : f32 to vector<8x32xf32>
    %588 = arith.mulf %587, %553 : vector<8x32xf32>
    %cst_215 = arith.constant -1.28842151 : f32
    %589 = vector.broadcast %cst_215 : f32 to vector<8x32xf32>
    %590 = arith.mulf %589, %561 : vector<8x32xf32>
    %591 = arith.addf %588, %590 : vector<8x32xf32>
    %cst_216 = arith.constant 1.09143257 : f32
    %592 = vector.broadcast %cst_216 : f32 to vector<8x32xf32>
    %593 = arith.mulf %592, %572 : vector<8x32xf32>
    %594 = arith.addf %591, %593 : vector<8x32xf32>
    %cst_217 = arith.constant -0.0323121473 : f32
    %595 = vector.broadcast %cst_217 : f32 to vector<8x32xf32>
    %596 = arith.mulf %595, %586 : vector<8x32xf32>
    %597 = arith.addf %594, %596 : vector<8x32xf32>
    %598 = arith.addf %548, %597 : vector<8x32xf32>
    %cst_218 = arith.constant dense<0.000000e+00> : vector<8x32xf32>
    %599 = tpu.matmul %598, %0, %cst_218 {dimension_numbers = #tpu.dot_dimension_numbers<[1], [0], [0], [1], [0, 0, 1, 1], [], []>} : vector<8x32xf32>, vector<32x32xf32>, vector<8x32xf32> -> vector<8x32xf32>
    %600 = arith.addf %599, %4 : vector<8x32xf32>
    %601 = math.tanh %600 : vector<8x32xf32>
    %cst_219 = arith.constant dense<0.000000e+00> : vector<8x32xf32>
    %602 = tpu.matmul %601, %1, %cst_219 {dimension_numbers = #tpu.dot_dimension_numbers<[1], [0], [0], [1], [0, 0, 1, 1], [], []>} : vector<8x32xf32>, vector<32x32xf32>, vector<8x32xf32> -> vector<8x32xf32>
    %603 = arith.addf %602, %7 : vector<8x32xf32>
    %cst_220 = arith.constant 0.316252798 : f32
    %604 = vector.broadcast %cst_220 : f32 to vector<8x32xf32>
    %605 = arith.mulf %604, %553 : vector<8x32xf32>
    %cst_221 = arith.constant -1.19528615 : f32
    %606 = vector.broadcast %cst_221 : f32 to vector<8x32xf32>
    %607 = arith.mulf %606, %561 : vector<8x32xf32>
    %608 = arith.addf %605, %607 : vector<8x32xf32>
    %cst_222 = arith.constant 0.989602506 : f32
    %609 = vector.broadcast %cst_222 : f32 to vector<8x32xf32>
    %610 = arith.mulf %609, %572 : vector<8x32xf32>
    %611 = arith.addf %608, %610 : vector<8x32xf32>
    %cst_223 = arith.constant 0.0309343431 : f32
    %612 = vector.broadcast %cst_223 : f32 to vector<8x32xf32>
    %613 = arith.mulf %612, %586 : vector<8x32xf32>
    %614 = arith.addf %611, %613 : vector<8x32xf32>
    %cst_224 = arith.constant -0.0303923674 : f32
    %615 = vector.broadcast %cst_224 : f32 to vector<8x32xf32>
    %616 = arith.mulf %615, %603 : vector<8x32xf32>
    %617 = arith.addf %614, %616 : vector<8x32xf32>
    %618 = arith.addf %548, %617 : vector<8x32xf32>
    %cst_225 = arith.constant dense<0.000000e+00> : vector<8x32xf32>
    %619 = tpu.matmul %618, %0, %cst_225 {dimension_numbers = #tpu.dot_dimension_numbers<[1], [0], [0], [1], [0, 0, 1, 1], [], []>} : vector<8x32xf32>, vector<32x32xf32>, vector<8x32xf32> -> vector<8x32xf32>
    %620 = arith.addf %619, %4 : vector<8x32xf32>
    %621 = math.tanh %620 : vector<8x32xf32>
    %cst_226 = arith.constant dense<0.000000e+00> : vector<8x32xf32>
    %622 = tpu.matmul %621, %1, %cst_226 {dimension_numbers = #tpu.dot_dimension_numbers<[1], [0], [0], [1], [0, 0, 1, 1], [], []>} : vector<8x32xf32>, vector<32x32xf32>, vector<8x32xf32> -> vector<8x32xf32>
    %623 = arith.addf %622, %7 : vector<8x32xf32>
    %cst_227 = arith.constant 0.0101273144 : f32
    %624 = vector.broadcast %cst_227 : f32 to vector<8x32xf32>
    %625 = arith.mulf %624, %553 : vector<8x32xf32>
    %cst_228 = arith.constant 0.0499151461 : f32
    %626 = vector.broadcast %cst_228 : f32 to vector<8x32xf32>
    %627 = arith.mulf %626, %572 : vector<8x32xf32>
    %628 = arith.addf %625, %627 : vector<8x32xf32>
    %cst_229 = arith.constant 0.0723379627 : f32
    %629 = vector.broadcast %cst_229 : f32 to vector<8x32xf32>
    %630 = arith.mulf %629, %586 : vector<8x32xf32>
    %631 = arith.addf %628, %630 : vector<8x32xf32>
    %cst_230 = arith.constant -0.0358195752 : f32
    %632 = vector.broadcast %cst_230 : f32 to vector<8x32xf32>
    %633 = arith.mulf %632, %603 : vector<8x32xf32>
    %634 = arith.addf %631, %633 : vector<8x32xf32>
    %cst_231 = arith.constant 0.0145502649 : f32
    %635 = vector.broadcast %cst_231 : f32 to vector<8x32xf32>
    %636 = arith.mulf %635, %623 : vector<8x32xf32>
    %637 = arith.addf %634, %636 : vector<8x32xf32>
    %638 = arith.addf %548, %637 : vector<8x32xf32>
    %c7_i32 = arith.constant 7 : i32
    %cst_232 = arith.constant dense<0.000000e+00> : vector<8x32xf32>
    %639 = tpu.matmul %638, %0, %cst_232 {dimension_numbers = #tpu.dot_dimension_numbers<[1], [0], [0], [1], [0, 0, 1, 1], [], []>} : vector<8x32xf32>, vector<32x32xf32>, vector<8x32xf32> -> vector<8x32xf32>
    %640 = arith.addf %639, %4 : vector<8x32xf32>
    %641 = math.tanh %640 : vector<8x32xf32>
    %cst_233 = arith.constant dense<0.000000e+00> : vector<8x32xf32>
    %642 = tpu.matmul %641, %1, %cst_233 {dimension_numbers = #tpu.dot_dimension_numbers<[1], [0], [0], [1], [0, 0, 1, 1], [], []>} : vector<8x32xf32>, vector<32x32xf32>, vector<8x32xf32> -> vector<8x32xf32>
    %643 = arith.addf %642, %7 : vector<8x32xf32>
    %cst_234 = arith.constant 0.0222222228 : f32
    %644 = vector.broadcast %cst_234 : f32 to vector<8x32xf32>
    %645 = arith.mulf %644, %643 : vector<8x32xf32>
    %646 = arith.addf %638, %645 : vector<8x32xf32>
    %cst_235 = arith.constant dense<0.000000e+00> : vector<8x32xf32>
    %647 = tpu.matmul %646, %0, %cst_235 {dimension_numbers = #tpu.dot_dimension_numbers<[1], [0], [0], [1], [0, 0, 1, 1], [], []>} : vector<8x32xf32>, vector<32x32xf32>, vector<8x32xf32> -> vector<8x32xf32>
    %648 = arith.addf %647, %4 : vector<8x32xf32>
    %649 = math.tanh %648 : vector<8x32xf32>
    %cst_236 = arith.constant dense<0.000000e+00> : vector<8x32xf32>
    %650 = tpu.matmul %649, %1, %cst_236 {dimension_numbers = #tpu.dot_dimension_numbers<[1], [0], [0], [1], [0, 0, 1, 1], [], []>} : vector<8x32xf32>, vector<32x32xf32>, vector<8x32xf32> -> vector<8x32xf32>
    %651 = arith.addf %650, %7 : vector<8x32xf32>
    %cst_237 = arith.constant 0.00833333377 : f32
    %652 = vector.broadcast %cst_237 : f32 to vector<8x32xf32>
    %653 = arith.mulf %652, %643 : vector<8x32xf32>
    %cst_238 = arith.constant 2.500000e-02 : f32
    %654 = vector.broadcast %cst_238 : f32 to vector<8x32xf32>
    %655 = arith.mulf %654, %651 : vector<8x32xf32>
    %656 = arith.addf %653, %655 : vector<8x32xf32>
    %657 = arith.addf %638, %656 : vector<8x32xf32>
    %cst_239 = arith.constant dense<0.000000e+00> : vector<8x32xf32>
    %658 = tpu.matmul %657, %0, %cst_239 {dimension_numbers = #tpu.dot_dimension_numbers<[1], [0], [0], [1], [0, 0, 1, 1], [], []>} : vector<8x32xf32>, vector<32x32xf32>, vector<8x32xf32> -> vector<8x32xf32>
    %659 = arith.addf %658, %4 : vector<8x32xf32>
    %660 = math.tanh %659 : vector<8x32xf32>
    %cst_240 = arith.constant dense<0.000000e+00> : vector<8x32xf32>
    %661 = tpu.matmul %660, %1, %cst_240 {dimension_numbers = #tpu.dot_dimension_numbers<[1], [0], [0], [1], [0, 0, 1, 1], [], []>} : vector<8x32xf32>, vector<32x32xf32>, vector<8x32xf32> -> vector<8x32xf32>
    %662 = arith.addf %661, %7 : vector<8x32xf32>
    %cst_241 = arith.constant 0.108641975 : f32
    %663 = vector.broadcast %cst_241 : f32 to vector<8x32xf32>
    %664 = arith.mulf %663, %643 : vector<8x32xf32>
    %cst_242 = arith.constant -0.4148148 : f32
    %665 = vector.broadcast %cst_242 : f32 to vector<8x32xf32>
    %666 = arith.mulf %665, %651 : vector<8x32xf32>
    %667 = arith.addf %664, %666 : vector<8x32xf32>
    %cst_243 = arith.constant 0.395061731 : f32
    %668 = vector.broadcast %cst_243 : f32 to vector<8x32xf32>
    %669 = arith.mulf %668, %662 : vector<8x32xf32>
    %670 = arith.addf %667, %669 : vector<8x32xf32>
    %671 = arith.addf %638, %670 : vector<8x32xf32>
    %cst_244 = arith.constant dense<0.000000e+00> : vector<8x32xf32>
    %672 = tpu.matmul %671, %0, %cst_244 {dimension_numbers = #tpu.dot_dimension_numbers<[1], [0], [0], [1], [0, 0, 1, 1], [], []>} : vector<8x32xf32>, vector<32x32xf32>, vector<8x32xf32> -> vector<8x32xf32>
    %673 = arith.addf %672, %4 : vector<8x32xf32>
    %674 = math.tanh %673 : vector<8x32xf32>
    %cst_245 = arith.constant dense<0.000000e+00> : vector<8x32xf32>
    %675 = tpu.matmul %674, %1, %cst_245 {dimension_numbers = #tpu.dot_dimension_numbers<[1], [0], [0], [1], [0, 0, 1, 1], [], []>} : vector<8x32xf32>, vector<32x32xf32>, vector<8x32xf32> -> vector<8x32xf32>
    %676 = arith.addf %675, %7 : vector<8x32xf32>
    %cst_246 = arith.constant 0.328066528 : f32
    %677 = vector.broadcast %cst_246 : f32 to vector<8x32xf32>
    %678 = arith.mulf %677, %643 : vector<8x32xf32>
    %cst_247 = arith.constant -1.28842151 : f32
    %679 = vector.broadcast %cst_247 : f32 to vector<8x32xf32>
    %680 = arith.mulf %679, %651 : vector<8x32xf32>
    %681 = arith.addf %678, %680 : vector<8x32xf32>
    %cst_248 = arith.constant 1.09143257 : f32
    %682 = vector.broadcast %cst_248 : f32 to vector<8x32xf32>
    %683 = arith.mulf %682, %662 : vector<8x32xf32>
    %684 = arith.addf %681, %683 : vector<8x32xf32>
    %cst_249 = arith.constant -0.0323121473 : f32
    %685 = vector.broadcast %cst_249 : f32 to vector<8x32xf32>
    %686 = arith.mulf %685, %676 : vector<8x32xf32>
    %687 = arith.addf %684, %686 : vector<8x32xf32>
    %688 = arith.addf %638, %687 : vector<8x32xf32>
    %cst_250 = arith.constant dense<0.000000e+00> : vector<8x32xf32>
    %689 = tpu.matmul %688, %0, %cst_250 {dimension_numbers = #tpu.dot_dimension_numbers<[1], [0], [0], [1], [0, 0, 1, 1], [], []>} : vector<8x32xf32>, vector<32x32xf32>, vector<8x32xf32> -> vector<8x32xf32>
    %690 = arith.addf %689, %4 : vector<8x32xf32>
    %691 = math.tanh %690 : vector<8x32xf32>
    %cst_251 = arith.constant dense<0.000000e+00> : vector<8x32xf32>
    %692 = tpu.matmul %691, %1, %cst_251 {dimension_numbers = #tpu.dot_dimension_numbers<[1], [0], [0], [1], [0, 0, 1, 1], [], []>} : vector<8x32xf32>, vector<32x32xf32>, vector<8x32xf32> -> vector<8x32xf32>
    %693 = arith.addf %692, %7 : vector<8x32xf32>
    %cst_252 = arith.constant 0.316252798 : f32
    %694 = vector.broadcast %cst_252 : f32 to vector<8x32xf32>
    %695 = arith.mulf %694, %643 : vector<8x32xf32>
    %cst_253 = arith.constant -1.19528615 : f32
    %696 = vector.broadcast %cst_253 : f32 to vector<8x32xf32>
    %697 = arith.mulf %696, %651 : vector<8x32xf32>
    %698 = arith.addf %695, %697 : vector<8x32xf32>
    %cst_254 = arith.constant 0.989602506 : f32
    %699 = vector.broadcast %cst_254 : f32 to vector<8x32xf32>
    %700 = arith.mulf %699, %662 : vector<8x32xf32>
    %701 = arith.addf %698, %700 : vector<8x32xf32>
    %cst_255 = arith.constant 0.0309343431 : f32
    %702 = vector.broadcast %cst_255 : f32 to vector<8x32xf32>
    %703 = arith.mulf %702, %676 : vector<8x32xf32>
    %704 = arith.addf %701, %703 : vector<8x32xf32>
    %cst_256 = arith.constant -0.0303923674 : f32
    %705 = vector.broadcast %cst_256 : f32 to vector<8x32xf32>
    %706 = arith.mulf %705, %693 : vector<8x32xf32>
    %707 = arith.addf %704, %706 : vector<8x32xf32>
    %708 = arith.addf %638, %707 : vector<8x32xf32>
    %cst_257 = arith.constant dense<0.000000e+00> : vector<8x32xf32>
    %709 = tpu.matmul %708, %0, %cst_257 {dimension_numbers = #tpu.dot_dimension_numbers<[1], [0], [0], [1], [0, 0, 1, 1], [], []>} : vector<8x32xf32>, vector<32x32xf32>, vector<8x32xf32> -> vector<8x32xf32>
    %710 = arith.addf %709, %4 : vector<8x32xf32>
    %711 = math.tanh %710 : vector<8x32xf32>
    %cst_258 = arith.constant dense<0.000000e+00> : vector<8x32xf32>
    %712 = tpu.matmul %711, %1, %cst_258 {dimension_numbers = #tpu.dot_dimension_numbers<[1], [0], [0], [1], [0, 0, 1, 1], [], []>} : vector<8x32xf32>, vector<32x32xf32>, vector<8x32xf32> -> vector<8x32xf32>
    %713 = arith.addf %712, %7 : vector<8x32xf32>
    %cst_259 = arith.constant 0.0101273144 : f32
    %714 = vector.broadcast %cst_259 : f32 to vector<8x32xf32>
    %715 = arith.mulf %714, %643 : vector<8x32xf32>
    %cst_260 = arith.constant 0.0499151461 : f32
    %716 = vector.broadcast %cst_260 : f32 to vector<8x32xf32>
    %717 = arith.mulf %716, %662 : vector<8x32xf32>
    %718 = arith.addf %715, %717 : vector<8x32xf32>
    %cst_261 = arith.constant 0.0723379627 : f32
    %719 = vector.broadcast %cst_261 : f32 to vector<8x32xf32>
    %720 = arith.mulf %719, %676 : vector<8x32xf32>
    %721 = arith.addf %718, %720 : vector<8x32xf32>
    %cst_262 = arith.constant -0.0358195752 : f32
    %722 = vector.broadcast %cst_262 : f32 to vector<8x32xf32>
    %723 = arith.mulf %722, %693 : vector<8x32xf32>
    %724 = arith.addf %721, %723 : vector<8x32xf32>
    %cst_263 = arith.constant 0.0145502649 : f32
    %725 = vector.broadcast %cst_263 : f32 to vector<8x32xf32>
    %726 = arith.mulf %725, %713 : vector<8x32xf32>
    %727 = arith.addf %724, %726 : vector<8x32xf32>
    %728 = arith.addf %638, %727 : vector<8x32xf32>
    %c8_i32 = arith.constant 8 : i32
    %cst_264 = arith.constant dense<0.000000e+00> : vector<8x32xf32>
    %729 = tpu.matmul %728, %0, %cst_264 {dimension_numbers = #tpu.dot_dimension_numbers<[1], [0], [0], [1], [0, 0, 1, 1], [], []>} : vector<8x32xf32>, vector<32x32xf32>, vector<8x32xf32> -> vector<8x32xf32>
    %730 = arith.addf %729, %4 : vector<8x32xf32>
    %731 = math.tanh %730 : vector<8x32xf32>
    %cst_265 = arith.constant dense<0.000000e+00> : vector<8x32xf32>
    %732 = tpu.matmul %731, %1, %cst_265 {dimension_numbers = #tpu.dot_dimension_numbers<[1], [0], [0], [1], [0, 0, 1, 1], [], []>} : vector<8x32xf32>, vector<32x32xf32>, vector<8x32xf32> -> vector<8x32xf32>
    %733 = arith.addf %732, %7 : vector<8x32xf32>
    %cst_266 = arith.constant 0.0222222228 : f32
    %734 = vector.broadcast %cst_266 : f32 to vector<8x32xf32>
    %735 = arith.mulf %734, %733 : vector<8x32xf32>
    %736 = arith.addf %728, %735 : vector<8x32xf32>
    %cst_267 = arith.constant dense<0.000000e+00> : vector<8x32xf32>
    %737 = tpu.matmul %736, %0, %cst_267 {dimension_numbers = #tpu.dot_dimension_numbers<[1], [0], [0], [1], [0, 0, 1, 1], [], []>} : vector<8x32xf32>, vector<32x32xf32>, vector<8x32xf32> -> vector<8x32xf32>
    %738 = arith.addf %737, %4 : vector<8x32xf32>
    %739 = math.tanh %738 : vector<8x32xf32>
    %cst_268 = arith.constant dense<0.000000e+00> : vector<8x32xf32>
    %740 = tpu.matmul %739, %1, %cst_268 {dimension_numbers = #tpu.dot_dimension_numbers<[1], [0], [0], [1], [0, 0, 1, 1], [], []>} : vector<8x32xf32>, vector<32x32xf32>, vector<8x32xf32> -> vector<8x32xf32>
    %741 = arith.addf %740, %7 : vector<8x32xf32>
    %cst_269 = arith.constant 0.00833333377 : f32
    %742 = vector.broadcast %cst_269 : f32 to vector<8x32xf32>
    %743 = arith.mulf %742, %733 : vector<8x32xf32>
    %cst_270 = arith.constant 2.500000e-02 : f32
    %744 = vector.broadcast %cst_270 : f32 to vector<8x32xf32>
    %745 = arith.mulf %744, %741 : vector<8x32xf32>
    %746 = arith.addf %743, %745 : vector<8x32xf32>
    %747 = arith.addf %728, %746 : vector<8x32xf32>
    %cst_271 = arith.constant dense<0.000000e+00> : vector<8x32xf32>
    %748 = tpu.matmul %747, %0, %cst_271 {dimension_numbers = #tpu.dot_dimension_numbers<[1], [0], [0], [1], [0, 0, 1, 1], [], []>} : vector<8x32xf32>, vector<32x32xf32>, vector<8x32xf32> -> vector<8x32xf32>
    %749 = arith.addf %748, %4 : vector<8x32xf32>
    %750 = math.tanh %749 : vector<8x32xf32>
    %cst_272 = arith.constant dense<0.000000e+00> : vector<8x32xf32>
    %751 = tpu.matmul %750, %1, %cst_272 {dimension_numbers = #tpu.dot_dimension_numbers<[1], [0], [0], [1], [0, 0, 1, 1], [], []>} : vector<8x32xf32>, vector<32x32xf32>, vector<8x32xf32> -> vector<8x32xf32>
    %752 = arith.addf %751, %7 : vector<8x32xf32>
    %cst_273 = arith.constant 0.108641975 : f32
    %753 = vector.broadcast %cst_273 : f32 to vector<8x32xf32>
    %754 = arith.mulf %753, %733 : vector<8x32xf32>
    %cst_274 = arith.constant -0.4148148 : f32
    %755 = vector.broadcast %cst_274 : f32 to vector<8x32xf32>
    %756 = arith.mulf %755, %741 : vector<8x32xf32>
    %757 = arith.addf %754, %756 : vector<8x32xf32>
    %cst_275 = arith.constant 0.395061731 : f32
    %758 = vector.broadcast %cst_275 : f32 to vector<8x32xf32>
    %759 = arith.mulf %758, %752 : vector<8x32xf32>
    %760 = arith.addf %757, %759 : vector<8x32xf32>
    %761 = arith.addf %728, %760 : vector<8x32xf32>
    %cst_276 = arith.constant dense<0.000000e+00> : vector<8x32xf32>
    %762 = tpu.matmul %761, %0, %cst_276 {dimension_numbers = #tpu.dot_dimension_numbers<[1], [0], [0], [1], [0, 0, 1, 1], [], []>} : vector<8x32xf32>, vector<32x32xf32>, vector<8x32xf32> -> vector<8x32xf32>
    %763 = arith.addf %762, %4 : vector<8x32xf32>
    %764 = math.tanh %763 : vector<8x32xf32>
    %cst_277 = arith.constant dense<0.000000e+00> : vector<8x32xf32>
    %765 = tpu.matmul %764, %1, %cst_277 {dimension_numbers = #tpu.dot_dimension_numbers<[1], [0], [0], [1], [0, 0, 1, 1], [], []>} : vector<8x32xf32>, vector<32x32xf32>, vector<8x32xf32> -> vector<8x32xf32>
    %766 = arith.addf %765, %7 : vector<8x32xf32>
    %cst_278 = arith.constant 0.328066528 : f32
    %767 = vector.broadcast %cst_278 : f32 to vector<8x32xf32>
    %768 = arith.mulf %767, %733 : vector<8x32xf32>
    %cst_279 = arith.constant -1.28842151 : f32
    %769 = vector.broadcast %cst_279 : f32 to vector<8x32xf32>
    %770 = arith.mulf %769, %741 : vector<8x32xf32>
    %771 = arith.addf %768, %770 : vector<8x32xf32>
    %cst_280 = arith.constant 1.09143257 : f32
    %772 = vector.broadcast %cst_280 : f32 to vector<8x32xf32>
    %773 = arith.mulf %772, %752 : vector<8x32xf32>
    %774 = arith.addf %771, %773 : vector<8x32xf32>
    %cst_281 = arith.constant -0.0323121473 : f32
    %775 = vector.broadcast %cst_281 : f32 to vector<8x32xf32>
    %776 = arith.mulf %775, %766 : vector<8x32xf32>
    %777 = arith.addf %774, %776 : vector<8x32xf32>
    %778 = arith.addf %728, %777 : vector<8x32xf32>
    %cst_282 = arith.constant dense<0.000000e+00> : vector<8x32xf32>
    %779 = tpu.matmul %778, %0, %cst_282 {dimension_numbers = #tpu.dot_dimension_numbers<[1], [0], [0], [1], [0, 0, 1, 1], [], []>} : vector<8x32xf32>, vector<32x32xf32>, vector<8x32xf32> -> vector<8x32xf32>
    %780 = arith.addf %779, %4 : vector<8x32xf32>
    %781 = math.tanh %780 : vector<8x32xf32>
    %cst_283 = arith.constant dense<0.000000e+00> : vector<8x32xf32>
    %782 = tpu.matmul %781, %1, %cst_283 {dimension_numbers = #tpu.dot_dimension_numbers<[1], [0], [0], [1], [0, 0, 1, 1], [], []>} : vector<8x32xf32>, vector<32x32xf32>, vector<8x32xf32> -> vector<8x32xf32>
    %783 = arith.addf %782, %7 : vector<8x32xf32>
    %cst_284 = arith.constant 0.316252798 : f32
    %784 = vector.broadcast %cst_284 : f32 to vector<8x32xf32>
    %785 = arith.mulf %784, %733 : vector<8x32xf32>
    %cst_285 = arith.constant -1.19528615 : f32
    %786 = vector.broadcast %cst_285 : f32 to vector<8x32xf32>
    %787 = arith.mulf %786, %741 : vector<8x32xf32>
    %788 = arith.addf %785, %787 : vector<8x32xf32>
    %cst_286 = arith.constant 0.989602506 : f32
    %789 = vector.broadcast %cst_286 : f32 to vector<8x32xf32>
    %790 = arith.mulf %789, %752 : vector<8x32xf32>
    %791 = arith.addf %788, %790 : vector<8x32xf32>
    %cst_287 = arith.constant 0.0309343431 : f32
    %792 = vector.broadcast %cst_287 : f32 to vector<8x32xf32>
    %793 = arith.mulf %792, %766 : vector<8x32xf32>
    %794 = arith.addf %791, %793 : vector<8x32xf32>
    %cst_288 = arith.constant -0.0303923674 : f32
    %795 = vector.broadcast %cst_288 : f32 to vector<8x32xf32>
    %796 = arith.mulf %795, %783 : vector<8x32xf32>
    %797 = arith.addf %794, %796 : vector<8x32xf32>
    %798 = arith.addf %728, %797 : vector<8x32xf32>
    %cst_289 = arith.constant dense<0.000000e+00> : vector<8x32xf32>
    %799 = tpu.matmul %798, %0, %cst_289 {dimension_numbers = #tpu.dot_dimension_numbers<[1], [0], [0], [1], [0, 0, 1, 1], [], []>} : vector<8x32xf32>, vector<32x32xf32>, vector<8x32xf32> -> vector<8x32xf32>
    %800 = arith.addf %799, %4 : vector<8x32xf32>
    %801 = math.tanh %800 : vector<8x32xf32>
    %cst_290 = arith.constant dense<0.000000e+00> : vector<8x32xf32>
    %802 = tpu.matmul %801, %1, %cst_290 {dimension_numbers = #tpu.dot_dimension_numbers<[1], [0], [0], [1], [0, 0, 1, 1], [], []>} : vector<8x32xf32>, vector<32x32xf32>, vector<8x32xf32> -> vector<8x32xf32>
    %803 = arith.addf %802, %7 : vector<8x32xf32>
    %cst_291 = arith.constant 0.0101273144 : f32
    %804 = vector.broadcast %cst_291 : f32 to vector<8x32xf32>
    %805 = arith.mulf %804, %733 : vector<8x32xf32>
    %cst_292 = arith.constant 0.0499151461 : f32
    %806 = vector.broadcast %cst_292 : f32 to vector<8x32xf32>
    %807 = arith.mulf %806, %752 : vector<8x32xf32>
    %808 = arith.addf %805, %807 : vector<8x32xf32>
    %cst_293 = arith.constant 0.0723379627 : f32
    %809 = vector.broadcast %cst_293 : f32 to vector<8x32xf32>
    %810 = arith.mulf %809, %766 : vector<8x32xf32>
    %811 = arith.addf %808, %810 : vector<8x32xf32>
    %cst_294 = arith.constant -0.0358195752 : f32
    %812 = vector.broadcast %cst_294 : f32 to vector<8x32xf32>
    %813 = arith.mulf %812, %783 : vector<8x32xf32>
    %814 = arith.addf %811, %813 : vector<8x32xf32>
    %cst_295 = arith.constant 0.0145502649 : f32
    %815 = vector.broadcast %cst_295 : f32 to vector<8x32xf32>
    %816 = arith.mulf %815, %803 : vector<8x32xf32>
    %817 = arith.addf %814, %816 : vector<8x32xf32>
    %818 = arith.addf %728, %817 : vector<8x32xf32>
    %c0_296 = arith.constant 0 : index
    %c0_297 = arith.constant 0 : index
    %819 = vector.load %arg6[%c0_296, %c0_297] : memref<8x32xf32, #tpu.memory_space<vmem>>, vector<8x32xf32>
    tpu.vector_store %arg6[%c0_296, %c0_297], %818 {strides = array<i32>} : memref<8x32xf32, #tpu.memory_space<vmem>>, vector<8x32xf32>,
    return
  }
  func.func @transform_0(%arg0: i32) -> (i32, i32) {
    %c0_i32 = arith.constant 0 : i32
    %c0_i32_0 = arith.constant 0 : i32
    return %arg0, %c0_i32 : i32, i32
  }
  func.func @transform_1(%arg0: i32) -> (i32, i32) {
    %c0_i32 = arith.constant 0 : i32
    %c0_i32_0 = arith.constant 0 : i32
    %c0_i32_1 = arith.constant 0 : i32
    return %c0_i32, %c0_i32_0 : i32, i32
  }
  func.func @transform_2(%arg0: i32) -> (i32, i32) {
    %c0_i32 = arith.constant 0 : i32
    %c0_i32_0 = arith.constant 0 : i32
    %c0_i32_1 = arith.constant 0 : i32
    return %c0_i32, %c0_i32_0 : i32, i32
  }
  func.func @transform_3(%arg0: i32) -> (i32, i32) {
    %c0_i32 = arith.constant 0 : i32
    %c0_i32_0 = arith.constant 0 : i32
    %c0_i32_1 = arith.constant 0 : i32
    return %c0_i32, %c0_i32_0 : i32, i32
  }
  func.func @transform_4(%arg0: i32) -> (i32, i32) {
    %c0_i32 = arith.constant 0 : i32
    %c0_i32_0 = arith.constant 0 : i32
    %c0_i32_1 = arith.constant 0 : i32
    return %c0_i32, %c0_i32_0 : i32, i32
  }
  func.func @transform_5(%arg0: i32) -> (i32, i32) {
    %c0_i32 = arith.constant 0 : i32
    %c0_i32_0 = arith.constant 0 : i32
    return %arg0, %c0_i32 : i32, i32
  }
}

</mosaic_0001>

<llo_original>
// kernel: tpu_custom_call.1
$region0: #{tpu_custom_call.1}
  #allocation0 [shape = 'u32[]', space=smem, size = 0x4, offset = 0x4, fixed_abs, tag = 'smem constant byte address 0x4 - core index']
  #allocation1 [shape = 'u32[144,128]{1,0:T(1,128)}', space=vmem, size = 0x12000, scoped, tag = 'internal scratch']
  %s0 = inlined_call_operand.hbm [shape: f32[8,32], index: 0, kind: input, shape index: {}]
  %s1 = inlined_call_operand.hbm [shape: f32[32,32], index: 1, kind: input, shape index: {}]
  %s2 = inlined_call_operand.vmem [shape: f32[1,32], index: 2, kind: input, shape index: {}]
  %s3 = inlined_call_operand.hbm [shape: f32[32,32], index: 3, kind: input, shape index: {}]
  %s4 = inlined_call_operand.vmem [shape: f32[1,32], index: 4, kind: input, shape index: {}]
  %s5 = inlined_call_operand.hbm [shape: f32[8,32], index: 5, kind: output, shape index: {}]
  %s6 = sld [smem:[#allocation0]]
  $region42: #{tpu_custom_call.1} parent=0
    _
  %s8 = ssub.s32 1, %s6
  %s9 = scalar_select 0, %s8, %s6
  $region1: #{tpu_custom_call.1} parent=0
    #allocation2 [shape = 'u8[4096]{0}', space=vmem, size = 0x1000, scoped, tag = 'input window, operand 0, single buffered']
    #allocation3 [shape = 's32[1]{0}', space=sflag, size = 0x4, scoped, tag = 'scoped memory for tpu_custom_call.1']
    #allocation4 [shape = 's32[1]{0}', space=sflag, size = 0x4, scoped, tag = 'scoped memory for tpu_custom_call.1']
    #allocation5 [shape = 'u8[16384]{0}', space=vmem, size = 0x4000, scoped, tag = 'input window, operand 1, single buffered']
    #allocation6 [shape = 's32[1]{0}', space=sflag, size = 0x4, scoped, tag = 'scoped memory for tpu_custom_call.1']
    #allocation7 [shape = 'u8[16384]{0}', space=vmem, size = 0x4000, scoped, tag = 'input window, operand 3, single buffered']
    #allocation8 [shape = 'u8[4096]{0}', space=vmem, size = 0x1000, scoped, tag = 'output window, operand 0, single buffered']
    %10 = vsyncpa [#allocation3], 0
    %11 = vsyncpa [#allocation6], 0
    %12 = vsyncpa [#allocation4], 0
    // Predicated region
    $region2: #{tpu_custom_call.1} parent=1 // pred_check
      _
    $region3: #{tpu_custom_call.1} parent=1 // pred_check_branch
      %14 = sbr.rel (0) target = $region5
    $region4: #{tpu_custom_call.1} parent=1 // pred_region
      %s16 = ssub.s32 128, 128
      %17 = vsyncadd [#allocation3], %s16
      %s19 = sshll.u32 [#allocation2], 4
      %s20 = int_to_ptr.vmem [resolvable:$true] %s19
      %22 = dma.hbm_to_vmem [thread:$0]  %s0, 128, %s20, [#allocation3]
    $region5: #{tpu_custom_call.1} parent=1 // pred_fallthru
      _
    // Predicated region
    $region6: #{tpu_custom_call.1} parent=1 // pred_check
      _
    $region7: #{tpu_custom_call.1} parent=1 // pred_check_branch
      %24 = sbr.rel (0) target = $region9
    $region8: #{tpu_custom_call.1} parent=1 // pred_region
      %s26 = ssub.s32 512, 512
      %27 = vsyncadd [#allocation6], %s26
      %s28 = sshll.u32 [#allocation5], 4
      %s29 = int_to_ptr.vmem [resolvable:$true] %s28
      %34 = dma.hbm_to_vmem [thread:$0]  %s1, 512, %s29, [#allocation6], 128, 128, 8
    $region9: #{tpu_custom_call.1} parent=1 // pred_fallthru
      _
    // Predicated region
    $region10: #{tpu_custom_call.1} parent=1 // pred_check
      _
    $region11: #{tpu_custom_call.1} parent=1 // pred_check_branch
      %36 = sbr.rel (0) target = $region13
    $region12: #{tpu_custom_call.1} parent=1 // pred_region
      _
    $region13: #{tpu_custom_call.1} parent=1 // pred_fallthru
      _
    // Predicated region
    $region14: #{tpu_custom_call.1} parent=1 // pred_check
      _
    $region15: #{tpu_custom_call.1} parent=1 // pred_check_branch
      %38 = sbr.rel (0) target = $region17
    $region16: #{tpu_custom_call.1} parent=1 // pred_region
      %s40 = ssub.s32 512, 512
      %41 = vsyncadd [#allocation6], %s40
      %s42 = sshll.u32 [#allocation7], 4
      %s43 = int_to_ptr.vmem [resolvable:$true] %s42
      %48 = dma.hbm_to_vmem [thread:$0]  %s3, 512, %s43, [#allocation6], 128, 128, 8
    $region17: #{tpu_custom_call.1} parent=1 // pred_fallthru
      _
    // Predicated region
    $region18: #{tpu_custom_call.1} parent=1 // pred_check
      _
    $region19: #{tpu_custom_call.1} parent=1 // pred_check_branch
      %50 = sbr.rel (0) target = $region21
    $region20: #{tpu_custom_call.1} parent=1 // pred_region
      _
    $region21: #{tpu_custom_call.1} parent=1 // pred_fallthru
      _
    // Predicated region
    $region22: #{tpu_custom_call.1} parent=1 // pred_check
      _
    $region23: #{tpu_custom_call.1} parent=1 // pred_check_branch
      %52 = sbr.rel (0) target = $region25
    $region24: #{tpu_custom_call.1} parent=1 // pred_region
      %53 = dma.done [#allocation3], 128
    $region25: #{tpu_custom_call.1} parent=1 // pred_fallthru
      _
    // Predicated region
    $region26: #{tpu_custom_call.1} parent=1 // pred_check
      _
    $region27: #{tpu_custom_call.1} parent=1 // pred_check_branch
      %55 = sbr.rel (0) target = $region29
    $region28: #{tpu_custom_call.1} parent=1 // pred_region
      %56 = dma.done [#allocation6], 512
    $region29: #{tpu_custom_call.1} parent=1 // pred_fallthru
      _
    // Predicated region
    $region30: #{tpu_custom_call.1} parent=1 // pred_check
      _
    $region31: #{tpu_custom_call.1} parent=1 // pred_check_branch
      %58 = sbr.rel (0) target = $region33
    $region32: #{tpu_custom_call.1} parent=1 // pred_region
      %59 = dma.done [#allocation6], 512
    $region33: #{tpu_custom_call.1} parent=1 // pred_fallthru
      _
    %v60 = vld [vmem:[#allocation5] sm:$0xff]
    %v61 = vld [vmem:[#allocation5 + $0x8] sm:$0xff]
    %v62 = vld [vmem:[#allocation5 + $0x10] sm:$0xff]
    %v63 = vld [vmem:[#allocation5 + $0x18] sm:$0xff]
    %v64 = vld [vmem:[#allocation7] sm:$0xff]
    %v65 = vld [vmem:[#allocation7 + $0x8] sm:$0xff]
    %v66 = vld [vmem:[#allocation7 + $0x10] sm:$0xff]
    %v67 = vld [vmem:[#allocation7 + $0x18] sm:$0xff]
    %v68 = vld [vmem:[%s2] sm:$0x1]
    %v70 = vlaneseq
    %v71 = vshrl.u32 %v70, 7
    %v72 = vsub.s32 0, %v71
    %v73 = vrot.slane %v68, %v72
    %v75 = vld [vmem:[%s4] sm:$0x1]
    %v77 = vlaneseq
    %v78 = vshrl.u32 %v77, 7
    %v79 = vsub.s32 0, %v78
    %v80 = vrot.slane %v75, %v79
    %v82 = vld [vmem:[#allocation2] sm:$0xff]
    %vm83 = vcmask 261120
    %v85 = vsel %vm83, %v82, 0
    %87 = vmatprep.subr.mxu0 0.0
    %88 = vmatpush1.msra.mxu0 0.0
    %89 = vmatprep.subr.mxu0 0.0
    %90 = vmatpush1.msra.mxu0 0.0
    %91 = vmatprep.subr.mxu0 0.0
    %92 = vmatpush1.msra.mxu0 0.0
    %93 = vmatprep.subr.mxu0 0.0
    %94 = vmatpush1.msra.mxu0 0.0
    %95 = vmatprep.subr.mxu0 0.0
    %96 = vmatpush1.msra.mxu0 0.0
    %97 = vmatprep.subr.mxu0 0.0
    %98 = vmatpush1.msra.mxu0 0.0
    %99 = vmatprep.subr.mxu0 0.0
    %100 = vmatpush1.msra.mxu0 0.0
    %101 = vmatprep.subr.mxu0 0.0
    %102 = vmatpush1.msra.mxu0 0.0
    %103 = vmatprep.subr.mxu0 0.0
    %104 = vmatpush1.msra.mxu0 0.0
    %105 = vmatprep.subr.mxu0 0.0
    %106 = vmatpush1.msra.mxu0 0.0
    %107 = vmatprep.subr.mxu0 0.0
    %108 = vmatpush1.msra.mxu0 0.0
    %109 = vmatprep.subr.mxu0 0.0
    %110 = vmatpush1.msra.mxu0 0.0
    %111 = vmatprep.subr.mxu0 0.0
    %112 = vmatpush1.msra.mxu0 %v63
    %113 = vmatprep.subr.mxu0 0.0
    %114 = vmatpush1.msra.mxu0 %v62
    %115 = vmatprep.subr.mxu0 0.0
    %116 = vmatpush1.msra.mxu0 %v61
    %117 = vmatprep.subr.mxu0 0.0
    %118 = vmatpush1.msra.mxu0 %v60
    %119 = vmatprep.subr.mxu0 0.0
    %120 = vmatpush2.msra.mxu0 0.0
    %121 = vmatprep.subr.mxu0 0.0
    %122 = vmatpush2.msra.mxu0 0.0
    %123 = vmatprep.subr.mxu0 0.0
    %124 = vmatpush2.msra.mxu0 0.0
    %125 = vmatprep.subr.mxu0 0.0
    %126 = vmatpush2.msra.mxu0 0.0
    %127 = vmatprep.subr.mxu0 0.0
    %128 = vmatpush2.msra.mxu0 0.0
    %129 = vmatprep.subr.mxu0 0.0
    %130 = vmatpush2.msra.mxu0 0.0
    %131 = vmatprep.subr.mxu0 0.0
    %132 = vmatpush2.msra.mxu0 0.0
    %133 = vmatprep.subr.mxu0 0.0
    %134 = vmatpush2.msra.mxu0 0.0
    %135 = vmatprep.subr.mxu0 0.0
    %136 = vmatpush2.msra.mxu0 0.0
    %137 = vmatprep.subr.mxu0 0.0
    %138 = vmatpush2.msra.mxu0 0.0
    %139 = vmatprep.subr.mxu0 0.0
    %140 = vmatpush2.msra.mxu0 0.0
    %141 = vmatprep.subr.mxu0 0.0
    %142 = vmatpush2.msra.mxu0 0.0
    %143 = vmatprep.subr.mxu0 0.0
    %144 = vmatpush2.msra.mxu0 0.0
    %145 = vmatprep.subr.mxu0 0.0
    %146 = vmatpush2.msra.mxu0 0.0
    %147 = vmatprep.subr.mxu0 0.0
    %148 = vmatpush2.msra.mxu0 0.0
    %149 = vmatprep.subr.mxu0 0.0
    %150 = vmatpush2.msra.mxu0 0.0
    %151 = vmatprep.mubr.f32.mxu0 0.0
    %152 = vmatmul.mubr.f32.gmra.mxu0 %v85
    %v153 = vpop.f32.mrf.mxu0
    %v154 = vadd.f32 %v73, %v153
    %v155 = vpop.f32.mrf.mxu0
    %156 = vdwg.mxu0
    %v157 = vtanh.pop %v154
    %v159 = vsel %vm83, %v157, 0
    %161 = vmatprep.subr.mxu0 0.0
    %162 = vmatpush1.msra.mxu0 0.0
    %163 = vmatprep.subr.mxu0 0.0
    %164 = vmatpush1.msra.mxu0 0.0
    %165 = vmatprep.subr.mxu0 0.0
    %166 = vmatpush1.msra.mxu0 0.0
    %167 = vmatprep.subr.mxu0 0.0
    %168 = vmatpush1.msra.mxu0 0.0
    %169 = vmatprep.subr.mxu0 0.0
    %170 = vmatpush1.msra.mxu0 0.0
    %171 = vmatprep.subr.mxu0 0.0
    %172 = vmatpush1.msra.mxu0 0.0
    %173 = vmatprep.subr.mxu0 0.0
    %174 = vmatpush1.msra.mxu0 0.0
    %175 = vmatprep.subr.mxu0 0.0
    %176 = vmatpush1.msra.mxu0 0.0
    %177 = vmatprep.subr.mxu0 0.0
    %178 = vmatpush1.msra.mxu0 0.0
    %179 = vmatprep.subr.mxu0 0.0
    %180 = vmatpush1.msra.mxu0 0.0
    %181 = vmatprep.subr.mxu0 0.0
    %182 = vmatpush1.msra.mxu0 0.0
    %183 = vmatprep.subr.mxu0 0.0
    %184 = vmatpush1.msra.mxu0 0.0
    %185 = vmatprep.subr.mxu0 0.0
    %186 = vmatpush1.msra.mxu0 %v67
    %187 = vmatprep.subr.mxu0 0.0
    %188 = vmatpush1.msra.mxu0 %v66
    %189 = vmatprep.subr.mxu0 0.0
    %190 = vmatpush1.msra.mxu0 %v65
    %191 = vmatprep.subr.mxu0 0.0
    %192 = vmatpush1.msra.mxu0 %v64
    %193 = vmatprep.subr.mxu0 0.0
    %194 = vmatpush2.msra.mxu0 0.0
    %195 = vmatprep.subr.mxu0 0.0
    %196 = vmatpush2.msra.mxu0 0.0
    %197 = vmatprep.subr.mxu0 0.0
    %198 = vmatpush2.msra.mxu0 0.0
    %199 = vmatprep.subr.mxu0 0.0
    %200 = vmatpush2.msra.mxu0 0.0
    %201 = vmatprep.subr.mxu0 0.0
    %202 = vmatpush2.msra.mxu0 0.0
    %203 = vmatprep.subr.mxu0 0.0
    %204 = vmatpush2.msra.mxu0 0.0
    %205 = vmatprep.subr.mxu0 0.0
    %206 = vmatpush2.msra.mxu0 0.0
    %207 = vmatprep.subr.mxu0 0.0
    %208 = vmatpush2.msra.mxu0 0.0
    %209 = vmatprep.subr.mxu0 0.0
    %210 = vmatpush2.msra.mxu0 0.0
    %211 = vmatprep.subr.mxu0 0.0
    %212 = vmatpush2.msra.mxu0 0.0
    %213 = vmatprep.subr.mxu0 0.0
    %214 = vmatpush2.msra.mxu0 0.0
    %215 = vmatprep.subr.mxu0 0.0
    %216 = vmatpush2.msra.mxu0 0.0
    %217 = vmatprep.subr.mxu0 0.0
    %218 = vmatpush2.msra.mxu0 0.0
    %219 = vmatprep.subr.mxu0 0.0
    %220 = vmatpush2.msra.mxu0 0.0
    %221 = vmatprep.subr.mxu0 0.0
    %222 = vmatpush2.msra.mxu0 0.0
    %223 = vmatprep.subr.mxu0 0.0
    %224 = vmatpush2.msra.mxu0 0.0
    %225 = vmatprep.mubr.f32.mxu0 0.0
    %226 = vmatmul.mubr.f32.gmra.mxu0 %v159
    %v227 = vpop.f32.mrf.mxu0
    %v228 = vadd.f32 %v80, %v227
    %v229 = vpop.f32.mrf.mxu0
    %230 = vdwg.mxu0
    %v231 = vmul.f32 %v228, 0.022222223
    %v232 = vadd.f32 %v82, %v231
    %v234 = vsel %vm83, %v232, 0
    %236 = vmatprep.subr.mxu0 0.0
    %237 = vmatpush1.msra.mxu0 0.0
    %238 = vmatprep.subr.mxu0 0.0
    %239 = vmatpush1.msra.mxu0 0.0
    %240 = vmatprep.subr.mxu0 0.0
    %241 = vmatpush1.msra.mxu0 0.0
    %242 = vmatprep.subr.mxu0 0.0
    %243 = vmatpush1.msra.mxu0 0.0
    %244 = vmatprep.subr.mxu0 0.0
    %245 = vmatpush1.msra.mxu0 0.0
    %246 = vmatprep.subr.mxu0 0.0
    %247 = vmatpush1.msra.mxu0 0.0
    %248 = vmatprep.subr.mxu0 0.0
    %249 = vmatpush1.msra.mxu0 0.0
    %250 = vmatprep.subr.mxu0 0.0
    %251 = vmatpush1.msra.mxu0 0.0
    %252 = vmatprep.subr.mxu0 0.0
    %253 = vmatpush1.msra.mxu0 0.0
    %254 = vmatprep.subr.mxu0 0.0
    %255 = vmatpush1.msra.mxu0 0.0
    %256 = vmatprep.subr.mxu0 0.0
    %257 = vmatpush1.msra.mxu0 0.0
    %258 = vmatprep.subr.mxu0 0.0
    %259 = vmatpush1.msra.mxu0 0.0
    %260 = vmatprep.subr.mxu0 0.0
    %261 = vmatpush1.msra.mxu0 %v63
    %262 = vmatprep.subr.mxu0 0.0
    %263 = vmatpush1.msra.mxu0 %v62
    %264 = vmatprep.subr.mxu0 0.0
    %265 = vmatpush1.msra.mxu0 %v61
    %266 = vmatprep.subr.mxu0 0.0
    %267 = vmatpush1.msra.mxu0 %v60
    %268 = vmatprep.subr.mxu0 0.0
    %269 = vmatpush2.msra.mxu0 0.0
    %270 = vmatprep.subr.mxu0 0.0
    %271 = vmatpush2.msra.mxu0 0.0
    %272 = vmatprep.subr.mxu0 0.0
    %273 = vmatpush2.msra.mxu0 0.0
    %274 = vmatprep.subr.mxu0 0.0
    %275 = vmatpush2.msra.mxu0 0.0
    %276 = vmatprep.subr.mxu0 0.0
    %277 = vmatpush2.msra.mxu0 0.0
    %278 = vmatprep.subr.mxu0 0.0
    %279 = vmatpush2.msra.mxu0 0.0
    %280 = vmatprep.subr.mxu0 0.0
    %281 = vmatpush2.msra.mxu0 0.0
    %282 = vmatprep.subr.mxu0 0.0
    %283 = vmatpush2.msra.mxu0 0.0
    %284 = vmatprep.subr.mxu0 0.0
    %285 = vmatpush2.msra.mxu0 0.0
    %286 = vmatprep.subr.mxu0 0.0
    %287 = vmatpush2.msra.mxu0 0.0
    %288 = vmatprep.subr.mxu0 0.0
    %289 = vmatpush2.msra.mxu0 0.0
    %290 = vmatprep.subr.mxu0 0.0
    %291 = vmatpush2.msra.mxu0 0.0
    %292 = vmatprep.subr.mxu0 0.0
    %293 = vmatpush2.msra.mxu0 0.0
    %294 = vmatprep.subr.mxu0 0.0
    %295 = vmatpush2.msra.mxu0 0.0
    %296 = vmatprep.subr.mxu0 0.0
    %297 = vmatpush2.msra.mxu0 0.0
    %298 = vmatprep.subr.mxu0 0.0
    %299 = vmatpush2.msra.mxu0 0.0
    %300 = vmatprep.mubr.f32.mxu0 0.0
    %301 = vmatmul.mubr.f32.gmra.mxu0 %v234
    %v302 = vpop.f32.mrf.mxu0
    %v303 = vadd.f32 %v73, %v302
    %v304 = vpop.f32.mrf.mxu0
    %305 = vdwg.mxu0
    %v306 = vtanh.pop %v303
    %v308 = vsel %vm83, %v306, 0
    %310 = vmatprep.subr.mxu0 0.0
    %311 = vmatpush1.msra.mxu0 0.0
    %312 = vmatprep.subr.mxu0 0.0
    %313 = vmatpush1.msra.mxu0 0.0
    %314 = vmatprep.subr.mxu0 0.0
    %315 = vmatpush1.msra.mxu0 0.0
    %316 = vmatprep.subr.mxu0 0.0
    %317 = vmatpush1.msra.mxu0 0.0
    %318 = vmatprep.subr.mxu0 0.0
    %319 = vmatpush1.msra.mxu0 0.0
    %320 = vmatprep.subr.mxu0 0.0
    %321 = vmatpush1.msra.mxu0 0.0
    %322 = vmatprep.subr.mxu0 0.0
    %323 = vmatpush1.msra.mxu0 0.0
    %324 = vmatprep.subr.mxu0 0.0
    %325 = vmatpush1.msra.mxu0 0.0
    %326 = vmatprep.subr.mxu0 0.0
    %327 = vmatpush1.msra.mxu0 0.0
    %328 = vmatprep.subr.mxu0 0.0
    %329 = vmatpush1.msra.mxu0 0.0
    %330 = vmatprep.subr.mxu0 0.0
    %331 = vmatpush1.msra.mxu0 0.0
    %332 = vmatprep.subr.mxu0 0.0
    %333 = vmatpush1.msra.mxu0 0.0
    %334 = vmatprep.subr.mxu0 0.0
    %335 = vmatpush1.msra.mxu0 %v67
    %336 = vmatprep.subr.mxu0 0.0
    %337 = vmatpush1.msra.mxu0 %v66
    %338 = vmatprep.subr.mxu0 0.0
    %339 = vmatpush1.msra.mxu0 %v65
    %340 = vmatprep.subr.mxu0 0.0
    %341 = vmatpush1.msra.mxu0 %v64
    %342 = vmatprep.subr.mxu0 0.0
    %343 = vmatpush2.msra.mxu0 0.0
    %344 = vmatprep.subr.mxu0 0.0
    %345 = vmatpush2.msra.mxu0 0.0
    %346 = vmatprep.subr.mxu0 0.0
    %347 = vmatpush2.msra.mxu0 0.0
    %348 = vmatprep.subr.mxu0 0.0
    %349 = vmatpush2.msra.mxu0 0.0
    %350 = vmatprep.subr.mxu0 0.0
    %351 = vmatpush2.msra.mxu0 0.0
    %352 = vmatprep.subr.mxu0 0.0
    %353 = vmatpush2.msra.mxu0 0.0
    %354 = vmatprep.subr.mxu0 0.0
    %355 = vmatpush2.msra.mxu0 0.0
    %356 = vmatprep.subr.mxu0 0.0
    %357 = vmatpush2.msra.mxu0 0.0
    %358 = vmatprep.subr.mxu0 0.0
    %359 = vmatpush2.msra.mxu0 0.0
    %360 = vmatprep.subr.mxu0 0.0
    %361 = vmatpush2.msra.mxu0 0.0
    %362 = vmatprep.subr.mxu0 0.0
    %363 = vmatpush2.msra.mxu0 0.0
    %364 = vmatprep.subr.mxu0 0.0
    %365 = vmatpush2.msra.mxu0 0.0
    %366 = vmatprep.subr.mxu0 0.0
    %367 = vmatpush2.msra.mxu0 0.0
    %368 = vmatprep.subr.mxu0 0.0
    %369 = vmatpush2.msra.mxu0 0.0
    %370 = vmatprep.subr.mxu0 0.0
    %371 = vmatpush2.msra.mxu0 0.0
    %372 = vmatprep.subr.mxu0 0.0
    %373 = vmatpush2.msra.mxu0 0.0
    %374 = vmatprep.mubr.f32.mxu0 0.0
    %375 = vmatmul.mubr.f32.gmra.mxu0 %v308
    %v376 = vpop.f32.mrf.mxu0
    %v377 = vadd.f32 %v80, %v376
    %v378 = vpop.f32.mrf.mxu0
    %379 = vdwg.mxu0
    %v380 = vmul.f32 %v228, 0.008333334
    %v381 = vmul.f32 %v377, 0.025
    %v382 = vadd.f32 %v380, %v381
    %v383 = vadd.f32 %v82, %v382
    %v385 = vsel %vm83, %v383, 0
    %387 = vmatprep.subr.mxu0 0.0
    %388 = vmatpush1.msra.mxu0 0.0
    %389 = vmatprep.subr.mxu0 0.0
    %390 = vmatpush1.msra.mxu0 0.0
    %391 = vmatprep.subr.mxu0 0.0
    %392 = vmatpush1.msra.mxu0 0.0
    %393 = vmatprep.subr.mxu0 0.0
    %394 = vmatpush1.msra.mxu0 0.0
    %395 = vmatprep.subr.mxu0 0.0
    %396 = vmatpush1.msra.mxu0 0.0
    %397 = vmatprep.subr.mxu0 0.0
    %398 = vmatpush1.msra.mxu0 0.0
    %399 = vmatprep.subr.mxu0 0.0
    %400 = vmatpush1.msra.mxu0 0.0
    %401 = vmatprep.subr.mxu0 0.0
    %402 = vmatpush1.msra.mxu0 0.0
    %403 = vmatprep.subr.mxu0 0.0
    %404 = vmatpush1.msra.mxu0 0.0
    %405 = vmatprep.subr.mxu0 0.0
    %406 = vmatpush1.msra.mxu0 0.0
    %407 = vmatprep.subr.mxu0 0.0
    %408 = vmatpush1.msra.mxu0 0.0
    %409 = vmatprep.subr.mxu0 0.0
    %410 = vmatpush1.msra.mxu0 0.0
    %411 = vmatprep.subr.mxu0 0.0
    %412 = vmatpush1.msra.mxu0 %v63
    %413 = vmatprep.subr.mxu0 0.0
    %414 = vmatpush1.msra.mxu0 %v62
    %415 = vmatprep.subr.mxu0 0.0
    %416 = vmatpush1.msra.mxu0 %v61
    %417 = vmatprep.subr.mxu0 0.0
    %418 = vmatpush1.msra.mxu0 %v60
    %419 = vmatprep.subr.mxu0 0.0
    %420 = vmatpush2.msra.mxu0 0.0
    %421 = vmatprep.subr.mxu0 0.0
    %422 = vmatpush2.msra.mxu0 0.0
    %423 = vmatprep.subr.mxu0 0.0
    %424 = vmatpush2.msra.mxu0 0.0
    %425 = vmatprep.subr.mxu0 0.0
    %426 = vmatpush2.msra.mxu0 0.0
    %427 = vmatprep.subr.mxu0 0.0
    %428 = vmatpush2.msra.mxu0 0.0
    %429 = vmatprep.subr.mxu0 0.0
    %430 = vmatpush2.msra.mxu0 0.0
    %431 = vmatprep.subr.mxu0 0.0
    %432 = vmatpush2.msra.mxu0 0.0
    %433 = vmatprep.subr.mxu0 0.0
    %434 = vmatpush2.msra.mxu0 0.0
    %435 = vmatprep.subr.mxu0 0.0
    %436 = vmatpush2.msra.mxu0 0.0
    %437 = vmatprep.subr.mxu0 0.0
    %438 = vmatpush2.msra.mxu0 0.0
    %439 = vmatprep.subr.mxu0 0.0
    %440 = vmatpush2.msra.mxu0 0.0
    %441 = vmatprep.subr.mxu0 0.0
    %442 = vmatpush2.msra.mxu0 0.0
    %443 = vmatprep.subr.mxu0 0.0
    %444 = vmatpush2.msra.mxu0 0.0
    %445 = vmatprep.subr.mxu0 0.0
    %446 = vmatpush2.msra.mxu0 0.0
    %447 = vmatprep.subr.mxu0 0.0
    %448 = vmatpush2.msra.mxu0 0.0
    %449 = vmatprep.subr.mxu0 0.0
    %450 = vmatpush2.msra.mxu0 0.0
    %451 = vmatprep.mubr.f32.mxu0 0.0
    %452 = vmatmul.mubr.f32.gmra.mxu0 %v385
    %v453 = vpop.f32.mrf.mxu0
    %v454 = vadd.f32 %v73, %v453
    %v455 = vpop.f32.mrf.mxu0
    %456 = vdwg.mxu0
    %v457 = vtanh.pop %v454
    %v459 = vsel %vm83, %v457, 0
    %461 = vmatprep.subr.mxu0 0.0
    %462 = vmatpush1.msra.mxu0 0.0
    %463 = vmatprep.subr.mxu0 0.0
    %464 = vmatpush1.msra.mxu0 0.0
    %465 = vmatprep.subr.mxu0 0.0
    %466 = vmatpush1.msra.mxu0 0.0
    %467 = vmatprep.subr.mxu0 0.0
    %468 = vmatpush1.msra.mxu0 0.0
    %469 = vmatprep.subr.mxu0 0.0
    %470 = vmatpush1.msra.mxu0 0.0
    %471 = vmatprep.subr.mxu0 0.0
    %472 = vmatpush1.msra.mxu0 0.0
    %473 = vmatprep.subr.mxu0 0.0
    %474 = vmatpush1.msra.mxu0 0.0
    %475 = vmatprep.subr.mxu0 0.0
    %476 = vmatpush1.msra.mxu0 0.0
    %477 = vmatprep.subr.mxu0 0.0
    %478 = vmatpush1.msra.mxu0 0.0
    %479 = vmatprep.subr.mxu0 0.0
    %480 = vmatpush1.msra.mxu0 0.0
    %481 = vmatprep.subr.mxu0 0.0
    %482 = vmatpush1.msra.mxu0 0.0
    %483 = vmatprep.subr.mxu0 0.0
    %484 = vmatpush1.msra.mxu0 0.0
    %485 = vmatprep.subr.mxu0 0.0
    %486 = vmatpush1.msra.mxu0 %v67
    %487 = vmatprep.subr.mxu0 0.0
    %488 = vmatpush1.msra.mxu0 %v66
    %489 = vmatprep.subr.mxu0 0.0
    %490 = vmatpush1.msra.mxu0 %v65
    %491 = vmatprep.subr.mxu0 0.0
    %492 = vmatpush1.msra.mxu0 %v64
    %493 = vmatprep.subr.mxu0 0.0
    %494 = vmatpush2.msra.mxu0 0.0
    %495 = vmatprep.subr.mxu0 0.0
    %496 = vmatpush2.msra.mxu0 0.0
    %497 = vmatprep.subr.mxu0 0.0
    %498 = vmatpush2.msra.mxu0 0.0
    %499 = vmatprep.subr.mxu0 0.0
    %500 = vmatpush2.msra.mxu0 0.0
    %501 = vmatprep.subr.mxu0 0.0
    %502 = vmatpush2.msra.mxu0 0.0
    %503 = vmatprep.subr.mxu0 0.0
    %504 = vmatpush2.msra.mxu0 0.0
    %505 = vmatprep.subr.mxu0 0.0
    %506 = vmatpush2.msra.mxu0 0.0
    %507 = vmatprep.subr.mxu0 0.0
    %508 = vmatpush2.msra.mxu0 0.0
    %509 = vmatprep.subr.mxu0 0.0
    %510 = vmatpush2.msra.mxu0 0.0
    %511 = vmatprep.subr.mxu0 0.0
    %512 = vmatpush2.msra.mxu0 0.0
    %513 = vmatprep.subr.mxu0 0.0
    %514 = vmatpush2.msra.mxu0 0.0
    %515 = vmatprep.subr.mxu0 0.0
    %516 = vmatpush2.msra.mxu0 0.0
    %517 = vmatprep.subr.mxu0 0.0
    %518 = vmatpush2.msra.mxu0 0.0
    %519 = vmatprep.subr.mxu0 0.0
    %520 = vmatpush2.msra.mxu0 0.0
    %521 = vmatprep.subr.mxu0 0.0
    %522 = vmatpush2.msra.mxu0 0.0
    %523 = vmatprep.subr.mxu0 0.0
    %524 = vmatpush2.msra.mxu0 0.0
    %525 = vmatprep.mubr.f32.mxu0 0.0
    %526 = vmatmul.mubr.f32.gmra.mxu0 %v459
    %v527 = vpop.f32.mrf.mxu0
    %v528 = vadd.f32 %v80, %v527
    %v529 = vpop.f32.mrf.mxu0
    %530 = vdwg.mxu0
    %v531 = vmul.f32 %v228, 0.108641975
    %v532 = vmul.f32 %v377, -0.4148148
    %v533 = vadd.f32 %v531, %v532
    %v534 = vmul.f32 %v528, 0.39506173
    %v535 = vadd.f32 %v533, %v534
    %v536 = vadd.f32 %v82, %v535
    %v538 = vsel %vm83, %v536, 0
    %540 = vmatprep.subr.mxu0 0.0
    %541 = vmatpush1.msra.mxu0 0.0
    %542 = vmatprep.subr.mxu0 0.0
    %543 = vmatpush1.msra.mxu0 0.0
    %544 = vmatprep.subr.mxu0 0.0
    %545 = vmatpush1.msra.mxu0 0.0
    %546 = vmatprep.subr.mxu0 0.0
    %547 = vmatpush1.msra.mxu0 0.0
    %548 = vmatprep.subr.mxu0 0.0
    %549 = vmatpush1.msra.mxu0 0.0
    %550 = vmatprep.subr.mxu0 0.0
    %551 = vmatpush1.msra.mxu0 0.0
    %552 = vmatprep.subr.mxu0 0.0
    %553 = vmatpush1.msra.mxu0 0.0
    %554 = vmatprep.subr.mxu0 0.0
    %555 = vmatpush1.msra.mxu0 0.0
    %556 = vmatprep.subr.mxu0 0.0
    %557 = vmatpush1.msra.mxu0 0.0
    %558 = vmatprep.subr.mxu0 0.0
    %559 = vmatpush1.msra.mxu0 0.0
    %560 = vmatprep.subr.mxu0 0.0
    %561 = vmatpush1.msra.mxu0 0.0
    %562 = vmatprep.subr.mxu0 0.0
    %563 = vmatpush1.msra.mxu0 0.0
    %564 = vmatprep.subr.mxu0 0.0
    %565 = vmatpush1.msra.mxu0 %v63
    %566 = vmatprep.subr.mxu0 0.0
    %567 = vmatpush1.msra.mxu0 %v62
    %568 = vmatprep.subr.mxu0 0.0
    %569 = vmatpush1.msra.mxu0 %v61
    %570 = vmatprep.subr.mxu0 0.0
    %571 = vmatpush1.msra.mxu0 %v60
    %572 = vmatprep.subr.mxu0 0.0
    %573 = vmatpush2.msra.mxu0 0.0
    %574 = vmatprep.subr.mxu0 0.0
    %575 = vmatpush2.msra.mxu0 0.0
    %576 = vmatprep.subr.mxu0 0.0
    %577 = vmatpush2.msra.mxu0 0.0
    %578 = vmatprep.subr.mxu0 0.0
    %579 = vmatpush2.msra.mxu0 0.0
    %580 = vmatprep.subr.mxu0 0.0
    %581 = vmatpush2.msra.mxu0 0.0
    %582 = vmatprep.subr.mxu0 0.0
    %583 = vmatpush2.msra.mxu0 0.0
    %584 = vmatprep.subr.mxu0 0.0
    %585 = vmatpush2.msra.mxu0 0.0
    %586 = vmatprep.subr.mxu0 0.0
    %587 = vmatpush2.msra.mxu0 0.0
    %588 = vmatprep.subr.mxu0 0.0
    %589 = vmatpush2.msra.mxu0 0.0
    %590 = vmatprep.subr.mxu0 0.0
    %591 = vmatpush2.msra.mxu0 0.0
    %592 = vmatprep.subr.mxu0 0.0
    %593 = vmatpush2.msra.mxu0 0.0
    %594 = vmatprep.subr.mxu0 0.0
    %595 = vmatpush2.msra.mxu0 0.0
    %596 = vmatprep.subr.mxu0 0.0
    %597 = vmatpush2.msra.mxu0 0.0
    %598 = vmatprep.subr.mxu0 0.0
    %599 = vmatpush2.msra.mxu0 0.0
    %600 = vmatprep.subr.mxu0 0.0
    %601 = vmatpush2.msra.mxu0 0.0
    %602 = vmatprep.subr.mxu0 0.0
    %603 = vmatpush2.msra.mxu0 0.0
    %604 = vmatprep.mubr.f32.mxu0 0.0
    %605 = vmatmul.mubr.f32.gmra.mxu0 %v538
    %v606 = vpop.f32.mrf.mxu0
    %v607 = vadd.f32 %v73, %v606
    %v608 = vpop.f32.mrf.mxu0
    %609 = vdwg.mxu0
    %v610 = vtanh.pop %v607
    %v612 = vsel %vm83, %v610, 0
    %614 = vmatprep.subr.mxu0 0.0
    %615 = vmatpush1.msra.mxu0 0.0
    %616 = vmatprep.subr.mxu0 0.0
    %617 = vmatpush1.msra.mxu0 0.0
    %618 = vmatprep.subr.mxu0 0.0
    %619 = vmatpush1.msra.mxu0 0.0
    %620 = vmatprep.subr.mxu0 0.0
    %621 = vmatpush1.msra.mxu0 0.0
    %622 = vmatprep.subr.mxu0 0.0
    %623 = vmatpush1.msra.mxu0 0.0
    %624 = vmatprep.subr.mxu0 0.0
    %625 = vmatpush1.msra.mxu0 0.0
    %626 = vmatprep.subr.mxu0 0.0
    %627 = vmatpush1.msra.mxu0 0.0
    %628 = vmatprep.subr.mxu0 0.0
    %629 = vmatpush1.msra.mxu0 0.0
    %630 = vmatprep.subr.mxu0 0.0
    %631 = vmatpush1.msra.mxu0 0.0
    %632 = vmatprep.subr.mxu0 0.0
    %633 = vmatpush1.msra.mxu0 0.0
    %634 = vmatprep.subr.mxu0 0.0
    %635 = vmatpush1.msra.mxu0 0.0
    %636 = vmatprep.subr.mxu0 0.0
    %637 = vmatpush1.msra.mxu0 0.0
    %638 = vmatprep.subr.mxu0 0.0
    %639 = vmatpush1.msra.mxu0 %v67
    %640 = vmatprep.subr.mxu0 0.0
    %641 = vmatpush1.msra.mxu0 %v66
    %642 = vmatprep.subr.mxu0 0.0
    %643 = vmatpush1.msra.mxu0 %v65
    %644 = vmatprep.subr.mxu0 0.0
    %645 = vmatpush1.msra.mxu0 %v64
    %646 = vmatprep.subr.mxu0 0.0
    %647 = vmatpush2.msra.mxu0 0.0
    %648 = vmatprep.subr.mxu0 0.0
    %649 = vmatpush2.msra.mxu0 0.0
    %650 = vmatprep.subr.mxu0 0.0
    %651 = vmatpush2.msra.mxu0 0.0
    %652 = vmatprep.subr.mxu0 0.0
    %653 = vmatpush2.msra.mxu0 0.0
    %654 = vmatprep.subr.mxu0 0.0
    %655 = vmatpush2.msra.mxu0 0.0
    %656 = vmatprep.subr.mxu0 0.0
    %657 = vmatpush2.msra.mxu0 0.0
    %658 = vmatprep.subr.mxu0 0.0
    %659 = vmatpush2.msra.mxu0 0.0
    %660 = vmatprep.subr.mxu0 0.0
    %661 = vmatpush2.msra.mxu0 0.0
    %662 = vmatprep.subr.mxu0 0.0
    %663 = vmatpush2.msra.mxu0 0.0
    %664 = vmatprep.subr.mxu0 0.0
    %665 = vmatpush2.msra.mxu0 0.0
    %666 = vmatprep.subr.mxu0 0.0
    %667 = vmatpush2.msra.mxu0 0.0
    %668 = vmatprep.subr.mxu0 0.0
    %669 = vmatpush2.msra.mxu0 0.0
    %670 = vmatprep.subr.mxu0 0.0
    %671 = vmatpush2.msra.mxu0 0.0
    %672 = vmatprep.subr.mxu0 0.0
    %673 = vmatpush2.msra.mxu0 0.0
    %674 = vmatprep.subr.mxu0 0.0
    %675 = vmatpush2.msra.mxu0 0.0
    %676 = vmatprep.subr.mxu0 0.0
    %677 = vmatpush2.msra.mxu0 0.0
    %678 = vmatprep.mubr.f32.mxu0 0.0
    %679 = vmatmul.mubr.f32.gmra.mxu0 %v612
    %v680 = vpop.f32.mrf.mxu0
    %v681 = vadd.f32 %v80, %v680
    %v682 = vpop.f32.mrf.mxu0
    %683 = vdwg.mxu0
    %v684 = vmul.f32 %v228, 0.32806653
    %v685 = vmul.f32 %v377, -1.2884215
    %v686 = vadd.f32 %v684, %v685
    %v687 = vmul.f32 %v528, 1.0914326
    %v688 = vadd.f32 %v686, %v687
    %v689 = vmul.f32 %v681, -0.032312147
    %v690 = vadd.f32 %v688, %v689
    %v691 = vadd.f32 %v82, %v690
    %v693 = vsel %vm83, %v691, 0
    %695 = vmatprep.subr.mxu0 0.0
    %696 = vmatpush1.msra.mxu0 0.0
    %697 = vmatprep.subr.mxu0 0.0
    %698 = vmatpush1.msra.mxu0 0.0
    %699 = vmatprep.subr.mxu0 0.0
    %700 = vmatpush1.msra.mxu0 0.0
    %701 = vmatprep.subr.mxu0 0.0
    %702 = vmatpush1.msra.mxu0 0.0
    %703 = vmatprep.subr.mxu0 0.0
    %704 = vmatpush1.msra.mxu0 0.0
    %705 = vmatprep.subr.mxu0 0.0
    %706 = vmatpush1.msra.mxu0 0.0
    %707 = vmatprep.subr.mxu0 0.0
    %708 = vmatpush1.msra.mxu0 0.0
    %709 = vmatprep.subr.mxu0 0.0
    %710 = vmatpush1.msra.mxu0 0.0
    %711 = vmatprep.subr.mxu0 0.0
    %712 = vmatpush1.msra.mxu0 0.0
    %713 = vmatprep.subr.mxu0 0.0
    %714 = vmatpush1.msra.mxu0 0.0
    %715 = vmatprep.subr.mxu0 0.0
    %716 = vmatpush1.msra.mxu0 0.0
    %717 = vmatprep.subr.mxu0 0.0
    %718 = vmatpush1.msra.mxu0 0.0
    %719 = vmatprep.subr.mxu0 0.0
    %720 = vmatpush1.msra.mxu0 %v63
    %721 = vmatprep.subr.mxu0 0.0
    %722 = vmatpush1.msra.mxu0 %v62
    %723 = vmatprep.subr.mxu0 0.0
    %724 = vmatpush1.msra.mxu0 %v61
    %725 = vmatprep.subr.mxu0 0.0
    %726 = vmatpush1.msra.mxu0 %v60
    %727 = vmatprep.subr.mxu0 0.0
    %728 = vmatpush2.msra.mxu0 0.0
    %729 = vmatprep.subr.mxu0 0.0
    %730 = vmatpush2.msra.mxu0 0.0
    %731 = vmatprep.subr.mxu0 0.0
    %732 = vmatpush2.msra.mxu0 0.0
    %733 = vmatprep.subr.mxu0 0.0
    %734 = vmatpush2.msra.mxu0 0.0
    %735 = vmatprep.subr.mxu0 0.0
    %736 = vmatpush2.msra.mxu0 0.0
    %737 = vmatprep.subr.mxu0 0.0
    %738 = vmatpush2.msra.mxu0 0.0
    %739 = vmatprep.subr.mxu0 0.0
    %740 = vmatpush2.msra.mxu0 0.0
    %741 = vmatprep.subr.mxu0 0.0
    %742 = vmatpush2.msra.mxu0 0.0
    %743 = vmatprep.subr.mxu0 0.0
    %744 = vmatpush2.msra.mxu0 0.0
    %745 = vmatprep.subr.mxu0 0.0
    %746 = vmatpush2.msra.mxu0 0.0
    %747 = vmatprep.subr.mxu0 0.0
    %748 = vmatpush2.msra.mxu0 0.0
    %749 = vmatprep.subr.mxu0 0.0
    %750 = vmatpush2.msra.mxu0 0.0
    %751 = vmatprep.subr.mxu0 0.0
    %752 = vmatpush2.msra.mxu0 0.0
    %753 = vmatprep.subr.mxu0 0.0
    %754 = vmatpush2.msra.mxu0 0.0
    %755 = vmatprep.subr.mxu0 0.0
    %756 = vmatpush2.msra.mxu0 0.0
    %757 = vmatprep.subr.mxu0 0.0
    %758 = vmatpush2.msra.mxu0 0.0
    %759 = vmatprep.mubr.f32.mxu0 0.0
    %760 = vmatmul.mubr.f32.gmra.mxu0 %v693
    %v761 = vpop.f32.mrf.mxu0
    %v762 = vadd.f32 %v73, %v761
    %v763 = vpop.f32.mrf.mxu0
    %764 = vdwg.mxu0
    %v765 = vtanh.pop %v762
    %v767 = vsel %vm83, %v765, 0
    %769 = vmatprep.subr.mxu0 0.0
    %770 = vmatpush1.msra.mxu0 0.0
    %771 = vmatprep.subr.mxu0 0.0
    %772 = vmatpush1.msra.mxu0 0.0
    %773 = vmatprep.subr.mxu0 0.0
    %774 = vmatpush1.msra.mxu0 0.0
    %775 = vmatprep.subr.mxu0 0.0
    %776 = vmatpush1.msra.mxu0 0.0
    %777 = vmatprep.subr.mxu0 0.0
    %778 = vmatpush1.msra.mxu0 0.0
    %779 = vmatprep.subr.mxu0 0.0
    %780 = vmatpush1.msra.mxu0 0.0
    %781 = vmatprep.subr.mxu0 0.0
    %782 = vmatpush1.msra.mxu0 0.0
    %783 = vmatprep.subr.mxu0 0.0
    %784 = vmatpush1.msra.mxu0 0.0
    %785 = vmatprep.subr.mxu0 0.0
    %786 = vmatpush1.msra.mxu0 0.0
    %787 = vmatprep.subr.mxu0 0.0
    %788 = vmatpush1.msra.mxu0 0.0
    %789 = vmatprep.subr.mxu0 0.0
    %790 = vmatpush1.msra.mxu0 0.0
    %791 = vmatprep.subr.mxu0 0.0
    %792 = vmatpush1.msra.mxu0 0.0
    %793 = vmatprep.subr.mxu0 0.0
    %794 = vmatpush1.msra.mxu0 %v67
    %795 = vmatprep.subr.mxu0 0.0
    %796 = vmatpush1.msra.mxu0 %v66
    %797 = vmatprep.subr.mxu0 0.0
    %798 = vmatpush1.msra.mxu0 %v65
    %799 = vmatprep.subr.mxu0 0.0
    %800 = vmatpush1.msra.mxu0 %v64
    %801 = vmatprep.subr.mxu0 0.0
    %802 = vmatpush2.msra.mxu0 0.0
    %803 = vmatprep.subr.mxu0 0.0
    %804 = vmatpush2.msra.mxu0 0.0
    %805 = vmatprep.subr.mxu0 0.0
    %806 = vmatpush2.msra.mxu0 0.0
    %807 = vmatprep.subr.mxu0 0.0
    %808 = vmatpush2.msra.mxu0 0.0
    %809 = vmatprep.subr.mxu0 0.0
    %810 = vmatpush2.msra.mxu0 0.0
    %811 = vmatprep.subr.mxu0 0.0
    %812 = vmatpush2.msra.mxu0 0.0
    %813 = vmatprep.subr.mxu0 0.0
    %814 = vmatpush2.msra.mxu0 0.0
    %815 = vmatprep.subr.mxu0 0.0
    %816 = vmatpush2.msra.mxu0 0.0
    %817 = vmatprep.subr.mxu0 0.0
    %818 = vmatpush2.msra.mxu0 0.0
    %819 = vmatprep.subr.mxu0 0.0
    %820 = vmatpush2.msra.mxu0 0.0
    %821 = vmatprep.subr.mxu0 0.0
    %822 = vmatpush2.msra.mxu0 0.0
    %823 = vmatprep.subr.mxu0 0.0
    %824 = vmatpush2.msra.mxu0 0.0
    %825 = vmatprep.subr.mxu0 0.0
    %826 = vmatpush2.msra.mxu0 0.0
    %827 = vmatprep.subr.mxu0 0.0
    %828 = vmatpush2.msra.mxu0 0.0
    %829 = vmatprep.subr.mxu0 0.0
    %830 = vmatpush2.msra.mxu0 0.0
    %831 = vmatprep.subr.mxu0 0.0
    %832 = vmatpush2.msra.mxu0 0.0
    %833 = vmatprep.mubr.f32.mxu0 0.0
    %834 = vmatmul.mubr.f32.gmra.mxu0 %v767
    %v835 = vpop.f32.mrf.mxu0
    %v836 = vadd.f32 %v80, %v835
    %v837 = vpop.f32.mrf.mxu0
    %838 = vdwg.mxu0
    %v839 = vmul.f32 %v228, 0.3162528
    %v840 = vmul.f32 %v377, -1.1952862
    %v841 = vadd.f32 %v839, %v840
    %v842 = vmul.f32 %v528, 0.9896025
    %v843 = vadd.f32 %v841, %v842
    %v844 = vmul.f32 %v681, 0.030934343
    %v845 = vadd.f32 %v843, %v844
    %v846 = vmul.f32 %v836, -0.030392367
    %v847 = vadd.f32 %v845, %v846
    %v848 = vadd.f32 %v82, %v847
    %v850 = vsel %vm83, %v848, 0
    %852 = vmatprep.subr.mxu0 0.0
    %853 = vmatpush1.msra.mxu0 0.0
    %854 = vmatprep.subr.mxu0 0.0
    %855 = vmatpush1.msra.mxu0 0.0
    %856 = vmatprep.subr.mxu0 0.0
    %857 = vmatpush1.msra.mxu0 0.0
    %858 = vmatprep.subr.mxu0 0.0
    %859 = vmatpush1.msra.mxu0 0.0
    %860 = vmatprep.subr.mxu0 0.0
    %861 = vmatpush1.msra.mxu0 0.0
    %862 = vmatprep.subr.mxu0 0.0
    %863 = vmatpush1.msra.mxu0 0.0
    %864 = vmatprep.subr.mxu0 0.0
    %865 = vmatpush1.msra.mxu0 0.0
    %866 = vmatprep.subr.mxu0 0.0
    %867 = vmatpush1.msra.mxu0 0.0
    %868 = vmatprep.subr.mxu0 0.0
    %869 = vmatpush1.msra.mxu0 0.0
    %870 = vmatprep.subr.mxu0 0.0
    %871 = vmatpush1.msra.mxu0 0.0
    %872 = vmatprep.subr.mxu0 0.0
    %873 = vmatpush1.msra.mxu0 0.0
    %874 = vmatprep.subr.mxu0 0.0
    %875 = vmatpush1.msra.mxu0 0.0
    %876 = vmatprep.subr.mxu0 0.0
    %877 = vmatpush1.msra.mxu0 %v63
    %878 = vmatprep.subr.mxu0 0.0
    %879 = vmatpush1.msra.mxu0 %v62
    %880 = vmatprep.subr.mxu0 0.0
    %881 = vmatpush1.msra.mxu0 %v61
    %882 = vmatprep.subr.mxu0 0.0
    %883 = vmatpush1.msra.mxu0 %v60
    %884 = vmatprep.subr.mxu0 0.0
    %885 = vmatpush2.msra.mxu0 0.0
    %886 = vmatprep.subr.mxu0 0.0
    %887 = vmatpush2.msra.mxu0 0.0
    %888 = vmatprep.subr.mxu0 0.0
    %889 = vmatpush2.msra.mxu0 0.0
    %890 = vmatprep.subr.mxu0 0.0
    %891 = vmatpush2.msra.mxu0 0.0
    %892 = vmatprep.subr.mxu0 0.0
    %893 = vmatpush2.msra.mxu0 0.0
    %894 = vmatprep.subr.mxu0 0.0
    %895 = vmatpush2.msra.mxu0 0.0
    %896 = vmatprep.subr.mxu0 0.0
    %897 = vmatpush2.msra.mxu0 0.0
    %898 = vmatprep.subr.mxu0 0.0
    %899 = vmatpush2.msra.mxu0 0.0
    %900 = vmatprep.subr.mxu0 0.0
    %901 = vmatpush2.msra.mxu0 0.0
    %902 = vmatprep.subr.mxu0 0.0
    %903 = vmatpush2.msra.mxu0 0.0
    %904 = vmatprep.subr.mxu0 0.0
    %905 = vmatpush2.msra.mxu0 0.0
    %906 = vmatprep.subr.mxu0 0.0
    %907 = vmatpush2.msra.mxu0 0.0
    %908 = vmatprep.subr.mxu0 0.0
    %909 = vmatpush2.msra.mxu0 0.0
    %910 = vmatprep.subr.mxu0 0.0
    %911 = vmatpush2.msra.mxu0 0.0
    %912 = vmatprep.subr.mxu0 0.0
    %913 = vmatpush2.msra.mxu0 0.0
    %914 = vmatprep.subr.mxu0 0.0
    %915 = vmatpush2.msra.mxu0 0.0
    %916 = vmatprep.mubr.f32.mxu0 0.0
    %917 = vmatmul.mubr.f32.gmra.mxu0 %v850
    %v918 = vpop.f32.mrf.mxu0
    %v919 = vadd.f32 %v73, %v918
    %v920 = vpop.f32.mrf.mxu0
    %921 = vdwg.mxu0
    %v922 = vtanh.pop %v919
    %v924 = vsel %vm83, %v922, 0
    %926 = vmatprep.subr.mxu0 0.0
    %927 = vmatpush1.msra.mxu0 0.0
    %928 = vmatprep.subr.mxu0 0.0
    %929 = vmatpush1.msra.mxu0 0.0
    %930 = vmatprep.subr.mxu0 0.0
    %931 = vmatpush1.msra.mxu0 0.0
    %932 = vmatprep.subr.mxu0 0.0
    %933 = vmatpush1.msra.mxu0 0.0
    %934 = vmatprep.subr.mxu0 0.0
    %935 = vmatpush1.msra.mxu0 0.0
    %936 = vmatprep.subr.mxu0 0.0
    %937 = vmatpush1.msra.mxu0 0.0
    %938 = vmatprep.subr.mxu0 0.0
    %939 = vmatpush1.msra.mxu0 0.0
    %940 = vmatprep.subr.mxu0 0.0
    %941 = vmatpush1.msra.mxu0 0.0
    %942 = vmatprep.subr.mxu0 0.0
    %943 = vmatpush1.msra.mxu0 0.0
    %944 = vmatprep.subr.mxu0 0.0
    %945 = vmatpush1.msra.mxu0 0.0
    %946 = vmatprep.subr.mxu0 0.0
    %947 = vmatpush1.msra.mxu0 0.0
    %948 = vmatprep.subr.mxu0 0.0
    %949 = vmatpush1.msra.mxu0 0.0
    %950 = vmatprep.subr.mxu0 0.0
    %951 = vmatpush1.msra.mxu0 %v67
    %952 = vmatprep.subr.mxu0 0.0
    %953 = vmatpush1.msra.mxu0 %v66
    %954 = vmatprep.subr.mxu0 0.0
    %955 = vmatpush1.msra.mxu0 %v65
    %956 = vmatprep.subr.mxu0 0.0
    %957 = vmatpush1.msra.mxu0 %v64
    %958 = vmatprep.subr.mxu0 0.0
    %959 = vmatpush2.msra.mxu0 0.0
    %960 = vmatprep.subr.mxu0 0.0
    %961 = vmatpush2.msra.mxu0 0.0
    %962 = vmatprep.subr.mxu0 0.0
    %963 = vmatpush2.msra.mxu0 0.0
    %964 = vmatprep.subr.mxu0 0.0
    %965 = vmatpush2.msra.mxu0 0.0
    %966 = vmatprep.subr.mxu0 0.0
    %967 = vmatpush2.msra.mxu0 0.0
    %968 = vmatprep.subr.mxu0 0.0
    %969 = vmatpush2.msra.mxu0 0.0
    %970 = vmatprep.subr.mxu0 0.0
    %971 = vmatpush2.msra.mxu0 0.0
    %972 = vmatprep.subr.mxu0 0.0
    %973 = vmatpush2.msra.mxu0 0.0
    %974 = vmatprep.subr.mxu0 0.0
    %975 = vmatpush2.msra.mxu0 0.0
    %976 = vmatprep.subr.mxu0 0.0
    %977 = vmatpush2.msra.mxu0 0.0
    %978 = vmatprep.subr.mxu0 0.0
    %979 = vmatpush2.msra.mxu0 0.0
    %980 = vmatprep.subr.mxu0 0.0
    %981 = vmatpush2.msra.mxu0 0.0
    %982 = vmatprep.subr.mxu0 0.0
    %983 = vmatpush2.msra.mxu0 0.0
    %984 = vmatprep.subr.mxu0 0.0
    %985 = vmatpush2.msra.mxu0 0.0
    %986 = vmatprep.subr.mxu0 0.0
    %987 = vmatpush2.msra.mxu0 0.0
    %988 = vmatprep.subr.mxu0 0.0
    %989 = vmatpush2.msra.mxu0 0.0
    %990 = vmatprep.mubr.f32.mxu0 0.0
    %991 = vmatmul.mubr.f32.gmra.mxu0 %v924
    %v992 = vpop.f32.mrf.mxu0
    %v993 = vadd.f32 %v80, %v992
    %v994 = vpop.f32.mrf.mxu0
    %995 = vdwg.mxu0
    %v996 = vmul.f32 %v228, 0.010127314
    %v997 = vmul.f32 %v528, 0.049915146
    %v998 = vadd.f32 %v996, %v997
    %v999 = vmul.f32 %v681, 0.07233796
    %v1000 = vadd.f32 %v998, %v999
    %v1001 = vmul.f32 %v836, -0.035819575
    %v1002 = vadd.f32 %v1000, %v1001
    %v1003 = vmul.f32 %v993, 0.014550265
    %v1004 = vadd.f32 %v1002, %v1003
    %v1005 = vadd.f32 %v82, %v1004
    %v1007 = vsel %vm83, %v1005, 0
    %1009 = vmatprep.subr.mxu0 0.0
    %1010 = vmatpush1.msra.mxu0 0.0
    %1011 = vmatprep.subr.mxu0 0.0
    %1012 = vmatpush1.msra.mxu0 0.0
    %1013 = vmatprep.subr.mxu0 0.0
    %1014 = vmatpush1.msra.mxu0 0.0
    %1015 = vmatprep.subr.mxu0 0.0
    %1016 = vmatpush1.msra.mxu0 0.0
    %1017 = vmatprep.subr.mxu0 0.0
    %1018 = vmatpush1.msra.mxu0 0.0
    %1019 = vmatprep.subr.mxu0 0.0
    %1020 = vmatpush1.msra.mxu0 0.0
    %1021 = vmatprep.subr.mxu0 0.0
    %1022 = vmatpush1.msra.mxu0 0.0
    %1023 = vmatprep.subr.mxu0 0.0
    %1024 = vmatpush1.msra.mxu0 0.0
    %1025 = vmatprep.subr.mxu0 0.0
    %1026 = vmatpush1.msra.mxu0 0.0
    %1027 = vmatprep.subr.mxu0 0.0
    %1028 = vmatpush1.msra.mxu0 0.0
    %1029 = vmatprep.subr.mxu0 0.0
    %1030 = vmatpush1.msra.mxu0 0.0
    %1031 = vmatprep.subr.mxu0 0.0
    %1032 = vmatpush1.msra.mxu0 0.0
    %1033 = vmatprep.subr.mxu0 0.0
    %1034 = vmatpush1.msra.mxu0 %v63
    %1035 = vmatprep.subr.mxu0 0.0
    %1036 = vmatpush1.msra.mxu0 %v62
    %1037 = vmatprep.subr.mxu0 0.0
    %1038 = vmatpush1.msra.mxu0 %v61
    %1039 = vmatprep.subr.mxu0 0.0
    %1040 = vmatpush1.msra.mxu0 %v60
    %1041 = vmatprep.subr.mxu0 0.0
    %1042 = vmatpush2.msra.mxu0 0.0
    %1043 = vmatprep.subr.mxu0 0.0
    %1044 = vmatpush2.msra.mxu0 0.0
    %1045 = vmatprep.subr.mxu0 0.0
    %1046 = vmatpush2.msra.mxu0 0.0
    %1047 = vmatprep.subr.mxu0 0.0
    %1048 = vmatpush2.msra.mxu0 0.0
    %1049 = vmatprep.subr.mxu0 0.0
    %1050 = vmatpush2.msra.mxu0 0.0
    %1051 = vmatprep.subr.mxu0 0.0
    %1052 = vmatpush2.msra.mxu0 0.0
    %1053 = vmatprep.subr.mxu0 0.0
    %1054 = vmatpush2.msra.mxu0 0.0
    %1055 = vmatprep.subr.mxu0 0.0
    %1056 = vmatpush2.msra.mxu0 0.0
    %1057 = vmatprep.subr.mxu0 0.0
    %1058 = vmatpush2.msra.mxu0 0.0
    %1059 = vmatprep.subr.mxu0 0.0
    %1060 = vmatpush2.msra.mxu0 0.0
    %1061 = vmatprep.subr.mxu0 0.0
    %1062 = vmatpush2.msra.mxu0 0.0
    %1063 = vmatprep.subr.mxu0 0.0
    %1064 = vmatpush2.msra.mxu0 0.0
    %1065 = vmatprep.subr.mxu0 0.0
    %1066 = vmatpush2.msra.mxu0 0.0
    %1067 = vmatprep.subr.mxu0 0.0
    %1068 = vmatpush2.msra.mxu0 0.0
    %1069 = vmatprep.subr.mxu0 0.0
    %1070 = vmatpush2.msra.mxu0 0.0
    %1071 = vmatprep.subr.mxu0 0.0
    %1072 = vmatpush2.msra.mxu0 0.0
    %1073 = vmatprep.mubr.f32.mxu0 0.0
    %1074 = vmatmul.mubr.f32.gmra.mxu0 %v1007
    %v1075 = vpop.f32.mrf.mxu0
    %v1076 = vadd.f32 %v73, %v1075
    %v1077 = vpop.f32.mrf.mxu0
    %1078 = vdwg.mxu0
    %v1079 = vtanh.pop %v1076
    %v1081 = vsel %vm83, %v1079, 0
    %1083 = vmatprep.subr.mxu0 0.0
    %1084 = vmatpush1.msra.mxu0 0.0
    %1085 = vmatprep.subr.mxu0 0.0
    %1086 = vmatpush1.msra.mxu0 0.0
    %1087 = vmatprep.subr.mxu0 0.0
    %1088 = vmatpush1.msra.mxu0 0.0
    %1089 = vmatprep.subr.mxu0 0.0
    %1090 = vmatpush1.msra.mxu0 0.0
    %1091 = vmatprep.subr.mxu0 0.0
    %1092 = vmatpush1.msra.mxu0 0.0
    %1093 = vmatprep.subr.mxu0 0.0
    %1094 = vmatpush1.msra.mxu0 0.0
    %1095 = vmatprep.subr.mxu0 0.0
    %1096 = vmatpush1.msra.mxu0 0.0
    %1097 = vmatprep.subr.mxu0 0.0
    %1098 = vmatpush1.msra.mxu0 0.0
    %1099 = vmatprep.subr.mxu0 0.0
    %1100 = vmatpush1.msra.mxu0 0.0
    %1101 = vmatprep.subr.mxu0 0.0
    %1102 = vmatpush1.msra.mxu0 0.0
    %1103 = vmatprep.subr.mxu0 0.0
    %1104 = vmatpush1.msra.mxu0 0.0
    %1105 = vmatprep.subr.mxu0 0.0
    %1106 = vmatpush1.msra.mxu0 0.0
    %1107 = vmatprep.subr.mxu0 0.0
    %1108 = vmatpush1.msra.mxu0 %v67
    %1109 = vmatprep.subr.mxu0 0.0
    %1110 = vmatpush1.msra.mxu0 %v66
    %1111 = vmatprep.subr.mxu0 0.0
    %1112 = vmatpush1.msra.mxu0 %v65
    %1113 = vmatprep.subr.mxu0 0.0
    %1114 = vmatpush1.msra.mxu0 %v64
    %1115 = vmatprep.subr.mxu0 0.0
    %1116 = vmatpush2.msra.mxu0 0.0
    %1117 = vmatprep.subr.mxu0 0.0
    %1118 = vmatpush2.msra.mxu0 0.0
    %1119 = vmatprep.subr.mxu0 0.0
    %1120 = vmatpush2.msra.mxu0 0.0
    %1121 = vmatprep.subr.mxu0 0.0
    %1122 = vmatpush2.msra.mxu0 0.0
    %1123 = vmatprep.subr.mxu0 0.0
    %1124 = vmatpush2.msra.mxu0 0.0
    %1125 = vmatprep.subr.mxu0 0.0
    %1126 = vmatpush2.msra.mxu0 0.0
    %1127 = vmatprep.subr.mxu0 0.0
    %1128 = vmatpush2.msra.mxu0 0.0
    %1129 = vmatprep.subr.mxu0 0.0
    %1130 = vmatpush2.msra.mxu0 0.0
    %1131 = vmatprep.subr.mxu0 0.0
    %1132 = vmatpush2.msra.mxu0 0.0
    %1133 = vmatprep.subr.mxu0 0.0
    %1134 = vmatpush2.msra.mxu0 0.0
    %1135 = vmatprep.subr.mxu0 0.0
    %1136 = vmatpush2.msra.mxu0 0.0
    %1137 = vmatprep.subr.mxu0 0.0
    %1138 = vmatpush2.msra.mxu0 0.0
    %1139 = vmatprep.subr.mxu0 0.0
    %1140 = vmatpush2.msra.mxu0 0.0
    %1141 = vmatprep.subr.mxu0 0.0
    %1142 = vmatpush2.msra.mxu0 0.0
    %1143 = vmatprep.subr.mxu0 0.0
    %1144 = vmatpush2.msra.mxu0 0.0
    %1145 = vmatprep.subr.mxu0 0.0
    %1146 = vmatpush2.msra.mxu0 0.0
    %1147 = vmatprep.mubr.f32.mxu0 0.0
    %1148 = vmatmul.mubr.f32.gmra.mxu0 %v1081
    %v1149 = vpop.f32.mrf.mxu0
    %v1150 = vadd.f32 %v80, %v1149
    %v1151 = vpop.f32.mrf.mxu0
    %1152 = vdwg.mxu0
    %v1153 = vmul.f32 %v1150, 0.022222223
    %v1154 = vadd.f32 %v1005, %v1153
    %v1156 = vsel %vm83, %v1154, 0
    %1158 = vmatprep.subr.mxu0 0.0
    %1159 = vmatpush1.msra.mxu0 0.0
    %1160 = vmatprep.subr.mxu0 0.0
    %1161 = vmatpush1.msra.mxu0 0.0
    %1162 = vmatprep.subr.mxu0 0.0
    %1163 = vmatpush1.msra.mxu0 0.0
    %1164 = vmatprep.subr.mxu0 0.0
    %1165 = vmatpush1.msra.mxu0 0.0
    %1166 = vmatprep.subr.mxu0 0.0
    %1167 = vmatpush1.msra.mxu0 0.0
    %1168 = vmatprep.subr.mxu0 0.0
    %1169 = vmatpush1.msra.mxu0 0.0
    %1170 = vmatprep.subr.mxu0 0.0
    %1171 = vmatpush1.msra.mxu0 0.0
    %1172 = vmatprep.subr.mxu0 0.0
    %1173 = vmatpush1.msra.mxu0 0.0
    %1174 = vmatprep.subr.mxu0 0.0
    %1175 = vmatpush1.msra.mxu0 0.0
    %1176 = vmatprep.subr.mxu0 0.0
    %1177 = vmatpush1.msra.mxu0 0.0
    %1178 = vmatprep.subr.mxu0 0.0
    %1179 = vmatpush1.msra.mxu0 0.0
    %1180 = vmatprep.subr.mxu0 0.0
    %1181 = vmatpush1.msra.mxu0 0.0
    %1182 = vmatprep.subr.mxu0 0.0
    %1183 = vmatpush1.msra.mxu0 %v63
    %1184 = vmatprep.subr.mxu0 0.0
    %1185 = vmatpush1.msra.mxu0 %v62
    %1186 = vmatprep.subr.mxu0 0.0
    %1187 = vmatpush1.msra.mxu0 %v61
    %1188 = vmatprep.subr.mxu0 0.0
    %1189 = vmatpush1.msra.mxu0 %v60
    %1190 = vmatprep.subr.mxu0 0.0
    %1191 = vmatpush2.msra.mxu0 0.0
    %1192 = vmatprep.subr.mxu0 0.0
    %1193 = vmatpush2.msra.mxu0 0.0
    %1194 = vmatprep.subr.mxu0 0.0
    %1195 = vmatpush2.msra.mxu0 0.0
    %1196 = vmatprep.subr.mxu0 0.0
    %1197 = vmatpush2.msra.mxu0 0.0
    %1198 = vmatprep.subr.mxu0 0.0
    %1199 = vmatpush2.msra.mxu0 0.0
    %1200 = vmatprep.subr.mxu0 0.0
    %1201 = vmatpush2.msra.mxu0 0.0
    %1202 = vmatprep.subr.mxu0 0.0
    %1203 = vmatpush2.msra.mxu0 0.0
    %1204 = vmatprep.subr.mxu0 0.0
    %1205 = vmatpush2.msra.mxu0 0.0
    %1206 = vmatprep.subr.mxu0 0.0
    %1207 = vmatpush2.msra.mxu0 0.0
    %1208 = vmatprep.subr.mxu0 0.0
    %1209 = vmatpush2.msra.mxu0 0.0
    %1210 = vmatprep.subr.mxu0 0.0
    %1211 = vmatpush2.msra.mxu0 0.0
    %1212 = vmatprep.subr.mxu0 0.0
    %1213 = vmatpush2.msra.mxu0 0.0
    %1214 = vmatprep.subr.mxu0 0.0
    %1215 = vmatpush2.msra.mxu0 0.0
    %1216 = vmatprep.subr.mxu0 0.0
    %1217 = vmatpush2.msra.mxu0 0.0
    %1218 = vmatprep.subr.mxu0 0.0
    %1219 = vmatpush2.msra.mxu0 0.0
    %1220 = vmatprep.subr.mxu0 0.0
    %1221 = vmatpush2.msra.mxu0 0.0
    %1222 = vmatprep.mubr.f32.mxu0 0.0
    %1223 = vmatmul.mubr.f32.gmra.mxu0 %v1156
    %v1224 = vpop.f32.mrf.mxu0
    %v1225 = vadd.f32 %v73, %v1224
    %v1226 = vpop.f32.mrf.mxu0
    %1227 = vdwg.mxu0
    %v1228 = vtanh.pop %v1225
    %v1230 = vsel %vm83, %v1228, 0
    %1232 = vmatprep.subr.mxu0 0.0
    %1233 = vmatpush1.msra.mxu0 0.0
    %1234 = vmatprep.subr.mxu0 0.0
    %1235 = vmatpush1.msra.mxu0 0.0
    %1236 = vmatprep.subr.mxu0 0.0
    %1237 = vmatpush1.msra.mxu0 0.0
    %1238 = vmatprep.subr.mxu0 0.0
    %1239 = vmatpush1.msra.mxu0 0.0
    %1240 = vmatprep.subr.mxu0 0.0
    %1241 = vmatpush1.msra.mxu0 0.0
    %1242 = vmatprep.subr.mxu0 0.0
    %1243 = vmatpush1.msra.mxu0 0.0
    %1244 = vmatprep.subr.mxu0 0.0
    %1245 = vmatpush1.msra.mxu0 0.0
    %1246 = vmatprep.subr.mxu0 0.0
    %1247 = vmatpush1.msra.mxu0 0.0
    %1248 = vmatprep.subr.mxu0 0.0
    %1249 = vmatpush1.msra.mxu0 0.0
    %1250 = vmatprep.subr.mxu0 0.0
    %1251 = vmatpush1.msra.mxu0 0.0
    %1252 = vmatprep.subr.mxu0 0.0
    %1253 = vmatpush1.msra.mxu0 0.0
    %1254 = vmatprep.subr.mxu0 0.0
    %1255 = vmatpush1.msra.mxu0 0.0
    %1256 = vmatprep.subr.mxu0 0.0
    %1257 = vmatpush1.msra.mxu0 %v67
    %1258 = vmatprep.subr.mxu0 0.0
    %1259 = vmatpush1.msra.mxu0 %v66
    %1260 = vmatprep.subr.mxu0 0.0
    %1261 = vmatpush1.msra.mxu0 %v65
    %1262 = vmatprep.subr.mxu0 0.0
    %1263 = vmatpush1.msra.mxu0 %v64
    %1264 = vmatprep.subr.mxu0 0.0
    %1265 = vmatpush2.msra.mxu0 0.0
    %1266 = vmatprep.subr.mxu0 0.0
    %1267 = vmatpush2.msra.mxu0 0.0
    %1268 = vmatprep.subr.mxu0 0.0
    %1269 = vmatpush2.msra.mxu0 0.0
    %1270 = vmatprep.subr.mxu0 0.0
    %1271 = vmatpush2.msra.mxu0 0.0
    %1272 = vmatprep.subr.mxu0 0.0
    %1273 = vmatpush2.msra.mxu0 0.0
    %1274 = vmatprep.subr.mxu0 0.0
    %1275 = vmatpush2.msra.mxu0 0.0
    %1276 = vmatprep.subr.mxu0 0.0
    %1277 = vmatpush2.msra.mxu0 0.0
    %1278 = vmatprep.subr.mxu0 0.0
    %1279 = vmatpush2.msra.mxu0 0.0
    %1280 = vmatprep.subr.mxu0 0.0
    %1281 = vmatpush2.msra.mxu0 0.0
    %1282 = vmatprep.subr.mxu0 0.0
    %1283 = vmatpush2.msra.mxu0 0.0
    %1284 = vmatprep.subr.mxu0 0.0
    %1285 = vmatpush2.msra.mxu0 0.0
    %1286 = vmatprep.subr.mxu0 0.0
    %1287 = vmatpush2.msra.mxu0 0.0
    %1288 = vmatprep.subr.mxu0 0.0
    %1289 = vmatpush2.msra.mxu0 0.0
    %1290 = vmatprep.subr.mxu0 0.0
    %1291 = vmatpush2.msra.mxu0 0.0
    %1292 = vmatprep.subr.mxu0 0.0
    %1293 = vmatpush2.msra.mxu0 0.0
    %1294 = vmatprep.subr.mxu0 0.0
    %1295 = vmatpush2.msra.mxu0 0.0
    %1296 = vmatprep.mubr.f32.mxu0 0.0
    %1297 = vmatmul.mubr.f32.gmra.mxu0 %v1230
    %v1298 = vpop.f32.mrf.mxu0
    %v1299 = vadd.f32 %v80, %v1298
    %v1300 = vpop.f32.mrf.mxu0
    %1301 = vdwg.mxu0
    %v1302 = vmul.f32 %v1150, 0.008333334
    %v1303 = vmul.f32 %v1299, 0.025
    %v1304 = vadd.f32 %v1302, %v1303
    %v1305 = vadd.f32 %v1005, %v1304
    %v1307 = vsel %vm83, %v1305, 0
    %1309 = vmatprep.subr.mxu0 0.0
    %1310 = vmatpush1.msra.mxu0 0.0
    %1311 = vmatprep.subr.mxu0 0.0
    %1312 = vmatpush1.msra.mxu0 0.0
    %1313 = vmatprep.subr.mxu0 0.0
    %1314 = vmatpush1.msra.mxu0 0.0
    %1315 = vmatprep.subr.mxu0 0.0
    %1316 = vmatpush1.msra.mxu0 0.0
    %1317 = vmatprep.subr.mxu0 0.0
    %1318 = vmatpush1.msra.mxu0 0.0
    %1319 = vmatprep.subr.mxu0 0.0
    %1320 = vmatpush1.msra.mxu0 0.0
    %1321 = vmatprep.subr.mxu0 0.0
    %1322 = vmatpush1.msra.mxu0 0.0
    %1323 = vmatprep.subr.mxu0 0.0
    %1324 = vmatpush1.msra.mxu0 0.0
    %1325 = vmatprep.subr.mxu0 0.0
    %1326 = vmatpush1.msra.mxu0 0.0
    %1327 = vmatprep.subr.mxu0 0.0
    %1328 = vmatpush1.msra.mxu0 0.0
    %1329 = vmatprep.subr.mxu0 0.0
    %1330 = vmatpush1.msra.mxu0 0.0
    %1331 = vmatprep.subr.mxu0 0.0
    %1332 = vmatpush1.msra.mxu0 0.0
    %1333 = vmatprep.subr.mxu0 0.0
    %1334 = vmatpush1.msra.mxu0 %v63
    %1335 = vmatprep.subr.mxu0 0.0
    %1336 = vmatpush1.msra.mxu0 %v62
    %1337 = vmatprep.subr.mxu0 0.0
    %1338 = vmatpush1.msra.mxu0 %v61
    %1339 = vmatprep.subr.mxu0 0.0
    %1340 = vmatpush1.msra.mxu0 %v60
    %1341 = vmatprep.subr.mxu0 0.0
    %1342 = vmatpush2.msra.mxu0 0.0
    %1343 = vmatprep.subr.mxu0 0.0
    %1344 = vmatpush2.msra.mxu0 0.0
    %1345 = vmatprep.subr.mxu0 0.0
    %1346 = vmatpush2.msra.mxu0 0.0
    %1347 = vmatprep.subr.mxu0 0.0
    %1348 = vmatpush2.msra.mxu0 0.0
    %1349 = vmatprep.subr.mxu0 0.0
    %1350 = vmatpush2.msra.mxu0 0.0
    %1351 = vmatprep.subr.mxu0 0.0
    %1352 = vmatpush2.msra.mxu0 0.0
    %1353 = vmatprep.subr.mxu0 0.0
    %1354 = vmatpush2.msra.mxu0 0.0
    %1355 = vmatprep.subr.mxu0 0.0
    %1356 = vmatpush2.msra.mxu0 0.0
    %1357 = vmatprep.subr.mxu0 0.0
    %1358 = vmatpush2.msra.mxu0 0.0
    %1359 = vmatprep.subr.mxu0 0.0
    %1360 = vmatpush2.msra.mxu0 0.0
    %1361 = vmatprep.subr.mxu0 0.0
    %1362 = vmatpush2.msra.mxu0 0.0
    %1363 = vmatprep.subr.mxu0 0.0
    %1364 = vmatpush2.msra.mxu0 0.0
    %1365 = vmatprep.subr.mxu0 0.0
    %1366 = vmatpush2.msra.mxu0 0.0
    %1367 = vmatprep.subr.mxu0 0.0
    %1368 = vmatpush2.msra.mxu0 0.0
    %1369 = vmatprep.subr.mxu0 0.0
    %1370 = vmatpush2.msra.mxu0 0.0
    %1371 = vmatprep.subr.mxu0 0.0
    %1372 = vmatpush2.msra.mxu0 0.0
    %1373 = vmatprep.mubr.f32.mxu0 0.0
    %1374 = vmatmul.mubr.f32.gmra.mxu0 %v1307
    %v1375 = vpop.f32.mrf.mxu0
    %v1376 = vadd.f32 %v73, %v1375
    %v1377 = vpop.f32.mrf.mxu0
    %1378 = vdwg.mxu0
    %v1379 = vtanh.pop %v1376
    %v1381 = vsel %vm83, %v1379, 0
    %1383 = vmatprep.subr.mxu0 0.0
    %1384 = vmatpush1.msra.mxu0 0.0
    %1385 = vmatprep.subr.mxu0 0.0
    %1386 = vmatpush1.msra.mxu0 0.0
    %1387 = vmatprep.subr.mxu0 0.0
    %1388 = vmatpush1.msra.mxu0 0.0
    %1389 = vmatprep.subr.mxu0 0.0
    %1390 = vmatpush1.msra.mxu0 0.0
    %1391 = vmatprep.subr.mxu0 0.0
    %1392 = vmatpush1.msra.mxu0 0.0
    %1393 = vmatprep.subr.mxu0 0.0
    %1394 = vmatpush1.msra.mxu0 0.0
    %1395 = vmatprep.subr.mxu0 0.0
    %1396 = vmatpush1.msra.mxu0 0.0
    %1397 = vmatprep.subr.mxu0 0.0
    %1398 = vmatpush1.msra.mxu0 0.0
    %1399 = vmatprep.subr.mxu0 0.0
    %1400 = vmatpush1.msra.mxu0 0.0
    %1401 = vmatprep.subr.mxu0 0.0
    %1402 = vmatpush1.msra.mxu0 0.0
    %1403 = vmatprep.subr.mxu0 0.0
    %1404 = vmatpush1.msra.mxu0 0.0
    %1405 = vmatprep.subr.mxu0 0.0
    %1406 = vmatpush1.msra.mxu0 0.0
    %1407 = vmatprep.subr.mxu0 0.0
    %1408 = vmatpush1.msra.mxu0 %v67
    %1409 = vmatprep.subr.mxu0 0.0
    %1410 = vmatpush1.msra.mxu0 %v66
    %1411 = vmatprep.subr.mxu0 0.0
    %1412 = vmatpush1.msra.mxu0 %v65
    %1413 = vmatprep.subr.mxu0 0.0
    %1414 = vmatpush1.msra.mxu0 %v64
    %1415 = vmatprep.subr.mxu0 0.0
    %1416 = vmatpush2.msra.mxu0 0.0
    %1417 = vmatprep.subr.mxu0 0.0
    %1418 = vmatpush2.msra.mxu0 0.0
    %1419 = vmatprep.subr.mxu0 0.0
    %1420 = vmatpush2.msra.mxu0 0.0
    %1421 = vmatprep.subr.mxu0 0.0
    %1422 = vmatpush2.msra.mxu0 0.0
    %1423 = vmatprep.subr.mxu0 0.0
    %1424 = vmatpush2.msra.mxu0 0.0
    %1425 = vmatprep.subr.mxu0 0.0
    %1426 = vmatpush2.msra.mxu0 0.0
    %1427 = vmatprep.subr.mxu0 0.0
    %1428 = vmatpush2.msra.mxu0 0.0
    %1429 = vmatprep.subr.mxu0 0.0
    %1430 = vmatpush2.msra.mxu0 0.0
    %1431 = vmatprep.subr.mxu0 0.0
    %1432 = vmatpush2.msra.mxu0 0.0
    %1433 = vmatprep.subr.mxu0 0.0
    %1434 = vmatpush2.msra.mxu0 0.0
    %1435 = vmatprep.subr.mxu0 0.0
    %1436 = vmatpush2.msra.mxu0 0.0
    %1437 = vmatprep.subr.mxu0 0.0
    %1438 = vmatpush2.msra.mxu0 0.0
    %1439 = vmatprep.subr.mxu0 0.0
    %1440 = vmatpush2.msra.mxu0 0.0
    %1441 = vmatprep.subr.mxu0 0.0
    %1442 = vmatpush2.msra.mxu0 0.0
    %1443 = vmatprep.subr.mxu0 0.0
    %1444 = vmatpush2.msra.mxu0 0.0
    %1445 = vmatprep.subr.mxu0 0.0
    %1446 = vmatpush2.msra.mxu0 0.0
    %1447 = vmatprep.mubr.f32.mxu0 0.0
    %1448 = vmatmul.mubr.f32.gmra.mxu0 %v1381
    %v1449 = vpop.f32.mrf.mxu0
    %v1450 = vadd.f32 %v80, %v1449
    %v1451 = vpop.f32.mrf.mxu0
    %1452 = vdwg.mxu0
    %v1453 = vmul.f32 %v1150, 0.108641975
    %v1454 = vmul.f32 %v1299, -0.4148148
    %v1455 = vadd.f32 %v1453, %v1454
    %v1456 = vmul.f32 %v1450, 0.39506173
    %v1457 = vadd.f32 %v1455, %v1456
    %v1458 = vadd.f32 %v1005, %v1457
    %v1460 = vsel %vm83, %v1458, 0
    %1462 = vmatprep.subr.mxu0 0.0
    %1463 = vmatpush1.msra.mxu0 0.0
    %1464 = vmatprep.subr.mxu0 0.0
    %1465 = vmatpush1.msra.mxu0 0.0
    %1466 = vmatprep.subr.mxu0 0.0
    %1467 = vmatpush1.msra.mxu0 0.0
    %1468 = vmatprep.subr.mxu0 0.0
    %1469 = vmatpush1.msra.mxu0 0.0
    %1470 = vmatprep.subr.mxu0 0.0
    %1471 = vmatpush1.msra.mxu0 0.0
    %1472 = vmatprep.subr.mxu0 0.0
    %1473 = vmatpush1.msra.mxu0 0.0
    %1474 = vmatprep.subr.mxu0 0.0
    %1475 = vmatpush1.msra.mxu0 0.0
    %1476 = vmatprep.subr.mxu0 0.0
    %1477 = vmatpush1.msra.mxu0 0.0
    %1478 = vmatprep.subr.mxu0 0.0
    %1479 = vmatpush1.msra.mxu0 0.0
    %1480 = vmatprep.subr.mxu0 0.0
    %1481 = vmatpush1.msra.mxu0 0.0
    %1482 = vmatprep.subr.mxu0 0.0
    %1483 = vmatpush1.msra.mxu0 0.0
    %1484 = vmatprep.subr.mxu0 0.0
    %1485 = vmatpush1.msra.mxu0 0.0
    %1486 = vmatprep.subr.mxu0 0.0
    %1487 = vmatpush1.msra.mxu0 %v63
    %1488 = vmatprep.subr.mxu0 0.0
    %1489 = vmatpush1.msra.mxu0 %v62
    %1490 = vmatprep.subr.mxu0 0.0
    %1491 = vmatpush1.msra.mxu0 %v61
    %1492 = vmatprep.subr.mxu0 0.0
    %1493 = vmatpush1.msra.mxu0 %v60
    %1494 = vmatprep.subr.mxu0 0.0
    %1495 = vmatpush2.msra.mxu0 0.0
    %1496 = vmatprep.subr.mxu0 0.0
    %1497 = vmatpush2.msra.mxu0 0.0
    %1498 = vmatprep.subr.mxu0 0.0
    %1499 = vmatpush2.msra.mxu0 0.0
    %1500 = vmatprep.subr.mxu0 0.0
    %1501 = vmatpush2.msra.mxu0 0.0
    %1502 = vmatprep.subr.mxu0 0.0
    %1503 = vmatpush2.msra.mxu0 0.0
    %1504 = vmatprep.subr.mxu0 0.0
    %1505 = vmatpush2.msra.mxu0 0.0
    %1506 = vmatprep.subr.mxu0 0.0
    %1507 = vmatpush2.msra.mxu0 0.0
    %1508 = vmatprep.subr.mxu0 0.0
    %1509 = vmatpush2.msra.mxu0 0.0
    %1510 = vmatprep.subr.mxu0 0.0
    %1511 = vmatpush2.msra.mxu0 0.0
    %1512 = vmatprep.subr.mxu0 0.0
    %1513 = vmatpush2.msra.mxu0 0.0
    %1514 = vmatprep.subr.mxu0 0.0
    %1515 = vmatpush2.msra.mxu0 0.0
    %1516 = vmatprep.subr.mxu0 0.0
    %1517 = vmatpush2.msra.mxu0 0.0
    %1518 = vmatprep.subr.mxu0 0.0
    %1519 = vmatpush2.msra.mxu0 0.0
    %1520 = vmatprep.subr.mxu0 0.0
    %1521 = vmatpush2.msra.mxu0 0.0
    %1522 = vmatprep.subr.mxu0 0.0
    %1523 = vmatpush2.msra.mxu0 0.0
    %1524 = vmatprep.subr.mxu0 0.0
    %1525 = vmatpush2.msra.mxu0 0.0
    %1526 = vmatprep.mubr.f32.mxu0 0.0
    %1527 = vmatmul.mubr.f32.gmra.mxu0 %v1460
    %v1528 = vpop.f32.mrf.mxu0
    %v1529 = vadd.f32 %v73, %v1528
    %v1530 = vpop.f32.mrf.mxu0
    %1531 = vdwg.mxu0
    %v1532 = vtanh.pop %v1529
    %v1534 = vsel %vm83, %v1532, 0
    %1536 = vmatprep.subr.mxu0 0.0
    %1537 = vmatpush1.msra.mxu0 0.0
    %1538 = vmatprep.subr.mxu0 0.0
    %1539 = vmatpush1.msra.mxu0 0.0
    %1540 = vmatprep.subr.mxu0 0.0
    %1541 = vmatpush1.msra.mxu0 0.0
    %1542 = vmatprep.subr.mxu0 0.0
    %1543 = vmatpush1.msra.mxu0 0.0
    %1544 = vmatprep.subr.mxu0 0.0
    %1545 = vmatpush1.msra.mxu0 0.0
    %1546 = vmatprep.subr.mxu0 0.0
    %1547 = vmatpush1.msra.mxu0 0.0
    %1548 = vmatprep.subr.mxu0 0.0
    %1549 = vmatpush1.msra.mxu0 0.0
    %1550 = vmatprep.subr.mxu0 0.0
    %1551 = vmatpush1.msra.mxu0 0.0
    %1552 = vmatprep.subr.mxu0 0.0
    %1553 = vmatpush1.msra.mxu0 0.0
    %1554 = vmatprep.subr.mxu0 0.0
    %1555 = vmatpush1.msra.mxu0 0.0
    %1556 = vmatprep.subr.mxu0 0.0
    %1557 = vmatpush1.msra.mxu0 0.0
    %1558 = vmatprep.subr.mxu0 0.0
    %1559 = vmatpush1.msra.mxu0 0.0
    %1560 = vmatprep.subr.mxu0 0.0
    %1561 = vmatpush1.msra.mxu0 %v67
    %1562 = vmatprep.subr.mxu0 0.0
    %1563 = vmatpush1.msra.mxu0 %v66
    %1564 = vmatprep.subr.mxu0 0.0
    %1565 = vmatpush1.msra.mxu0 %v65
    %1566 = vmatprep.subr.mxu0 0.0
    %1567 = vmatpush1.msra.mxu0 %v64
    %1568 = vmatprep.subr.mxu0 0.0
    %1569 = vmatpush2.msra.mxu0 0.0
    %1570 = vmatprep.subr.mxu0 0.0
    %1571 = vmatpush2.msra.mxu0 0.0
    %1572 = vmatprep.subr.mxu0 0.0
    %1573 = vmatpush2.msra.mxu0 0.0
    %1574 = vmatprep.subr.mxu0 0.0
    %1575 = vmatpush2.msra.mxu0 0.0
    %1576 = vmatprep.subr.mxu0 0.0
    %1577 = vmatpush2.msra.mxu0 0.0
    %1578 = vmatprep.subr.mxu0 0.0
    %1579 = vmatpush2.msra.mxu0 0.0
    %1580 = vmatprep.subr.mxu0 0.0
    %1581 = vmatpush2.msra.mxu0 0.0
    %1582 = vmatprep.subr.mxu0 0.0
    %1583 = vmatpush2.msra.mxu0 0.0
    %1584 = vmatprep.subr.mxu0 0.0
    %1585 = vmatpush2.msra.mxu0 0.0
    %1586 = vmatprep.subr.mxu0 0.0
    %1587 = vmatpush2.msra.mxu0 0.0
    %1588 = vmatprep.subr.mxu0 0.0
    %1589 = vmatpush2.msra.mxu0 0.0
    %1590 = vmatprep.subr.mxu0 0.0
    %1591 = vmatpush2.msra.mxu0 0.0
    %1592 = vmatprep.subr.mxu0 0.0
    %1593 = vmatpush2.msra.mxu0 0.0
    %1594 = vmatprep.subr.mxu0 0.0
    %1595 = vmatpush2.msra.mxu0 0.0
    %1596 = vmatprep.subr.mxu0 0.0
    %1597 = vmatpush2.msra.mxu0 0.0
    %1598 = vmatprep.subr.mxu0 0.0
    %1599 = vmatpush2.msra.mxu0 0.0
    %1600 = vmatprep.mubr.f32.mxu0 0.0
    %1601 = vmatmul.mubr.f32.gmra.mxu0 %v1534
    %v1602 = vpop.f32.mrf.mxu0
    %v1603 = vadd.f32 %v80, %v1602
    %v1604 = vpop.f32.mrf.mxu0
    %1605 = vdwg.mxu0
    %v1606 = vmul.f32 %v1150, 0.32806653
    %v1607 = vmul.f32 %v1299, -1.2884215
    %v1608 = vadd.f32 %v1606, %v1607
    %v1609 = vmul.f32 %v1450, 1.0914326
    %v1610 = vadd.f32 %v1608, %v1609
    %v1611 = vmul.f32 %v1603, -0.032312147
    %v1612 = vadd.f32 %v1610, %v1611
    %v1613 = vadd.f32 %v1005, %v1612
    %v1615 = vsel %vm83, %v1613, 0
    %1617 = vmatprep.subr.mxu0 0.0
    %1618 = vmatpush1.msra.mxu0 0.0
    %1619 = vmatprep.subr.mxu0 0.0
    %1620 = vmatpush1.msra.mxu0 0.0
    %1621 = vmatprep.subr.mxu0 0.0
    %1622 = vmatpush1.msra.mxu0 0.0
    %1623 = vmatprep.subr.mxu0 0.0
    %1624 = vmatpush1.msra.mxu0 0.0
    %1625 = vmatprep.subr.mxu0 0.0
    %1626 = vmatpush1.msra.mxu0 0.0
    %1627 = vmatprep.subr.mxu0 0.0
    %1628 = vmatpush1.msra.mxu0 0.0
    %1629 = vmatprep.subr.mxu0 0.0
    %1630 = vmatpush1.msra.mxu0 0.0
    %1631 = vmatprep.subr.mxu0 0.0
    %1632 = vmatpush1.msra.mxu0 0.0
    %1633 = vmatprep.subr.mxu0 0.0
    %1634 = vmatpush1.msra.mxu0 0.0
    %1635 = vmatprep.subr.mxu0 0.0
    %1636 = vmatpush1.msra.mxu0 0.0
    %1637 = vmatprep.subr.mxu0 0.0
    %1638 = vmatpush1.msra.mxu0 0.0
    %1639 = vmatprep.subr.mxu0 0.0
    %1640 = vmatpush1.msra.mxu0 0.0
    %1641 = vmatprep.subr.mxu0 0.0
    %1642 = vmatpush1.msra.mxu0 %v63
    %1643 = vmatprep.subr.mxu0 0.0
    %1644 = vmatpush1.msra.mxu0 %v62
    %1645 = vmatprep.subr.mxu0 0.0
    %1646 = vmatpush1.msra.mxu0 %v61
    %1647 = vmatprep.subr.mxu0 0.0
    %1648 = vmatpush1.msra.mxu0 %v60
    %1649 = vmatprep.subr.mxu0 0.0
    %1650 = vmatpush2.msra.mxu0 0.0
    %1651 = vmatprep.subr.mxu0 0.0
    %1652 = vmatpush2.msra.mxu0 0.0
    %1653 = vmatprep.subr.mxu0 0.0
    %1654 = vmatpush2.msra.mxu0 0.0
    %1655 = vmatprep.subr.mxu0 0.0
    %1656 = vmatpush2.msra.mxu0 0.0
    %1657 = vmatprep.subr.mxu0 0.0
    %1658 = vmatpush2.msra.mxu0 0.0
    %1659 = vmatprep.subr.mxu0 0.0
    %1660 = vmatpush2.msra.mxu0 0.0
    %1661 = vmatprep.subr.mxu0 0.0
    %1662 = vmatpush2.msra.mxu0 0.0
    %1663 = vmatprep.subr.mxu0 0.0
    %1664 = vmatpush2.msra.mxu0 0.0
    %1665 = vmatprep.subr.mxu0 0.0
    %1666 = vmatpush2.msra.mxu0 0.0
    %1667 = vmatprep.subr.mxu0 0.0
    %1668 = vmatpush2.msra.mxu0 0.0
    %1669 = vmatprep.subr.mxu0 0.0
    %1670 = vmatpush2.msra.mxu0 0.0
    %1671 = vmatprep.subr.mxu0 0.0
    %1672 = vmatpush2.msra.mxu0 0.0
    %1673 = vmatprep.subr.mxu0 0.0
    %1674 = vmatpush2.msra.mxu0 0.0
    %1675 = vmatprep.subr.mxu0 0.0
    %1676 = vmatpush2.msra.mxu0 0.0
    %1677 = vmatprep.subr.mxu0 0.0
    %1678 = vmatpush2.msra.mxu0 0.0
    %1679 = vmatprep.subr.mxu0 0.0
    %1680 = vmatpush2.msra.mxu0 0.0
    %1681 = vmatprep.mubr.f32.mxu0 0.0
    %1682 = vmatmul.mubr.f32.gmra.mxu0 %v1615
    %v1683 = vpop.f32.mrf.mxu0
    %v1684 = vadd.f32 %v73, %v1683
    %v1685 = vpop.f32.mrf.mxu0
    %1686 = vdwg.mxu0
    %v1687 = vtanh.pop %v1684
    %v1689 = vsel %vm83, %v1687, 0
    %1691 = vmatprep.subr.mxu0 0.0
    %1692 = vmatpush1.msra.mxu0 0.0
    %1693 = vmatprep.subr.mxu0 0.0
    %1694 = vmatpush1.msra.mxu0 0.0
    %1695 = vmatprep.subr.mxu0 0.0
    %1696 = vmatpush1.msra.mxu0 0.0
    %1697 = vmatprep.subr.mxu0 0.0
    %1698 = vmatpush1.msra.mxu0 0.0
    %1699 = vmatprep.subr.mxu0 0.0
    %1700 = vmatpush1.msra.mxu0 0.0
    %1701 = vmatprep.subr.mxu0 0.0
    %1702 = vmatpush1.msra.mxu0 0.0
    %1703 = vmatprep.subr.mxu0 0.0
    %1704 = vmatpush1.msra.mxu0 0.0
    %1705 = vmatprep.subr.mxu0 0.0
    %1706 = vmatpush1.msra.mxu0 0.0
    %1707 = vmatprep.subr.mxu0 0.0
    %1708 = vmatpush1.msra.mxu0 0.0
    %1709 = vmatprep.subr.mxu0 0.0
    %1710 = vmatpush1.msra.mxu0 0.0
    %1711 = vmatprep.subr.mxu0 0.0
    %1712 = vmatpush1.msra.mxu0 0.0
    %1713 = vmatprep.subr.mxu0 0.0
    %1714 = vmatpush1.msra.mxu0 0.0
    %1715 = vmatprep.subr.mxu0 0.0
    %1716 = vmatpush1.msra.mxu0 %v67
    %1717 = vmatprep.subr.mxu0 0.0
    %1718 = vmatpush1.msra.mxu0 %v66
    %1719 = vmatprep.subr.mxu0 0.0
    %1720 = vmatpush1.msra.mxu0 %v65
    %1721 = vmatprep.subr.mxu0 0.0
    %1722 = vmatpush1.msra.mxu0 %v64
    %1723 = vmatprep.subr.mxu0 0.0
    %1724 = vmatpush2.msra.mxu0 0.0
    %1725 = vmatprep.subr.mxu0 0.0
    %1726 = vmatpush2.msra.mxu0 0.0
    %1727 = vmatprep.subr.mxu0 0.0
    %1728 = vmatpush2.msra.mxu0 0.0
    %1729 = vmatprep.subr.mxu0 0.0
    %1730 = vmatpush2.msra.mxu0 0.0
    %1731 = vmatprep.subr.mxu0 0.0
    %1732 = vmatpush2.msra.mxu0 0.0
    %1733 = vmatprep.subr.mxu0 0.0
    %1734 = vmatpush2.msra.mxu0 0.0
    %1735 = vmatprep.subr.mxu0 0.0
    %1736 = vmatpush2.msra.mxu0 0.0
    %1737 = vmatprep.subr.mxu0 0.0
    %1738 = vmatpush2.msra.mxu0 0.0
    %1739 = vmatprep.subr.mxu0 0.0
    %1740 = vmatpush2.msra.mxu0 0.0
    %1741 = vmatprep.subr.mxu0 0.0
    %1742 = vmatpush2.msra.mxu0 0.0
    %1743 = vmatprep.subr.mxu0 0.0
    %1744 = vmatpush2.msra.mxu0 0.0
    %1745 = vmatprep.subr.mxu0 0.0
    %1746 = vmatpush2.msra.mxu0 0.0
    %1747 = vmatprep.subr.mxu0 0.0
    %1748 = vmatpush2.msra.mxu0 0.0
    %1749 = vmatprep.subr.mxu0 0.0
    %1750 = vmatpush2.msra.mxu0 0.0
    %1751 = vmatprep.subr.mxu0 0.0
    %1752 = vmatpush2.msra.mxu0 0.0
    %1753 = vmatprep.subr.mxu0 0.0
    %1754 = vmatpush2.msra.mxu0 0.0
    %1755 = vmatprep.mubr.f32.mxu0 0.0
    %1756 = vmatmul.mubr.f32.gmra.mxu0 %v1689
    %v1757 = vpop.f32.mrf.mxu0
    %v1758 = vadd.f32 %v80, %v1757
    %v1759 = vpop.f32.mrf.mxu0
    %1760 = vdwg.mxu0
    %v1761 = vmul.f32 %v1150, 0.3162528
    %v1762 = vmul.f32 %v1299, -1.1952862
    %v1763 = vadd.f32 %v1761, %v1762
    %v1764 = vmul.f32 %v1450, 0.9896025
    %v1765 = vadd.f32 %v1763, %v1764
    %v1766 = vmul.f32 %v1603, 0.030934343
    %v1767 = vadd.f32 %v1765, %v1766
    %v1768 = vmul.f32 %v1758, -0.030392367
    %v1769 = vadd.f32 %v1767, %v1768
    %v1770 = vadd.f32 %v1005, %v1769
    %v1772 = vsel %vm83, %v1770, 0
    %1774 = vmatprep.subr.mxu0 0.0
    %1775 = vmatpush1.msra.mxu0 0.0
    %1776 = vmatprep.subr.mxu0 0.0
    %1777 = vmatpush1.msra.mxu0 0.0
    %1778 = vmatprep.subr.mxu0 0.0
    %1779 = vmatpush1.msra.mxu0 0.0
    %1780 = vmatprep.subr.mxu0 0.0
    %1781 = vmatpush1.msra.mxu0 0.0
    %1782 = vmatprep.subr.mxu0 0.0
    %1783 = vmatpush1.msra.mxu0 0.0
    %1784 = vmatprep.subr.mxu0 0.0
    %1785 = vmatpush1.msra.mxu0 0.0
    %1786 = vmatprep.subr.mxu0 0.0
    %1787 = vmatpush1.msra.mxu0 0.0
    %1788 = vmatprep.subr.mxu0 0.0
    %1789 = vmatpush1.msra.mxu0 0.0
    %1790 = vmatprep.subr.mxu0 0.0
    %1791 = vmatpush1.msra.mxu0 0.0
    %1792 = vmatprep.subr.mxu0 0.0
    %1793 = vmatpush1.msra.mxu0 0.0
    %1794 = vmatprep.subr.mxu0 0.0
    %1795 = vmatpush1.msra.mxu0 0.0
    %1796 = vmatprep.subr.mxu0 0.0
    %1797 = vmatpush1.msra.mxu0 0.0
    %1798 = vmatprep.subr.mxu0 0.0
    %1799 = vmatpush1.msra.mxu0 %v63
    %1800 = vmatprep.subr.mxu0 0.0
    %1801 = vmatpush1.msra.mxu0 %v62
    %1802 = vmatprep.subr.mxu0 0.0
    %1803 = vmatpush1.msra.mxu0 %v61
    %1804 = vmatprep.subr.mxu0 0.0
    %1805 = vmatpush1.msra.mxu0 %v60
    %1806 = vmatprep.subr.mxu0 0.0
    %1807 = vmatpush2.msra.mxu0 0.0
    %1808 = vmatprep.subr.mxu0 0.0
    %1809 = vmatpush2.msra.mxu0 0.0
    %1810 = vmatprep.subr.mxu0 0.0
    %1811 = vmatpush2.msra.mxu0 0.0
    %1812 = vmatprep.subr.mxu0 0.0
    %1813 = vmatpush2.msra.mxu0 0.0
    %1814 = vmatprep.subr.mxu0 0.0
    %1815 = vmatpush2.msra.mxu0 0.0
    %1816 = vmatprep.subr.mxu0 0.0
    %1817 = vmatpush2.msra.mxu0 0.0
    %1818 = vmatprep.subr.mxu0 0.0
    %1819 = vmatpush2.msra.mxu0 0.0
    %1820 = vmatprep.subr.mxu0 0.0
    %1821 = vmatpush2.msra.mxu0 0.0
    %1822 = vmatprep.subr.mxu0 0.0
    %1823 = vmatpush2.msra.mxu0 0.0
    %1824 = vmatprep.subr.mxu0 0.0
    %1825 = vmatpush2.msra.mxu0 0.0
    %1826 = vmatprep.subr.mxu0 0.0
    %1827 = vmatpush2.msra.mxu0 0.0
    %1828 = vmatprep.subr.mxu0 0.0
    %1829 = vmatpush2.msra.mxu0 0.0
    %1830 = vmatprep.subr.mxu0 0.0
    %1831 = vmatpush2.msra.mxu0 0.0
    %1832 = vmatprep.subr.mxu0 0.0
    %1833 = vmatpush2.msra.mxu0 0.0
    %1834 = vmatprep.subr.mxu0 0.0
    %1835 = vmatpush2.msra.mxu0 0.0
    %1836 = vmatprep.subr.mxu0 0.0
    %1837 = vmatpush2.msra.mxu0 0.0
    %1838 = vmatprep.mubr.f32.mxu0 0.0
    %1839 = vmatmul.mubr.f32.gmra.mxu0 %v1772
    %v1840 = vpop.f32.mrf.mxu0
    %v1841 = vadd.f32 %v73, %v1840
    %v1842 = vpop.f32.mrf.mxu0
    %1843 = vdwg.mxu0
    %v1844 = vtanh.pop %v1841
    %v1846 = vsel %vm83, %v1844, 0
    %1848 = vmatprep.subr.mxu0 0.0
    %1849 = vmatpush1.msra.mxu0 0.0
    %1850 = vmatprep.subr.mxu0 0.0
    %1851 = vmatpush1.msra.mxu0 0.0
    %1852 = vmatprep.subr.mxu0 0.0
    %1853 = vmatpush1.msra.mxu0 0.0
    %1854 = vmatprep.subr.mxu0 0.0
    %1855 = vmatpush1.msra.mxu0 0.0
    %1856 = vmatprep.subr.mxu0 0.0
    %1857 = vmatpush1.msra.mxu0 0.0
    %1858 = vmatprep.subr.mxu0 0.0
    %1859 = vmatpush1.msra.mxu0 0.0
    %1860 = vmatprep.subr.mxu0 0.0
    %1861 = vmatpush1.msra.mxu0 0.0
    %1862 = vmatprep.subr.mxu0 0.0
    %1863 = vmatpush1.msra.mxu0 0.0
    %1864 = vmatprep.subr.mxu0 0.0
    %1865 = vmatpush1.msra.mxu0 0.0
    %1866 = vmatprep.subr.mxu0 0.0
    %1867 = vmatpush1.msra.mxu0 0.0
    %1868 = vmatprep.subr.mxu0 0.0
    %1869 = vmatpush1.msra.mxu0 0.0
    %1870 = vmatprep.subr.mxu0 0.0
    %1871 = vmatpush1.msra.mxu0 0.0
    %1872 = vmatprep.subr.mxu0 0.0
    %1873 = vmatpush1.msra.mxu0 %v67
    %1874 = vmatprep.subr.mxu0 0.0
    %1875 = vmatpush1.msra.mxu0 %v66
    %1876 = vmatprep.subr.mxu0 0.0
    %1877 = vmatpush1.msra.mxu0 %v65
    %1878 = vmatprep.subr.mxu0 0.0
    %1879 = vmatpush1.msra.mxu0 %v64
    %1880 = vmatprep.subr.mxu0 0.0
    %1881 = vmatpush2.msra.mxu0 0.0
    %1882 = vmatprep.subr.mxu0 0.0
    %1883 = vmatpush2.msra.mxu0 0.0
    %1884 = vmatprep.subr.mxu0 0.0
    %1885 = vmatpush2.msra.mxu0 0.0
    %1886 = vmatprep.subr.mxu0 0.0
    %1887 = vmatpush2.msra.mxu0 0.0
    %1888 = vmatprep.subr.mxu0 0.0
    %1889 = vmatpush2.msra.mxu0 0.0
    %1890 = vmatprep.subr.mxu0 0.0
    %1891 = vmatpush2.msra.mxu0 0.0
    %1892 = vmatprep.subr.mxu0 0.0
    %1893 = vmatpush2.msra.mxu0 0.0
    %1894 = vmatprep.subr.mxu0 0.0
    %1895 = vmatpush2.msra.mxu0 0.0
    %1896 = vmatprep.subr.mxu0 0.0
    %1897 = vmatpush2.msra.mxu0 0.0
    %1898 = vmatprep.subr.mxu0 0.0
    %1899 = vmatpush2.msra.mxu0 0.0
    %1900 = vmatprep.subr.mxu0 0.0
    %1901 = vmatpush2.msra.mxu0 0.0
    %1902 = vmatprep.subr.mxu0 0.0
    %1903 = vmatpush2.msra.mxu0 0.0
    %1904 = vmatprep.subr.mxu0 0.0
    %1905 = vmatpush2.msra.mxu0 0.0
    %1906 = vmatprep.subr.mxu0 0.0
    %1907 = vmatpush2.msra.mxu0 0.0
    %1908 = vmatprep.subr.mxu0 0.0
    %1909 = vmatpush2.msra.mxu0 0.0
    %1910 = vmatprep.subr.mxu0 0.0
    %1911 = vmatpush2.msra.mxu0 0.0
    %1912 = vmatprep.mubr.f32.mxu0 0.0
    %1913 = vmatmul.mubr.f32.gmra.mxu0 %v1846
    %v1914 = vpop.f32.mrf.mxu0
    %v1915 = vadd.f32 %v80, %v1914
    %v1916 = vpop.f32.mrf.mxu0
    %1917 = vdwg.mxu0
    %v1918 = vmul.f32 %v1150, 0.010127314
    %v1919 = vmul.f32 %v1450, 0.049915146
    %v1920 = vadd.f32 %v1918, %v1919
    %v1921 = vmul.f32 %v1603, 0.07233796
    %v1922 = vadd.f32 %v1920, %v1921
    %v1923 = vmul.f32 %v1758, -0.035819575
    %v1924 = vadd.f32 %v1922, %v1923
    %v1925 = vmul.f32 %v1915, 0.014550265
    %v1926 = vadd.f32 %v1924, %v1925
    %v1927 = vadd.f32 %v1005, %v1926
    %v1929 = vsel %vm83, %v1927, 0
    %1931 = vmatprep.subr.mxu0 0.0
    %1932 = vmatpush1.msra.mxu0 0.0
    %1933 = vmatprep.subr.mxu0 0.0
    %1934 = vmatpush1.msra.mxu0 0.0
    %1935 = vmatprep.subr.mxu0 0.0
    %1936 = vmatpush1.msra.mxu0 0.0
    %1937 = vmatprep.subr.mxu0 0.0
    %1938 = vmatpush1.msra.mxu0 0.0
    %1939 = vmatprep.subr.mxu0 0.0
    %1940 = vmatpush1.msra.mxu0 0.0
    %1941 = vmatprep.subr.mxu0 0.0
    %1942 = vmatpush1.msra.mxu0 0.0
    %1943 = vmatprep.subr.mxu0 0.0
    %1944 = vmatpush1.msra.mxu0 0.0
    %1945 = vmatprep.subr.mxu0 0.0
    %1946 = vmatpush1.msra.mxu0 0.0
    %1947 = vmatprep.subr.mxu0 0.0
    %1948 = vmatpush1.msra.mxu0 0.0
    %1949 = vmatprep.subr.mxu0 0.0
    %1950 = vmatpush1.msra.mxu0 0.0
    %1951 = vmatprep.subr.mxu0 0.0
    %1952 = vmatpush1.msra.mxu0 0.0
    %1953 = vmatprep.subr.mxu0 0.0
    %1954 = vmatpush1.msra.mxu0 0.0
    %1955 = vmatprep.subr.mxu0 0.0
    %1956 = vmatpush1.msra.mxu0 %v63
    %1957 = vmatprep.subr.mxu0 0.0
    %1958 = vmatpush1.msra.mxu0 %v62
    %1959 = vmatprep.subr.mxu0 0.0
    %1960 = vmatpush1.msra.mxu0 %v61
    %1961 = vmatprep.subr.mxu0 0.0
    %1962 = vmatpush1.msra.mxu0 %v60
    %1963 = vmatprep.subr.mxu0 0.0
    %1964 = vmatpush2.msra.mxu0 0.0
    %1965 = vmatprep.subr.mxu0 0.0
    %1966 = vmatpush2.msra.mxu0 0.0
    %1967 = vmatprep.subr.mxu0 0.0
    %1968 = vmatpush2.msra.mxu0 0.0
    %1969 = vmatprep.subr.mxu0 0.0
    %1970 = vmatpush2.msra.mxu0 0.0
    %1971 = vmatprep.subr.mxu0 0.0
    %1972 = vmatpush2.msra.mxu0 0.0
    %1973 = vmatprep.subr.mxu0 0.0
    %1974 = vmatpush2.msra.mxu0 0.0
    %1975 = vmatprep.subr.mxu0 0.0
    %1976 = vmatpush2.msra.mxu0 0.0
    %1977 = vmatprep.subr.mxu0 0.0
    %1978 = vmatpush2.msra.mxu0 0.0
    %1979 = vmatprep.subr.mxu0 0.0
    %1980 = vmatpush2.msra.mxu0 0.0
    %1981 = vmatprep.subr.mxu0 0.0
    %1982 = vmatpush2.msra.mxu0 0.0
    %1983 = vmatprep.subr.mxu0 0.0
    %1984 = vmatpush2.msra.mxu0 0.0
    %1985 = vmatprep.subr.mxu0 0.0
    %1986 = vmatpush2.msra.mxu0 0.0
    %1987 = vmatprep.subr.mxu0 0.0
    %1988 = vmatpush2.msra.mxu0 0.0
    %1989 = vmatprep.subr.mxu0 0.0
    %1990 = vmatpush2.msra.mxu0 0.0
    %1991 = vmatprep.subr.mxu0 0.0
    %1992 = vmatpush2.msra.mxu0 0.0
    %1993 = vmatprep.subr.mxu0 0.0
    %1994 = vmatpush2.msra.mxu0 0.0
    %1995 = vmatprep.mubr.f32.mxu0 0.0
    %1996 = vmatmul.mubr.f32.gmra.mxu0 %v1929
    %v1997 = vpop.f32.mrf.mxu0
    %v1998 = vadd.f32 %v73, %v1997
    %v1999 = vpop.f32.mrf.mxu0
    %2000 = vdwg.mxu0
    %v2001 = vtanh.pop %v1998
    %v2003 = vsel %vm83, %v2001, 0
    %2005 = vmatprep.subr.mxu0 0.0
    %2006 = vmatpush1.msra.mxu0 0.0
    %2007 = vmatprep.subr.mxu0 0.0
    %2008 = vmatpush1.msra.mxu0 0.0
    %2009 = vmatprep.subr.mxu0 0.0
    %2010 = vmatpush1.msra.mxu0 0.0
    %2011 = vmatprep.subr.mxu0 0.0
    %2012 = vmatpush1.msra.mxu0 0.0
    %2013 = vmatprep.subr.mxu0 0.0
    %2014 = vmatpush1.msra.mxu0 0.0
    %2015 = vmatprep.subr.mxu0 0.0
    %2016 = vmatpush1.msra.mxu0 0.0
    %2017 = vmatprep.subr.mxu0 0.0
    %2018 = vmatpush1.msra.mxu0 0.0
    %2019 = vmatprep.subr.mxu0 0.0
    %2020 = vmatpush1.msra.mxu0 0.0
    %2021 = vmatprep.subr.mxu0 0.0
    %2022 = vmatpush1.msra.mxu0 0.0
    %2023 = vmatprep.subr.mxu0 0.0
    %2024 = vmatpush1.msra.mxu0 0.0
    %2025 = vmatprep.subr.mxu0 0.0
    %2026 = vmatpush1.msra.mxu0 0.0
    %2027 = vmatprep.subr.mxu0 0.0
    %2028 = vmatpush1.msra.mxu0 0.0
    %2029 = vmatprep.subr.mxu0 0.0
    %2030 = vmatpush1.msra.mxu0 %v67
    %2031 = vmatprep.subr.mxu0 0.0
    %2032 = vmatpush1.msra.mxu0 %v66
    %2033 = vmatprep.subr.mxu0 0.0
    %2034 = vmatpush1.msra.mxu0 %v65
    %2035 = vmatprep.subr.mxu0 0.0
    %2036 = vmatpush1.msra.mxu0 %v64
    %2037 = vmatprep.subr.mxu0 0.0
    %2038 = vmatpush2.msra.mxu0 0.0
    %2039 = vmatprep.subr.mxu0 0.0
    %2040 = vmatpush2.msra.mxu0 0.0
    %2041 = vmatprep.subr.mxu0 0.0
    %2042 = vmatpush2.msra.mxu0 0.0
    %2043 = vmatprep.subr.mxu0 0.0
    %2044 = vmatpush2.msra.mxu0 0.0
    %2045 = vmatprep.subr.mxu0 0.0
    %2046 = vmatpush2.msra.mxu0 0.0
    %2047 = vmatprep.subr.mxu0 0.0
    %2048 = vmatpush2.msra.mxu0 0.0
    %2049 = vmatprep.subr.mxu0 0.0
    %2050 = vmatpush2.msra.mxu0 0.0
    %2051 = vmatprep.subr.mxu0 0.0
    %2052 = vmatpush2.msra.mxu0 0.0
    %2053 = vmatprep.subr.mxu0 0.0
    %2054 = vmatpush2.msra.mxu0 0.0
    %2055 = vmatprep.subr.mxu0 0.0
    %2056 = vmatpush2.msra.mxu0 0.0
    %2057 = vmatprep.subr.mxu0 0.0
    %2058 = vmatpush2.msra.mxu0 0.0
    %2059 = vmatprep.subr.mxu0 0.0
    %2060 = vmatpush2.msra.mxu0 0.0
    %2061 = vmatprep.subr.mxu0 0.0
    %2062 = vmatpush2.msra.mxu0 0.0
    %2063 = vmatprep.subr.mxu0 0.0
    %2064 = vmatpush2.msra.mxu0 0.0
    %2065 = vmatprep.subr.mxu0 0.0
    %2066 = vmatpush2.msra.mxu0 0.0
    %2067 = vmatprep.subr.mxu0 0.0
    %2068 = vmatpush2.msra.mxu0 0.0
    %2069 = vmatprep.mubr.f32.mxu0 0.0
    %2070 = vmatmul.mubr.f32.gmra.mxu0 %v2003
    %v2071 = vpop.f32.mrf.mxu0
    %v2072 = vadd.f32 %v80, %v2071
    %v2073 = vpop.f32.mrf.mxu0
    %2074 = vdwg.mxu0
    %v2075 = vmul.f32 %v2072, 0.022222223
    %v2076 = vadd.f32 %v1927, %v2075
    %v2078 = vsel %vm83, %v2076, 0
    %2080 = vmatprep.subr.mxu0 0.0
    %2081 = vmatpush1.msra.mxu0 0.0
    %2082 = vmatprep.subr.mxu0 0.0
    %2083 = vmatpush1.msra.mxu0 0.0
    %2084 = vmatprep.subr.mxu0 0.0
    %2085 = vmatpush1.msra.mxu0 0.0
    %2086 = vmatprep.subr.mxu0 0.0
    %2087 = vmatpush1.msra.mxu0 0.0
    %2088 = vmatprep.subr.mxu0 0.0
    %2089 = vmatpush1.msra.mxu0 0.0
    %2090 = vmatprep.subr.mxu0 0.0
    %2091 = vmatpush1.msra.mxu0 0.0
    %2092 = vmatprep.subr.mxu0 0.0
    %2093 = vmatpush1.msra.mxu0 0.0
    %2094 = vmatprep.subr.mxu0 0.0
    %2095 = vmatpush1.msra.mxu0 0.0
    %2096 = vmatprep.subr.mxu0 0.0
    %2097 = vmatpush1.msra.mxu0 0.0
    %2098 = vmatprep.subr.mxu0 0.0
    %2099 = vmatpush1.msra.mxu0 0.0
    %2100 = vmatprep.subr.mxu0 0.0
    %2101 = vmatpush1.msra.mxu0 0.0
    %2102 = vmatprep.subr.mxu0 0.0
    %2103 = vmatpush1.msra.mxu0 0.0
    %2104 = vmatprep.subr.mxu0 0.0
    %2105 = vmatpush1.msra.mxu0 %v63
    %2106 = vmatprep.subr.mxu0 0.0
    %2107 = vmatpush1.msra.mxu0 %v62
    %2108 = vmatprep.subr.mxu0 0.0
    %2109 = vmatpush1.msra.mxu0 %v61
    %2110 = vmatprep.subr.mxu0 0.0
    %2111 = vmatpush1.msra.mxu0 %v60
    %2112 = vmatprep.subr.mxu0 0.0
    %2113 = vmatpush2.msra.mxu0 0.0
    %2114 = vmatprep.subr.mxu0 0.0
    %2115 = vmatpush2.msra.mxu0 0.0
    %2116 = vmatprep.subr.mxu0 0.0
    %2117 = vmatpush2.msra.mxu0 0.0
    %2118 = vmatprep.subr.mxu0 0.0
    %2119 = vmatpush2.msra.mxu0 0.0
    %2120 = vmatprep.subr.mxu0 0.0
    %2121 = vmatpush2.msra.mxu0 0.0
    %2122 = vmatprep.subr.mxu0 0.0
    %2123 = vmatpush2.msra.mxu0 0.0
    %2124 = vmatprep.subr.mxu0 0.0
    %2125 = vmatpush2.msra.mxu0 0.0
    %2126 = vmatprep.subr.mxu0 0.0
    %2127 = vmatpush2.msra.mxu0 0.0
    %2128 = vmatprep.subr.mxu0 0.0
    %2129 = vmatpush2.msra.mxu0 0.0
    %2130 = vmatprep.subr.mxu0 0.0
    %2131 = vmatpush2.msra.mxu0 0.0
    %2132 = vmatprep.subr.mxu0 0.0
    %2133 = vmatpush2.msra.mxu0 0.0
    %2134 = vmatprep.subr.mxu0 0.0
    %2135 = vmatpush2.msra.mxu0 0.0
    %2136 = vmatprep.subr.mxu0 0.0
    %2137 = vmatpush2.msra.mxu0 0.0
    %2138 = vmatprep.subr.mxu0 0.0
    %2139 = vmatpush2.msra.mxu0 0.0
    %2140 = vmatprep.subr.mxu0 0.0
    %2141 = vmatpush2.msra.mxu0 0.0
    %2142 = vmatprep.subr.mxu0 0.0
    %2143 = vmatpush2.msra.mxu0 0.0
    %2144 = vmatprep.mubr.f32.mxu0 0.0
    %2145 = vmatmul.mubr.f32.gmra.mxu0 %v2078
    %v2146 = vpop.f32.mrf.mxu0
    %v2147 = vadd.f32 %v73, %v2146
    %v2148 = vpop.f32.mrf.mxu0
    %2149 = vdwg.mxu0
    %v2150 = vtanh.pop %v2147
    %v2152 = vsel %vm83, %v2150, 0
    %2154 = vmatprep.subr.mxu0 0.0
    %2155 = vmatpush1.msra.mxu0 0.0
    %2156 = vmatprep.subr.mxu0 0.0
    %2157 = vmatpush1.msra.mxu0 0.0
    %2158 = vmatprep.subr.mxu0 0.0
    %2159 = vmatpush1.msra.mxu0 0.0
    %2160 = vmatprep.subr.mxu0 0.0
    %2161 = vmatpush1.msra.mxu0 0.0
    %2162 = vmatprep.subr.mxu0 0.0
    %2163 = vmatpush1.msra.mxu0 0.0
    %2164 = vmatprep.subr.mxu0 0.0
    %2165 = vmatpush1.msra.mxu0 0.0
    %2166 = vmatprep.subr.mxu0 0.0
    %2167 = vmatpush1.msra.mxu0 0.0
    %2168 = vmatprep.subr.mxu0 0.0
    %2169 = vmatpush1.msra.mxu0 0.0
    %2170 = vmatprep.subr.mxu0 0.0
    %2171 = vmatpush1.msra.mxu0 0.0
    %2172 = vmatprep.subr.mxu0 0.0
    %2173 = vmatpush1.msra.mxu0 0.0
    %2174 = vmatprep.subr.mxu0 0.0
    %2175 = vmatpush1.msra.mxu0 0.0
    %2176 = vmatprep.subr.mxu0 0.0
    %2177 = vmatpush1.msra.mxu0 0.0
    %2178 = vmatprep.subr.mxu0 0.0
    %2179 = vmatpush1.msra.mxu0 %v67
    %2180 = vmatprep.subr.mxu0 0.0
    %2181 = vmatpush1.msra.mxu0 %v66
    %2182 = vmatprep.subr.mxu0 0.0
    %2183 = vmatpush1.msra.mxu0 %v65
    %2184 = vmatprep.subr.mxu0 0.0
    %2185 = vmatpush1.msra.mxu0 %v64
    %2186 = vmatprep.subr.mxu0 0.0
    %2187 = vmatpush2.msra.mxu0 0.0
    %2188 = vmatprep.subr.mxu0 0.0
    %2189 = vmatpush2.msra.mxu0 0.0
    %2190 = vmatprep.subr.mxu0 0.0
    %2191 = vmatpush2.msra.mxu0 0.0
    %2192 = vmatprep.subr.mxu0 0.0
    %2193 = vmatpush2.msra.mxu0 0.0
    %2194 = vmatprep.subr.mxu0 0.0
    %2195 = vmatpush2.msra.mxu0 0.0
    %2196 = vmatprep.subr.mxu0 0.0
    %2197 = vmatpush2.msra.mxu0 0.0
    %2198 = vmatprep.subr.mxu0 0.0
    %2199 = vmatpush2.msra.mxu0 0.0
    %2200 = vmatprep.subr.mxu0 0.0
    %2201 = vmatpush2.msra.mxu0 0.0
    %2202 = vmatprep.subr.mxu0 0.0
    %2203 = vmatpush2.msra.mxu0 0.0
    %2204 = vmatprep.subr.mxu0 0.0
    %2205 = vmatpush2.msra.mxu0 0.0
    %2206 = vmatprep.subr.mxu0 0.0
    %2207 = vmatpush2.msra.mxu0 0.0
    %2208 = vmatprep.subr.mxu0 0.0
    %2209 = vmatpush2.msra.mxu0 0.0
    %2210 = vmatprep.subr.mxu0 0.0
    %2211 = vmatpush2.msra.mxu0 0.0
    %2212 = vmatprep.subr.mxu0 0.0
    %2213 = vmatpush2.msra.mxu0 0.0
    %2214 = vmatprep.subr.mxu0 0.0
    %2215 = vmatpush2.msra.mxu0 0.0
    %2216 = vmatprep.subr.mxu0 0.0
    %2217 = vmatpush2.msra.mxu0 0.0
    %2218 = vmatprep.mubr.f32.mxu0 0.0
    %2219 = vmatmul.mubr.f32.gmra.mxu0 %v2152
    %v2220 = vpop.f32.mrf.mxu0
    %v2221 = vadd.f32 %v80, %v2220
    %v2222 = vpop.f32.mrf.mxu0
    %2223 = vdwg.mxu0
    %v2224 = vmul.f32 %v2072, 0.008333334
    %v2225 = vmul.f32 %v2221, 0.025
    %v2226 = vadd.f32 %v2224, %v2225
    %v2227 = vadd.f32 %v1927, %v2226
    %v2229 = vsel %vm83, %v2227, 0
    %2231 = vmatprep.subr.mxu0 0.0
    %2232 = vmatpush1.msra.mxu0 0.0
    %2233 = vmatprep.subr.mxu0 0.0
    %2234 = vmatpush1.msra.mxu0 0.0
    %2235 = vmatprep.subr.mxu0 0.0
    %2236 = vmatpush1.msra.mxu0 0.0
    %2237 = vmatprep.subr.mxu0 0.0
    %2238 = vmatpush1.msra.mxu0 0.0
    %2239 = vmatprep.subr.mxu0 0.0
    %2240 = vmatpush1.msra.mxu0 0.0
    %2241 = vmatprep.subr.mxu0 0.0
    %2242 = vmatpush1.msra.mxu0 0.0
    %2243 = vmatprep.subr.mxu0 0.0
    %2244 = vmatpush1.msra.mxu0 0.0
    %2245 = vmatprep.subr.mxu0 0.0
    %2246 = vmatpush1.msra.mxu0 0.0
    %2247 = vmatprep.subr.mxu0 0.0
    %2248 = vmatpush1.msra.mxu0 0.0
    %2249 = vmatprep.subr.mxu0 0.0
    %2250 = vmatpush1.msra.mxu0 0.0
    %2251 = vmatprep.subr.mxu0 0.0
    %2252 = vmatpush1.msra.mxu0 0.0
    %2253 = vmatprep.subr.mxu0 0.0
    %2254 = vmatpush1.msra.mxu0 0.0
    %2255 = vmatprep.subr.mxu0 0.0
    %2256 = vmatpush1.msra.mxu0 %v63
    %2257 = vmatprep.subr.mxu0 0.0
    %2258 = vmatpush1.msra.mxu0 %v62
    %2259 = vmatprep.subr.mxu0 0.0
    %2260 = vmatpush1.msra.mxu0 %v61
    %2261 = vmatprep.subr.mxu0 0.0
    %2262 = vmatpush1.msra.mxu0 %v60
    %2263 = vmatprep.subr.mxu0 0.0
    %2264 = vmatpush2.msra.mxu0 0.0
    %2265 = vmatprep.subr.mxu0 0.0
    %2266 = vmatpush2.msra.mxu0 0.0
    %2267 = vmatprep.subr.mxu0 0.0
    %2268 = vmatpush2.msra.mxu0 0.0
    %2269 = vmatprep.subr.mxu0 0.0
    %2270 = vmatpush2.msra.mxu0 0.0
    %2271 = vmatprep.subr.mxu0 0.0
    %2272 = vmatpush2.msra.mxu0 0.0
    %2273 = vmatprep.subr.mxu0 0.0
    %2274 = vmatpush2.msra.mxu0 0.0
    %2275 = vmatprep.subr.mxu0 0.0
    %2276 = vmatpush2.msra.mxu0 0.0
    %2277 = vmatprep.subr.mxu0 0.0
    %2278 = vmatpush2.msra.mxu0 0.0
    %2279 = vmatprep.subr.mxu0 0.0
    %2280 = vmatpush2.msra.mxu0 0.0
    %2281 = vmatprep.subr.mxu0 0.0
    %2282 = vmatpush2.msra.mxu0 0.0
    %2283 = vmatprep.subr.mxu0 0.0
    %2284 = vmatpush2.msra.mxu0 0.0
    %2285 = vmatprep.subr.mxu0 0.0
    %2286 = vmatpush2.msra.mxu0 0.0
    %2287 = vmatprep.subr.mxu0 0.0
    %2288 = vmatpush2.msra.mxu0 0.0
    %2289 = vmatprep.subr.mxu0 0.0
    %2290 = vmatpush2.msra.mxu0 0.0
    %2291 = vmatprep.subr.mxu0 0.0
    %2292 = vmatpush2.msra.mxu0 0.0
    %2293 = vmatprep.subr.mxu0 0.0
    %2294 = vmatpush2.msra.mxu0 0.0
    %2295 = vmatprep.mubr.f32.mxu0 0.0
    %2296 = vmatmul.mubr.f32.gmra.mxu0 %v2229
    %v2297 = vpop.f32.mrf.mxu0
    %v2298 = vadd.f32 %v73, %v2297
    %v2299 = vpop.f32.mrf.mxu0
    %2300 = vdwg.mxu0
    %v2301 = vtanh.pop %v2298
    %v2303 = vsel %vm83, %v2301, 0
    %2305 = vmatprep.subr.mxu0 0.0
    %2306 = vmatpush1.msra.mxu0 0.0
    %2307 = vmatprep.subr.mxu0 0.0
    %2308 = vmatpush1.msra.mxu0 0.0
    %2309 = vmatprep.subr.mxu0 0.0
    %2310 = vmatpush1.msra.mxu0 0.0
    %2311 = vmatprep.subr.mxu0 0.0
    %2312 = vmatpush1.msra.mxu0 0.0
    %2313 = vmatprep.subr.mxu0 0.0
    %2314 = vmatpush1.msra.mxu0 0.0
    %2315 = vmatprep.subr.mxu0 0.0
    %2316 = vmatpush1.msra.mxu0 0.0
    %2317 = vmatprep.subr.mxu0 0.0
    %2318 = vmatpush1.msra.mxu0 0.0
    %2319 = vmatprep.subr.mxu0 0.0
    %2320 = vmatpush1.msra.mxu0 0.0
    %2321 = vmatprep.subr.mxu0 0.0
    %2322 = vmatpush1.msra.mxu0 0.0
    %2323 = vmatprep.subr.mxu0 0.0
    %2324 = vmatpush1.msra.mxu0 0.0
    %2325 = vmatprep.subr.mxu0 0.0
    %2326 = vmatpush1.msra.mxu0 0.0
    %2327 = vmatprep.subr.mxu0 0.0
    %2328 = vmatpush1.msra.mxu0 0.0
    %2329 = vmatprep.subr.mxu0 0.0
    %2330 = vmatpush1.msra.mxu0 %v67
    %2331 = vmatprep.subr.mxu0 0.0
    %2332 = vmatpush1.msra.mxu0 %v66
    %2333 = vmatprep.subr.mxu0 0.0
    %2334 = vmatpush1.msra.mxu0 %v65
    %2335 = vmatprep.subr.mxu0 0.0
    %2336 = vmatpush1.msra.mxu0 %v64
    %2337 = vmatprep.subr.mxu0 0.0
    %2338 = vmatpush2.msra.mxu0 0.0
    %2339 = vmatprep.subr.mxu0 0.0
    %2340 = vmatpush2.msra.mxu0 0.0
    %2341 = vmatprep.subr.mxu0 0.0
    %2342 = vmatpush2.msra.mxu0 0.0
    %2343 = vmatprep.subr.mxu0 0.0
    %2344 = vmatpush2.msra.mxu0 0.0
    %2345 = vmatprep.subr.mxu0 0.0
    %2346 = vmatpush2.msra.mxu0 0.0
    %2347 = vmatprep.subr.mxu0 0.0
    %2348 = vmatpush2.msra.mxu0 0.0
    %2349 = vmatprep.subr.mxu0 0.0
    %2350 = vmatpush2.msra.mxu0 0.0
    %2351 = vmatprep.subr.mxu0 0.0
    %2352 = vmatpush2.msra.mxu0 0.0
    %2353 = vmatprep.subr.mxu0 0.0
    %2354 = vmatpush2.msra.mxu0 0.0
    %2355 = vmatprep.subr.mxu0 0.0
    %2356 = vmatpush2.msra.mxu0 0.0
    %2357 = vmatprep.subr.mxu0 0.0
    %2358 = vmatpush2.msra.mxu0 0.0
    %2359 = vmatprep.subr.mxu0 0.0
    %2360 = vmatpush2.msra.mxu0 0.0
    %2361 = vmatprep.subr.mxu0 0.0
    %2362 = vmatpush2.msra.mxu0 0.0
    %2363 = vmatprep.subr.mxu0 0.0
    %2364 = vmatpush2.msra.mxu0 0.0
    %2365 = vmatprep.subr.mxu0 0.0
    %2366 = vmatpush2.msra.mxu0 0.0
    %2367 = vmatprep.subr.mxu0 0.0
    %2368 = vmatpush2.msra.mxu0 0.0
    %2369 = vmatprep.mubr.f32.mxu0 0.0
    %2370 = vmatmul.mubr.f32.gmra.mxu0 %v2303
    %v2371 = vpop.f32.mrf.mxu0
    %v2372 = vadd.f32 %v80, %v2371
    %v2373 = vpop.f32.mrf.mxu0
    %2374 = vdwg.mxu0
    %v2375 = vmul.f32 %v2072, 0.108641975
    %v2376 = vmul.f32 %v2221, -0.4148148
    %v2377 = vadd.f32 %v2375, %v2376
    %v2378 = vmul.f32 %v2372, 0.39506173
    %v2379 = vadd.f32 %v2377, %v2378
    %v2380 = vadd.f32 %v1927, %v2379
    %v2382 = vsel %vm83, %v2380, 0
    %2384 = vmatprep.subr.mxu0 0.0
    %2385 = vmatpush1.msra.mxu0 0.0
    %2386 = vmatprep.subr.mxu0 0.0
    %2387 = vmatpush1.msra.mxu0 0.0
    %2388 = vmatprep.subr.mxu0 0.0
    %2389 = vmatpush1.msra.mxu0 0.0
    %2390 = vmatprep.subr.mxu0 0.0
    %2391 = vmatpush1.msra.mxu0 0.0
    %2392 = vmatprep.subr.mxu0 0.0
    %2393 = vmatpush1.msra.mxu0 0.0
    %2394 = vmatprep.subr.mxu0 0.0
    %2395 = vmatpush1.msra.mxu0 0.0
    %2396 = vmatprep.subr.mxu0 0.0
    %2397 = vmatpush1.msra.mxu0 0.0
    %2398 = vmatprep.subr.mxu0 0.0
    %2399 = vmatpush1.msra.mxu0 0.0
    %2400 = vmatprep.subr.mxu0 0.0
    %2401 = vmatpush1.msra.mxu0 0.0
    %2402 = vmatprep.subr.mxu0 0.0
    %2403 = vmatpush1.msra.mxu0 0.0
    %2404 = vmatprep.subr.mxu0 0.0
    %2405 = vmatpush1.msra.mxu0 0.0
    %2406 = vmatprep.subr.mxu0 0.0
    %2407 = vmatpush1.msra.mxu0 0.0
    %2408 = vmatprep.subr.mxu0 0.0
    %2409 = vmatpush1.msra.mxu0 %v63
    %2410 = vmatprep.subr.mxu0 0.0
    %2411 = vmatpush1.msra.mxu0 %v62
    %2412 = vmatprep.subr.mxu0 0.0
    %2413 = vmatpush1.msra.mxu0 %v61
    %2414 = vmatprep.subr.mxu0 0.0
    %2415 = vmatpush1.msra.mxu0 %v60
    %2416 = vmatprep.subr.mxu0 0.0
    %2417 = vmatpush2.msra.mxu0 0.0
    %2418 = vmatprep.subr.mxu0 0.0
    %2419 = vmatpush2.msra.mxu0 0.0
    %2420 = vmatprep.subr.mxu0 0.0
    %2421 = vmatpush2.msra.mxu0 0.0
    %2422 = vmatprep.subr.mxu0 0.0
    %2423 = vmatpush2.msra.mxu0 0.0
    %2424 = vmatprep.subr.mxu0 0.0
    %2425 = vmatpush2.msra.mxu0 0.0
    %2426 = vmatprep.subr.mxu0 0.0
    %2427 = vmatpush2.msra.mxu0 0.0
    %2428 = vmatprep.subr.mxu0 0.0
    %2429 = vmatpush2.msra.mxu0 0.0
    %2430 = vmatprep.subr.mxu0 0.0
    %2431 = vmatpush2.msra.mxu0 0.0
    %2432 = vmatprep.subr.mxu0 0.0
    %2433 = vmatpush2.msra.mxu0 0.0
    %2434 = vmatprep.subr.mxu0 0.0
    %2435 = vmatpush2.msra.mxu0 0.0
    %2436 = vmatprep.subr.mxu0 0.0
    %2437 = vmatpush2.msra.mxu0 0.0
    %2438 = vmatprep.subr.mxu0 0.0
    %2439 = vmatpush2.msra.mxu0 0.0
    %2440 = vmatprep.subr.mxu0 0.0
    %2441 = vmatpush2.msra.mxu0 0.0
    %2442 = vmatprep.subr.mxu0 0.0
    %2443 = vmatpush2.msra.mxu0 0.0
    %2444 = vmatprep.subr.mxu0 0.0
    %2445 = vmatpush2.msra.mxu0 0.0
    %2446 = vmatprep.subr.mxu0 0.0
    %2447 = vmatpush2.msra.mxu0 0.0
    %2448 = vmatprep.mubr.f32.mxu0 0.0
    %2449 = vmatmul.mubr.f32.gmra.mxu0 %v2382
    %v2450 = vpop.f32.mrf.mxu0
    %v2451 = vadd.f32 %v73, %v2450
    %v2452 = vpop.f32.mrf.mxu0
    %2453 = vdwg.mxu0
    %v2454 = vtanh.pop %v2451
    %v2456 = vsel %vm83, %v2454, 0
    %2458 = vmatprep.subr.mxu0 0.0
    %2459 = vmatpush1.msra.mxu0 0.0
    %2460 = vmatprep.subr.mxu0 0.0
    %2461 = vmatpush1.msra.mxu0 0.0
    %2462 = vmatprep.subr.mxu0 0.0
    %2463 = vmatpush1.msra.mxu0 0.0
    %2464 = vmatprep.subr.mxu0 0.0
    %2465 = vmatpush1.msra.mxu0 0.0
    %2466 = vmatprep.subr.mxu0 0.0
    %2467 = vmatpush1.msra.mxu0 0.0
    %2468 = vmatprep.subr.mxu0 0.0
    %2469 = vmatpush1.msra.mxu0 0.0
    %2470 = vmatprep.subr.mxu0 0.0
    %2471 = vmatpush1.msra.mxu0 0.0
    %2472 = vmatprep.subr.mxu0 0.0
    %2473 = vmatpush1.msra.mxu0 0.0
    %2474 = vmatprep.subr.mxu0 0.0
    %2475 = vmatpush1.msra.mxu0 0.0
    %2476 = vmatprep.subr.mxu0 0.0
    %2477 = vmatpush1.msra.mxu0 0.0
    %2478 = vmatprep.subr.mxu0 0.0
    %2479 = vmatpush1.msra.mxu0 0.0
    %2480 = vmatprep.subr.mxu0 0.0
    %2481 = vmatpush1.msra.mxu0 0.0
    %2482 = vmatprep.subr.mxu0 0.0
    %2483 = vmatpush1.msra.mxu0 %v67
    %2484 = vmatprep.subr.mxu0 0.0
    %2485 = vmatpush1.msra.mxu0 %v66
    %2486 = vmatprep.subr.mxu0 0.0
    %2487 = vmatpush1.msra.mxu0 %v65
    %2488 = vmatprep.subr.mxu0 0.0
    %2489 = vmatpush1.msra.mxu0 %v64
    %2490 = vmatprep.subr.mxu0 0.0
    %2491 = vmatpush2.msra.mxu0 0.0
    %2492 = vmatprep.subr.mxu0 0.0
    %2493 = vmatpush2.msra.mxu0 0.0
    %2494 = vmatprep.subr.mxu0 0.0
    %2495 = vmatpush2.msra.mxu0 0.0
    %2496 = vmatprep.subr.mxu0 0.0
    %2497 = vmatpush2.msra.mxu0 0.0
    %2498 = vmatprep.subr.mxu0 0.0
    %2499 = vmatpush2.msra.mxu0 0.0
    %2500 = vmatprep.subr.mxu0 0.0
    %2501 = vmatpush2.msra.mxu0 0.0
    %2502 = vmatprep.subr.mxu0 0.0
    %2503 = vmatpush2.msra.mxu0 0.0
    %2504 = vmatprep.subr.mxu0 0.0
    %2505 = vmatpush2.msra.mxu0 0.0
    %2506 = vmatprep.subr.mxu0 0.0
    %2507 = vmatpush2.msra.mxu0 0.0
    %2508 = vmatprep.subr.mxu0 0.0
    %2509 = vmatpush2.msra.mxu0 0.0
    %2510 = vmatprep.subr.mxu0 0.0
    %2511 = vmatpush2.msra.mxu0 0.0
    %2512 = vmatprep.subr.mxu0 0.0
    %2513 = vmatpush2.msra.mxu0 0.0
    %2514 = vmatprep.subr.mxu0 0.0
    %2515 = vmatpush2.msra.mxu0 0.0
    %2516 = vmatprep.subr.mxu0 0.0
    %2517 = vmatpush2.msra.mxu0 0.0
    %2518 = vmatprep.subr.mxu0 0.0
    %2519 = vmatpush2.msra.mxu0 0.0
    %2520 = vmatprep.subr.mxu0 0.0
    %2521 = vmatpush2.msra.mxu0 0.0
    %2522 = vmatprep.mubr.f32.mxu0 0.0
    %2523 = vmatmul.mubr.f32.gmra.mxu0 %v2456
    %v2524 = vpop.f32.mrf.mxu0
    %v2525 = vadd.f32 %v80, %v2524
    %v2526 = vpop.f32.mrf.mxu0
    %2527 = vdwg.mxu0
    %v2528 = vmul.f32 %v2072, 0.32806653
    %v2529 = vmul.f32 %v2221, -1.2884215
    %v2530 = vadd.f32 %v2528, %v2529
    %v2531 = vmul.f32 %v2372, 1.0914326
    %v2532 = vadd.f32 %v2530, %v2531
    %v2533 = vmul.f32 %v2525, -0.032312147
    %v2534 = vadd.f32 %v2532, %v2533
    %v2535 = vadd.f32 %v1927, %v2534
    %v2537 = vsel %vm83, %v2535, 0
    %2539 = vmatprep.subr.mxu0 0.0
    %2540 = vmatpush1.msra.mxu0 0.0
    %2541 = vmatprep.subr.mxu0 0.0
    %2542 = vmatpush1.msra.mxu0 0.0
    %2543 = vmatprep.subr.mxu0 0.0
    %2544 = vmatpush1.msra.mxu0 0.0
    %2545 = vmatprep.subr.mxu0 0.0
    %2546 = vmatpush1.msra.mxu0 0.0
    %2547 = vmatprep.subr.mxu0 0.0
    %2548 = vmatpush1.msra.mxu0 0.0
    %2549 = vmatprep.subr.mxu0 0.0
    %2550 = vmatpush1.msra.mxu0 0.0
    %2551 = vmatprep.subr.mxu0 0.0
    %2552 = vmatpush1.msra.mxu0 0.0
    %2553 = vmatprep.subr.mxu0 0.0
    %2554 = vmatpush1.msra.mxu0 0.0
    %2555 = vmatprep.subr.mxu0 0.0
    %2556 = vmatpush1.msra.mxu0 0.0
    %2557 = vmatprep.subr.mxu0 0.0
    %2558 = vmatpush1.msra.mxu0 0.0
    %2559 = vmatprep.subr.mxu0 0.0
    %2560 = vmatpush1.msra.mxu0 0.0
    %2561 = vmatprep.subr.mxu0 0.0
    %2562 = vmatpush1.msra.mxu0 0.0
    %2563 = vmatprep.subr.mxu0 0.0
    %2564 = vmatpush1.msra.mxu0 %v63
    %2565 = vmatprep.subr.mxu0 0.0
    %2566 = vmatpush1.msra.mxu0 %v62
    %2567 = vmatprep.subr.mxu0 0.0
    %2568 = vmatpush1.msra.mxu0 %v61
    %2569 = vmatprep.subr.mxu0 0.0
    %2570 = vmatpush1.msra.mxu0 %v60
    %2571 = vmatprep.subr.mxu0 0.0
    %2572 = vmatpush2.msra.mxu0 0.0
    %2573 = vmatprep.subr.mxu0 0.0
    %2574 = vmatpush2.msra.mxu0 0.0
    %2575 = vmatprep.subr.mxu0 0.0
    %2576 = vmatpush2.msra.mxu0 0.0
    %2577 = vmatprep.subr.mxu0 0.0
    %2578 = vmatpush2.msra.mxu0 0.0
    %2579 = vmatprep.subr.mxu0 0.0
    %2580 = vmatpush2.msra.mxu0 0.0
    %2581 = vmatprep.subr.mxu0 0.0
    %2582 = vmatpush2.msra.mxu0 0.0
    %2583 = vmatprep.subr.mxu0 0.0
    %2584 = vmatpush2.msra.mxu0 0.0
    %2585 = vmatprep.subr.mxu0 0.0
    %2586 = vmatpush2.msra.mxu0 0.0
    %2587 = vmatprep.subr.mxu0 0.0
    %2588 = vmatpush2.msra.mxu0 0.0
    %2589 = vmatprep.subr.mxu0 0.0
    %2590 = vmatpush2.msra.mxu0 0.0
    %2591 = vmatprep.subr.mxu0 0.0
    %2592 = vmatpush2.msra.mxu0 0.0
    %2593 = vmatprep.subr.mxu0 0.0
    %2594 = vmatpush2.msra.mxu0 0.0
    %2595 = vmatprep.subr.mxu0 0.0
    %2596 = vmatpush2.msra.mxu0 0.0
    %2597 = vmatprep.subr.mxu0 0.0
    %2598 = vmatpush2.msra.mxu0 0.0
    %2599 = vmatprep.subr.mxu0 0.0
    %2600 = vmatpush2.msra.mxu0 0.0
    %2601 = vmatprep.subr.mxu0 0.0
    %2602 = vmatpush2.msra.mxu0 0.0
    %2603 = vmatprep.mubr.f32.mxu0 0.0
    %2604 = vmatmul.mubr.f32.gmra.mxu0 %v2537
    %v2605 = vpop.f32.mrf.mxu0
    %v2606 = vadd.f32 %v73, %v2605
    %v2607 = vpop.f32.mrf.mxu0
    %2608 = vdwg.mxu0
    %v2609 = vtanh.pop %v2606
    %v2611 = vsel %vm83, %v2609, 0
    %2613 = vmatprep.subr.mxu0 0.0
    %2614 = vmatpush1.msra.mxu0 0.0
    %2615 = vmatprep.subr.mxu0 0.0
    %2616 = vmatpush1.msra.mxu0 0.0
    %2617 = vmatprep.subr.mxu0 0.0
    %2618 = vmatpush1.msra.mxu0 0.0
    %2619 = vmatprep.subr.mxu0 0.0
    %2620 = vmatpush1.msra.mxu0 0.0
    %2621 = vmatprep.subr.mxu0 0.0
    %2622 = vmatpush1.msra.mxu0 0.0
    %2623 = vmatprep.subr.mxu0 0.0
    %2624 = vmatpush1.msra.mxu0 0.0
    %2625 = vmatprep.subr.mxu0 0.0
    %2626 = vmatpush1.msra.mxu0 0.0
    %2627 = vmatprep.subr.mxu0 0.0
    %2628 = vmatpush1.msra.mxu0 0.0
    %2629 = vmatprep.subr.mxu0 0.0
    %2630 = vmatpush1.msra.mxu0 0.0
    %2631 = vmatprep.subr.mxu0 0.0
    %2632 = vmatpush1.msra.mxu0 0.0
    %2633 = vmatprep.subr.mxu0 0.0
    %2634 = vmatpush1.msra.mxu0 0.0
    %2635 = vmatprep.subr.mxu0 0.0
    %2636 = vmatpush1.msra.mxu0 0.0
    %2637 = vmatprep.subr.mxu0 0.0
    %2638 = vmatpush1.msra.mxu0 %v67
    %2639 = vmatprep.subr.mxu0 0.0
    %2640 = vmatpush1.msra.mxu0 %v66
    %2641 = vmatprep.subr.mxu0 0.0
    %2642 = vmatpush1.msra.mxu0 %v65
    %2643 = vmatprep.subr.mxu0 0.0
    %2644 = vmatpush1.msra.mxu0 %v64
    %2645 = vmatprep.subr.mxu0 0.0
    %2646 = vmatpush2.msra.mxu0 0.0
    %2647 = vmatprep.subr.mxu0 0.0
    %2648 = vmatpush2.msra.mxu0 0.0
    %2649 = vmatprep.subr.mxu0 0.0
    %2650 = vmatpush2.msra.mxu0 0.0
    %2651 = vmatprep.subr.mxu0 0.0
    %2652 = vmatpush2.msra.mxu0 0.0
    %2653 = vmatprep.subr.mxu0 0.0
    %2654 = vmatpush2.msra.mxu0 0.0
    %2655 = vmatprep.subr.mxu0 0.0
    %2656 = vmatpush2.msra.mxu0 0.0
    %2657 = vmatprep.subr.mxu0 0.0
    %2658 = vmatpush2.msra.mxu0 0.0
    %2659 = vmatprep.subr.mxu0 0.0
    %2660 = vmatpush2.msra.mxu0 0.0
    %2661 = vmatprep.subr.mxu0 0.0
    %2662 = vmatpush2.msra.mxu0 0.0
    %2663 = vmatprep.subr.mxu0 0.0
    %2664 = vmatpush2.msra.mxu0 0.0
    %2665 = vmatprep.subr.mxu0 0.0
    %2666 = vmatpush2.msra.mxu0 0.0
    %2667 = vmatprep.subr.mxu0 0.0
    %2668 = vmatpush2.msra.mxu0 0.0
    %2669 = vmatprep.subr.mxu0 0.0
    %2670 = vmatpush2.msra.mxu0 0.0
    %2671 = vmatprep.subr.mxu0 0.0
    %2672 = vmatpush2.msra.mxu0 0.0
    %2673 = vmatprep.subr.mxu0 0.0
    %2674 = vmatpush2.msra.mxu0 0.0
    %2675 = vmatprep.subr.mxu0 0.0
    %2676 = vmatpush2.msra.mxu0 0.0
    %2677 = vmatprep.mubr.f32.mxu0 0.0
    %2678 = vmatmul.mubr.f32.gmra.mxu0 %v2611
    %v2679 = vpop.f32.mrf.mxu0
    %v2680 = vadd.f32 %v80, %v2679
    %v2681 = vpop.f32.mrf.mxu0
    %2682 = vdwg.mxu0
    %v2683 = vmul.f32 %v2072, 0.3162528
    %v2684 = vmul.f32 %v2221, -1.1952862
    %v2685 = vadd.f32 %v2683, %v2684
    %v2686 = vmul.f32 %v2372, 0.9896025
    %v2687 = vadd.f32 %v2685, %v2686
    %v2688 = vmul.f32 %v2525, 0.030934343
    %v2689 = vadd.f32 %v2687, %v2688
    %v2690 = vmul.f32 %v2680, -0.030392367
    %v2691 = vadd.f32 %v2689, %v2690
    %v2692 = vadd.f32 %v1927, %v2691
    %v2694 = vsel %vm83, %v2692, 0
    %2696 = vmatprep.subr.mxu0 0.0
    %2697 = vmatpush1.msra.mxu0 0.0
    %2698 = vmatprep.subr.mxu0 0.0
    %2699 = vmatpush1.msra.mxu0 0.0
    %2700 = vmatprep.subr.mxu0 0.0
    %2701 = vmatpush1.msra.mxu0 0.0
    %2702 = vmatprep.subr.mxu0 0.0
    %2703 = vmatpush1.msra.mxu0 0.0
    %2704 = vmatprep.subr.mxu0 0.0
    %2705 = vmatpush1.msra.mxu0 0.0
    %2706 = vmatprep.subr.mxu0 0.0
    %2707 = vmatpush1.msra.mxu0 0.0
    %2708 = vmatprep.subr.mxu0 0.0
    %2709 = vmatpush1.msra.mxu0 0.0
    %2710 = vmatprep.subr.mxu0 0.0
    %2711 = vmatpush1.msra.mxu0 0.0
    %2712 = vmatprep.subr.mxu0 0.0
    %2713 = vmatpush1.msra.mxu0 0.0
    %2714 = vmatprep.subr.mxu0 0.0
    %2715 = vmatpush1.msra.mxu0 0.0
    %2716 = vmatprep.subr.mxu0 0.0
    %2717 = vmatpush1.msra.mxu0 0.0
    %2718 = vmatprep.subr.mxu0 0.0
    %2719 = vmatpush1.msra.mxu0 0.0
    %2720 = vmatprep.subr.mxu0 0.0
    %2721 = vmatpush1.msra.mxu0 %v63
    %2722 = vmatprep.subr.mxu0 0.0
    %2723 = vmatpush1.msra.mxu0 %v62
    %2724 = vmatprep.subr.mxu0 0.0
    %2725 = vmatpush1.msra.mxu0 %v61
    %2726 = vmatprep.subr.mxu0 0.0
    %2727 = vmatpush1.msra.mxu0 %v60
    %2728 = vmatprep.subr.mxu0 0.0
    %2729 = vmatpush2.msra.mxu0 0.0
    %2730 = vmatprep.subr.mxu0 0.0
    %2731 = vmatpush2.msra.mxu0 0.0
    %2732 = vmatprep.subr.mxu0 0.0
    %2733 = vmatpush2.msra.mxu0 0.0
    %2734 = vmatprep.subr.mxu0 0.0
    %2735 = vmatpush2.msra.mxu0 0.0
    %2736 = vmatprep.subr.mxu0 0.0
    %2737 = vmatpush2.msra.mxu0 0.0
    %2738 = vmatprep.subr.mxu0 0.0
    %2739 = vmatpush2.msra.mxu0 0.0
    %2740 = vmatprep.subr.mxu0 0.0
    %2741 = vmatpush2.msra.mxu0 0.0
    %2742 = vmatprep.subr.mxu0 0.0
    %2743 = vmatpush2.msra.mxu0 0.0
    %2744 = vmatprep.subr.mxu0 0.0
    %2745 = vmatpush2.msra.mxu0 0.0
    %2746 = vmatprep.subr.mxu0 0.0
    %2747 = vmatpush2.msra.mxu0 0.0
    %2748 = vmatprep.subr.mxu0 0.0
    %2749 = vmatpush2.msra.mxu0 0.0
    %2750 = vmatprep.subr.mxu0 0.0
    %2751 = vmatpush2.msra.mxu0 0.0
    %2752 = vmatprep.subr.mxu0 0.0
    %2753 = vmatpush2.msra.mxu0 0.0
    %2754 = vmatprep.subr.mxu0 0.0
    %2755 = vmatpush2.msra.mxu0 0.0
    %2756 = vmatprep.subr.mxu0 0.0
    %2757 = vmatpush2.msra.mxu0 0.0
    %2758 = vmatprep.subr.mxu0 0.0
    %2759 = vmatpush2.msra.mxu0 0.0
    %2760 = vmatprep.mubr.f32.mxu0 0.0
    %2761 = vmatmul.mubr.f32.gmra.mxu0 %v2694
    %v2762 = vpop.f32.mrf.mxu0
    %v2763 = vadd.f32 %v73, %v2762
    %v2764 = vpop.f32.mrf.mxu0
    %2765 = vdwg.mxu0
    %v2766 = vtanh.pop %v2763
    %v2768 = vsel %vm83, %v2766, 0
    %2770 = vmatprep.subr.mxu0 0.0
    %2771 = vmatpush1.msra.mxu0 0.0
    %2772 = vmatprep.subr.mxu0 0.0
    %2773 = vmatpush1.msra.mxu0 0.0
    %2774 = vmatprep.subr.mxu0 0.0
    %2775 = vmatpush1.msra.mxu0 0.0
    %2776 = vmatprep.subr.mxu0 0.0
    %2777 = vmatpush1.msra.mxu0 0.0
    %2778 = vmatprep.subr.mxu0 0.0
    %2779 = vmatpush1.msra.mxu0 0.0
    %2780 = vmatprep.subr.mxu0 0.0
    %2781 = vmatpush1.msra.mxu0 0.0
    %2782 = vmatprep.subr.mxu0 0.0
    %2783 = vmatpush1.msra.mxu0 0.0
    %2784 = vmatprep.subr.mxu0 0.0
    %2785 = vmatpush1.msra.mxu0 0.0
    %2786 = vmatprep.subr.mxu0 0.0
    %2787 = vmatpush1.msra.mxu0 0.0
    %2788 = vmatprep.subr.mxu0 0.0
    %2789 = vmatpush1.msra.mxu0 0.0
    %2790 = vmatprep.subr.mxu0 0.0
    %2791 = vmatpush1.msra.mxu0 0.0
    %2792 = vmatprep.subr.mxu0 0.0
    %2793 = vmatpush1.msra.mxu0 0.0
    %2794 = vmatprep.subr.mxu0 0.0
    %2795 = vmatpush1.msra.mxu0 %v67
    %2796 = vmatprep.subr.mxu0 0.0
    %2797 = vmatpush1.msra.mxu0 %v66
    %2798 = vmatprep.subr.mxu0 0.0
    %2799 = vmatpush1.msra.mxu0 %v65
    %2800 = vmatprep.subr.mxu0 0.0
    %2801 = vmatpush1.msra.mxu0 %v64
    %2802 = vmatprep.subr.mxu0 0.0
    %2803 = vmatpush2.msra.mxu0 0.0
    %2804 = vmatprep.subr.mxu0 0.0
    %2805 = vmatpush2.msra.mxu0 0.0
    %2806 = vmatprep.subr.mxu0 0.0
    %2807 = vmatpush2.msra.mxu0 0.0
    %2808 = vmatprep.subr.mxu0 0.0
    %2809 = vmatpush2.msra.mxu0 0.0
    %2810 = vmatprep.subr.mxu0 0.0
    %2811 = vmatpush2.msra.mxu0 0.0
    %2812 = vmatprep.subr.mxu0 0.0
    %2813 = vmatpush2.msra.mxu0 0.0
    %2814 = vmatprep.subr.mxu0 0.0
    %2815 = vmatpush2.msra.mxu0 0.0
    %2816 = vmatprep.subr.mxu0 0.0
    %2817 = vmatpush2.msra.mxu0 0.0
    %2818 = vmatprep.subr.mxu0 0.0
    %2819 = vmatpush2.msra.mxu0 0.0
    %2820 = vmatprep.subr.mxu0 0.0
    %2821 = vmatpush2.msra.mxu0 0.0
    %2822 = vmatprep.subr.mxu0 0.0
    %2823 = vmatpush2.msra.mxu0 0.0
    %2824 = vmatprep.subr.mxu0 0.0
    %2825 = vmatpush2.msra.mxu0 0.0
    %2826 = vmatprep.subr.mxu0 0.0
    %2827 = vmatpush2.msra.mxu0 0.0
    %2828 = vmatprep.subr.mxu0 0.0
    %2829 = vmatpush2.msra.mxu0 0.0
    %2830 = vmatprep.subr.mxu0 0.0
    %2831 = vmatpush2.msra.mxu0 0.0
    %2832 = vmatprep.subr.mxu0 0.0
    %2833 = vmatpush2.msra.mxu0 0.0
    %2834 = vmatprep.mubr.f32.mxu0 0.0
    %2835 = vmatmul.mubr.f32.gmra.mxu0 %v2768
    %v2836 = vpop.f32.mrf.mxu0
    %v2837 = vadd.f32 %v80, %v2836
    %v2838 = vpop.f32.mrf.mxu0
    %2839 = vdwg.mxu0
    %v2840 = vmul.f32 %v2072, 0.010127314
    %v2841 = vmul.f32 %v2372, 0.049915146
    %v2842 = vadd.f32 %v2840, %v2841
    %v2843 = vmul.f32 %v2525, 0.07233796
    %v2844 = vadd.f32 %v2842, %v2843
    %v2845 = vmul.f32 %v2680, -0.035819575
    %v2846 = vadd.f32 %v2844, %v2845
    %v2847 = vmul.f32 %v2837, 0.014550265
    %v2848 = vadd.f32 %v2846, %v2847
    %v2849 = vadd.f32 %v1927, %v2848
    %v2851 = vsel %vm83, %v2849, 0
    %2853 = vmatprep.subr.mxu0 0.0
    %2854 = vmatpush1.msra.mxu0 0.0
    %2855 = vmatprep.subr.mxu0 0.0
    %2856 = vmatpush1.msra.mxu0 0.0
    %2857 = vmatprep.subr.mxu0 0.0
    %2858 = vmatpush1.msra.mxu0 0.0
    %2859 = vmatprep.subr.mxu0 0.0
    %2860 = vmatpush1.msra.mxu0 0.0
    %2861 = vmatprep.subr.mxu0 0.0
    %2862 = vmatpush1.msra.mxu0 0.0
    %2863 = vmatprep.subr.mxu0 0.0
    %2864 = vmatpush1.msra.mxu0 0.0
    %2865 = vmatprep.subr.mxu0 0.0
    %2866 = vmatpush1.msra.mxu0 0.0
    %2867 = vmatprep.subr.mxu0 0.0
    %2868 = vmatpush1.msra.mxu0 0.0
    %2869 = vmatprep.subr.mxu0 0.0
    %2870 = vmatpush1.msra.mxu0 0.0
    %2871 = vmatprep.subr.mxu0 0.0
    %2872 = vmatpush1.msra.mxu0 0.0
    %2873 = vmatprep.subr.mxu0 0.0
    %2874 = vmatpush1.msra.mxu0 0.0
    %2875 = vmatprep.subr.mxu0 0.0
    %2876 = vmatpush1.msra.mxu0 0.0
    %2877 = vmatprep.subr.mxu0 0.0
    %2878 = vmatpush1.msra.mxu0 %v63
    %2879 = vmatprep.subr.mxu0 0.0
    %2880 = vmatpush1.msra.mxu0 %v62
    %2881 = vmatprep.subr.mxu0 0.0
    %2882 = vmatpush1.msra.mxu0 %v61
    %2883 = vmatprep.subr.mxu0 0.0
    %2884 = vmatpush1.msra.mxu0 %v60
    %2885 = vmatprep.subr.mxu0 0.0
    %2886 = vmatpush2.msra.mxu0 0.0
    %2887 = vmatprep.subr.mxu0 0.0
    %2888 = vmatpush2.msra.mxu0 0.0
    %2889 = vmatprep.subr.mxu0 0.0
    %2890 = vmatpush2.msra.mxu0 0.0
    %2891 = vmatprep.subr.mxu0 0.0
    %2892 = vmatpush2.msra.mxu0 0.0
    %2893 = vmatprep.subr.mxu0 0.0
    %2894 = vmatpush2.msra.mxu0 0.0
    %2895 = vmatprep.subr.mxu0 0.0
    %2896 = vmatpush2.msra.mxu0 0.0
    %2897 = vmatprep.subr.mxu0 0.0
    %2898 = vmatpush2.msra.mxu0 0.0
    %2899 = vmatprep.subr.mxu0 0.0
    %2900 = vmatpush2.msra.mxu0 0.0
    %2901 = vmatprep.subr.mxu0 0.0
    %2902 = vmatpush2.msra.mxu0 0.0
    %2903 = vmatprep.subr.mxu0 0.0
    %2904 = vmatpush2.msra.mxu0 0.0
    %2905 = vmatprep.subr.mxu0 0.0
    %2906 = vmatpush2.msra.mxu0 0.0
    %2907 = vmatprep.subr.mxu0 0.0
    %2908 = vmatpush2.msra.mxu0 0.0
    %2909 = vmatprep.subr.mxu0 0.0
    %2910 = vmatpush2.msra.mxu0 0.0
    %2911 = vmatprep.subr.mxu0 0.0
    %2912 = vmatpush2.msra.mxu0 0.0
    %2913 = vmatprep.subr.mxu0 0.0
    %2914 = vmatpush2.msra.mxu0 0.0
    %2915 = vmatprep.subr.mxu0 0.0
    %2916 = vmatpush2.msra.mxu0 0.0
    %2917 = vmatprep.mubr.f32.mxu0 0.0
    %2918 = vmatmul.mubr.f32.gmra.mxu0 %v2851
    %v2919 = vpop.f32.mrf.mxu0
    %v2920 = vadd.f32 %v73, %v2919
    %v2921 = vpop.f32.mrf.mxu0
    %2922 = vdwg.mxu0
    %v2923 = vtanh.pop %v2920
    %v2925 = vsel %vm83, %v2923, 0
    %2927 = vmatprep.subr.mxu0 0.0
    %2928 = vmatpush1.msra.mxu0 0.0
    %2929 = vmatprep.subr.mxu0 0.0
    %2930 = vmatpush1.msra.mxu0 0.0
    %2931 = vmatprep.subr.mxu0 0.0
    %2932 = vmatpush1.msra.mxu0 0.0
    %2933 = vmatprep.subr.mxu0 0.0
    %2934 = vmatpush1.msra.mxu0 0.0
    %2935 = vmatprep.subr.mxu0 0.0
    %2936 = vmatpush1.msra.mxu0 0.0
    %2937 = vmatprep.subr.mxu0 0.0
    %2938 = vmatpush1.msra.mxu0 0.0
    %2939 = vmatprep.subr.mxu0 0.0
    %2940 = vmatpush1.msra.mxu0 0.0
    %2941 = vmatprep.subr.mxu0 0.0
    %2942 = vmatpush1.msra.mxu0 0.0
    %2943 = vmatprep.subr.mxu0 0.0
    %2944 = vmatpush1.msra.mxu0 0.0
    %2945 = vmatprep.subr.mxu0 0.0
    %2946 = vmatpush1.msra.mxu0 0.0
    %2947 = vmatprep.subr.mxu0 0.0
    %2948 = vmatpush1.msra.mxu0 0.0
    %2949 = vmatprep.subr.mxu0 0.0
    %2950 = vmatpush1.msra.mxu0 0.0
    %2951 = vmatprep.subr.mxu0 0.0
    %2952 = vmatpush1.msra.mxu0 %v67
    %2953 = vmatprep.subr.mxu0 0.0
    %2954 = vmatpush1.msra.mxu0 %v66
    %2955 = vmatprep.subr.mxu0 0.0
    %2956 = vmatpush1.msra.mxu0 %v65
    %2957 = vmatprep.subr.mxu0 0.0
    %2958 = vmatpush1.msra.mxu0 %v64
    %2959 = vmatprep.subr.mxu0 0.0
    %2960 = vmatpush2.msra.mxu0 0.0
    %2961 = vmatprep.subr.mxu0 0.0
    %2962 = vmatpush2.msra.mxu0 0.0
    %2963 = vmatprep.subr.mxu0 0.0
    %2964 = vmatpush2.msra.mxu0 0.0
    %2965 = vmatprep.subr.mxu0 0.0
    %2966 = vmatpush2.msra.mxu0 0.0
    %2967 = vmatprep.subr.mxu0 0.0
    %2968 = vmatpush2.msra.mxu0 0.0
    %2969 = vmatprep.subr.mxu0 0.0
    %2970 = vmatpush2.msra.mxu0 0.0
    %2971 = vmatprep.subr.mxu0 0.0
    %2972 = vmatpush2.msra.mxu0 0.0
    %2973 = vmatprep.subr.mxu0 0.0
    %2974 = vmatpush2.msra.mxu0 0.0
    %2975 = vmatprep.subr.mxu0 0.0
    %2976 = vmatpush2.msra.mxu0 0.0
    %2977 = vmatprep.subr.mxu0 0.0
    %2978 = vmatpush2.msra.mxu0 0.0
    %2979 = vmatprep.subr.mxu0 0.0
    %2980 = vmatpush2.msra.mxu0 0.0
    %2981 = vmatprep.subr.mxu0 0.0
    %2982 = vmatpush2.msra.mxu0 0.0
    %2983 = vmatprep.subr.mxu0 0.0
    %2984 = vmatpush2.msra.mxu0 0.0
    %2985 = vmatprep.subr.mxu0 0.0
    %2986 = vmatpush2.msra.mxu0 0.0
    %2987 = vmatprep.subr.mxu0 0.0
    %2988 = vmatpush2.msra.mxu0 0.0
    %2989 = vmatprep.subr.mxu0 0.0
    %2990 = vmatpush2.msra.mxu0 0.0
    %2991 = vmatprep.mubr.f32.mxu0 0.0
    %2992 = vmatmul.mubr.f32.gmra.mxu0 %v2925
    %v2993 = vpop.f32.mrf.mxu0
    %v2994 = vadd.f32 %v80, %v2993
    %v2995 = vpop.f32.mrf.mxu0
    %2996 = vdwg.mxu0
    %v2997 = vmul.f32 %v2994, 0.022222223
    %v2998 = vadd.f32 %v2849, %v2997
    %v3000 = vsel %vm83, %v2998, 0
    %3002 = vmatprep.subr.mxu0 0.0
    %3003 = vmatpush1.msra.mxu0 0.0
    %3004 = vmatprep.subr.mxu0 0.0
    %3005 = vmatpush1.msra.mxu0 0.0
    %3006 = vmatprep.subr.mxu0 0.0
    %3007 = vmatpush1.msra.mxu0 0.0
    %3008 = vmatprep.subr.mxu0 0.0
    %3009 = vmatpush1.msra.mxu0 0.0
    %3010 = vmatprep.subr.mxu0 0.0
    %3011 = vmatpush1.msra.mxu0 0.0
    %3012 = vmatprep.subr.mxu0 0.0
    %3013 = vmatpush1.msra.mxu0 0.0
    %3014 = vmatprep.subr.mxu0 0.0
    %3015 = vmatpush1.msra.mxu0 0.0
    %3016 = vmatprep.subr.mxu0 0.0
    %3017 = vmatpush1.msra.mxu0 0.0
    %3018 = vmatprep.subr.mxu0 0.0
    %3019 = vmatpush1.msra.mxu0 0.0
    %3020 = vmatprep.subr.mxu0 0.0
    %3021 = vmatpush1.msra.mxu0 0.0
    %3022 = vmatprep.subr.mxu0 0.0
    %3023 = vmatpush1.msra.mxu0 0.0
    %3024 = vmatprep.subr.mxu0 0.0
    %3025 = vmatpush1.msra.mxu0 0.0
    %3026 = vmatprep.subr.mxu0 0.0
    %3027 = vmatpush1.msra.mxu0 %v63
    %3028 = vmatprep.subr.mxu0 0.0
    %3029 = vmatpush1.msra.mxu0 %v62
    %3030 = vmatprep.subr.mxu0 0.0
    %3031 = vmatpush1.msra.mxu0 %v61
    %3032 = vmatprep.subr.mxu0 0.0
    %3033 = vmatpush1.msra.mxu0 %v60
    %3034 = vmatprep.subr.mxu0 0.0
    %3035 = vmatpush2.msra.mxu0 0.0
    %3036 = vmatprep.subr.mxu0 0.0
    %3037 = vmatpush2.msra.mxu0 0.0
    %3038 = vmatprep.subr.mxu0 0.0
    %3039 = vmatpush2.msra.mxu0 0.0
    %3040 = vmatprep.subr.mxu0 0.0
    %3041 = vmatpush2.msra.mxu0 0.0
    %3042 = vmatprep.subr.mxu0 0.0
    %3043 = vmatpush2.msra.mxu0 0.0
    %3044 = vmatprep.subr.mxu0 0.0
    %3045 = vmatpush2.msra.mxu0 0.0
    %3046 = vmatprep.subr.mxu0 0.0
    %3047 = vmatpush2.msra.mxu0 0.0
    %3048 = vmatprep.subr.mxu0 0.0
    %3049 = vmatpush2.msra.mxu0 0.0
    %3050 = vmatprep.subr.mxu0 0.0
    %3051 = vmatpush2.msra.mxu0 0.0
    %3052 = vmatprep.subr.mxu0 0.0
    %3053 = vmatpush2.msra.mxu0 0.0
    %3054 = vmatprep.subr.mxu0 0.0
    %3055 = vmatpush2.msra.mxu0 0.0
    %3056 = vmatprep.subr.mxu0 0.0
    %3057 = vmatpush2.msra.mxu0 0.0
    %3058 = vmatprep.subr.mxu0 0.0
    %3059 = vmatpush2.msra.mxu0 0.0
    %3060 = vmatprep.subr.mxu0 0.0
    %3061 = vmatpush2.msra.mxu0 0.0
    %3062 = vmatprep.subr.mxu0 0.0
    %3063 = vmatpush2.msra.mxu0 0.0
    %3064 = vmatprep.subr.mxu0 0.0
    %3065 = vmatpush2.msra.mxu0 0.0
    %3066 = vmatprep.mubr.f32.mxu0 0.0
    %3067 = vmatmul.mubr.f32.gmra.mxu0 %v3000
    %v3068 = vpop.f32.mrf.mxu0
    %v3069 = vadd.f32 %v73, %v3068
    %v3070 = vpop.f32.mrf.mxu0
    %3071 = vdwg.mxu0
    %v3072 = vtanh.pop %v3069
    %v3074 = vsel %vm83, %v3072, 0
    %3076 = vmatprep.subr.mxu0 0.0
    %3077 = vmatpush1.msra.mxu0 0.0
    %3078 = vmatprep.subr.mxu0 0.0
    %3079 = vmatpush1.msra.mxu0 0.0
    %3080 = vmatprep.subr.mxu0 0.0
    %3081 = vmatpush1.msra.mxu0 0.0
    %3082 = vmatprep.subr.mxu0 0.0
    %3083 = vmatpush1.msra.mxu0 0.0
    %3084 = vmatprep.subr.mxu0 0.0
    %3085 = vmatpush1.msra.mxu0 0.0
    %3086 = vmatprep.subr.mxu0 0.0
    %3087 = vmatpush1.msra.mxu0 0.0
    %3088 = vmatprep.subr.mxu0 0.0
    %3089 = vmatpush1.msra.mxu0 0.0
    %3090 = vmatprep.subr.mxu0 0.0
    %3091 = vmatpush1.msra.mxu0 0.0
    %3092 = vmatprep.subr.mxu0 0.0
    %3093 = vmatpush1.msra.mxu0 0.0
    %3094 = vmatprep.subr.mxu0 0.0
    %3095 = vmatpush1.msra.mxu0 0.0
    %3096 = vmatprep.subr.mxu0 0.0
    %3097 = vmatpush1.msra.mxu0 0.0
    %3098 = vmatprep.subr.mxu0 0.0
    %3099 = vmatpush1.msra.mxu0 0.0
    %3100 = vmatprep.subr.mxu0 0.0
    %3101 = vmatpush1.msra.mxu0 %v67
    %3102 = vmatprep.subr.mxu0 0.0
    %3103 = vmatpush1.msra.mxu0 %v66
    %3104 = vmatprep.subr.mxu0 0.0
    %3105 = vmatpush1.msra.mxu0 %v65
    %3106 = vmatprep.subr.mxu0 0.0
    %3107 = vmatpush1.msra.mxu0 %v64
    %3108 = vmatprep.subr.mxu0 0.0
    %3109 = vmatpush2.msra.mxu0 0.0
    %3110 = vmatprep.subr.mxu0 0.0
    %3111 = vmatpush2.msra.mxu0 0.0
    %3112 = vmatprep.subr.mxu0 0.0
    %3113 = vmatpush2.msra.mxu0 0.0
    %3114 = vmatprep.subr.mxu0 0.0
    %3115 = vmatpush2.msra.mxu0 0.0
    %3116 = vmatprep.subr.mxu0 0.0
    %3117 = vmatpush2.msra.mxu0 0.0
    %3118 = vmatprep.subr.mxu0 0.0
    %3119 = vmatpush2.msra.mxu0 0.0
    %3120 = vmatprep.subr.mxu0 0.0
    %3121 = vmatpush2.msra.mxu0 0.0
    %3122 = vmatprep.subr.mxu0 0.0
    %3123 = vmatpush2.msra.mxu0 0.0
    %3124 = vmatprep.subr.mxu0 0.0
    %3125 = vmatpush2.msra.mxu0 0.0
    %3126 = vmatprep.subr.mxu0 0.0
    %3127 = vmatpush2.msra.mxu0 0.0
    %3128 = vmatprep.subr.mxu0 0.0
    %3129 = vmatpush2.msra.mxu0 0.0
    %3130 = vmatprep.subr.mxu0 0.0
    %3131 = vmatpush2.msra.mxu0 0.0
    %3132 = vmatprep.subr.mxu0 0.0
    %3133 = vmatpush2.msra.mxu0 0.0
    %3134 = vmatprep.subr.mxu0 0.0
    %3135 = vmatpush2.msra.mxu0 0.0
    %3136 = vmatprep.subr.mxu0 0.0
    %3137 = vmatpush2.msra.mxu0 0.0
    %3138 = vmatprep.subr.mxu0 0.0
    %3139 = vmatpush2.msra.mxu0 0.0
    %3140 = vmatprep.mubr.f32.mxu0 0.0
    %3141 = vmatmul.mubr.f32.gmra.mxu0 %v3074
    %v3142 = vpop.f32.mrf.mxu0
    %v3143 = vadd.f32 %v80, %v3142
    %v3144 = vpop.f32.mrf.mxu0
    %3145 = vdwg.mxu0
    %v3146 = vmul.f32 %v2994, 0.008333334
    %v3147 = vmul.f32 %v3143, 0.025
    %v3148 = vadd.f32 %v3146, %v3147
    %v3149 = vadd.f32 %v2849, %v3148
    %v3151 = vsel %vm83, %v3149, 0
    %3153 = vmatprep.subr.mxu0 0.0
    %3154 = vmatpush1.msra.mxu0 0.0
    %3155 = vmatprep.subr.mxu0 0.0
    %3156 = vmatpush1.msra.mxu0 0.0
    %3157 = vmatprep.subr.mxu0 0.0
    %3158 = vmatpush1.msra.mxu0 0.0
    %3159 = vmatprep.subr.mxu0 0.0
    %3160 = vmatpush1.msra.mxu0 0.0
    %3161 = vmatprep.subr.mxu0 0.0
    %3162 = vmatpush1.msra.mxu0 0.0
    %3163 = vmatprep.subr.mxu0 0.0
    %3164 = vmatpush1.msra.mxu0 0.0
    %3165 = vmatprep.subr.mxu0 0.0
    %3166 = vmatpush1.msra.mxu0 0.0
    %3167 = vmatprep.subr.mxu0 0.0
    %3168 = vmatpush1.msra.mxu0 0.0
    %3169 = vmatprep.subr.mxu0 0.0
    %3170 = vmatpush1.msra.mxu0 0.0
    %3171 = vmatprep.subr.mxu0 0.0
    %3172 = vmatpush1.msra.mxu0 0.0
    %3173 = vmatprep.subr.mxu0 0.0
    %3174 = vmatpush1.msra.mxu0 0.0
    %3175 = vmatprep.subr.mxu0 0.0
    %3176 = vmatpush1.msra.mxu0 0.0
    %3177 = vmatprep.subr.mxu0 0.0
    %3178 = vmatpush1.msra.mxu0 %v63
    %3179 = vmatprep.subr.mxu0 0.0
    %3180 = vmatpush1.msra.mxu0 %v62
    %3181 = vmatprep.subr.mxu0 0.0
    %3182 = vmatpush1.msra.mxu0 %v61
    %3183 = vmatprep.subr.mxu0 0.0
    %3184 = vmatpush1.msra.mxu0 %v60
    %3185 = vmatprep.subr.mxu0 0.0
    %3186 = vmatpush2.msra.mxu0 0.0
    %3187 = vmatprep.subr.mxu0 0.0
    %3188 = vmatpush2.msra.mxu0 0.0
    %3189 = vmatprep.subr.mxu0 0.0
    %3190 = vmatpush2.msra.mxu0 0.0
    %3191 = vmatprep.subr.mxu0 0.0
    %3192 = vmatpush2.msra.mxu0 0.0
    %3193 = vmatprep.subr.mxu0 0.0
    %3194 = vmatpush2.msra.mxu0 0.0
    %3195 = vmatprep.subr.mxu0 0.0
    %3196 = vmatpush2.msra.mxu0 0.0
    %3197 = vmatprep.subr.mxu0 0.0
    %3198 = vmatpush2.msra.mxu0 0.0
    %3199 = vmatprep.subr.mxu0 0.0
    %3200 = vmatpush2.msra.mxu0 0.0
    %3201 = vmatprep.subr.mxu0 0.0
    %3202 = vmatpush2.msra.mxu0 0.0
    %3203 = vmatprep.subr.mxu0 0.0
    %3204 = vmatpush2.msra.mxu0 0.0
    %3205 = vmatprep.subr.mxu0 0.0
    %3206 = vmatpush2.msra.mxu0 0.0
    %3207 = vmatprep.subr.mxu0 0.0
    %3208 = vmatpush2.msra.mxu0 0.0
    %3209 = vmatprep.subr.mxu0 0.0
    %3210 = vmatpush2.msra.mxu0 0.0
    %3211 = vmatprep.subr.mxu0 0.0
    %3212 = vmatpush2.msra.mxu0 0.0
    %3213 = vmatprep.subr.mxu0 0.0
    %3214 = vmatpush2.msra.mxu0 0.0
    %3215 = vmatprep.subr.mxu0 0.0
    %3216 = vmatpush2.msra.mxu0 0.0
    %3217 = vmatprep.mubr.f32.mxu0 0.0
    %3218 = vmatmul.mubr.f32.gmra.mxu0 %v3151
    %v3219 = vpop.f32.mrf.mxu0
    %v3220 = vadd.f32 %v73, %v3219
    %v3221 = vpop.f32.mrf.mxu0
    %3222 = vdwg.mxu0
    %v3223 = vtanh.pop %v3220
    %v3225 = vsel %vm83, %v3223, 0
    %3227 = vmatprep.subr.mxu0 0.0
    %3228 = vmatpush1.msra.mxu0 0.0
    %3229 = vmatprep.subr.mxu0 0.0
    %3230 = vmatpush1.msra.mxu0 0.0
    %3231 = vmatprep.subr.mxu0 0.0
    %3232 = vmatpush1.msra.mxu0 0.0
    %3233 = vmatprep.subr.mxu0 0.0
    %3234 = vmatpush1.msra.mxu0 0.0
    %3235 = vmatprep.subr.mxu0 0.0
    %3236 = vmatpush1.msra.mxu0 0.0
    %3237 = vmatprep.subr.mxu0 0.0
    %3238 = vmatpush1.msra.mxu0 0.0
    %3239 = vmatprep.subr.mxu0 0.0
    %3240 = vmatpush1.msra.mxu0 0.0
    %3241 = vmatprep.subr.mxu0 0.0
    %3242 = vmatpush1.msra.mxu0 0.0
    %3243 = vmatprep.subr.mxu0 0.0
    %3244 = vmatpush1.msra.mxu0 0.0
    %3245 = vmatprep.subr.mxu0 0.0
    %3246 = vmatpush1.msra.mxu0 0.0
    %3247 = vmatprep.subr.mxu0 0.0
    %3248 = vmatpush1.msra.mxu0 0.0
    %3249 = vmatprep.subr.mxu0 0.0
    %3250 = vmatpush1.msra.mxu0 0.0
    %3251 = vmatprep.subr.mxu0 0.0
    %3252 = vmatpush1.msra.mxu0 %v67
    %3253 = vmatprep.subr.mxu0 0.0
    %3254 = vmatpush1.msra.mxu0 %v66
    %3255 = vmatprep.subr.mxu0 0.0
    %3256 = vmatpush1.msra.mxu0 %v65
    %3257 = vmatprep.subr.mxu0 0.0
    %3258 = vmatpush1.msra.mxu0 %v64
    %3259 = vmatprep.subr.mxu0 0.0
    %3260 = vmatpush2.msra.mxu0 0.0
    %3261 = vmatprep.subr.mxu0 0.0
    %3262 = vmatpush2.msra.mxu0 0.0
    %3263 = vmatprep.subr.mxu0 0.0
    %3264 = vmatpush2.msra.mxu0 0.0
    %3265 = vmatprep.subr.mxu0 0.0
    %3266 = vmatpush2.msra.mxu0 0.0
    %3267 = vmatprep.subr.mxu0 0.0
    %3268 = vmatpush2.msra.mxu0 0.0
    %3269 = vmatprep.subr.mxu0 0.0
    %3270 = vmatpush2.msra.mxu0 0.0
    %3271 = vmatprep.subr.mxu0 0.0
    %3272 = vmatpush2.msra.mxu0 0.0
    %3273 = vmatprep.subr.mxu0 0.0
    %3274 = vmatpush2.msra.mxu0 0.0
    %3275 = vmatprep.subr.mxu0 0.0
    %3276 = vmatpush2.msra.mxu0 0.0
    %3277 = vmatprep.subr.mxu0 0.0
    %3278 = vmatpush2.msra.mxu0 0.0
    %3279 = vmatprep.subr.mxu0 0.0
    %3280 = vmatpush2.msra.mxu0 0.0
    %3281 = vmatprep.subr.mxu0 0.0
    %3282 = vmatpush2.msra.mxu0 0.0
    %3283 = vmatprep.subr.mxu0 0.0
    %3284 = vmatpush2.msra.mxu0 0.0
    %3285 = vmatprep.subr.mxu0 0.0
    %3286 = vmatpush2.msra.mxu0 0.0
    %3287 = vmatprep.subr.mxu0 0.0
    %3288 = vmatpush2.msra.mxu0 0.0
    %3289 = vmatprep.subr.mxu0 0.0
    %3290 = vmatpush2.msra.mxu0 0.0
    %3291 = vmatprep.mubr.f32.mxu0 0.0
    %3292 = vmatmul.mubr.f32.gmra.mxu0 %v3225
    %v3293 = vpop.f32.mrf.mxu0
    %v3294 = vadd.f32 %v80, %v3293
    %v3295 = vpop.f32.mrf.mxu0
    %3296 = vdwg.mxu0
    %v3297 = vmul.f32 %v2994, 0.108641975
    %v3298 = vmul.f32 %v3143, -0.4148148
    %v3299 = vadd.f32 %v3297, %v3298
    %v3300 = vmul.f32 %v3294, 0.39506173
    %v3301 = vadd.f32 %v3299, %v3300
    %v3302 = vadd.f32 %v2849, %v3301
    %v3304 = vsel %vm83, %v3302, 0
    %3306 = vmatprep.subr.mxu0 0.0
    %3307 = vmatpush1.msra.mxu0 0.0
    %3308 = vmatprep.subr.mxu0 0.0
    %3309 = vmatpush1.msra.mxu0 0.0
    %3310 = vmatprep.subr.mxu0 0.0
    %3311 = vmatpush1.msra.mxu0 0.0
    %3312 = vmatprep.subr.mxu0 0.0
    %3313 = vmatpush1.msra.mxu0 0.0
    %3314 = vmatprep.subr.mxu0 0.0
    %3315 = vmatpush1.msra.mxu0 0.0
    %3316 = vmatprep.subr.mxu0 0.0
    %3317 = vmatpush1.msra.mxu0 0.0
    %3318 = vmatprep.subr.mxu0 0.0
    %3319 = vmatpush1.msra.mxu0 0.0
    %3320 = vmatprep.subr.mxu0 0.0
    %3321 = vmatpush1.msra.mxu0 0.0
    %3322 = vmatprep.subr.mxu0 0.0
    %3323 = vmatpush1.msra.mxu0 0.0
    %3324 = vmatprep.subr.mxu0 0.0
    %3325 = vmatpush1.msra.mxu0 0.0
    %3326 = vmatprep.subr.mxu0 0.0
    %3327 = vmatpush1.msra.mxu0 0.0
    %3328 = vmatprep.subr.mxu0 0.0
    %3329 = vmatpush1.msra.mxu0 0.0
    %3330 = vmatprep.subr.mxu0 0.0
    %3331 = vmatpush1.msra.mxu0 %v63
    %3332 = vmatprep.subr.mxu0 0.0
    %3333 = vmatpush1.msra.mxu0 %v62
    %3334 = vmatprep.subr.mxu0 0.0
    %3335 = vmatpush1.msra.mxu0 %v61
    %3336 = vmatprep.subr.mxu0 0.0
    %3337 = vmatpush1.msra.mxu0 %v60
    %3338 = vmatprep.subr.mxu0 0.0
    %3339 = vmatpush2.msra.mxu0 0.0
    %3340 = vmatprep.subr.mxu0 0.0
    %3341 = vmatpush2.msra.mxu0 0.0
    %3342 = vmatprep.subr.mxu0 0.0
    %3343 = vmatpush2.msra.mxu0 0.0
    %3344 = vmatprep.subr.mxu0 0.0
    %3345 = vmatpush2.msra.mxu0 0.0
    %3346 = vmatprep.subr.mxu0 0.0
    %3347 = vmatpush2.msra.mxu0 0.0
    %3348 = vmatprep.subr.mxu0 0.0
    %3349 = vmatpush2.msra.mxu0 0.0
    %3350 = vmatprep.subr.mxu0 0.0
    %3351 = vmatpush2.msra.mxu0 0.0
    %3352 = vmatprep.subr.mxu0 0.0
    %3353 = vmatpush2.msra.mxu0 0.0
    %3354 = vmatprep.subr.mxu0 0.0
    %3355 = vmatpush2.msra.mxu0 0.0
    %3356 = vmatprep.subr.mxu0 0.0
    %3357 = vmatpush2.msra.mxu0 0.0
    %3358 = vmatprep.subr.mxu0 0.0
    %3359 = vmatpush2.msra.mxu0 0.0
    %3360 = vmatprep.subr.mxu0 0.0
    %3361 = vmatpush2.msra.mxu0 0.0
    %3362 = vmatprep.subr.mxu0 0.0
    %3363 = vmatpush2.msra.mxu0 0.0
    %3364 = vmatprep.subr.mxu0 0.0
    %3365 = vmatpush2.msra.mxu0 0.0
    %3366 = vmatprep.subr.mxu0 0.0
    %3367 = vmatpush2.msra.mxu0 0.0
    %3368 = vmatprep.subr.mxu0 0.0
    %3369 = vmatpush2.msra.mxu0 0.0
    %3370 = vmatprep.mubr.f32.mxu0 0.0
    %3371 = vmatmul.mubr.f32.gmra.mxu0 %v3304
    %v3372 = vpop.f32.mrf.mxu0
    %v3373 = vadd.f32 %v73, %v3372
    %v3374 = vpop.f32.mrf.mxu0
    %3375 = vdwg.mxu0
    %v3376 = vtanh.pop %v3373
    %v3378 = vsel %vm83, %v3376, 0
    %3380 = vmatprep.subr.mxu0 0.0
    %3381 = vmatpush1.msra.mxu0 0.0
    %3382 = vmatprep.subr.mxu0 0.0
    %3383 = vmatpush1.msra.mxu0 0.0
    %3384 = vmatprep.subr.mxu0 0.0
    %3385 = vmatpush1.msra.mxu0 0.0
    %3386 = vmatprep.subr.mxu0 0.0
    %3387 = vmatpush1.msra.mxu0 0.0
    %3388 = vmatprep.subr.mxu0 0.0
    %3389 = vmatpush1.msra.mxu0 0.0
    %3390 = vmatprep.subr.mxu0 0.0
    %3391 = vmatpush1.msra.mxu0 0.0
    %3392 = vmatprep.subr.mxu0 0.0
    %3393 = vmatpush1.msra.mxu0 0.0
    %3394 = vmatprep.subr.mxu0 0.0
    %3395 = vmatpush1.msra.mxu0 0.0
    %3396 = vmatprep.subr.mxu0 0.0
    %3397 = vmatpush1.msra.mxu0 0.0
    %3398 = vmatprep.subr.mxu0 0.0
    %3399 = vmatpush1.msra.mxu0 0.0
    %3400 = vmatprep.subr.mxu0 0.0
    %3401 = vmatpush1.msra.mxu0 0.0
    %3402 = vmatprep.subr.mxu0 0.0
    %3403 = vmatpush1.msra.mxu0 0.0
    %3404 = vmatprep.subr.mxu0 0.0
    %3405 = vmatpush1.msra.mxu0 %v67
    %3406 = vmatprep.subr.mxu0 0.0
    %3407 = vmatpush1.msra.mxu0 %v66
    %3408 = vmatprep.subr.mxu0 0.0
    %3409 = vmatpush1.msra.mxu0 %v65
    %3410 = vmatprep.subr.mxu0 0.0
    %3411 = vmatpush1.msra.mxu0 %v64
    %3412 = vmatprep.subr.mxu0 0.0
    %3413 = vmatpush2.msra.mxu0 0.0
    %3414 = vmatprep.subr.mxu0 0.0
    %3415 = vmatpush2.msra.mxu0 0.0
    %3416 = vmatprep.subr.mxu0 0.0
    %3417 = vmatpush2.msra.mxu0 0.0
    %3418 = vmatprep.subr.mxu0 0.0
    %3419 = vmatpush2.msra.mxu0 0.0
    %3420 = vmatprep.subr.mxu0 0.0
    %3421 = vmatpush2.msra.mxu0 0.0
    %3422 = vmatprep.subr.mxu0 0.0
    %3423 = vmatpush2.msra.mxu0 0.0
    %3424 = vmatprep.subr.mxu0 0.0
    %3425 = vmatpush2.msra.mxu0 0.0
    %3426 = vmatprep.subr.mxu0 0.0
    %3427 = vmatpush2.msra.mxu0 0.0
    %3428 = vmatprep.subr.mxu0 0.0
    %3429 = vmatpush2.msra.mxu0 0.0
    %3430 = vmatprep.subr.mxu0 0.0
    %3431 = vmatpush2.msra.mxu0 0.0
    %3432 = vmatprep.subr.mxu0 0.0
    %3433 = vmatpush2.msra.mxu0 0.0
    %3434 = vmatprep.subr.mxu0 0.0
    %3435 = vmatpush2.msra.mxu0 0.0
    %3436 = vmatprep.subr.mxu0 0.0
    %3437 = vmatpush2.msra.mxu0 0.0
    %3438 = vmatprep.subr.mxu0 0.0
    %3439 = vmatpush2.msra.mxu0 0.0
    %3440 = vmatprep.subr.mxu0 0.0
    %3441 = vmatpush2.msra.mxu0 0.0
    %3442 = vmatprep.subr.mxu0 0.0
    %3443 = vmatpush2.msra.mxu0 0.0
    %3444 = vmatprep.mubr.f32.mxu0 0.0
    %3445 = vmatmul.mubr.f32.gmra.mxu0 %v3378
    %v3446 = vpop.f32.mrf.mxu0
    %v3447 = vadd.f32 %v80, %v3446
    %v3448 = vpop.f32.mrf.mxu0
    %3449 = vdwg.mxu0
    %v3450 = vmul.f32 %v2994, 0.32806653
    %v3451 = vmul.f32 %v3143, -1.2884215
    %v3452 = vadd.f32 %v3450, %v3451
    %v3453 = vmul.f32 %v3294, 1.0914326
    %v3454 = vadd.f32 %v3452, %v3453
    %v3455 = vmul.f32 %v3447, -0.032312147
    %v3456 = vadd.f32 %v3454, %v3455
    %v3457 = vadd.f32 %v2849, %v3456
    %v3459 = vsel %vm83, %v3457, 0
    %3461 = vmatprep.subr.mxu0 0.0
    %3462 = vmatpush1.msra.mxu0 0.0
    %3463 = vmatprep.subr.mxu0 0.0
    %3464 = vmatpush1.msra.mxu0 0.0
    %3465 = vmatprep.subr.mxu0 0.0
    %3466 = vmatpush1.msra.mxu0 0.0
    %3467 = vmatprep.subr.mxu0 0.0
    %3468 = vmatpush1.msra.mxu0 0.0
    %3469 = vmatprep.subr.mxu0 0.0
    %3470 = vmatpush1.msra.mxu0 0.0
    %3471 = vmatprep.subr.mxu0 0.0
    %3472 = vmatpush1.msra.mxu0 0.0
    %3473 = vmatprep.subr.mxu0 0.0
    %3474 = vmatpush1.msra.mxu0 0.0
    %3475 = vmatprep.subr.mxu0 0.0
    %3476 = vmatpush1.msra.mxu0 0.0
    %3477 = vmatprep.subr.mxu0 0.0
    %3478 = vmatpush1.msra.mxu0 0.0
    %3479 = vmatprep.subr.mxu0 0.0
    %3480 = vmatpush1.msra.mxu0 0.0
    %3481 = vmatprep.subr.mxu0 0.0
    %3482 = vmatpush1.msra.mxu0 0.0
    %3483 = vmatprep.subr.mxu0 0.0
    %3484 = vmatpush1.msra.mxu0 0.0
    %3485 = vmatprep.subr.mxu0 0.0
    %3486 = vmatpush1.msra.mxu0 %v63
    %3487 = vmatprep.subr.mxu0 0.0
    %3488 = vmatpush1.msra.mxu0 %v62
    %3489 = vmatprep.subr.mxu0 0.0
    %3490 = vmatpush1.msra.mxu0 %v61
    %3491 = vmatprep.subr.mxu0 0.0
    %3492 = vmatpush1.msra.mxu0 %v60
    %3493 = vmatprep.subr.mxu0 0.0
    %3494 = vmatpush2.msra.mxu0 0.0
    %3495 = vmatprep.subr.mxu0 0.0
    %3496 = vmatpush2.msra.mxu0 0.0
    %3497 = vmatprep.subr.mxu0 0.0
    %3498 = vmatpush2.msra.mxu0 0.0
    %3499 = vmatprep.subr.mxu0 0.0
    %3500 = vmatpush2.msra.mxu0 0.0
    %3501 = vmatprep.subr.mxu0 0.0
    %3502 = vmatpush2.msra.mxu0 0.0
    %3503 = vmatprep.subr.mxu0 0.0
    %3504 = vmatpush2.msra.mxu0 0.0
    %3505 = vmatprep.subr.mxu0 0.0
    %3506 = vmatpush2.msra.mxu0 0.0
    %3507 = vmatprep.subr.mxu0 0.0
    %3508 = vmatpush2.msra.mxu0 0.0
    %3509 = vmatprep.subr.mxu0 0.0
    %3510 = vmatpush2.msra.mxu0 0.0
    %3511 = vmatprep.subr.mxu0 0.0
    %3512 = vmatpush2.msra.mxu0 0.0
    %3513 = vmatprep.subr.mxu0 0.0
    %3514 = vmatpush2.msra.mxu0 0.0
    %3515 = vmatprep.subr.mxu0 0.0
    %3516 = vmatpush2.msra.mxu0 0.0
    %3517 = vmatprep.subr.mxu0 0.0
    %3518 = vmatpush2.msra.mxu0 0.0
    %3519 = vmatprep.subr.mxu0 0.0
    %3520 = vmatpush2.msra.mxu0 0.0
    %3521 = vmatprep.subr.mxu0 0.0
    %3522 = vmatpush2.msra.mxu0 0.0
    %3523 = vmatprep.subr.mxu0 0.0
    %3524 = vmatpush2.msra.mxu0 0.0
    %3525 = vmatprep.mubr.f32.mxu0 0.0
    %3526 = vmatmul.mubr.f32.gmra.mxu0 %v3459
    %v3527 = vpop.f32.mrf.mxu0
    %v3528 = vadd.f32 %v73, %v3527
    %v3529 = vpop.f32.mrf.mxu0
    %3530 = vdwg.mxu0
    %v3531 = vtanh.pop %v3528
    %v3533 = vsel %vm83, %v3531, 0
    %3535 = vmatprep.subr.mxu0 0.0
    %3536 = vmatpush1.msra.mxu0 0.0
    %3537 = vmatprep.subr.mxu0 0.0
    %3538 = vmatpush1.msra.mxu0 0.0
    %3539 = vmatprep.subr.mxu0 0.0
    %3540 = vmatpush1.msra.mxu0 0.0
    %3541 = vmatprep.subr.mxu0 0.0
    %3542 = vmatpush1.msra.mxu0 0.0
    %3543 = vmatprep.subr.mxu0 0.0
    %3544 = vmatpush1.msra.mxu0 0.0
    %3545 = vmatprep.subr.mxu0 0.0
    %3546 = vmatpush1.msra.mxu0 0.0
    %3547 = vmatprep.subr.mxu0 0.0
    %3548 = vmatpush1.msra.mxu0 0.0
    %3549 = vmatprep.subr.mxu0 0.0
    %3550 = vmatpush1.msra.mxu0 0.0
    %3551 = vmatprep.subr.mxu0 0.0
    %3552 = vmatpush1.msra.mxu0 0.0
    %3553 = vmatprep.subr.mxu0 0.0
    %3554 = vmatpush1.msra.mxu0 0.0
    %3555 = vmatprep.subr.mxu0 0.0
    %3556 = vmatpush1.msra.mxu0 0.0
    %3557 = vmatprep.subr.mxu0 0.0
    %3558 = vmatpush1.msra.mxu0 0.0
    %3559 = vmatprep.subr.mxu0 0.0
    %3560 = vmatpush1.msra.mxu0 %v67
    %3561 = vmatprep.subr.mxu0 0.0
    %3562 = vmatpush1.msra.mxu0 %v66
    %3563 = vmatprep.subr.mxu0 0.0
    %3564 = vmatpush1.msra.mxu0 %v65
    %3565 = vmatprep.subr.mxu0 0.0
    %3566 = vmatpush1.msra.mxu0 %v64
    %3567 = vmatprep.subr.mxu0 0.0
    %3568 = vmatpush2.msra.mxu0 0.0
    %3569 = vmatprep.subr.mxu0 0.0
    %3570 = vmatpush2.msra.mxu0 0.0
    %3571 = vmatprep.subr.mxu0 0.0
    %3572 = vmatpush2.msra.mxu0 0.0
    %3573 = vmatprep.subr.mxu0 0.0
    %3574 = vmatpush2.msra.mxu0 0.0
    %3575 = vmatprep.subr.mxu0 0.0
    %3576 = vmatpush2.msra.mxu0 0.0
    %3577 = vmatprep.subr.mxu0 0.0
    %3578 = vmatpush2.msra.mxu0 0.0
    %3579 = vmatprep.subr.mxu0 0.0
    %3580 = vmatpush2.msra.mxu0 0.0
    %3581 = vmatprep.subr.mxu0 0.0
    %3582 = vmatpush2.msra.mxu0 0.0
    %3583 = vmatprep.subr.mxu0 0.0
    %3584 = vmatpush2.msra.mxu0 0.0
    %3585 = vmatprep.subr.mxu0 0.0
    %3586 = vmatpush2.msra.mxu0 0.0
    %3587 = vmatprep.subr.mxu0 0.0
    %3588 = vmatpush2.msra.mxu0 0.0
    %3589 = vmatprep.subr.mxu0 0.0
    %3590 = vmatpush2.msra.mxu0 0.0
    %3591 = vmatprep.subr.mxu0 0.0
    %3592 = vmatpush2.msra.mxu0 0.0
    %3593 = vmatprep.subr.mxu0 0.0
    %3594 = vmatpush2.msra.mxu0 0.0
    %3595 = vmatprep.subr.mxu0 0.0
    %3596 = vmatpush2.msra.mxu0 0.0
    %3597 = vmatprep.subr.mxu0 0.0
    %3598 = vmatpush2.msra.mxu0 0.0
    %3599 = vmatprep.mubr.f32.mxu0 0.0
    %3600 = vmatmul.mubr.f32.gmra.mxu0 %v3533
    %v3601 = vpop.f32.mrf.mxu0
    %v3602 = vadd.f32 %v80, %v3601
    %v3603 = vpop.f32.mrf.mxu0
    %3604 = vdwg.mxu0
    %v3605 = vmul.f32 %v2994, 0.3162528
    %v3606 = vmul.f32 %v3143, -1.1952862
    %v3607 = vadd.f32 %v3605, %v3606
    %v3608 = vmul.f32 %v3294, 0.9896025
    %v3609 = vadd.f32 %v3607, %v3608
    %v3610 = vmul.f32 %v3447, 0.030934343
    %v3611 = vadd.f32 %v3609, %v3610
    %v3612 = vmul.f32 %v3602, -0.030392367
    %v3613 = vadd.f32 %v3611, %v3612
    %v3614 = vadd.f32 %v2849, %v3613
    %v3616 = vsel %vm83, %v3614, 0
    %3618 = vmatprep.subr.mxu0 0.0
    %3619 = vmatpush1.msra.mxu0 0.0
    %3620 = vmatprep.subr.mxu0 0.0
    %3621 = vmatpush1.msra.mxu0 0.0
    %3622 = vmatprep.subr.mxu0 0.0
    %3623 = vmatpush1.msra.mxu0 0.0
    %3624 = vmatprep.subr.mxu0 0.0
    %3625 = vmatpush1.msra.mxu0 0.0
    %3626 = vmatprep.subr.mxu0 0.0
    %3627 = vmatpush1.msra.mxu0 0.0
    %3628 = vmatprep.subr.mxu0 0.0
    %3629 = vmatpush1.msra.mxu0 0.0
    %3630 = vmatprep.subr.mxu0 0.0
    %3631 = vmatpush1.msra.mxu0 0.0
    %3632 = vmatprep.subr.mxu0 0.0
    %3633 = vmatpush1.msra.mxu0 0.0
    %3634 = vmatprep.subr.mxu0 0.0
    %3635 = vmatpush1.msra.mxu0 0.0
    %3636 = vmatprep.subr.mxu0 0.0
    %3637 = vmatpush1.msra.mxu0 0.0
    %3638 = vmatprep.subr.mxu0 0.0
    %3639 = vmatpush1.msra.mxu0 0.0
    %3640 = vmatprep.subr.mxu0 0.0
    %3641 = vmatpush1.msra.mxu0 0.0
    %3642 = vmatprep.subr.mxu0 0.0
    %3643 = vmatpush1.msra.mxu0 %v63
    %3644 = vmatprep.subr.mxu0 0.0
    %3645 = vmatpush1.msra.mxu0 %v62
    %3646 = vmatprep.subr.mxu0 0.0
    %3647 = vmatpush1.msra.mxu0 %v61
    %3648 = vmatprep.subr.mxu0 0.0
    %3649 = vmatpush1.msra.mxu0 %v60
    %3650 = vmatprep.subr.mxu0 0.0
    %3651 = vmatpush2.msra.mxu0 0.0
    %3652 = vmatprep.subr.mxu0 0.0
    %3653 = vmatpush2.msra.mxu0 0.0
    %3654 = vmatprep.subr.mxu0 0.0
    %3655 = vmatpush2.msra.mxu0 0.0
    %3656 = vmatprep.subr.mxu0 0.0
    %3657 = vmatpush2.msra.mxu0 0.0
    %3658 = vmatprep.subr.mxu0 0.0
    %3659 = vmatpush2.msra.mxu0 0.0
    %3660 = vmatprep.subr.mxu0 0.0
    %3661 = vmatpush2.msra.mxu0 0.0
    %3662 = vmatprep.subr.mxu0 0.0
    %3663 = vmatpush2.msra.mxu0 0.0
    %3664 = vmatprep.subr.mxu0 0.0
    %3665 = vmatpush2.msra.mxu0 0.0
    %3666 = vmatprep.subr.mxu0 0.0
    %3667 = vmatpush2.msra.mxu0 0.0
    %3668 = vmatprep.subr.mxu0 0.0
    %3669 = vmatpush2.msra.mxu0 0.0
    %3670 = vmatprep.subr.mxu0 0.0
    %3671 = vmatpush2.msra.mxu0 0.0
    %3672 = vmatprep.subr.mxu0 0.0
    %3673 = vmatpush2.msra.mxu0 0.0
    %3674 = vmatprep.subr.mxu0 0.0
    %3675 = vmatpush2.msra.mxu0 0.0
    %3676 = vmatprep.subr.mxu0 0.0
    %3677 = vmatpush2.msra.mxu0 0.0
    %3678 = vmatprep.subr.mxu0 0.0
    %3679 = vmatpush2.msra.mxu0 0.0
    %3680 = vmatprep.subr.mxu0 0.0
    %3681 = vmatpush2.msra.mxu0 0.0
    %3682 = vmatprep.mubr.f32.mxu0 0.0
    %3683 = vmatmul.mubr.f32.gmra.mxu0 %v3616
    %v3684 = vpop.f32.mrf.mxu0
    %v3685 = vadd.f32 %v73, %v3684
    %v3686 = vpop.f32.mrf.mxu0
    %3687 = vdwg.mxu0
    %v3688 = vtanh.pop %v3685
    %v3690 = vsel %vm83, %v3688, 0
    %3692 = vmatprep.subr.mxu0 0.0
    %3693 = vmatpush1.msra.mxu0 0.0
    %3694 = vmatprep.subr.mxu0 0.0
    %3695 = vmatpush1.msra.mxu0 0.0
    %3696 = vmatprep.subr.mxu0 0.0
    %3697 = vmatpush1.msra.mxu0 0.0
    %3698 = vmatprep.subr.mxu0 0.0
    %3699 = vmatpush1.msra.mxu0 0.0
    %3700 = vmatprep.subr.mxu0 0.0
    %3701 = vmatpush1.msra.mxu0 0.0
    %3702 = vmatprep.subr.mxu0 0.0
    %3703 = vmatpush1.msra.mxu0 0.0
    %3704 = vmatprep.subr.mxu0 0.0
    %3705 = vmatpush1.msra.mxu0 0.0
    %3706 = vmatprep.subr.mxu0 0.0
    %3707 = vmatpush1.msra.mxu0 0.0
    %3708 = vmatprep.subr.mxu0 0.0
    %3709 = vmatpush1.msra.mxu0 0.0
    %3710 = vmatprep.subr.mxu0 0.0
    %3711 = vmatpush1.msra.mxu0 0.0
    %3712 = vmatprep.subr.mxu0 0.0
    %3713 = vmatpush1.msra.mxu0 0.0
    %3714 = vmatprep.subr.mxu0 0.0
    %3715 = vmatpush1.msra.mxu0 0.0
    %3716 = vmatprep.subr.mxu0 0.0
    %3717 = vmatpush1.msra.mxu0 %v67
    %3718 = vmatprep.subr.mxu0 0.0
    %3719 = vmatpush1.msra.mxu0 %v66
    %3720 = vmatprep.subr.mxu0 0.0
    %3721 = vmatpush1.msra.mxu0 %v65
    %3722 = vmatprep.subr.mxu0 0.0
    %3723 = vmatpush1.msra.mxu0 %v64
    %3724 = vmatprep.subr.mxu0 0.0
    %3725 = vmatpush2.msra.mxu0 0.0
    %3726 = vmatprep.subr.mxu0 0.0
    %3727 = vmatpush2.msra.mxu0 0.0
    %3728 = vmatprep.subr.mxu0 0.0
    %3729 = vmatpush2.msra.mxu0 0.0
    %3730 = vmatprep.subr.mxu0 0.0
    %3731 = vmatpush2.msra.mxu0 0.0
    %3732 = vmatprep.subr.mxu0 0.0
    %3733 = vmatpush2.msra.mxu0 0.0
    %3734 = vmatprep.subr.mxu0 0.0
    %3735 = vmatpush2.msra.mxu0 0.0
    %3736 = vmatprep.subr.mxu0 0.0
    %3737 = vmatpush2.msra.mxu0 0.0
    %3738 = vmatprep.subr.mxu0 0.0
    %3739 = vmatpush2.msra.mxu0 0.0
    %3740 = vmatprep.subr.mxu0 0.0
    %3741 = vmatpush2.msra.mxu0 0.0
    %3742 = vmatprep.subr.mxu0 0.0
    %3743 = vmatpush2.msra.mxu0 0.0
    %3744 = vmatprep.subr.mxu0 0.0
    %3745 = vmatpush2.msra.mxu0 0.0
    %3746 = vmatprep.subr.mxu0 0.0
    %3747 = vmatpush2.msra.mxu0 0.0
    %3748 = vmatprep.subr.mxu0 0.0
    %3749 = vmatpush2.msra.mxu0 0.0
    %3750 = vmatprep.subr.mxu0 0.0
    %3751 = vmatpush2.msra.mxu0 0.0
    %3752 = vmatprep.subr.mxu0 0.0
    %3753 = vmatpush2.msra.mxu0 0.0
    %3754 = vmatprep.subr.mxu0 0.0
    %3755 = vmatpush2.msra.mxu0 0.0
    %3756 = vmatprep.mubr.f32.mxu0 0.0
    %3757 = vmatmul.mubr.f32.gmra.mxu0 %v3690
    %v3758 = vpop.f32.mrf.mxu0
    %v3759 = vadd.f32 %v80, %v3758
    %v3760 = vpop.f32.mrf.mxu0
    %3761 = vdwg.mxu0
    %v3762 = vmul.f32 %v2994, 0.010127314
    %v3763 = vmul.f32 %v3294, 0.049915146
    %v3764 = vadd.f32 %v3762, %v3763
    %v3765 = vmul.f32 %v3447, 0.07233796
    %v3766 = vadd.f32 %v3764, %v3765
    %v3767 = vmul.f32 %v3602, -0.035819575
    %v3768 = vadd.f32 %v3766, %v3767
    %v3769 = vmul.f32 %v3759, 0.014550265
    %v3770 = vadd.f32 %v3768, %v3769
    %v3771 = vadd.f32 %v2849, %v3770
    %v3773 = vsel %vm83, %v3771, 0
    %3775 = vmatprep.subr.mxu0 0.0
    %3776 = vmatpush1.msra.mxu0 0.0
    %3777 = vmatprep.subr.mxu0 0.0
    %3778 = vmatpush1.msra.mxu0 0.0
    %3779 = vmatprep.subr.mxu0 0.0
    %3780 = vmatpush1.msra.mxu0 0.0
    %3781 = vmatprep.subr.mxu0 0.0
    %3782 = vmatpush1.msra.mxu0 0.0
    %3783 = vmatprep.subr.mxu0 0.0
    %3784 = vmatpush1.msra.mxu0 0.0
    %3785 = vmatprep.subr.mxu0 0.0
    %3786 = vmatpush1.msra.mxu0 0.0
    %3787 = vmatprep.subr.mxu0 0.0
    %3788 = vmatpush1.msra.mxu0 0.0
    %3789 = vmatprep.subr.mxu0 0.0
    %3790 = vmatpush1.msra.mxu0 0.0
    %3791 = vmatprep.subr.mxu0 0.0
    %3792 = vmatpush1.msra.mxu0 0.0
    %3793 = vmatprep.subr.mxu0 0.0
    %3794 = vmatpush1.msra.mxu0 0.0
    %3795 = vmatprep.subr.mxu0 0.0
    %3796 = vmatpush1.msra.mxu0 0.0
    %3797 = vmatprep.subr.mxu0 0.0
    %3798 = vmatpush1.msra.mxu0 0.0
    %3799 = vmatprep.subr.mxu0 0.0
    %3800 = vmatpush1.msra.mxu0 %v63
    %3801 = vmatprep.subr.mxu0 0.0
    %3802 = vmatpush1.msra.mxu0 %v62
    %3803 = vmatprep.subr.mxu0 0.0
    %3804 = vmatpush1.msra.mxu0 %v61
    %3805 = vmatprep.subr.mxu0 0.0
    %3806 = vmatpush1.msra.mxu0 %v60
    %3807 = vmatprep.subr.mxu0 0.0
    %3808 = vmatpush2.msra.mxu0 0.0
    %3809 = vmatprep.subr.mxu0 0.0
    %3810 = vmatpush2.msra.mxu0 0.0
    %3811 = vmatprep.subr.mxu0 0.0
    %3812 = vmatpush2.msra.mxu0 0.0
    %3813 = vmatprep.subr.mxu0 0.0
    %3814 = vmatpush2.msra.mxu0 0.0
    %3815 = vmatprep.subr.mxu0 0.0
    %3816 = vmatpush2.msra.mxu0 0.0
    %3817 = vmatprep.subr.mxu0 0.0
    %3818 = vmatpush2.msra.mxu0 0.0
    %3819 = vmatprep.subr.mxu0 0.0
    %3820 = vmatpush2.msra.mxu0 0.0
    %3821 = vmatprep.subr.mxu0 0.0
    %3822 = vmatpush2.msra.mxu0 0.0
    %3823 = vmatprep.subr.mxu0 0.0
    %3824 = vmatpush2.msra.mxu0 0.0
    %3825 = vmatprep.subr.mxu0 0.0
    %3826 = vmatpush2.msra.mxu0 0.0
    %3827 = vmatprep.subr.mxu0 0.0
    %3828 = vmatpush2.msra.mxu0 0.0
    %3829 = vmatprep.subr.mxu0 0.0
    %3830 = vmatpush2.msra.mxu0 0.0
    %3831 = vmatprep.subr.mxu0 0.0
    %3832 = vmatpush2.msra.mxu0 0.0
    %3833 = vmatprep.subr.mxu0 0.0
    %3834 = vmatpush2.msra.mxu0 0.0
    %3835 = vmatprep.subr.mxu0 0.0
    %3836 = vmatpush2.msra.mxu0 0.0
    %3837 = vmatprep.subr.mxu0 0.0
    %3838 = vmatpush2.msra.mxu0 0.0
    %3839 = vmatprep.mubr.f32.mxu0 0.0
    %3840 = vmatmul.mubr.f32.gmra.mxu0 %v3773
    %v3841 = vpop.f32.mrf.mxu0
    %v3842 = vadd.f32 %v73, %v3841
    %v3843 = vpop.f32.mrf.mxu0
    %3844 = vdwg.mxu0
    %v3845 = vtanh.pop %v3842
    %v3847 = vsel %vm83, %v3845, 0
    %3849 = vmatprep.subr.mxu0 0.0
    %3850 = vmatpush1.msra.mxu0 0.0
    %3851 = vmatprep.subr.mxu0 0.0
    %3852 = vmatpush1.msra.mxu0 0.0
    %3853 = vmatprep.subr.mxu0 0.0
    %3854 = vmatpush1.msra.mxu0 0.0
    %3855 = vmatprep.subr.mxu0 0.0
    %3856 = vmatpush1.msra.mxu0 0.0
    %3857 = vmatprep.subr.mxu0 0.0
    %3858 = vmatpush1.msra.mxu0 0.0
    %3859 = vmatprep.subr.mxu0 0.0
    %3860 = vmatpush1.msra.mxu0 0.0
    %3861 = vmatprep.subr.mxu0 0.0
    %3862 = vmatpush1.msra.mxu0 0.0
    %3863 = vmatprep.subr.mxu0 0.0
    %3864 = vmatpush1.msra.mxu0 0.0
    %3865 = vmatprep.subr.mxu0 0.0
    %3866 = vmatpush1.msra.mxu0 0.0
    %3867 = vmatprep.subr.mxu0 0.0
    %3868 = vmatpush1.msra.mxu0 0.0
    %3869 = vmatprep.subr.mxu0 0.0
    %3870 = vmatpush1.msra.mxu0 0.0
    %3871 = vmatprep.subr.mxu0 0.0
    %3872 = vmatpush1.msra.mxu0 0.0
    %3873 = vmatprep.subr.mxu0 0.0
    %3874 = vmatpush1.msra.mxu0 %v67
    %3875 = vmatprep.subr.mxu0 0.0
    %3876 = vmatpush1.msra.mxu0 %v66
    %3877 = vmatprep.subr.mxu0 0.0
    %3878 = vmatpush1.msra.mxu0 %v65
    %3879 = vmatprep.subr.mxu0 0.0
    %3880 = vmatpush1.msra.mxu0 %v64
    %3881 = vmatprep.subr.mxu0 0.0
    %3882 = vmatpush2.msra.mxu0 0.0
    %3883 = vmatprep.subr.mxu0 0.0
    %3884 = vmatpush2.msra.mxu0 0.0
    %3885 = vmatprep.subr.mxu0 0.0
    %3886 = vmatpush2.msra.mxu0 0.0
    %3887 = vmatprep.subr.mxu0 0.0
    %3888 = vmatpush2.msra.mxu0 0.0
    %3889 = vmatprep.subr.mxu0 0.0
    %3890 = vmatpush2.msra.mxu0 0.0
    %3891 = vmatprep.subr.mxu0 0.0
    %3892 = vmatpush2.msra.mxu0 0.0
    %3893 = vmatprep.subr.mxu0 0.0
    %3894 = vmatpush2.msra.mxu0 0.0
    %3895 = vmatprep.subr.mxu0 0.0
    %3896 = vmatpush2.msra.mxu0 0.0
    %3897 = vmatprep.subr.mxu0 0.0
    %3898 = vmatpush2.msra.mxu0 0.0
    %3899 = vmatprep.subr.mxu0 0.0
    %3900 = vmatpush2.msra.mxu0 0.0
    %3901 = vmatprep.subr.mxu0 0.0
    %3902 = vmatpush2.msra.mxu0 0.0
    %3903 = vmatprep.subr.mxu0 0.0
    %3904 = vmatpush2.msra.mxu0 0.0
    %3905 = vmatprep.subr.mxu0 0.0
    %3906 = vmatpush2.msra.mxu0 0.0
    %3907 = vmatprep.subr.mxu0 0.0
    %3908 = vmatpush2.msra.mxu0 0.0
    %3909 = vmatprep.subr.mxu0 0.0
    %3910 = vmatpush2.msra.mxu0 0.0
    %3911 = vmatprep.subr.mxu0 0.0
    %3912 = vmatpush2.msra.mxu0 0.0
    %3913 = vmatprep.mubr.f32.mxu0 0.0
    %3914 = vmatmul.mubr.f32.gmra.mxu0 %v3847
    %v3915 = vpop.f32.mrf.mxu0
    %v3916 = vadd.f32 %v80, %v3915
    %v3917 = vpop.f32.mrf.mxu0
    %3918 = vdwg.mxu0
    %v3919 = vmul.f32 %v3916, 0.022222223
    %v3920 = vadd.f32 %v3771, %v3919
    %v3922 = vsel %vm83, %v3920, 0
    %3924 = vmatprep.subr.mxu0 0.0
    %3925 = vmatpush1.msra.mxu0 0.0
    %3926 = vmatprep.subr.mxu0 0.0
    %3927 = vmatpush1.msra.mxu0 0.0
    %3928 = vmatprep.subr.mxu0 0.0
    %3929 = vmatpush1.msra.mxu0 0.0
    %3930 = vmatprep.subr.mxu0 0.0
    %3931 = vmatpush1.msra.mxu0 0.0
    %3932 = vmatprep.subr.mxu0 0.0
    %3933 = vmatpush1.msra.mxu0 0.0
    %3934 = vmatprep.subr.mxu0 0.0
    %3935 = vmatpush1.msra.mxu0 0.0
    %3936 = vmatprep.subr.mxu0 0.0
    %3937 = vmatpush1.msra.mxu0 0.0
    %3938 = vmatprep.subr.mxu0 0.0
    %3939 = vmatpush1.msra.mxu0 0.0
    %3940 = vmatprep.subr.mxu0 0.0
    %3941 = vmatpush1.msra.mxu0 0.0
    %3942 = vmatprep.subr.mxu0 0.0
    %3943 = vmatpush1.msra.mxu0 0.0
    %3944 = vmatprep.subr.mxu0 0.0
    %3945 = vmatpush1.msra.mxu0 0.0
    %3946 = vmatprep.subr.mxu0 0.0
    %3947 = vmatpush1.msra.mxu0 0.0
    %3948 = vmatprep.subr.mxu0 0.0
    %3949 = vmatpush1.msra.mxu0 %v63
    %3950 = vmatprep.subr.mxu0 0.0
    %3951 = vmatpush1.msra.mxu0 %v62
    %3952 = vmatprep.subr.mxu0 0.0
    %3953 = vmatpush1.msra.mxu0 %v61
    %3954 = vmatprep.subr.mxu0 0.0
    %3955 = vmatpush1.msra.mxu0 %v60
    %3956 = vmatprep.subr.mxu0 0.0
    %3957 = vmatpush2.msra.mxu0 0.0
    %3958 = vmatprep.subr.mxu0 0.0
    %3959 = vmatpush2.msra.mxu0 0.0
    %3960 = vmatprep.subr.mxu0 0.0
    %3961 = vmatpush2.msra.mxu0 0.0
    %3962 = vmatprep.subr.mxu0 0.0
    %3963 = vmatpush2.msra.mxu0 0.0
    %3964 = vmatprep.subr.mxu0 0.0
    %3965 = vmatpush2.msra.mxu0 0.0
    %3966 = vmatprep.subr.mxu0 0.0
    %3967 = vmatpush2.msra.mxu0 0.0
    %3968 = vmatprep.subr.mxu0 0.0
    %3969 = vmatpush2.msra.mxu0 0.0
    %3970 = vmatprep.subr.mxu0 0.0
    %3971 = vmatpush2.msra.mxu0 0.0
    %3972 = vmatprep.subr.mxu0 0.0
    %3973 = vmatpush2.msra.mxu0 0.0
    %3974 = vmatprep.subr.mxu0 0.0
    %3975 = vmatpush2.msra.mxu0 0.0
    %3976 = vmatprep.subr.mxu0 0.0
    %3977 = vmatpush2.msra.mxu0 0.0
    %3978 = vmatprep.subr.mxu0 0.0
    %3979 = vmatpush2.msra.mxu0 0.0
    %3980 = vmatprep.subr.mxu0 0.0
    %3981 = vmatpush2.msra.mxu0 0.0
    %3982 = vmatprep.subr.mxu0 0.0
    %3983 = vmatpush2.msra.mxu0 0.0
    %3984 = vmatprep.subr.mxu0 0.0
    %3985 = vmatpush2.msra.mxu0 0.0
    %3986 = vmatprep.subr.mxu0 0.0
    %3987 = vmatpush2.msra.mxu0 0.0
    %3988 = vmatprep.mubr.f32.mxu0 0.0
    %3989 = vmatmul.mubr.f32.gmra.mxu0 %v3922
    %v3990 = vpop.f32.mrf.mxu0
    %v3991 = vadd.f32 %v73, %v3990
    %v3992 = vpop.f32.mrf.mxu0
    %3993 = vdwg.mxu0
    %v3994 = vtanh.pop %v3991
    %v3996 = vsel %vm83, %v3994, 0
    %3998 = vmatprep.subr.mxu0 0.0
    %3999 = vmatpush1.msra.mxu0 0.0
    %4000 = vmatprep.subr.mxu0 0.0
    %4001 = vmatpush1.msra.mxu0 0.0
    %4002 = vmatprep.subr.mxu0 0.0
    %4003 = vmatpush1.msra.mxu0 0.0
    %4004 = vmatprep.subr.mxu0 0.0
    %4005 = vmatpush1.msra.mxu0 0.0
    %4006 = vmatprep.subr.mxu0 0.0
    %4007 = vmatpush1.msra.mxu0 0.0
    %4008 = vmatprep.subr.mxu0 0.0
    %4009 = vmatpush1.msra.mxu0 0.0
    %4010 = vmatprep.subr.mxu0 0.0
    %4011 = vmatpush1.msra.mxu0 0.0
    %4012 = vmatprep.subr.mxu0 0.0
    %4013 = vmatpush1.msra.mxu0 0.0
    %4014 = vmatprep.subr.mxu0 0.0
    %4015 = vmatpush1.msra.mxu0 0.0
    %4016 = vmatprep.subr.mxu0 0.0
    %4017 = vmatpush1.msra.mxu0 0.0
    %4018 = vmatprep.subr.mxu0 0.0
    %4019 = vmatpush1.msra.mxu0 0.0
    %4020 = vmatprep.subr.mxu0 0.0
    %4021 = vmatpush1.msra.mxu0 0.0
    %4022 = vmatprep.subr.mxu0 0.0
    %4023 = vmatpush1.msra.mxu0 %v67
    %4024 = vmatprep.subr.mxu0 0.0
    %4025 = vmatpush1.msra.mxu0 %v66
    %4026 = vmatprep.subr.mxu0 0.0
    %4027 = vmatpush1.msra.mxu0 %v65
    %4028 = vmatprep.subr.mxu0 0.0
    %4029 = vmatpush1.msra.mxu0 %v64
    %4030 = vmatprep.subr.mxu0 0.0
    %4031 = vmatpush2.msra.mxu0 0.0
    %4032 = vmatprep.subr.mxu0 0.0
    %4033 = vmatpush2.msra.mxu0 0.0
    %4034 = vmatprep.subr.mxu0 0.0
    %4035 = vmatpush2.msra.mxu0 0.0
    %4036 = vmatprep.subr.mxu0 0.0
    %4037 = vmatpush2.msra.mxu0 0.0
    %4038 = vmatprep.subr.mxu0 0.0
    %4039 = vmatpush2.msra.mxu0 0.0
    %4040 = vmatprep.subr.mxu0 0.0
    %4041 = vmatpush2.msra.mxu0 0.0
    %4042 = vmatprep.subr.mxu0 0.0
    %4043 = vmatpush2.msra.mxu0 0.0
    %4044 = vmatprep.subr.mxu0 0.0
    %4045 = vmatpush2.msra.mxu0 0.0
    %4046 = vmatprep.subr.mxu0 0.0
    %4047 = vmatpush2.msra.mxu0 0.0
    %4048 = vmatprep.subr.mxu0 0.0
    %4049 = vmatpush2.msra.mxu0 0.0
    %4050 = vmatprep.subr.mxu0 0.0
    %4051 = vmatpush2.msra.mxu0 0.0
    %4052 = vmatprep.subr.mxu0 0.0
    %4053 = vmatpush2.msra.mxu0 0.0
    %4054 = vmatprep.subr.mxu0 0.0
    %4055 = vmatpush2.msra.mxu0 0.0
    %4056 = vmatprep.subr.mxu0 0.0
    %4057 = vmatpush2.msra.mxu0 0.0
    %4058 = vmatprep.subr.mxu0 0.0
    %4059 = vmatpush2.msra.mxu0 0.0
    %4060 = vmatprep.subr.mxu0 0.0
    %4061 = vmatpush2.msra.mxu0 0.0
    %4062 = vmatprep.mubr.f32.mxu0 0.0
    %4063 = vmatmul.mubr.f32.gmra.mxu0 %v3996
    %v4064 = vpop.f32.mrf.mxu0
    %v4065 = vadd.f32 %v80, %v4064
    %v4066 = vpop.f32.mrf.mxu0
    %4067 = vdwg.mxu0
    %v4068 = vmul.f32 %v3916, 0.008333334
    %v4069 = vmul.f32 %v4065, 0.025
    %v4070 = vadd.f32 %v4068, %v4069
    %v4071 = vadd.f32 %v3771, %v4070
    %v4073 = vsel %vm83, %v4071, 0
    %4075 = vmatprep.subr.mxu0 0.0
    %4076 = vmatpush1.msra.mxu0 0.0
    %4077 = vmatprep.subr.mxu0 0.0
    %4078 = vmatpush1.msra.mxu0 0.0
    %4079 = vmatprep.subr.mxu0 0.0
    %4080 = vmatpush1.msra.mxu0 0.0
    %4081 = vmatprep.subr.mxu0 0.0
    %4082 = vmatpush1.msra.mxu0 0.0
    %4083 = vmatprep.subr.mxu0 0.0
    %4084 = vmatpush1.msra.mxu0 0.0
    %4085 = vmatprep.subr.mxu0 0.0
    %4086 = vmatpush1.msra.mxu0 0.0
    %4087 = vmatprep.subr.mxu0 0.0
    %4088 = vmatpush1.msra.mxu0 0.0
    %4089 = vmatprep.subr.mxu0 0.0
    %4090 = vmatpush1.msra.mxu0 0.0
    %4091 = vmatprep.subr.mxu0 0.0
    %4092 = vmatpush1.msra.mxu0 0.0
    %4093 = vmatprep.subr.mxu0 0.0
    %4094 = vmatpush1.msra.mxu0 0.0
    %4095 = vmatprep.subr.mxu0 0.0
    %4096 = vmatpush1.msra.mxu0 0.0
    %4097 = vmatprep.subr.mxu0 0.0
    %4098 = vmatpush1.msra.mxu0 0.0
    %4099 = vmatprep.subr.mxu0 0.0
    %4100 = vmatpush1.msra.mxu0 %v63
    %4101 = vmatprep.subr.mxu0 0.0
    %4102 = vmatpush1.msra.mxu0 %v62
    %4103 = vmatprep.subr.mxu0 0.0
    %4104 = vmatpush1.msra.mxu0 %v61
    %4105 = vmatprep.subr.mxu0 0.0
    %4106 = vmatpush1.msra.mxu0 %v60
    %4107 = vmatprep.subr.mxu0 0.0
    %4108 = vmatpush2.msra.mxu0 0.0
    %4109 = vmatprep.subr.mxu0 0.0
    %4110 = vmatpush2.msra.mxu0 0.0
    %4111 = vmatprep.subr.mxu0 0.0
    %4112 = vmatpush2.msra.mxu0 0.0
    %4113 = vmatprep.subr.mxu0 0.0
    %4114 = vmatpush2.msra.mxu0 0.0
    %4115 = vmatprep.subr.mxu0 0.0
    %4116 = vmatpush2.msra.mxu0 0.0
    %4117 = vmatprep.subr.mxu0 0.0
    %4118 = vmatpush2.msra.mxu0 0.0
    %4119 = vmatprep.subr.mxu0 0.0
    %4120 = vmatpush2.msra.mxu0 0.0
    %4121 = vmatprep.subr.mxu0 0.0
    %4122 = vmatpush2.msra.mxu0 0.0
    %4123 = vmatprep.subr.mxu0 0.0
    %4124 = vmatpush2.msra.mxu0 0.0
    %4125 = vmatprep.subr.mxu0 0.0
    %4126 = vmatpush2.msra.mxu0 0.0
    %4127 = vmatprep.subr.mxu0 0.0
    %4128 = vmatpush2.msra.mxu0 0.0
    %4129 = vmatprep.subr.mxu0 0.0
    %4130 = vmatpush2.msra.mxu0 0.0
    %4131 = vmatprep.subr.mxu0 0.0
    %4132 = vmatpush2.msra.mxu0 0.0
    %4133 = vmatprep.subr.mxu0 0.0
    %4134 = vmatpush2.msra.mxu0 0.0
    %4135 = vmatprep.subr.mxu0 0.0
    %4136 = vmatpush2.msra.mxu0 0.0
    %4137 = vmatprep.subr.mxu0 0.0
    %4138 = vmatpush2.msra.mxu0 0.0
    %4139 = vmatprep.mubr.f32.mxu0 0.0
    %4140 = vmatmul.mubr.f32.gmra.mxu0 %v4073
    %v4141 = vpop.f32.mrf.mxu0
    %v4142 = vadd.f32 %v73, %v4141
    %v4143 = vpop.f32.mrf.mxu0
    %4144 = vdwg.mxu0
    %v4145 = vtanh.pop %v4142
    %v4147 = vsel %vm83, %v4145, 0
    %4149 = vmatprep.subr.mxu0 0.0
    %4150 = vmatpush1.msra.mxu0 0.0
    %4151 = vmatprep.subr.mxu0 0.0
    %4152 = vmatpush1.msra.mxu0 0.0
    %4153 = vmatprep.subr.mxu0 0.0
    %4154 = vmatpush1.msra.mxu0 0.0
    %4155 = vmatprep.subr.mxu0 0.0
    %4156 = vmatpush1.msra.mxu0 0.0
    %4157 = vmatprep.subr.mxu0 0.0
    %4158 = vmatpush1.msra.mxu0 0.0
    %4159 = vmatprep.subr.mxu0 0.0
    %4160 = vmatpush1.msra.mxu0 0.0
    %4161 = vmatprep.subr.mxu0 0.0
    %4162 = vmatpush1.msra.mxu0 0.0
    %4163 = vmatprep.subr.mxu0 0.0
    %4164 = vmatpush1.msra.mxu0 0.0
    %4165 = vmatprep.subr.mxu0 0.0
    %4166 = vmatpush1.msra.mxu0 0.0
    %4167 = vmatprep.subr.mxu0 0.0
    %4168 = vmatpush1.msra.mxu0 0.0
    %4169 = vmatprep.subr.mxu0 0.0
    %4170 = vmatpush1.msra.mxu0 0.0
    %4171 = vmatprep.subr.mxu0 0.0
    %4172 = vmatpush1.msra.mxu0 0.0
    %4173 = vmatprep.subr.mxu0 0.0
    %4174 = vmatpush1.msra.mxu0 %v67
    %4175 = vmatprep.subr.mxu0 0.0
    %4176 = vmatpush1.msra.mxu0 %v66
    %4177 = vmatprep.subr.mxu0 0.0
    %4178 = vmatpush1.msra.mxu0 %v65
    %4179 = vmatprep.subr.mxu0 0.0
    %4180 = vmatpush1.msra.mxu0 %v64
    %4181 = vmatprep.subr.mxu0 0.0
    %4182 = vmatpush2.msra.mxu0 0.0
    %4183 = vmatprep.subr.mxu0 0.0
    %4184 = vmatpush2.msra.mxu0 0.0
    %4185 = vmatprep.subr.mxu0 0.0
    %4186 = vmatpush2.msra.mxu0 0.0
    %4187 = vmatprep.subr.mxu0 0.0
    %4188 = vmatpush2.msra.mxu0 0.0
    %4189 = vmatprep.subr.mxu0 0.0
    %4190 = vmatpush2.msra.mxu0 0.0
    %4191 = vmatprep.subr.mxu0 0.0
    %4192 = vmatpush2.msra.mxu0 0.0
    %4193 = vmatprep.subr.mxu0 0.0
    %4194 = vmatpush2.msra.mxu0 0.0
    %4195 = vmatprep.subr.mxu0 0.0
    %4196 = vmatpush2.msra.mxu0 0.0
    %4197 = vmatprep.subr.mxu0 0.0
    %4198 = vmatpush2.msra.mxu0 0.0
    %4199 = vmatprep.subr.mxu0 0.0
    %4200 = vmatpush2.msra.mxu0 0.0
    %4201 = vmatprep.subr.mxu0 0.0
    %4202 = vmatpush2.msra.mxu0 0.0
    %4203 = vmatprep.subr.mxu0 0.0
    %4204 = vmatpush2.msra.mxu0 0.0
    %4205 = vmatprep.subr.mxu0 0.0
    %4206 = vmatpush2.msra.mxu0 0.0
    %4207 = vmatprep.subr.mxu0 0.0
    %4208 = vmatpush2.msra.mxu0 0.0
    %4209 = vmatprep.subr.mxu0 0.0
    %4210 = vmatpush2.msra.mxu0 0.0
    %4211 = vmatprep.subr.mxu0 0.0
    %4212 = vmatpush2.msra.mxu0 0.0
    %4213 = vmatprep.mubr.f32.mxu0 0.0
    %4214 = vmatmul.mubr.f32.gmra.mxu0 %v4147
    %v4215 = vpop.f32.mrf.mxu0
    %v4216 = vadd.f32 %v80, %v4215
    %v4217 = vpop.f32.mrf.mxu0
    %4218 = vdwg.mxu0
    %v4219 = vmul.f32 %v3916, 0.108641975
    %v4220 = vmul.f32 %v4065, -0.4148148
    %v4221 = vadd.f32 %v4219, %v4220
    %v4222 = vmul.f32 %v4216, 0.39506173
    %v4223 = vadd.f32 %v4221, %v4222
    %v4224 = vadd.f32 %v3771, %v4223
    %v4226 = vsel %vm83, %v4224, 0
    %4228 = vmatprep.subr.mxu0 0.0
    %4229 = vmatpush1.msra.mxu0 0.0
    %4230 = vmatprep.subr.mxu0 0.0
    %4231 = vmatpush1.msra.mxu0 0.0
    %4232 = vmatprep.subr.mxu0 0.0
    %4233 = vmatpush1.msra.mxu0 0.0
    %4234 = vmatprep.subr.mxu0 0.0
    %4235 = vmatpush1.msra.mxu0 0.0
    %4236 = vmatprep.subr.mxu0 0.0
    %4237 = vmatpush1.msra.mxu0 0.0
    %4238 = vmatprep.subr.mxu0 0.0
    %4239 = vmatpush1.msra.mxu0 0.0
    %4240 = vmatprep.subr.mxu0 0.0
    %4241 = vmatpush1.msra.mxu0 0.0
    %4242 = vmatprep.subr.mxu0 0.0
    %4243 = vmatpush1.msra.mxu0 0.0
    %4244 = vmatprep.subr.mxu0 0.0
    %4245 = vmatpush1.msra.mxu0 0.0
    %4246 = vmatprep.subr.mxu0 0.0
    %4247 = vmatpush1.msra.mxu0 0.0
    %4248 = vmatprep.subr.mxu0 0.0
    %4249 = vmatpush1.msra.mxu0 0.0
    %4250 = vmatprep.subr.mxu0 0.0
    %4251 = vmatpush1.msra.mxu0 0.0
    %4252 = vmatprep.subr.mxu0 0.0
    %4253 = vmatpush1.msra.mxu0 %v63
    %4254 = vmatprep.subr.mxu0 0.0
    %4255 = vmatpush1.msra.mxu0 %v62
    %4256 = vmatprep.subr.mxu0 0.0
    %4257 = vmatpush1.msra.mxu0 %v61
    %4258 = vmatprep.subr.mxu0 0.0
    %4259 = vmatpush1.msra.mxu0 %v60
    %4260 = vmatprep.subr.mxu0 0.0
    %4261 = vmatpush2.msra.mxu0 0.0
    %4262 = vmatprep.subr.mxu0 0.0
    %4263 = vmatpush2.msra.mxu0 0.0
    %4264 = vmatprep.subr.mxu0 0.0
    %4265 = vmatpush2.msra.mxu0 0.0
    %4266 = vmatprep.subr.mxu0 0.0
    %4267 = vmatpush2.msra.mxu0 0.0
    %4268 = vmatprep.subr.mxu0 0.0
    %4269 = vmatpush2.msra.mxu0 0.0
    %4270 = vmatprep.subr.mxu0 0.0
    %4271 = vmatpush2.msra.mxu0 0.0
    %4272 = vmatprep.subr.mxu0 0.0
    %4273 = vmatpush2.msra.mxu0 0.0
    %4274 = vmatprep.subr.mxu0 0.0
    %4275 = vmatpush2.msra.mxu0 0.0
    %4276 = vmatprep.subr.mxu0 0.0
    %4277 = vmatpush2.msra.mxu0 0.0
    %4278 = vmatprep.subr.mxu0 0.0
    %4279 = vmatpush2.msra.mxu0 0.0
    %4280 = vmatprep.subr.mxu0 0.0
    %4281 = vmatpush2.msra.mxu0 0.0
    %4282 = vmatprep.subr.mxu0 0.0
    %4283 = vmatpush2.msra.mxu0 0.0
    %4284 = vmatprep.subr.mxu0 0.0
    %4285 = vmatpush2.msra.mxu0 0.0
    %4286 = vmatprep.subr.mxu0 0.0
    %4287 = vmatpush2.msra.mxu0 0.0
    %4288 = vmatprep.subr.mxu0 0.0
    %4289 = vmatpush2.msra.mxu0 0.0
    %4290 = vmatprep.subr.mxu0 0.0
    %4291 = vmatpush2.msra.mxu0 0.0
    %4292 = vmatprep.mubr.f32.mxu0 0.0
    %4293 = vmatmul.mubr.f32.gmra.mxu0 %v4226
    %v4294 = vpop.f32.mrf.mxu0
    %v4295 = vadd.f32 %v73, %v4294
    %v4296 = vpop.f32.mrf.mxu0
    %4297 = vdwg.mxu0
    %v4298 = vtanh.pop %v4295
    %v4300 = vsel %vm83, %v4298, 0
    %4302 = vmatprep.subr.mxu0 0.0
    %4303 = vmatpush1.msra.mxu0 0.0
    %4304 = vmatprep.subr.mxu0 0.0
    %4305 = vmatpush1.msra.mxu0 0.0
    %4306 = vmatprep.subr.mxu0 0.0
    %4307 = vmatpush1.msra.mxu0 0.0
    %4308 = vmatprep.subr.mxu0 0.0
    %4309 = vmatpush1.msra.mxu0 0.0
    %4310 = vmatprep.subr.mxu0 0.0
    %4311 = vmatpush1.msra.mxu0 0.0
    %4312 = vmatprep.subr.mxu0 0.0
    %4313 = vmatpush1.msra.mxu0 0.0
    %4314 = vmatprep.subr.mxu0 0.0
    %4315 = vmatpush1.msra.mxu0 0.0
    %4316 = vmatprep.subr.mxu0 0.0
    %4317 = vmatpush1.msra.mxu0 0.0
    %4318 = vmatprep.subr.mxu0 0.0
    %4319 = vmatpush1.msra.mxu0 0.0
    %4320 = vmatprep.subr.mxu0 0.0
    %4321 = vmatpush1.msra.mxu0 0.0
    %4322 = vmatprep.subr.mxu0 0.0
    %4323 = vmatpush1.msra.mxu0 0.0
    %4324 = vmatprep.subr.mxu0 0.0
    %4325 = vmatpush1.msra.mxu0 0.0
    %4326 = vmatprep.subr.mxu0 0.0
    %4327 = vmatpush1.msra.mxu0 %v67
    %4328 = vmatprep.subr.mxu0 0.0
    %4329 = vmatpush1.msra.mxu0 %v66
    %4330 = vmatprep.subr.mxu0 0.0
    %4331 = vmatpush1.msra.mxu0 %v65
    %4332 = vmatprep.subr.mxu0 0.0
    %4333 = vmatpush1.msra.mxu0 %v64
    %4334 = vmatprep.subr.mxu0 0.0
    %4335 = vmatpush2.msra.mxu0 0.0
    %4336 = vmatprep.subr.mxu0 0.0
    %4337 = vmatpush2.msra.mxu0 0.0
    %4338 = vmatprep.subr.mxu0 0.0
    %4339 = vmatpush2.msra.mxu0 0.0
    %4340 = vmatprep.subr.mxu0 0.0
    %4341 = vmatpush2.msra.mxu0 0.0
    %4342 = vmatprep.subr.mxu0 0.0
    %4343 = vmatpush2.msra.mxu0 0.0
    %4344 = vmatprep.subr.mxu0 0.0
    %4345 = vmatpush2.msra.mxu0 0.0
    %4346 = vmatprep.subr.mxu0 0.0
    %4347 = vmatpush2.msra.mxu0 0.0
    %4348 = vmatprep.subr.mxu0 0.0
    %4349 = vmatpush2.msra.mxu0 0.0
    %4350 = vmatprep.subr.mxu0 0.0
    %4351 = vmatpush2.msra.mxu0 0.0
    %4352 = vmatprep.subr.mxu0 0.0
    %4353 = vmatpush2.msra.mxu0 0.0
    %4354 = vmatprep.subr.mxu0 0.0
    %4355 = vmatpush2.msra.mxu0 0.0
    %4356 = vmatprep.subr.mxu0 0.0
    %4357 = vmatpush2.msra.mxu0 0.0
    %4358 = vmatprep.subr.mxu0 0.0
    %4359 = vmatpush2.msra.mxu0 0.0
    %4360 = vmatprep.subr.mxu0 0.0
    %4361 = vmatpush2.msra.mxu0 0.0
    %4362 = vmatprep.subr.mxu0 0.0
    %4363 = vmatpush2.msra.mxu0 0.0
    %4364 = vmatprep.subr.mxu0 0.0
    %4365 = vmatpush2.msra.mxu0 0.0
    %4366 = vmatprep.mubr.f32.mxu0 0.0
    %4367 = vmatmul.mubr.f32.gmra.mxu0 %v4300
    %v4368 = vpop.f32.mrf.mxu0
    %v4369 = vadd.f32 %v80, %v4368
    %v4370 = vpop.f32.mrf.mxu0
    %4371 = vdwg.mxu0
    %v4372 = vmul.f32 %v3916, 0.32806653
    %v4373 = vmul.f32 %v4065, -1.2884215
    %v4374 = vadd.f32 %v4372, %v4373
    %v4375 = vmul.f32 %v4216, 1.0914326
    %v4376 = vadd.f32 %v4374, %v4375
    %v4377 = vmul.f32 %v4369, -0.032312147
    %v4378 = vadd.f32 %v4376, %v4377
    %v4379 = vadd.f32 %v3771, %v4378
    %v4381 = vsel %vm83, %v4379, 0
    %4383 = vmatprep.subr.mxu0 0.0
    %4384 = vmatpush1.msra.mxu0 0.0
    %4385 = vmatprep.subr.mxu0 0.0
    %4386 = vmatpush1.msra.mxu0 0.0
    %4387 = vmatprep.subr.mxu0 0.0
    %4388 = vmatpush1.msra.mxu0 0.0
    %4389 = vmatprep.subr.mxu0 0.0
    %4390 = vmatpush1.msra.mxu0 0.0
    %4391 = vmatprep.subr.mxu0 0.0
    %4392 = vmatpush1.msra.mxu0 0.0
    %4393 = vmatprep.subr.mxu0 0.0
    %4394 = vmatpush1.msra.mxu0 0.0
    %4395 = vmatprep.subr.mxu0 0.0
    %4396 = vmatpush1.msra.mxu0 0.0
    %4397 = vmatprep.subr.mxu0 0.0
    %4398 = vmatpush1.msra.mxu0 0.0
    %4399 = vmatprep.subr.mxu0 0.0
    %4400 = vmatpush1.msra.mxu0 0.0
    %4401 = vmatprep.subr.mxu0 0.0
    %4402 = vmatpush1.msra.mxu0 0.0
    %4403 = vmatprep.subr.mxu0 0.0
    %4404 = vmatpush1.msra.mxu0 0.0
    %4405 = vmatprep.subr.mxu0 0.0
    %4406 = vmatpush1.msra.mxu0 0.0
    %4407 = vmatprep.subr.mxu0 0.0
    %4408 = vmatpush1.msra.mxu0 %v63
    %4409 = vmatprep.subr.mxu0 0.0
    %4410 = vmatpush1.msra.mxu0 %v62
    %4411 = vmatprep.subr.mxu0 0.0
    %4412 = vmatpush1.msra.mxu0 %v61
    %4413 = vmatprep.subr.mxu0 0.0
    %4414 = vmatpush1.msra.mxu0 %v60
    %4415 = vmatprep.subr.mxu0 0.0
    %4416 = vmatpush2.msra.mxu0 0.0
    %4417 = vmatprep.subr.mxu0 0.0
    %4418 = vmatpush2.msra.mxu0 0.0
    %4419 = vmatprep.subr.mxu0 0.0
    %4420 = vmatpush2.msra.mxu0 0.0
    %4421 = vmatprep.subr.mxu0 0.0
    %4422 = vmatpush2.msra.mxu0 0.0
    %4423 = vmatprep.subr.mxu0 0.0
    %4424 = vmatpush2.msra.mxu0 0.0
    %4425 = vmatprep.subr.mxu0 0.0
    %4426 = vmatpush2.msra.mxu0 0.0
    %4427 = vmatprep.subr.mxu0 0.0
    %4428 = vmatpush2.msra.mxu0 0.0
    %4429 = vmatprep.subr.mxu0 0.0
    %4430 = vmatpush2.msra.mxu0 0.0
    %4431 = vmatprep.subr.mxu0 0.0
    %4432 = vmatpush2.msra.mxu0 0.0
    %4433 = vmatprep.subr.mxu0 0.0
    %4434 = vmatpush2.msra.mxu0 0.0
    %4435 = vmatprep.subr.mxu0 0.0
    %4436 = vmatpush2.msra.mxu0 0.0
    %4437 = vmatprep.subr.mxu0 0.0
    %4438 = vmatpush2.msra.mxu0 0.0
    %4439 = vmatprep.subr.mxu0 0.0
    %4440 = vmatpush2.msra.mxu0 0.0
    %4441 = vmatprep.subr.mxu0 0.0
    %4442 = vmatpush2.msra.mxu0 0.0
    %4443 = vmatprep.subr.mxu0 0.0
    %4444 = vmatpush2.msra.mxu0 0.0
    %4445 = vmatprep.subr.mxu0 0.0
    %4446 = vmatpush2.msra.mxu0 0.0
    %4447 = vmatprep.mubr.f32.mxu0 0.0
    %4448 = vmatmul.mubr.f32.gmra.mxu0 %v4381
    %v4449 = vpop.f32.mrf.mxu0
    %v4450 = vadd.f32 %v73, %v4449
    %v4451 = vpop.f32.mrf.mxu0
    %4452 = vdwg.mxu0
    %v4453 = vtanh.pop %v4450
    %v4455 = vsel %vm83, %v4453, 0
    %4457 = vmatprep.subr.mxu0 0.0
    %4458 = vmatpush1.msra.mxu0 0.0
    %4459 = vmatprep.subr.mxu0 0.0
    %4460 = vmatpush1.msra.mxu0 0.0
    %4461 = vmatprep.subr.mxu0 0.0
    %4462 = vmatpush1.msra.mxu0 0.0
    %4463 = vmatprep.subr.mxu0 0.0
    %4464 = vmatpush1.msra.mxu0 0.0
    %4465 = vmatprep.subr.mxu0 0.0
    %4466 = vmatpush1.msra.mxu0 0.0
    %4467 = vmatprep.subr.mxu0 0.0
    %4468 = vmatpush1.msra.mxu0 0.0
    %4469 = vmatprep.subr.mxu0 0.0
    %4470 = vmatpush1.msra.mxu0 0.0
    %4471 = vmatprep.subr.mxu0 0.0
    %4472 = vmatpush1.msra.mxu0 0.0
    %4473 = vmatprep.subr.mxu0 0.0
    %4474 = vmatpush1.msra.mxu0 0.0
    %4475 = vmatprep.subr.mxu0 0.0
    %4476 = vmatpush1.msra.mxu0 0.0
    %4477 = vmatprep.subr.mxu0 0.0
    %4478 = vmatpush1.msra.mxu0 0.0
    %4479 = vmatprep.subr.mxu0 0.0
    %4480 = vmatpush1.msra.mxu0 0.0
    %4481 = vmatprep.subr.mxu0 0.0
    %4482 = vmatpush1.msra.mxu0 %v67
    %4483 = vmatprep.subr.mxu0 0.0
    %4484 = vmatpush1.msra.mxu0 %v66
    %4485 = vmatprep.subr.mxu0 0.0
    %4486 = vmatpush1.msra.mxu0 %v65
    %4487 = vmatprep.subr.mxu0 0.0
    %4488 = vmatpush1.msra.mxu0 %v64
    %4489 = vmatprep.subr.mxu0 0.0
    %4490 = vmatpush2.msra.mxu0 0.0
    %4491 = vmatprep.subr.mxu0 0.0
    %4492 = vmatpush2.msra.mxu0 0.0
    %4493 = vmatprep.subr.mxu0 0.0
    %4494 = vmatpush2.msra.mxu0 0.0
    %4495 = vmatprep.subr.mxu0 0.0
    %4496 = vmatpush2.msra.mxu0 0.0
    %4497 = vmatprep.subr.mxu0 0.0
    %4498 = vmatpush2.msra.mxu0 0.0
    %4499 = vmatprep.subr.mxu0 0.0
    %4500 = vmatpush2.msra.mxu0 0.0
    %4501 = vmatprep.subr.mxu0 0.0
    %4502 = vmatpush2.msra.mxu0 0.0
    %4503 = vmatprep.subr.mxu0 0.0
    %4504 = vmatpush2.msra.mxu0 0.0
    %4505 = vmatprep.subr.mxu0 0.0
    %4506 = vmatpush2.msra.mxu0 0.0
    %4507 = vmatprep.subr.mxu0 0.0
    %4508 = vmatpush2.msra.mxu0 0.0
    %4509 = vmatprep.subr.mxu0 0.0
    %4510 = vmatpush2.msra.mxu0 0.0
    %4511 = vmatprep.subr.mxu0 0.0
    %4512 = vmatpush2.msra.mxu0 0.0
    %4513 = vmatprep.subr.mxu0 0.0
    %4514 = vmatpush2.msra.mxu0 0.0
    %4515 = vmatprep.subr.mxu0 0.0
    %4516 = vmatpush2.msra.mxu0 0.0
    %4517 = vmatprep.subr.mxu0 0.0
    %4518 = vmatpush2.msra.mxu0 0.0
    %4519 = vmatprep.subr.mxu0 0.0
    %4520 = vmatpush2.msra.mxu0 0.0
    %4521 = vmatprep.mubr.f32.mxu0 0.0
    %4522 = vmatmul.mubr.f32.gmra.mxu0 %v4455
    %v4523 = vpop.f32.mrf.mxu0
    %v4524 = vadd.f32 %v80, %v4523
    %v4525 = vpop.f32.mrf.mxu0
    %4526 = vdwg.mxu0
    %v4527 = vmul.f32 %v3916, 0.3162528
    %v4528 = vmul.f32 %v4065, -1.1952862
    %v4529 = vadd.f32 %v4527, %v4528
    %v4530 = vmul.f32 %v4216, 0.9896025
    %v4531 = vadd.f32 %v4529, %v4530
    %v4532 = vmul.f32 %v4369, 0.030934343
    %v4533 = vadd.f32 %v4531, %v4532
    %v4534 = vmul.f32 %v4524, -0.030392367
    %v4535 = vadd.f32 %v4533, %v4534
    %v4536 = vadd.f32 %v3771, %v4535
    %v4538 = vsel %vm83, %v4536, 0
    %4540 = vmatprep.subr.mxu0 0.0
    %4541 = vmatpush1.msra.mxu0 0.0
    %4542 = vmatprep.subr.mxu0 0.0
    %4543 = vmatpush1.msra.mxu0 0.0
    %4544 = vmatprep.subr.mxu0 0.0
    %4545 = vmatpush1.msra.mxu0 0.0
    %4546 = vmatprep.subr.mxu0 0.0
    %4547 = vmatpush1.msra.mxu0 0.0
    %4548 = vmatprep.subr.mxu0 0.0
    %4549 = vmatpush1.msra.mxu0 0.0
    %4550 = vmatprep.subr.mxu0 0.0
    %4551 = vmatpush1.msra.mxu0 0.0
    %4552 = vmatprep.subr.mxu0 0.0
    %4553 = vmatpush1.msra.mxu0 0.0
    %4554 = vmatprep.subr.mxu0 0.0
    %4555 = vmatpush1.msra.mxu0 0.0
    %4556 = vmatprep.subr.mxu0 0.0
    %4557 = vmatpush1.msra.mxu0 0.0
    %4558 = vmatprep.subr.mxu0 0.0
    %4559 = vmatpush1.msra.mxu0 0.0
    %4560 = vmatprep.subr.mxu0 0.0
    %4561 = vmatpush1.msra.mxu0 0.0
    %4562 = vmatprep.subr.mxu0 0.0
    %4563 = vmatpush1.msra.mxu0 0.0
    %4564 = vmatprep.subr.mxu0 0.0
    %4565 = vmatpush1.msra.mxu0 %v63
    %4566 = vmatprep.subr.mxu0 0.0
    %4567 = vmatpush1.msra.mxu0 %v62
    %4568 = vmatprep.subr.mxu0 0.0
    %4569 = vmatpush1.msra.mxu0 %v61
    %4570 = vmatprep.subr.mxu0 0.0
    %4571 = vmatpush1.msra.mxu0 %v60
    %4572 = vmatprep.subr.mxu0 0.0
    %4573 = vmatpush2.msra.mxu0 0.0
    %4574 = vmatprep.subr.mxu0 0.0
    %4575 = vmatpush2.msra.mxu0 0.0
    %4576 = vmatprep.subr.mxu0 0.0
    %4577 = vmatpush2.msra.mxu0 0.0
    %4578 = vmatprep.subr.mxu0 0.0
    %4579 = vmatpush2.msra.mxu0 0.0
    %4580 = vmatprep.subr.mxu0 0.0
    %4581 = vmatpush2.msra.mxu0 0.0
    %4582 = vmatprep.subr.mxu0 0.0
    %4583 = vmatpush2.msra.mxu0 0.0
    %4584 = vmatprep.subr.mxu0 0.0
    %4585 = vmatpush2.msra.mxu0 0.0
    %4586 = vmatprep.subr.mxu0 0.0
    %4587 = vmatpush2.msra.mxu0 0.0
    %4588 = vmatprep.subr.mxu0 0.0
    %4589 = vmatpush2.msra.mxu0 0.0
    %4590 = vmatprep.subr.mxu0 0.0
    %4591 = vmatpush2.msra.mxu0 0.0
    %4592 = vmatprep.subr.mxu0 0.0
    %4593 = vmatpush2.msra.mxu0 0.0
    %4594 = vmatprep.subr.mxu0 0.0
    %4595 = vmatpush2.msra.mxu0 0.0
    %4596 = vmatprep.subr.mxu0 0.0
    %4597 = vmatpush2.msra.mxu0 0.0
    %4598 = vmatprep.subr.mxu0 0.0
    %4599 = vmatpush2.msra.mxu0 0.0
    %4600 = vmatprep.subr.mxu0 0.0
    %4601 = vmatpush2.msra.mxu0 0.0
    %4602 = vmatprep.subr.mxu0 0.0
    %4603 = vmatpush2.msra.mxu0 0.0
    %4604 = vmatprep.mubr.f32.mxu0 0.0
    %4605 = vmatmul.mubr.f32.gmra.mxu0 %v4538
    %v4606 = vpop.f32.mrf.mxu0
    %v4607 = vadd.f32 %v73, %v4606
    %v4608 = vpop.f32.mrf.mxu0
    %4609 = vdwg.mxu0
    %v4610 = vtanh.pop %v4607
    %v4612 = vsel %vm83, %v4610, 0
    %4614 = vmatprep.subr.mxu0 0.0
    %4615 = vmatpush1.msra.mxu0 0.0
    %4616 = vmatprep.subr.mxu0 0.0
    %4617 = vmatpush1.msra.mxu0 0.0
    %4618 = vmatprep.subr.mxu0 0.0
    %4619 = vmatpush1.msra.mxu0 0.0
    %4620 = vmatprep.subr.mxu0 0.0
    %4621 = vmatpush1.msra.mxu0 0.0
    %4622 = vmatprep.subr.mxu0 0.0
    %4623 = vmatpush1.msra.mxu0 0.0
    %4624 = vmatprep.subr.mxu0 0.0
    %4625 = vmatpush1.msra.mxu0 0.0
    %4626 = vmatprep.subr.mxu0 0.0
    %4627 = vmatpush1.msra.mxu0 0.0
    %4628 = vmatprep.subr.mxu0 0.0
    %4629 = vmatpush1.msra.mxu0 0.0
    %4630 = vmatprep.subr.mxu0 0.0
    %4631 = vmatpush1.msra.mxu0 0.0
    %4632 = vmatprep.subr.mxu0 0.0
    %4633 = vmatpush1.msra.mxu0 0.0
    %4634 = vmatprep.subr.mxu0 0.0
    %4635 = vmatpush1.msra.mxu0 0.0
    %4636 = vmatprep.subr.mxu0 0.0
    %4637 = vmatpush1.msra.mxu0 0.0
    %4638 = vmatprep.subr.mxu0 0.0
    %4639 = vmatpush1.msra.mxu0 %v67
    %4640 = vmatprep.subr.mxu0 0.0
    %4641 = vmatpush1.msra.mxu0 %v66
    %4642 = vmatprep.subr.mxu0 0.0
    %4643 = vmatpush1.msra.mxu0 %v65
    %4644 = vmatprep.subr.mxu0 0.0
    %4645 = vmatpush1.msra.mxu0 %v64
    %4646 = vmatprep.subr.mxu0 0.0
    %4647 = vmatpush2.msra.mxu0 0.0
    %4648 = vmatprep.subr.mxu0 0.0
    %4649 = vmatpush2.msra.mxu0 0.0
    %4650 = vmatprep.subr.mxu0 0.0
    %4651 = vmatpush2.msra.mxu0 0.0
    %4652 = vmatprep.subr.mxu0 0.0
    %4653 = vmatpush2.msra.mxu0 0.0
    %4654 = vmatprep.subr.mxu0 0.0
    %4655 = vmatpush2.msra.mxu0 0.0
    %4656 = vmatprep.subr.mxu0 0.0
    %4657 = vmatpush2.msra.mxu0 0.0
    %4658 = vmatprep.subr.mxu0 0.0
    %4659 = vmatpush2.msra.mxu0 0.0
    %4660 = vmatprep.subr.mxu0 0.0
    %4661 = vmatpush2.msra.mxu0 0.0
    %4662 = vmatprep.subr.mxu0 0.0
    %4663 = vmatpush2.msra.mxu0 0.0
    %4664 = vmatprep.subr.mxu0 0.0
    %4665 = vmatpush2.msra.mxu0 0.0
    %4666 = vmatprep.subr.mxu0 0.0
    %4667 = vmatpush2.msra.mxu0 0.0
    %4668 = vmatprep.subr.mxu0 0.0
    %4669 = vmatpush2.msra.mxu0 0.0
    %4670 = vmatprep.subr.mxu0 0.0
    %4671 = vmatpush2.msra.mxu0 0.0
    %4672 = vmatprep.subr.mxu0 0.0
    %4673 = vmatpush2.msra.mxu0 0.0
    %4674 = vmatprep.subr.mxu0 0.0
    %4675 = vmatpush2.msra.mxu0 0.0
    %4676 = vmatprep.subr.mxu0 0.0
    %4677 = vmatpush2.msra.mxu0 0.0
    %4678 = vmatprep.mubr.f32.mxu0 0.0
    %4679 = vmatmul.mubr.f32.gmra.mxu0 %v4612
    %v4680 = vpop.f32.mrf.mxu0
    %v4681 = vadd.f32 %v80, %v4680
    %v4682 = vpop.f32.mrf.mxu0
    %4683 = vdwg.mxu0
    %v4684 = vmul.f32 %v3916, 0.010127314
    %v4685 = vmul.f32 %v4216, 0.049915146
    %v4686 = vadd.f32 %v4684, %v4685
    %v4687 = vmul.f32 %v4369, 0.07233796
    %v4688 = vadd.f32 %v4686, %v4687
    %v4689 = vmul.f32 %v4524, -0.035819575
    %v4690 = vadd.f32 %v4688, %v4689
    %v4691 = vmul.f32 %v4681, 0.014550265
    %v4692 = vadd.f32 %v4690, %v4691
    %v4693 = vadd.f32 %v3771, %v4692
    %v4695 = vsel %vm83, %v4693, 0
    %4697 = vmatprep.subr.mxu0 0.0
    %4698 = vmatpush1.msra.mxu0 0.0
    %4699 = vmatprep.subr.mxu0 0.0
    %4700 = vmatpush1.msra.mxu0 0.0
    %4701 = vmatprep.subr.mxu0 0.0
    %4702 = vmatpush1.msra.mxu0 0.0
    %4703 = vmatprep.subr.mxu0 0.0
    %4704 = vmatpush1.msra.mxu0 0.0
    %4705 = vmatprep.subr.mxu0 0.0
    %4706 = vmatpush1.msra.mxu0 0.0
    %4707 = vmatprep.subr.mxu0 0.0
    %4708 = vmatpush1.msra.mxu0 0.0
    %4709 = vmatprep.subr.mxu0 0.0
    %4710 = vmatpush1.msra.mxu0 0.0
    %4711 = vmatprep.subr.mxu0 0.0
    %4712 = vmatpush1.msra.mxu0 0.0
    %4713 = vmatprep.subr.mxu0 0.0
    %4714 = vmatpush1.msra.mxu0 0.0
    %4715 = vmatprep.subr.mxu0 0.0
    %4716 = vmatpush1.msra.mxu0 0.0
    %4717 = vmatprep.subr.mxu0 0.0
    %4718 = vmatpush1.msra.mxu0 0.0
    %4719 = vmatprep.subr.mxu0 0.0
    %4720 = vmatpush1.msra.mxu0 0.0
    %4721 = vmatprep.subr.mxu0 0.0
    %4722 = vmatpush1.msra.mxu0 %v63
    %4723 = vmatprep.subr.mxu0 0.0
    %4724 = vmatpush1.msra.mxu0 %v62
    %4725 = vmatprep.subr.mxu0 0.0
    %4726 = vmatpush1.msra.mxu0 %v61
    %4727 = vmatprep.subr.mxu0 0.0
    %4728 = vmatpush1.msra.mxu0 %v60
    %4729 = vmatprep.subr.mxu0 0.0
    %4730 = vmatpush2.msra.mxu0 0.0
    %4731 = vmatprep.subr.mxu0 0.0
    %4732 = vmatpush2.msra.mxu0 0.0
    %4733 = vmatprep.subr.mxu0 0.0
    %4734 = vmatpush2.msra.mxu0 0.0
    %4735 = vmatprep.subr.mxu0 0.0
    %4736 = vmatpush2.msra.mxu0 0.0
    %4737 = vmatprep.subr.mxu0 0.0
    %4738 = vmatpush2.msra.mxu0 0.0
    %4739 = vmatprep.subr.mxu0 0.0
    %4740 = vmatpush2.msra.mxu0 0.0
    %4741 = vmatprep.subr.mxu0 0.0
    %4742 = vmatpush2.msra.mxu0 0.0
    %4743 = vmatprep.subr.mxu0 0.0
    %4744 = vmatpush2.msra.mxu0 0.0
    %4745 = vmatprep.subr.mxu0 0.0
    %4746 = vmatpush2.msra.mxu0 0.0
    %4747 = vmatprep.subr.mxu0 0.0
    %4748 = vmatpush2.msra.mxu0 0.0
    %4749 = vmatprep.subr.mxu0 0.0
    %4750 = vmatpush2.msra.mxu0 0.0
    %4751 = vmatprep.subr.mxu0 0.0
    %4752 = vmatpush2.msra.mxu0 0.0
    %4753 = vmatprep.subr.mxu0 0.0
    %4754 = vmatpush2.msra.mxu0 0.0
    %4755 = vmatprep.subr.mxu0 0.0
    %4756 = vmatpush2.msra.mxu0 0.0
    %4757 = vmatprep.subr.mxu0 0.0
    %4758 = vmatpush2.msra.mxu0 0.0
    %4759 = vmatprep.subr.mxu0 0.0
    %4760 = vmatpush2.msra.mxu0 0.0
    %4761 = vmatprep.mubr.f32.mxu0 0.0
    %4762 = vmatmul.mubr.f32.gmra.mxu0 %v4695
    %v4763 = vpop.f32.mrf.mxu0
    %v4764 = vadd.f32 %v73, %v4763
    %v4765 = vpop.f32.mrf.mxu0
    %4766 = vdwg.mxu0
    %v4767 = vtanh.pop %v4764
    %v4769 = vsel %vm83, %v4767, 0
    %4771 = vmatprep.subr.mxu0 0.0
    %4772 = vmatpush1.msra.mxu0 0.0
    %4773 = vmatprep.subr.mxu0 0.0
    %4774 = vmatpush1.msra.mxu0 0.0
    %4775 = vmatprep.subr.mxu0 0.0
    %4776 = vmatpush1.msra.mxu0 0.0
    %4777 = vmatprep.subr.mxu0 0.0
    %4778 = vmatpush1.msra.mxu0 0.0
    %4779 = vmatprep.subr.mxu0 0.0
    %4780 = vmatpush1.msra.mxu0 0.0
    %4781 = vmatprep.subr.mxu0 0.0
    %4782 = vmatpush1.msra.mxu0 0.0
    %4783 = vmatprep.subr.mxu0 0.0
    %4784 = vmatpush1.msra.mxu0 0.0
    %4785 = vmatprep.subr.mxu0 0.0
    %4786 = vmatpush1.msra.mxu0 0.0
    %4787 = vmatprep.subr.mxu0 0.0
    %4788 = vmatpush1.msra.mxu0 0.0
    %4789 = vmatprep.subr.mxu0 0.0
    %4790 = vmatpush1.msra.mxu0 0.0
    %4791 = vmatprep.subr.mxu0 0.0
    %4792 = vmatpush1.msra.mxu0 0.0
    %4793 = vmatprep.subr.mxu0 0.0
    %4794 = vmatpush1.msra.mxu0 0.0
    %4795 = vmatprep.subr.mxu0 0.0
    %4796 = vmatpush1.msra.mxu0 %v67
    %4797 = vmatprep.subr.mxu0 0.0
    %4798 = vmatpush1.msra.mxu0 %v66
    %4799 = vmatprep.subr.mxu0 0.0
    %4800 = vmatpush1.msra.mxu0 %v65
    %4801 = vmatprep.subr.mxu0 0.0
    %4802 = vmatpush1.msra.mxu0 %v64
    %4803 = vmatprep.subr.mxu0 0.0
    %4804 = vmatpush2.msra.mxu0 0.0
    %4805 = vmatprep.subr.mxu0 0.0
    %4806 = vmatpush2.msra.mxu0 0.0
    %4807 = vmatprep.subr.mxu0 0.0
    %4808 = vmatpush2.msra.mxu0 0.0
    %4809 = vmatprep.subr.mxu0 0.0
    %4810 = vmatpush2.msra.mxu0 0.0
    %4811 = vmatprep.subr.mxu0 0.0
    %4812 = vmatpush2.msra.mxu0 0.0
    %4813 = vmatprep.subr.mxu0 0.0
    %4814 = vmatpush2.msra.mxu0 0.0
    %4815 = vmatprep.subr.mxu0 0.0
    %4816 = vmatpush2.msra.mxu0 0.0
    %4817 = vmatprep.subr.mxu0 0.0
    %4818 = vmatpush2.msra.mxu0 0.0
    %4819 = vmatprep.subr.mxu0 0.0
    %4820 = vmatpush2.msra.mxu0 0.0
    %4821 = vmatprep.subr.mxu0 0.0
    %4822 = vmatpush2.msra.mxu0 0.0
    %4823 = vmatprep.subr.mxu0 0.0
    %4824 = vmatpush2.msra.mxu0 0.0
    %4825 = vmatprep.subr.mxu0 0.0
    %4826 = vmatpush2.msra.mxu0 0.0
    %4827 = vmatprep.subr.mxu0 0.0
    %4828 = vmatpush2.msra.mxu0 0.0
    %4829 = vmatprep.subr.mxu0 0.0
    %4830 = vmatpush2.msra.mxu0 0.0
    %4831 = vmatprep.subr.mxu0 0.0
    %4832 = vmatpush2.msra.mxu0 0.0
    %4833 = vmatprep.subr.mxu0 0.0
    %4834 = vmatpush2.msra.mxu0 0.0
    %4835 = vmatprep.mubr.f32.mxu0 0.0
    %4836 = vmatmul.mubr.f32.gmra.mxu0 %v4769
    %v4837 = vpop.f32.mrf.mxu0
    %v4838 = vadd.f32 %v80, %v4837
    %v4839 = vpop.f32.mrf.mxu0
    %4840 = vdwg.mxu0
    %v4841 = vmul.f32 %v4838, 0.022222223
    %v4842 = vadd.f32 %v4693, %v4841
    %v4844 = vsel %vm83, %v4842, 0
    %4846 = vmatprep.subr.mxu0 0.0
    %4847 = vmatpush1.msra.mxu0 0.0
    %4848 = vmatprep.subr.mxu0 0.0
    %4849 = vmatpush1.msra.mxu0 0.0
    %4850 = vmatprep.subr.mxu0 0.0
    %4851 = vmatpush1.msra.mxu0 0.0
    %4852 = vmatprep.subr.mxu0 0.0
    %4853 = vmatpush1.msra.mxu0 0.0
    %4854 = vmatprep.subr.mxu0 0.0
    %4855 = vmatpush1.msra.mxu0 0.0
    %4856 = vmatprep.subr.mxu0 0.0
    %4857 = vmatpush1.msra.mxu0 0.0
    %4858 = vmatprep.subr.mxu0 0.0
    %4859 = vmatpush1.msra.mxu0 0.0
    %4860 = vmatprep.subr.mxu0 0.0
    %4861 = vmatpush1.msra.mxu0 0.0
    %4862 = vmatprep.subr.mxu0 0.0
    %4863 = vmatpush1.msra.mxu0 0.0
    %4864 = vmatprep.subr.mxu0 0.0
    %4865 = vmatpush1.msra.mxu0 0.0
    %4866 = vmatprep.subr.mxu0 0.0
    %4867 = vmatpush1.msra.mxu0 0.0
    %4868 = vmatprep.subr.mxu0 0.0
    %4869 = vmatpush1.msra.mxu0 0.0
    %4870 = vmatprep.subr.mxu0 0.0
    %4871 = vmatpush1.msra.mxu0 %v63
    %4872 = vmatprep.subr.mxu0 0.0
    %4873 = vmatpush1.msra.mxu0 %v62
    %4874 = vmatprep.subr.mxu0 0.0
    %4875 = vmatpush1.msra.mxu0 %v61
    %4876 = vmatprep.subr.mxu0 0.0
    %4877 = vmatpush1.msra.mxu0 %v60
    %4878 = vmatprep.subr.mxu0 0.0
    %4879 = vmatpush2.msra.mxu0 0.0
    %4880 = vmatprep.subr.mxu0 0.0
    %4881 = vmatpush2.msra.mxu0 0.0
    %4882 = vmatprep.subr.mxu0 0.0
    %4883 = vmatpush2.msra.mxu0 0.0
    %4884 = vmatprep.subr.mxu0 0.0
    %4885 = vmatpush2.msra.mxu0 0.0
    %4886 = vmatprep.subr.mxu0 0.0
    %4887 = vmatpush2.msra.mxu0 0.0
    %4888 = vmatprep.subr.mxu0 0.0
    %4889 = vmatpush2.msra.mxu0 0.0
    %4890 = vmatprep.subr.mxu0 0.0
    %4891 = vmatpush2.msra.mxu0 0.0
    %4892 = vmatprep.subr.mxu0 0.0
    %4893 = vmatpush2.msra.mxu0 0.0
    %4894 = vmatprep.subr.mxu0 0.0
    %4895 = vmatpush2.msra.mxu0 0.0
    %4896 = vmatprep.subr.mxu0 0.0
    %4897 = vmatpush2.msra.mxu0 0.0
    %4898 = vmatprep.subr.mxu0 0.0
    %4899 = vmatpush2.msra.mxu0 0.0
    %4900 = vmatprep.subr.mxu0 0.0
    %4901 = vmatpush2.msra.mxu0 0.0
    %4902 = vmatprep.subr.mxu0 0.0
    %4903 = vmatpush2.msra.mxu0 0.0
    %4904 = vmatprep.subr.mxu0 0.0
    %4905 = vmatpush2.msra.mxu0 0.0
    %4906 = vmatprep.subr.mxu0 0.0
    %4907 = vmatpush2.msra.mxu0 0.0
    %4908 = vmatprep.subr.mxu0 0.0
    %4909 = vmatpush2.msra.mxu0 0.0
    %4910 = vmatprep.mubr.f32.mxu0 0.0
    %4911 = vmatmul.mubr.f32.gmra.mxu0 %v4844
    %v4912 = vpop.f32.mrf.mxu0
    %v4913 = vadd.f32 %v73, %v4912
    %v4914 = vpop.f32.mrf.mxu0
    %4915 = vdwg.mxu0
    %v4916 = vtanh.pop %v4913
    %v4918 = vsel %vm83, %v4916, 0
    %4920 = vmatprep.subr.mxu0 0.0
    %4921 = vmatpush1.msra.mxu0 0.0
    %4922 = vmatprep.subr.mxu0 0.0
    %4923 = vmatpush1.msra.mxu0 0.0
    %4924 = vmatprep.subr.mxu0 0.0
    %4925 = vmatpush1.msra.mxu0 0.0
    %4926 = vmatprep.subr.mxu0 0.0
    %4927 = vmatpush1.msra.mxu0 0.0
    %4928 = vmatprep.subr.mxu0 0.0
    %4929 = vmatpush1.msra.mxu0 0.0
    %4930 = vmatprep.subr.mxu0 0.0
    %4931 = vmatpush1.msra.mxu0 0.0
    %4932 = vmatprep.subr.mxu0 0.0
    %4933 = vmatpush1.msra.mxu0 0.0
    %4934 = vmatprep.subr.mxu0 0.0
    %4935 = vmatpush1.msra.mxu0 0.0
    %4936 = vmatprep.subr.mxu0 0.0
    %4937 = vmatpush1.msra.mxu0 0.0
    %4938 = vmatprep.subr.mxu0 0.0
    %4939 = vmatpush1.msra.mxu0 0.0
    %4940 = vmatprep.subr.mxu0 0.0
    %4941 = vmatpush1.msra.mxu0 0.0
    %4942 = vmatprep.subr.mxu0 0.0
    %4943 = vmatpush1.msra.mxu0 0.0
    %4944 = vmatprep.subr.mxu0 0.0
    %4945 = vmatpush1.msra.mxu0 %v67
    %4946 = vmatprep.subr.mxu0 0.0
    %4947 = vmatpush1.msra.mxu0 %v66
    %4948 = vmatprep.subr.mxu0 0.0
    %4949 = vmatpush1.msra.mxu0 %v65
    %4950 = vmatprep.subr.mxu0 0.0
    %4951 = vmatpush1.msra.mxu0 %v64
    %4952 = vmatprep.subr.mxu0 0.0
    %4953 = vmatpush2.msra.mxu0 0.0
    %4954 = vmatprep.subr.mxu0 0.0
    %4955 = vmatpush2.msra.mxu0 0.0
    %4956 = vmatprep.subr.mxu0 0.0
    %4957 = vmatpush2.msra.mxu0 0.0
    %4958 = vmatprep.subr.mxu0 0.0
    %4959 = vmatpush2.msra.mxu0 0.0
    %4960 = vmatprep.subr.mxu0 0.0
    %4961 = vmatpush2.msra.mxu0 0.0
    %4962 = vmatprep.subr.mxu0 0.0
    %4963 = vmatpush2.msra.mxu0 0.0
    %4964 = vmatprep.subr.mxu0 0.0
    %4965 = vmatpush2.msra.mxu0 0.0
    %4966 = vmatprep.subr.mxu0 0.0
    %4967 = vmatpush2.msra.mxu0 0.0
    %4968 = vmatprep.subr.mxu0 0.0
    %4969 = vmatpush2.msra.mxu0 0.0
    %4970 = vmatprep.subr.mxu0 0.0
    %4971 = vmatpush2.msra.mxu0 0.0
    %4972 = vmatprep.subr.mxu0 0.0
    %4973 = vmatpush2.msra.mxu0 0.0
    %4974 = vmatprep.subr.mxu0 0.0
    %4975 = vmatpush2.msra.mxu0 0.0
    %4976 = vmatprep.subr.mxu0 0.0
    %4977 = vmatpush2.msra.mxu0 0.0
    %4978 = vmatprep.subr.mxu0 0.0
    %4979 = vmatpush2.msra.mxu0 0.0
    %4980 = vmatprep.subr.mxu0 0.0
    %4981 = vmatpush2.msra.mxu0 0.0
    %4982 = vmatprep.subr.mxu0 0.0
    %4983 = vmatpush2.msra.mxu0 0.0
    %4984 = vmatprep.mubr.f32.mxu0 0.0
    %4985 = vmatmul.mubr.f32.gmra.mxu0 %v4918
    %v4986 = vpop.f32.mrf.mxu0
    %v4987 = vadd.f32 %v80, %v4986
    %v4988 = vpop.f32.mrf.mxu0
    %4989 = vdwg.mxu0
    %v4990 = vmul.f32 %v4838, 0.008333334
    %v4991 = vmul.f32 %v4987, 0.025
    %v4992 = vadd.f32 %v4990, %v4991
    %v4993 = vadd.f32 %v4693, %v4992
    %v4995 = vsel %vm83, %v4993, 0
    %4997 = vmatprep.subr.mxu0 0.0
    %4998 = vmatpush1.msra.mxu0 0.0
    %4999 = vmatprep.subr.mxu0 0.0
    %5000 = vmatpush1.msra.mxu0 0.0
    %5001 = vmatprep.subr.mxu0 0.0
    %5002 = vmatpush1.msra.mxu0 0.0
    %5003 = vmatprep.subr.mxu0 0.0
    %5004 = vmatpush1.msra.mxu0 0.0
    %5005 = vmatprep.subr.mxu0 0.0
    %5006 = vmatpush1.msra.mxu0 0.0
    %5007 = vmatprep.subr.mxu0 0.0
    %5008 = vmatpush1.msra.mxu0 0.0
    %5009 = vmatprep.subr.mxu0 0.0
    %5010 = vmatpush1.msra.mxu0 0.0
    %5011 = vmatprep.subr.mxu0 0.0
    %5012 = vmatpush1.msra.mxu0 0.0
    %5013 = vmatprep.subr.mxu0 0.0
    %5014 = vmatpush1.msra.mxu0 0.0
    %5015 = vmatprep.subr.mxu0 0.0
    %5016 = vmatpush1.msra.mxu0 0.0
    %5017 = vmatprep.subr.mxu0 0.0
    %5018 = vmatpush1.msra.mxu0 0.0
    %5019 = vmatprep.subr.mxu0 0.0
    %5020 = vmatpush1.msra.mxu0 0.0
    %5021 = vmatprep.subr.mxu0 0.0
    %5022 = vmatpush1.msra.mxu0 %v63
    %5023 = vmatprep.subr.mxu0 0.0
    %5024 = vmatpush1.msra.mxu0 %v62
    %5025 = vmatprep.subr.mxu0 0.0
    %5026 = vmatpush1.msra.mxu0 %v61
    %5027 = vmatprep.subr.mxu0 0.0
    %5028 = vmatpush1.msra.mxu0 %v60
    %5029 = vmatprep.subr.mxu0 0.0
    %5030 = vmatpush2.msra.mxu0 0.0
    %5031 = vmatprep.subr.mxu0 0.0
    %5032 = vmatpush2.msra.mxu0 0.0
    %5033 = vmatprep.subr.mxu0 0.0
    %5034 = vmatpush2.msra.mxu0 0.0
    %5035 = vmatprep.subr.mxu0 0.0
    %5036 = vmatpush2.msra.mxu0 0.0
    %5037 = vmatprep.subr.mxu0 0.0
    %5038 = vmatpush2.msra.mxu0 0.0
    %5039 = vmatprep.subr.mxu0 0.0
    %5040 = vmatpush2.msra.mxu0 0.0
    %5041 = vmatprep.subr.mxu0 0.0
    %5042 = vmatpush2.msra.mxu0 0.0
    %5043 = vmatprep.subr.mxu0 0.0
    %5044 = vmatpush2.msra.mxu0 0.0
    %5045 = vmatprep.subr.mxu0 0.0
    %5046 = vmatpush2.msra.mxu0 0.0
    %5047 = vmatprep.subr.mxu0 0.0
    %5048 = vmatpush2.msra.mxu0 0.0
    %5049 = vmatprep.subr.mxu0 0.0
    %5050 = vmatpush2.msra.mxu0 0.0
    %5051 = vmatprep.subr.mxu0 0.0
    %5052 = vmatpush2.msra.mxu0 0.0
    %5053 = vmatprep.subr.mxu0 0.0
    %5054 = vmatpush2.msra.mxu0 0.0
    %5055 = vmatprep.subr.mxu0 0.0
    %5056 = vmatpush2.msra.mxu0 0.0
    %5057 = vmatprep.subr.mxu0 0.0
    %5058 = vmatpush2.msra.mxu0 0.0
    %5059 = vmatprep.subr.mxu0 0.0
    %5060 = vmatpush2.msra.mxu0 0.0
    %5061 = vmatprep.mubr.f32.mxu0 0.0
    %5062 = vmatmul.mubr.f32.gmra.mxu0 %v4995
    %v5063 = vpop.f32.mrf.mxu0
    %v5064 = vadd.f32 %v73, %v5063
    %v5065 = vpop.f32.mrf.mxu0
    %5066 = vdwg.mxu0
    %v5067 = vtanh.pop %v5064
    %v5069 = vsel %vm83, %v5067, 0
    %5071 = vmatprep.subr.mxu0 0.0
    %5072 = vmatpush1.msra.mxu0 0.0
    %5073 = vmatprep.subr.mxu0 0.0
    %5074 = vmatpush1.msra.mxu0 0.0
    %5075 = vmatprep.subr.mxu0 0.0
    %5076 = vmatpush1.msra.mxu0 0.0
    %5077 = vmatprep.subr.mxu0 0.0
    %5078 = vmatpush1.msra.mxu0 0.0
    %5079 = vmatprep.subr.mxu0 0.0
    %5080 = vmatpush1.msra.mxu0 0.0
    %5081 = vmatprep.subr.mxu0 0.0
    %5082 = vmatpush1.msra.mxu0 0.0
    %5083 = vmatprep.subr.mxu0 0.0
    %5084 = vmatpush1.msra.mxu0 0.0
    %5085 = vmatprep.subr.mxu0 0.0
    %5086 = vmatpush1.msra.mxu0 0.0
    %5087 = vmatprep.subr.mxu0 0.0
    %5088 = vmatpush1.msra.mxu0 0.0
    %5089 = vmatprep.subr.mxu0 0.0
    %5090 = vmatpush1.msra.mxu0 0.0
    %5091 = vmatprep.subr.mxu0 0.0
    %5092 = vmatpush1.msra.mxu0 0.0
    %5093 = vmatprep.subr.mxu0 0.0
    %5094 = vmatpush1.msra.mxu0 0.0
    %5095 = vmatprep.subr.mxu0 0.0
    %5096 = vmatpush1.msra.mxu0 %v67
    %5097 = vmatprep.subr.mxu0 0.0
    %5098 = vmatpush1.msra.mxu0 %v66
    %5099 = vmatprep.subr.mxu0 0.0
    %5100 = vmatpush1.msra.mxu0 %v65
    %5101 = vmatprep.subr.mxu0 0.0
    %5102 = vmatpush1.msra.mxu0 %v64
    %5103 = vmatprep.subr.mxu0 0.0
    %5104 = vmatpush2.msra.mxu0 0.0
    %5105 = vmatprep.subr.mxu0 0.0
    %5106 = vmatpush2.msra.mxu0 0.0
    %5107 = vmatprep.subr.mxu0 0.0
    %5108 = vmatpush2.msra.mxu0 0.0
    %5109 = vmatprep.subr.mxu0 0.0
    %5110 = vmatpush2.msra.mxu0 0.0
    %5111 = vmatprep.subr.mxu0 0.0
    %5112 = vmatpush2.msra.mxu0 0.0
    %5113 = vmatprep.subr.mxu0 0.0
    %5114 = vmatpush2.msra.mxu0 0.0
    %5115 = vmatprep.subr.mxu0 0.0
    %5116 = vmatpush2.msra.mxu0 0.0
    %5117 = vmatprep.subr.mxu0 0.0
    %5118 = vmatpush2.msra.mxu0 0.0
    %5119 = vmatprep.subr.mxu0 0.0
    %5120 = vmatpush2.msra.mxu0 0.0
    %5121 = vmatprep.subr.mxu0 0.0
    %5122 = vmatpush2.msra.mxu0 0.0
    %5123 = vmatprep.subr.mxu0 0.0
    %5124 = vmatpush2.msra.mxu0 0.0
    %5125 = vmatprep.subr.mxu0 0.0
    %5126 = vmatpush2.msra.mxu0 0.0
    %5127 = vmatprep.subr.mxu0 0.0
    %5128 = vmatpush2.msra.mxu0 0.0
    %5129 = vmatprep.subr.mxu0 0.0
    %5130 = vmatpush2.msra.mxu0 0.0
    %5131 = vmatprep.subr.mxu0 0.0
    %5132 = vmatpush2.msra.mxu0 0.0
    %5133 = vmatprep.subr.mxu0 0.0
    %5134 = vmatpush2.msra.mxu0 0.0
    %5135 = vmatprep.mubr.f32.mxu0 0.0
    %5136 = vmatmul.mubr.f32.gmra.mxu0 %v5069
    %v5137 = vpop.f32.mrf.mxu0
    %v5138 = vadd.f32 %v80, %v5137
    %v5139 = vpop.f32.mrf.mxu0
    %5140 = vdwg.mxu0
    %v5141 = vmul.f32 %v4838, 0.108641975
    %v5142 = vmul.f32 %v4987, -0.4148148
    %v5143 = vadd.f32 %v5141, %v5142
    %v5144 = vmul.f32 %v5138, 0.39506173
    %v5145 = vadd.f32 %v5143, %v5144
    %v5146 = vadd.f32 %v4693, %v5145
    %v5148 = vsel %vm83, %v5146, 0
    %5150 = vmatprep.subr.mxu0 0.0
    %5151 = vmatpush1.msra.mxu0 0.0
    %5152 = vmatprep.subr.mxu0 0.0
    %5153 = vmatpush1.msra.mxu0 0.0
    %5154 = vmatprep.subr.mxu0 0.0
    %5155 = vmatpush1.msra.mxu0 0.0
    %5156 = vmatprep.subr.mxu0 0.0
    %5157 = vmatpush1.msra.mxu0 0.0
    %5158 = vmatprep.subr.mxu0 0.0
    %5159 = vmatpush1.msra.mxu0 0.0
    %5160 = vmatprep.subr.mxu0 0.0
    %5161 = vmatpush1.msra.mxu0 0.0
    %5162 = vmatprep.subr.mxu0 0.0
    %5163 = vmatpush1.msra.mxu0 0.0
    %5164 = vmatprep.subr.mxu0 0.0
    %5165 = vmatpush1.msra.mxu0 0.0
    %5166 = vmatprep.subr.mxu0 0.0
    %5167 = vmatpush1.msra.mxu0 0.0
    %5168 = vmatprep.subr.mxu0 0.0
    %5169 = vmatpush1.msra.mxu0 0.0
    %5170 = vmatprep.subr.mxu0 0.0
    %5171 = vmatpush1.msra.mxu0 0.0
    %5172 = vmatprep.subr.mxu0 0.0
    %5173 = vmatpush1.msra.mxu0 0.0
    %5174 = vmatprep.subr.mxu0 0.0
    %5175 = vmatpush1.msra.mxu0 %v63
    %5176 = vmatprep.subr.mxu0 0.0
    %5177 = vmatpush1.msra.mxu0 %v62
    %5178 = vmatprep.subr.mxu0 0.0
    %5179 = vmatpush1.msra.mxu0 %v61
    %5180 = vmatprep.subr.mxu0 0.0
    %5181 = vmatpush1.msra.mxu0 %v60
    %5182 = vmatprep.subr.mxu0 0.0
    %5183 = vmatpush2.msra.mxu0 0.0
    %5184 = vmatprep.subr.mxu0 0.0
    %5185 = vmatpush2.msra.mxu0 0.0
    %5186 = vmatprep.subr.mxu0 0.0
    %5187 = vmatpush2.msra.mxu0 0.0
    %5188 = vmatprep.subr.mxu0 0.0
    %5189 = vmatpush2.msra.mxu0 0.0
    %5190 = vmatprep.subr.mxu0 0.0
    %5191 = vmatpush2.msra.mxu0 0.0
    %5192 = vmatprep.subr.mxu0 0.0
    %5193 = vmatpush2.msra.mxu0 0.0
    %5194 = vmatprep.subr.mxu0 0.0
    %5195 = vmatpush2.msra.mxu0 0.0
    %5196 = vmatprep.subr.mxu0 0.0
    %5197 = vmatpush2.msra.mxu0 0.0
    %5198 = vmatprep.subr.mxu0 0.0
    %5199 = vmatpush2.msra.mxu0 0.0
    %5200 = vmatprep.subr.mxu0 0.0
    %5201 = vmatpush2.msra.mxu0 0.0
    %5202 = vmatprep.subr.mxu0 0.0
    %5203 = vmatpush2.msra.mxu0 0.0
    %5204 = vmatprep.subr.mxu0 0.0
    %5205 = vmatpush2.msra.mxu0 0.0
    %5206 = vmatprep.subr.mxu0 0.0
    %5207 = vmatpush2.msra.mxu0 0.0
    %5208 = vmatprep.subr.mxu0 0.0
    %5209 = vmatpush2.msra.mxu0 0.0
    %5210 = vmatprep.subr.mxu0 0.0
    %5211 = vmatpush2.msra.mxu0 0.0
    %5212 = vmatprep.subr.mxu0 0.0
    %5213 = vmatpush2.msra.mxu0 0.0
    %5214 = vmatprep.mubr.f32.mxu0 0.0
    %5215 = vmatmul.mubr.f32.gmra.mxu0 %v5148
    %v5216 = vpop.f32.mrf.mxu0
    %v5217 = vadd.f32 %v73, %v5216
    %v5218 = vpop.f32.mrf.mxu0
    %5219 = vdwg.mxu0
    %v5220 = vtanh.pop %v5217
    %v5222 = vsel %vm83, %v5220, 0
    %5224 = vmatprep.subr.mxu0 0.0
    %5225 = vmatpush1.msra.mxu0 0.0
    %5226 = vmatprep.subr.mxu0 0.0
    %5227 = vmatpush1.msra.mxu0 0.0
    %5228 = vmatprep.subr.mxu0 0.0
    %5229 = vmatpush1.msra.mxu0 0.0
    %5230 = vmatprep.subr.mxu0 0.0
    %5231 = vmatpush1.msra.mxu0 0.0
    %5232 = vmatprep.subr.mxu0 0.0
    %5233 = vmatpush1.msra.mxu0 0.0
    %5234 = vmatprep.subr.mxu0 0.0
    %5235 = vmatpush1.msra.mxu0 0.0
    %5236 = vmatprep.subr.mxu0 0.0
    %5237 = vmatpush1.msra.mxu0 0.0
    %5238 = vmatprep.subr.mxu0 0.0
    %5239 = vmatpush1.msra.mxu0 0.0
    %5240 = vmatprep.subr.mxu0 0.0
    %5241 = vmatpush1.msra.mxu0 0.0
    %5242 = vmatprep.subr.mxu0 0.0
    %5243 = vmatpush1.msra.mxu0 0.0
    %5244 = vmatprep.subr.mxu0 0.0
    %5245 = vmatpush1.msra.mxu0 0.0
    %5246 = vmatprep.subr.mxu0 0.0
    %5247 = vmatpush1.msra.mxu0 0.0
    %5248 = vmatprep.subr.mxu0 0.0
    %5249 = vmatpush1.msra.mxu0 %v67
    %5250 = vmatprep.subr.mxu0 0.0
    %5251 = vmatpush1.msra.mxu0 %v66
    %5252 = vmatprep.subr.mxu0 0.0
    %5253 = vmatpush1.msra.mxu0 %v65
    %5254 = vmatprep.subr.mxu0 0.0
    %5255 = vmatpush1.msra.mxu0 %v64
    %5256 = vmatprep.subr.mxu0 0.0
    %5257 = vmatpush2.msra.mxu0 0.0
    %5258 = vmatprep.subr.mxu0 0.0
    %5259 = vmatpush2.msra.mxu0 0.0
    %5260 = vmatprep.subr.mxu0 0.0
    %5261 = vmatpush2.msra.mxu0 0.0
    %5262 = vmatprep.subr.mxu0 0.0
    %5263 = vmatpush2.msra.mxu0 0.0
    %5264 = vmatprep.subr.mxu0 0.0
    %5265 = vmatpush2.msra.mxu0 0.0
    %5266 = vmatprep.subr.mxu0 0.0
    %5267 = vmatpush2.msra.mxu0 0.0
    %5268 = vmatprep.subr.mxu0 0.0
    %5269 = vmatpush2.msra.mxu0 0.0
    %5270 = vmatprep.subr.mxu0 0.0
    %5271 = vmatpush2.msra.mxu0 0.0
    %5272 = vmatprep.subr.mxu0 0.0
    %5273 = vmatpush2.msra.mxu0 0.0
    %5274 = vmatprep.subr.mxu0 0.0
    %5275 = vmatpush2.msra.mxu0 0.0
    %5276 = vmatprep.subr.mxu0 0.0
    %5277 = vmatpush2.msra.mxu0 0.0
    %5278 = vmatprep.subr.mxu0 0.0
    %5279 = vmatpush2.msra.mxu0 0.0
    %5280 = vmatprep.subr.mxu0 0.0
    %5281 = vmatpush2.msra.mxu0 0.0
    %5282 = vmatprep.subr.mxu0 0.0
    %5283 = vmatpush2.msra.mxu0 0.0
    %5284 = vmatprep.subr.mxu0 0.0
    %5285 = vmatpush2.msra.mxu0 0.0
    %5286 = vmatprep.subr.mxu0 0.0
    %5287 = vmatpush2.msra.mxu0 0.0
    %5288 = vmatprep.mubr.f32.mxu0 0.0
    %5289 = vmatmul.mubr.f32.gmra.mxu0 %v5222
    %v5290 = vpop.f32.mrf.mxu0
    %v5291 = vadd.f32 %v80, %v5290
    %v5292 = vpop.f32.mrf.mxu0
    %5293 = vdwg.mxu0
    %v5294 = vmul.f32 %v4838, 0.32806653
    %v5295 = vmul.f32 %v4987, -1.2884215
    %v5296 = vadd.f32 %v5294, %v5295
    %v5297 = vmul.f32 %v5138, 1.0914326
    %v5298 = vadd.f32 %v5296, %v5297
    %v5299 = vmul.f32 %v5291, -0.032312147
    %v5300 = vadd.f32 %v5298, %v5299
    %v5301 = vadd.f32 %v4693, %v5300
    %v5303 = vsel %vm83, %v5301, 0
    %5305 = vmatprep.subr.mxu0 0.0
    %5306 = vmatpush1.msra.mxu0 0.0
    %5307 = vmatprep.subr.mxu0 0.0
    %5308 = vmatpush1.msra.mxu0 0.0
    %5309 = vmatprep.subr.mxu0 0.0
    %5310 = vmatpush1.msra.mxu0 0.0
    %5311 = vmatprep.subr.mxu0 0.0
    %5312 = vmatpush1.msra.mxu0 0.0
    %5313 = vmatprep.subr.mxu0 0.0
    %5314 = vmatpush1.msra.mxu0 0.0
    %5315 = vmatprep.subr.mxu0 0.0
    %5316 = vmatpush1.msra.mxu0 0.0
    %5317 = vmatprep.subr.mxu0 0.0
    %5318 = vmatpush1.msra.mxu0 0.0
    %5319 = vmatprep.subr.mxu0 0.0
    %5320 = vmatpush1.msra.mxu0 0.0
    %5321 = vmatprep.subr.mxu0 0.0
    %5322 = vmatpush1.msra.mxu0 0.0
    %5323 = vmatprep.subr.mxu0 0.0
    %5324 = vmatpush1.msra.mxu0 0.0
    %5325 = vmatprep.subr.mxu0 0.0
    %5326 = vmatpush1.msra.mxu0 0.0
    %5327 = vmatprep.subr.mxu0 0.0
    %5328 = vmatpush1.msra.mxu0 0.0
    %5329 = vmatprep.subr.mxu0 0.0
    %5330 = vmatpush1.msra.mxu0 %v63
    %5331 = vmatprep.subr.mxu0 0.0
    %5332 = vmatpush1.msra.mxu0 %v62
    %5333 = vmatprep.subr.mxu0 0.0
    %5334 = vmatpush1.msra.mxu0 %v61
    %5335 = vmatprep.subr.mxu0 0.0
    %5336 = vmatpush1.msra.mxu0 %v60
    %5337 = vmatprep.subr.mxu0 0.0
    %5338 = vmatpush2.msra.mxu0 0.0
    %5339 = vmatprep.subr.mxu0 0.0
    %5340 = vmatpush2.msra.mxu0 0.0
    %5341 = vmatprep.subr.mxu0 0.0
    %5342 = vmatpush2.msra.mxu0 0.0
    %5343 = vmatprep.subr.mxu0 0.0
    %5344 = vmatpush2.msra.mxu0 0.0
    %5345 = vmatprep.subr.mxu0 0.0
    %5346 = vmatpush2.msra.mxu0 0.0
    %5347 = vmatprep.subr.mxu0 0.0
    %5348 = vmatpush2.msra.mxu0 0.0
    %5349 = vmatprep.subr.mxu0 0.0
    %5350 = vmatpush2.msra.mxu0 0.0
    %5351 = vmatprep.subr.mxu0 0.0
    %5352 = vmatpush2.msra.mxu0 0.0
    %5353 = vmatprep.subr.mxu0 0.0
    %5354 = vmatpush2.msra.mxu0 0.0
    %5355 = vmatprep.subr.mxu0 0.0
    %5356 = vmatpush2.msra.mxu0 0.0
    %5357 = vmatprep.subr.mxu0 0.0
    %5358 = vmatpush2.msra.mxu0 0.0
    %5359 = vmatprep.subr.mxu0 0.0
    %5360 = vmatpush2.msra.mxu0 0.0
    %5361 = vmatprep.subr.mxu0 0.0
    %5362 = vmatpush2.msra.mxu0 0.0
    %5363 = vmatprep.subr.mxu0 0.0
    %5364 = vmatpush2.msra.mxu0 0.0
    %5365 = vmatprep.subr.mxu0 0.0
    %5366 = vmatpush2.msra.mxu0 0.0
    %5367 = vmatprep.subr.mxu0 0.0
    %5368 = vmatpush2.msra.mxu0 0.0
    %5369 = vmatprep.mubr.f32.mxu0 0.0
    %5370 = vmatmul.mubr.f32.gmra.mxu0 %v5303
    %v5371 = vpop.f32.mrf.mxu0
    %v5372 = vadd.f32 %v73, %v5371
    %v5373 = vpop.f32.mrf.mxu0
    %5374 = vdwg.mxu0
    %v5375 = vtanh.pop %v5372
    %v5377 = vsel %vm83, %v5375, 0
    %5379 = vmatprep.subr.mxu0 0.0
    %5380 = vmatpush1.msra.mxu0 0.0
    %5381 = vmatprep.subr.mxu0 0.0
    %5382 = vmatpush1.msra.mxu0 0.0
    %5383 = vmatprep.subr.mxu0 0.0
    %5384 = vmatpush1.msra.mxu0 0.0
    %5385 = vmatprep.subr.mxu0 0.0
    %5386 = vmatpush1.msra.mxu0 0.0
    %5387 = vmatprep.subr.mxu0 0.0
    %5388 = vmatpush1.msra.mxu0 0.0
    %5389 = vmatprep.subr.mxu0 0.0
    %5390 = vmatpush1.msra.mxu0 0.0
    %5391 = vmatprep.subr.mxu0 0.0
    %5392 = vmatpush1.msra.mxu0 0.0
    %5393 = vmatprep.subr.mxu0 0.0
    %5394 = vmatpush1.msra.mxu0 0.0
    %5395 = vmatprep.subr.mxu0 0.0
    %5396 = vmatpush1.msra.mxu0 0.0
    %5397 = vmatprep.subr.mxu0 0.0
    %5398 = vmatpush1.msra.mxu0 0.0
    %5399 = vmatprep.subr.mxu0 0.0
    %5400 = vmatpush1.msra.mxu0 0.0
    %5401 = vmatprep.subr.mxu0 0.0
    %5402 = vmatpush1.msra.mxu0 0.0
    %5403 = vmatprep.subr.mxu0 0.0
    %5404 = vmatpush1.msra.mxu0 %v67
    %5405 = vmatprep.subr.mxu0 0.0
    %5406 = vmatpush1.msra.mxu0 %v66
    %5407 = vmatprep.subr.mxu0 0.0
    %5408 = vmatpush1.msra.mxu0 %v65
    %5409 = vmatprep.subr.mxu0 0.0
    %5410 = vmatpush1.msra.mxu0 %v64
    %5411 = vmatprep.subr.mxu0 0.0
    %5412 = vmatpush2.msra.mxu0 0.0
    %5413 = vmatprep.subr.mxu0 0.0
    %5414 = vmatpush2.msra.mxu0 0.0
    %5415 = vmatprep.subr.mxu0 0.0
    %5416 = vmatpush2.msra.mxu0 0.0
    %5417 = vmatprep.subr.mxu0 0.0
    %5418 = vmatpush2.msra.mxu0 0.0
    %5419 = vmatprep.subr.mxu0 0.0
    %5420 = vmatpush2.msra.mxu0 0.0
    %5421 = vmatprep.subr.mxu0 0.0
    %5422 = vmatpush2.msra.mxu0 0.0
    %5423 = vmatprep.subr.mxu0 0.0
    %5424 = vmatpush2.msra.mxu0 0.0
    %5425 = vmatprep.subr.mxu0 0.0
    %5426 = vmatpush2.msra.mxu0 0.0
    %5427 = vmatprep.subr.mxu0 0.0
    %5428 = vmatpush2.msra.mxu0 0.0
    %5429 = vmatprep.subr.mxu0 0.0
    %5430 = vmatpush2.msra.mxu0 0.0
    %5431 = vmatprep.subr.mxu0 0.0
    %5432 = vmatpush2.msra.mxu0 0.0
    %5433 = vmatprep.subr.mxu0 0.0
    %5434 = vmatpush2.msra.mxu0 0.0
    %5435 = vmatprep.subr.mxu0 0.0
    %5436 = vmatpush2.msra.mxu0 0.0
    %5437 = vmatprep.subr.mxu0 0.0
    %5438 = vmatpush2.msra.mxu0 0.0
    %5439 = vmatprep.subr.mxu0 0.0
    %5440 = vmatpush2.msra.mxu0 0.0
    %5441 = vmatprep.subr.mxu0 0.0
    %5442 = vmatpush2.msra.mxu0 0.0
    %5443 = vmatprep.mubr.f32.mxu0 0.0
    %5444 = vmatmul.mubr.f32.gmra.mxu0 %v5377
    %v5445 = vpop.f32.mrf.mxu0
    %v5446 = vadd.f32 %v80, %v5445
    %v5447 = vpop.f32.mrf.mxu0
    %5448 = vdwg.mxu0
    %v5449 = vmul.f32 %v4838, 0.3162528
    %v5450 = vmul.f32 %v4987, -1.1952862
    %v5451 = vadd.f32 %v5449, %v5450
    %v5452 = vmul.f32 %v5138, 0.9896025
    %v5453 = vadd.f32 %v5451, %v5452
    %v5454 = vmul.f32 %v5291, 0.030934343
    %v5455 = vadd.f32 %v5453, %v5454
    %v5456 = vmul.f32 %v5446, -0.030392367
    %v5457 = vadd.f32 %v5455, %v5456
    %v5458 = vadd.f32 %v4693, %v5457
    %v5460 = vsel %vm83, %v5458, 0
    %5462 = vmatprep.subr.mxu0 0.0
    %5463 = vmatpush1.msra.mxu0 0.0
    %5464 = vmatprep.subr.mxu0 0.0
    %5465 = vmatpush1.msra.mxu0 0.0
    %5466 = vmatprep.subr.mxu0 0.0
    %5467 = vmatpush1.msra.mxu0 0.0
    %5468 = vmatprep.subr.mxu0 0.0
    %5469 = vmatpush1.msra.mxu0 0.0
    %5470 = vmatprep.subr.mxu0 0.0
    %5471 = vmatpush1.msra.mxu0 0.0
    %5472 = vmatprep.subr.mxu0 0.0
    %5473 = vmatpush1.msra.mxu0 0.0
    %5474 = vmatprep.subr.mxu0 0.0
    %5475 = vmatpush1.msra.mxu0 0.0
    %5476 = vmatprep.subr.mxu0 0.0
    %5477 = vmatpush1.msra.mxu0 0.0
    %5478 = vmatprep.subr.mxu0 0.0
    %5479 = vmatpush1.msra.mxu0 0.0
    %5480 = vmatprep.subr.mxu0 0.0
    %5481 = vmatpush1.msra.mxu0 0.0
    %5482 = vmatprep.subr.mxu0 0.0
    %5483 = vmatpush1.msra.mxu0 0.0
    %5484 = vmatprep.subr.mxu0 0.0
    %5485 = vmatpush1.msra.mxu0 0.0
    %5486 = vmatprep.subr.mxu0 0.0
    %5487 = vmatpush1.msra.mxu0 %v63
    %5488 = vmatprep.subr.mxu0 0.0
    %5489 = vmatpush1.msra.mxu0 %v62
    %5490 = vmatprep.subr.mxu0 0.0
    %5491 = vmatpush1.msra.mxu0 %v61
    %5492 = vmatprep.subr.mxu0 0.0
    %5493 = vmatpush1.msra.mxu0 %v60
    %5494 = vmatprep.subr.mxu0 0.0
    %5495 = vmatpush2.msra.mxu0 0.0
    %5496 = vmatprep.subr.mxu0 0.0
    %5497 = vmatpush2.msra.mxu0 0.0
    %5498 = vmatprep.subr.mxu0 0.0
    %5499 = vmatpush2.msra.mxu0 0.0
    %5500 = vmatprep.subr.mxu0 0.0
    %5501 = vmatpush2.msra.mxu0 0.0
    %5502 = vmatprep.subr.mxu0 0.0
    %5503 = vmatpush2.msra.mxu0 0.0
    %5504 = vmatprep.subr.mxu0 0.0
    %5505 = vmatpush2.msra.mxu0 0.0
    %5506 = vmatprep.subr.mxu0 0.0
    %5507 = vmatpush2.msra.mxu0 0.0
    %5508 = vmatprep.subr.mxu0 0.0
    %5509 = vmatpush2.msra.mxu0 0.0
    %5510 = vmatprep.subr.mxu0 0.0
    %5511 = vmatpush2.msra.mxu0 0.0
    %5512 = vmatprep.subr.mxu0 0.0
    %5513 = vmatpush2.msra.mxu0 0.0
    %5514 = vmatprep.subr.mxu0 0.0
    %5515 = vmatpush2.msra.mxu0 0.0
    %5516 = vmatprep.subr.mxu0 0.0
    %5517 = vmatpush2.msra.mxu0 0.0
    %5518 = vmatprep.subr.mxu0 0.0
    %5519 = vmatpush2.msra.mxu0 0.0
    %5520 = vmatprep.subr.mxu0 0.0
    %5521 = vmatpush2.msra.mxu0 0.0
    %5522 = vmatprep.subr.mxu0 0.0
    %5523 = vmatpush2.msra.mxu0 0.0
    %5524 = vmatprep.subr.mxu0 0.0
    %5525 = vmatpush2.msra.mxu0 0.0
    %5526 = vmatprep.mubr.f32.mxu0 0.0
    %5527 = vmatmul.mubr.f32.gmra.mxu0 %v5460
    %v5528 = vpop.f32.mrf.mxu0
    %v5529 = vadd.f32 %v73, %v5528
    %v5530 = vpop.f32.mrf.mxu0
    %5531 = vdwg.mxu0
    %v5532 = vtanh.pop %v5529
    %v5534 = vsel %vm83, %v5532, 0
    %5536 = vmatprep.subr.mxu0 0.0
    %5537 = vmatpush1.msra.mxu0 0.0
    %5538 = vmatprep.subr.mxu0 0.0
    %5539 = vmatpush1.msra.mxu0 0.0
    %5540 = vmatprep.subr.mxu0 0.0
    %5541 = vmatpush1.msra.mxu0 0.0
    %5542 = vmatprep.subr.mxu0 0.0
    %5543 = vmatpush1.msra.mxu0 0.0
    %5544 = vmatprep.subr.mxu0 0.0
    %5545 = vmatpush1.msra.mxu0 0.0
    %5546 = vmatprep.subr.mxu0 0.0
    %5547 = vmatpush1.msra.mxu0 0.0
    %5548 = vmatprep.subr.mxu0 0.0
    %5549 = vmatpush1.msra.mxu0 0.0
    %5550 = vmatprep.subr.mxu0 0.0
    %5551 = vmatpush1.msra.mxu0 0.0
    %5552 = vmatprep.subr.mxu0 0.0
    %5553 = vmatpush1.msra.mxu0 0.0
    %5554 = vmatprep.subr.mxu0 0.0
    %5555 = vmatpush1.msra.mxu0 0.0
    %5556 = vmatprep.subr.mxu0 0.0
    %5557 = vmatpush1.msra.mxu0 0.0
    %5558 = vmatprep.subr.mxu0 0.0
    %5559 = vmatpush1.msra.mxu0 0.0
    %5560 = vmatprep.subr.mxu0 0.0
    %5561 = vmatpush1.msra.mxu0 %v67
    %5562 = vmatprep.subr.mxu0 0.0
    %5563 = vmatpush1.msra.mxu0 %v66
    %5564 = vmatprep.subr.mxu0 0.0
    %5565 = vmatpush1.msra.mxu0 %v65
    %5566 = vmatprep.subr.mxu0 0.0
    %5567 = vmatpush1.msra.mxu0 %v64
    %5568 = vmatprep.subr.mxu0 0.0
    %5569 = vmatpush2.msra.mxu0 0.0
    %5570 = vmatprep.subr.mxu0 0.0
    %5571 = vmatpush2.msra.mxu0 0.0
    %5572 = vmatprep.subr.mxu0 0.0
    %5573 = vmatpush2.msra.mxu0 0.0
    %5574 = vmatprep.subr.mxu0 0.0
    %5575 = vmatpush2.msra.mxu0 0.0
    %5576 = vmatprep.subr.mxu0 0.0
    %5577 = vmatpush2.msra.mxu0 0.0
    %5578 = vmatprep.subr.mxu0 0.0
    %5579 = vmatpush2.msra.mxu0 0.0
    %5580 = vmatprep.subr.mxu0 0.0
    %5581 = vmatpush2.msra.mxu0 0.0
    %5582 = vmatprep.subr.mxu0 0.0
    %5583 = vmatpush2.msra.mxu0 0.0
    %5584 = vmatprep.subr.mxu0 0.0
    %5585 = vmatpush2.msra.mxu0 0.0
    %5586 = vmatprep.subr.mxu0 0.0
    %5587 = vmatpush2.msra.mxu0 0.0
    %5588 = vmatprep.subr.mxu0 0.0
    %5589 = vmatpush2.msra.mxu0 0.0
    %5590 = vmatprep.subr.mxu0 0.0
    %5591 = vmatpush2.msra.mxu0 0.0
    %5592 = vmatprep.subr.mxu0 0.0
    %5593 = vmatpush2.msra.mxu0 0.0
    %5594 = vmatprep.subr.mxu0 0.0
    %5595 = vmatpush2.msra.mxu0 0.0
    %5596 = vmatprep.subr.mxu0 0.0
    %5597 = vmatpush2.msra.mxu0 0.0
    %5598 = vmatprep.subr.mxu0 0.0
    %5599 = vmatpush2.msra.mxu0 0.0
    %5600 = vmatprep.mubr.f32.mxu0 0.0
    %5601 = vmatmul.mubr.f32.gmra.mxu0 %v5534
    %v5602 = vpop.f32.mrf.mxu0
    %v5603 = vadd.f32 %v80, %v5602
    %v5604 = vpop.f32.mrf.mxu0
    %5605 = vdwg.mxu0
    %v5606 = vmul.f32 %v4838, 0.010127314
    %v5607 = vmul.f32 %v5138, 0.049915146
    %v5608 = vadd.f32 %v5606, %v5607
    %v5609 = vmul.f32 %v5291, 0.07233796
    %v5610 = vadd.f32 %v5608, %v5609
    %v5611 = vmul.f32 %v5446, -0.035819575
    %v5612 = vadd.f32 %v5610, %v5611
    %v5613 = vmul.f32 %v5603, 0.014550265
    %v5614 = vadd.f32 %v5612, %v5613
    %v5615 = vadd.f32 %v4693, %v5614
    %v5617 = vsel %vm83, %v5615, 0
    %5619 = vmatprep.subr.mxu0 0.0
    %5620 = vmatpush1.msra.mxu0 0.0
    %5621 = vmatprep.subr.mxu0 0.0
    %5622 = vmatpush1.msra.mxu0 0.0
    %5623 = vmatprep.subr.mxu0 0.0
    %5624 = vmatpush1.msra.mxu0 0.0
    %5625 = vmatprep.subr.mxu0 0.0
    %5626 = vmatpush1.msra.mxu0 0.0
    %5627 = vmatprep.subr.mxu0 0.0
    %5628 = vmatpush1.msra.mxu0 0.0
    %5629 = vmatprep.subr.mxu0 0.0
    %5630 = vmatpush1.msra.mxu0 0.0
    %5631 = vmatprep.subr.mxu0 0.0
    %5632 = vmatpush1.msra.mxu0 0.0
    %5633 = vmatprep.subr.mxu0 0.0
    %5634 = vmatpush1.msra.mxu0 0.0
    %5635 = vmatprep.subr.mxu0 0.0
    %5636 = vmatpush1.msra.mxu0 0.0
    %5637 = vmatprep.subr.mxu0 0.0
    %5638 = vmatpush1.msra.mxu0 0.0
    %5639 = vmatprep.subr.mxu0 0.0
    %5640 = vmatpush1.msra.mxu0 0.0
    %5641 = vmatprep.subr.mxu0 0.0
    %5642 = vmatpush1.msra.mxu0 0.0
    %5643 = vmatprep.subr.mxu0 0.0
    %5644 = vmatpush1.msra.mxu0 %v63
    %5645 = vmatprep.subr.mxu0 0.0
    %5646 = vmatpush1.msra.mxu0 %v62
    %5647 = vmatprep.subr.mxu0 0.0
    %5648 = vmatpush1.msra.mxu0 %v61
    %5649 = vmatprep.subr.mxu0 0.0
    %5650 = vmatpush1.msra.mxu0 %v60
    %5651 = vmatprep.subr.mxu0 0.0
    %5652 = vmatpush2.msra.mxu0 0.0
    %5653 = vmatprep.subr.mxu0 0.0
    %5654 = vmatpush2.msra.mxu0 0.0
    %5655 = vmatprep.subr.mxu0 0.0
    %5656 = vmatpush2.msra.mxu0 0.0
    %5657 = vmatprep.subr.mxu0 0.0
    %5658 = vmatpush2.msra.mxu0 0.0
    %5659 = vmatprep.subr.mxu0 0.0
    %5660 = vmatpush2.msra.mxu0 0.0
    %5661 = vmatprep.subr.mxu0 0.0
    %5662 = vmatpush2.msra.mxu0 0.0
    %5663 = vmatprep.subr.mxu0 0.0
    %5664 = vmatpush2.msra.mxu0 0.0
    %5665 = vmatprep.subr.mxu0 0.0
    %5666 = vmatpush2.msra.mxu0 0.0
    %5667 = vmatprep.subr.mxu0 0.0
    %5668 = vmatpush2.msra.mxu0 0.0
    %5669 = vmatprep.subr.mxu0 0.0
    %5670 = vmatpush2.msra.mxu0 0.0
    %5671 = vmatprep.subr.mxu0 0.0
    %5672 = vmatpush2.msra.mxu0 0.0
    %5673 = vmatprep.subr.mxu0 0.0
    %5674 = vmatpush2.msra.mxu0 0.0
    %5675 = vmatprep.subr.mxu0 0.0
    %5676 = vmatpush2.msra.mxu0 0.0
    %5677 = vmatprep.subr.mxu0 0.0
    %5678 = vmatpush2.msra.mxu0 0.0
    %5679 = vmatprep.subr.mxu0 0.0
    %5680 = vmatpush2.msra.mxu0 0.0
    %5681 = vmatprep.subr.mxu0 0.0
    %5682 = vmatpush2.msra.mxu0 0.0
    %5683 = vmatprep.mubr.f32.mxu0 0.0
    %5684 = vmatmul.mubr.f32.gmra.mxu0 %v5617
    %v5685 = vpop.f32.mrf.mxu0
    %v5686 = vadd.f32 %v73, %v5685
    %v5687 = vpop.f32.mrf.mxu0
    %5688 = vdwg.mxu0
    %v5689 = vtanh.pop %v5686
    %v5691 = vsel %vm83, %v5689, 0
    %5693 = vmatprep.subr.mxu0 0.0
    %5694 = vmatpush1.msra.mxu0 0.0
    %5695 = vmatprep.subr.mxu0 0.0
    %5696 = vmatpush1.msra.mxu0 0.0
    %5697 = vmatprep.subr.mxu0 0.0
    %5698 = vmatpush1.msra.mxu0 0.0
    %5699 = vmatprep.subr.mxu0 0.0
    %5700 = vmatpush1.msra.mxu0 0.0
    %5701 = vmatprep.subr.mxu0 0.0
    %5702 = vmatpush1.msra.mxu0 0.0
    %5703 = vmatprep.subr.mxu0 0.0
    %5704 = vmatpush1.msra.mxu0 0.0
    %5705 = vmatprep.subr.mxu0 0.0
    %5706 = vmatpush1.msra.mxu0 0.0
    %5707 = vmatprep.subr.mxu0 0.0
    %5708 = vmatpush1.msra.mxu0 0.0
    %5709 = vmatprep.subr.mxu0 0.0
    %5710 = vmatpush1.msra.mxu0 0.0
    %5711 = vmatprep.subr.mxu0 0.0
    %5712 = vmatpush1.msra.mxu0 0.0
    %5713 = vmatprep.subr.mxu0 0.0
    %5714 = vmatpush1.msra.mxu0 0.0
    %5715 = vmatprep.subr.mxu0 0.0
    %5716 = vmatpush1.msra.mxu0 0.0
    %5717 = vmatprep.subr.mxu0 0.0
    %5718 = vmatpush1.msra.mxu0 %v67
    %5719 = vmatprep.subr.mxu0 0.0
    %5720 = vmatpush1.msra.mxu0 %v66
    %5721 = vmatprep.subr.mxu0 0.0
    %5722 = vmatpush1.msra.mxu0 %v65
    %5723 = vmatprep.subr.mxu0 0.0
    %5724 = vmatpush1.msra.mxu0 %v64
    %5725 = vmatprep.subr.mxu0 0.0
    %5726 = vmatpush2.msra.mxu0 0.0
    %5727 = vmatprep.subr.mxu0 0.0
    %5728 = vmatpush2.msra.mxu0 0.0
    %5729 = vmatprep.subr.mxu0 0.0
    %5730 = vmatpush2.msra.mxu0 0.0
    %5731 = vmatprep.subr.mxu0 0.0
    %5732 = vmatpush2.msra.mxu0 0.0
    %5733 = vmatprep.subr.mxu0 0.0
    %5734 = vmatpush2.msra.mxu0 0.0
    %5735 = vmatprep.subr.mxu0 0.0
    %5736 = vmatpush2.msra.mxu0 0.0
    %5737 = vmatprep.subr.mxu0 0.0
    %5738 = vmatpush2.msra.mxu0 0.0
    %5739 = vmatprep.subr.mxu0 0.0
    %5740 = vmatpush2.msra.mxu0 0.0
    %5741 = vmatprep.subr.mxu0 0.0
    %5742 = vmatpush2.msra.mxu0 0.0
    %5743 = vmatprep.subr.mxu0 0.0
    %5744 = vmatpush2.msra.mxu0 0.0
    %5745 = vmatprep.subr.mxu0 0.0
    %5746 = vmatpush2.msra.mxu0 0.0
    %5747 = vmatprep.subr.mxu0 0.0
    %5748 = vmatpush2.msra.mxu0 0.0
    %5749 = vmatprep.subr.mxu0 0.0
    %5750 = vmatpush2.msra.mxu0 0.0
    %5751 = vmatprep.subr.mxu0 0.0
    %5752 = vmatpush2.msra.mxu0 0.0
    %5753 = vmatprep.subr.mxu0 0.0
    %5754 = vmatpush2.msra.mxu0 0.0
    %5755 = vmatprep.subr.mxu0 0.0
    %5756 = vmatpush2.msra.mxu0 0.0
    %5757 = vmatprep.mubr.f32.mxu0 0.0
    %5758 = vmatmul.mubr.f32.gmra.mxu0 %v5691
    %v5759 = vpop.f32.mrf.mxu0
    %v5760 = vadd.f32 %v80, %v5759
    %v5761 = vpop.f32.mrf.mxu0
    %5762 = vdwg.mxu0
    %v5763 = vmul.f32 %v5760, 0.022222223
    %v5764 = vadd.f32 %v5615, %v5763
    %v5766 = vsel %vm83, %v5764, 0
    %5768 = vmatprep.subr.mxu0 0.0
    %5769 = vmatpush1.msra.mxu0 0.0
    %5770 = vmatprep.subr.mxu0 0.0
    %5771 = vmatpush1.msra.mxu0 0.0
    %5772 = vmatprep.subr.mxu0 0.0
    %5773 = vmatpush1.msra.mxu0 0.0
    %5774 = vmatprep.subr.mxu0 0.0
    %5775 = vmatpush1.msra.mxu0 0.0
    %5776 = vmatprep.subr.mxu0 0.0
    %5777 = vmatpush1.msra.mxu0 0.0
    %5778 = vmatprep.subr.mxu0 0.0
    %5779 = vmatpush1.msra.mxu0 0.0
    %5780 = vmatprep.subr.mxu0 0.0
    %5781 = vmatpush1.msra.mxu0 0.0
    %5782 = vmatprep.subr.mxu0 0.0
    %5783 = vmatpush1.msra.mxu0 0.0
    %5784 = vmatprep.subr.mxu0 0.0
    %5785 = vmatpush1.msra.mxu0 0.0
    %5786 = vmatprep.subr.mxu0 0.0
    %5787 = vmatpush1.msra.mxu0 0.0
    %5788 = vmatprep.subr.mxu0 0.0
    %5789 = vmatpush1.msra.mxu0 0.0
    %5790 = vmatprep.subr.mxu0 0.0
    %5791 = vmatpush1.msra.mxu0 0.0
    %5792 = vmatprep.subr.mxu0 0.0
    %5793 = vmatpush1.msra.mxu0 %v63
    %5794 = vmatprep.subr.mxu0 0.0
    %5795 = vmatpush1.msra.mxu0 %v62
    %5796 = vmatprep.subr.mxu0 0.0
    %5797 = vmatpush1.msra.mxu0 %v61
    %5798 = vmatprep.subr.mxu0 0.0
    %5799 = vmatpush1.msra.mxu0 %v60
    %5800 = vmatprep.subr.mxu0 0.0
    %5801 = vmatpush2.msra.mxu0 0.0
    %5802 = vmatprep.subr.mxu0 0.0
    %5803 = vmatpush2.msra.mxu0 0.0
    %5804 = vmatprep.subr.mxu0 0.0
    %5805 = vmatpush2.msra.mxu0 0.0
    %5806 = vmatprep.subr.mxu0 0.0
    %5807 = vmatpush2.msra.mxu0 0.0
    %5808 = vmatprep.subr.mxu0 0.0
    %5809 = vmatpush2.msra.mxu0 0.0
    %5810 = vmatprep.subr.mxu0 0.0
    %5811 = vmatpush2.msra.mxu0 0.0
    %5812 = vmatprep.subr.mxu0 0.0
    %5813 = vmatpush2.msra.mxu0 0.0
    %5814 = vmatprep.subr.mxu0 0.0
    %5815 = vmatpush2.msra.mxu0 0.0
    %5816 = vmatprep.subr.mxu0 0.0
    %5817 = vmatpush2.msra.mxu0 0.0
    %5818 = vmatprep.subr.mxu0 0.0
    %5819 = vmatpush2.msra.mxu0 0.0
    %5820 = vmatprep.subr.mxu0 0.0
    %5821 = vmatpush2.msra.mxu0 0.0
    %5822 = vmatprep.subr.mxu0 0.0
    %5823 = vmatpush2.msra.mxu0 0.0
    %5824 = vmatprep.subr.mxu0 0.0
    %5825 = vmatpush2.msra.mxu0 0.0
    %5826 = vmatprep.subr.mxu0 0.0
    %5827 = vmatpush2.msra.mxu0 0.0
    %5828 = vmatprep.subr.mxu0 0.0
    %5829 = vmatpush2.msra.mxu0 0.0
    %5830 = vmatprep.subr.mxu0 0.0
    %5831 = vmatpush2.msra.mxu0 0.0
    %5832 = vmatprep.mubr.f32.mxu0 0.0
    %5833 = vmatmul.mubr.f32.gmra.mxu0 %v5766
    %v5834 = vpop.f32.mrf.mxu0
    %v5835 = vadd.f32 %v73, %v5834
    %v5836 = vpop.f32.mrf.mxu0
    %5837 = vdwg.mxu0
    %v5838 = vtanh.pop %v5835
    %v5840 = vsel %vm83, %v5838, 0
    %5842 = vmatprep.subr.mxu0 0.0
    %5843 = vmatpush1.msra.mxu0 0.0
    %5844 = vmatprep.subr.mxu0 0.0
    %5845 = vmatpush1.msra.mxu0 0.0
    %5846 = vmatprep.subr.mxu0 0.0
    %5847 = vmatpush1.msra.mxu0 0.0
    %5848 = vmatprep.subr.mxu0 0.0
    %5849 = vmatpush1.msra.mxu0 0.0
    %5850 = vmatprep.subr.mxu0 0.0
    %5851 = vmatpush1.msra.mxu0 0.0
    %5852 = vmatprep.subr.mxu0 0.0
    %5853 = vmatpush1.msra.mxu0 0.0
    %5854 = vmatprep.subr.mxu0 0.0
    %5855 = vmatpush1.msra.mxu0 0.0
    %5856 = vmatprep.subr.mxu0 0.0
    %5857 = vmatpush1.msra.mxu0 0.0
    %5858 = vmatprep.subr.mxu0 0.0
    %5859 = vmatpush1.msra.mxu0 0.0
    %5860 = vmatprep.subr.mxu0 0.0
    %5861 = vmatpush1.msra.mxu0 0.0
    %5862 = vmatprep.subr.mxu0 0.0
    %5863 = vmatpush1.msra.mxu0 0.0
    %5864 = vmatprep.subr.mxu0 0.0
    %5865 = vmatpush1.msra.mxu0 0.0
    %5866 = vmatprep.subr.mxu0 0.0
    %5867 = vmatpush1.msra.mxu0 %v67
    %5868 = vmatprep.subr.mxu0 0.0
    %5869 = vmatpush1.msra.mxu0 %v66
    %5870 = vmatprep.subr.mxu0 0.0
    %5871 = vmatpush1.msra.mxu0 %v65
    %5872 = vmatprep.subr.mxu0 0.0
    %5873 = vmatpush1.msra.mxu0 %v64
    %5874 = vmatprep.subr.mxu0 0.0
    %5875 = vmatpush2.msra.mxu0 0.0
    %5876 = vmatprep.subr.mxu0 0.0
    %5877 = vmatpush2.msra.mxu0 0.0
    %5878 = vmatprep.subr.mxu0 0.0
    %5879 = vmatpush2.msra.mxu0 0.0
    %5880 = vmatprep.subr.mxu0 0.0
    %5881 = vmatpush2.msra.mxu0 0.0
    %5882 = vmatprep.subr.mxu0 0.0
    %5883 = vmatpush2.msra.mxu0 0.0
    %5884 = vmatprep.subr.mxu0 0.0
    %5885 = vmatpush2.msra.mxu0 0.0
    %5886 = vmatprep.subr.mxu0 0.0
    %5887 = vmatpush2.msra.mxu0 0.0
    %5888 = vmatprep.subr.mxu0 0.0
    %5889 = vmatpush2.msra.mxu0 0.0
    %5890 = vmatprep.subr.mxu0 0.0
    %5891 = vmatpush2.msra.mxu0 0.0
    %5892 = vmatprep.subr.mxu0 0.0
    %5893 = vmatpush2.msra.mxu0 0.0
    %5894 = vmatprep.subr.mxu0 0.0
    %5895 = vmatpush2.msra.mxu0 0.0
    %5896 = vmatprep.subr.mxu0 0.0
    %5897 = vmatpush2.msra.mxu0 0.0
    %5898 = vmatprep.subr.mxu0 0.0
    %5899 = vmatpush2.msra.mxu0 0.0
    %5900 = vmatprep.subr.mxu0 0.0
    %5901 = vmatpush2.msra.mxu0 0.0
    %5902 = vmatprep.subr.mxu0 0.0
    %5903 = vmatpush2.msra.mxu0 0.0
    %5904 = vmatprep.subr.mxu0 0.0
    %5905 = vmatpush2.msra.mxu0 0.0
    %5906 = vmatprep.mubr.f32.mxu0 0.0
    %5907 = vmatmul.mubr.f32.gmra.mxu0 %v5840
    %v5908 = vpop.f32.mrf.mxu0
    %v5909 = vadd.f32 %v80, %v5908
    %v5910 = vpop.f32.mrf.mxu0
    %5911 = vdwg.mxu0
    %v5912 = vmul.f32 %v5760, 0.008333334
    %v5913 = vmul.f32 %v5909, 0.025
    %v5914 = vadd.f32 %v5912, %v5913
    %v5915 = vadd.f32 %v5615, %v5914
    %v5917 = vsel %vm83, %v5915, 0
    %5919 = vmatprep.subr.mxu0 0.0
    %5920 = vmatpush1.msra.mxu0 0.0
    %5921 = vmatprep.subr.mxu0 0.0
    %5922 = vmatpush1.msra.mxu0 0.0
    %5923 = vmatprep.subr.mxu0 0.0
    %5924 = vmatpush1.msra.mxu0 0.0
    %5925 = vmatprep.subr.mxu0 0.0
    %5926 = vmatpush1.msra.mxu0 0.0
    %5927 = vmatprep.subr.mxu0 0.0
    %5928 = vmatpush1.msra.mxu0 0.0
    %5929 = vmatprep.subr.mxu0 0.0
    %5930 = vmatpush1.msra.mxu0 0.0
    %5931 = vmatprep.subr.mxu0 0.0
    %5932 = vmatpush1.msra.mxu0 0.0
    %5933 = vmatprep.subr.mxu0 0.0
    %5934 = vmatpush1.msra.mxu0 0.0
    %5935 = vmatprep.subr.mxu0 0.0
    %5936 = vmatpush1.msra.mxu0 0.0
    %5937 = vmatprep.subr.mxu0 0.0
    %5938 = vmatpush1.msra.mxu0 0.0
    %5939 = vmatprep.subr.mxu0 0.0
    %5940 = vmatpush1.msra.mxu0 0.0
    %5941 = vmatprep.subr.mxu0 0.0
    %5942 = vmatpush1.msra.mxu0 0.0
    %5943 = vmatprep.subr.mxu0 0.0
    %5944 = vmatpush1.msra.mxu0 %v63
    %5945 = vmatprep.subr.mxu0 0.0
    %5946 = vmatpush1.msra.mxu0 %v62
    %5947 = vmatprep.subr.mxu0 0.0
    %5948 = vmatpush1.msra.mxu0 %v61
    %5949 = vmatprep.subr.mxu0 0.0
    %5950 = vmatpush1.msra.mxu0 %v60
    %5951 = vmatprep.subr.mxu0 0.0
    %5952 = vmatpush2.msra.mxu0 0.0
    %5953 = vmatprep.subr.mxu0 0.0
    %5954 = vmatpush2.msra.mxu0 0.0
    %5955 = vmatprep.subr.mxu0 0.0
    %5956 = vmatpush2.msra.mxu0 0.0
    %5957 = vmatprep.subr.mxu0 0.0
    %5958 = vmatpush2.msra.mxu0 0.0
    %5959 = vmatprep.subr.mxu0 0.0
    %5960 = vmatpush2.msra.mxu0 0.0
    %5961 = vmatprep.subr.mxu0 0.0
    %5962 = vmatpush2.msra.mxu0 0.0
    %5963 = vmatprep.subr.mxu0 0.0
    %5964 = vmatpush2.msra.mxu0 0.0
    %5965 = vmatprep.subr.mxu0 0.0
    %5966 = vmatpush2.msra.mxu0 0.0
    %5967 = vmatprep.subr.mxu0 0.0
    %5968 = vmatpush2.msra.mxu0 0.0
    %5969 = vmatprep.subr.mxu0 0.0
    %5970 = vmatpush2.msra.mxu0 0.0
    %5971 = vmatprep.subr.mxu0 0.0
    %5972 = vmatpush2.msra.mxu0 0.0
    %5973 = vmatprep.subr.mxu0 0.0
    %5974 = vmatpush2.msra.mxu0 0.0
    %5975 = vmatprep.subr.mxu0 0.0
    %5976 = vmatpush2.msra.mxu0 0.0
    %5977 = vmatprep.subr.mxu0 0.0
    %5978 = vmatpush2.msra.mxu0 0.0
    %5979 = vmatprep.subr.mxu0 0.0
    %5980 = vmatpush2.msra.mxu0 0.0
    %5981 = vmatprep.subr.mxu0 0.0
    %5982 = vmatpush2.msra.mxu0 0.0
    %5983 = vmatprep.mubr.f32.mxu0 0.0
    %5984 = vmatmul.mubr.f32.gmra.mxu0 %v5917
    %v5985 = vpop.f32.mrf.mxu0
    %v5986 = vadd.f32 %v73, %v5985
    %v5987 = vpop.f32.mrf.mxu0
    %5988 = vdwg.mxu0
    %v5989 = vtanh.pop %v5986
    %v5991 = vsel %vm83, %v5989, 0
    %5993 = vmatprep.subr.mxu0 0.0
    %5994 = vmatpush1.msra.mxu0 0.0
    %5995 = vmatprep.subr.mxu0 0.0
    %5996 = vmatpush1.msra.mxu0 0.0
    %5997 = vmatprep.subr.mxu0 0.0
    %5998 = vmatpush1.msra.mxu0 0.0
    %5999 = vmatprep.subr.mxu0 0.0
    %6000 = vmatpush1.msra.mxu0 0.0
    %6001 = vmatprep.subr.mxu0 0.0
    %6002 = vmatpush1.msra.mxu0 0.0
    %6003 = vmatprep.subr.mxu0 0.0
    %6004 = vmatpush1.msra.mxu0 0.0
    %6005 = vmatprep.subr.mxu0 0.0
    %6006 = vmatpush1.msra.mxu0 0.0
    %6007 = vmatprep.subr.mxu0 0.0
    %6008 = vmatpush1.msra.mxu0 0.0
    %6009 = vmatprep.subr.mxu0 0.0
    %6010 = vmatpush1.msra.mxu0 0.0
    %6011 = vmatprep.subr.mxu0 0.0
    %6012 = vmatpush1.msra.mxu0 0.0
    %6013 = vmatprep.subr.mxu0 0.0
    %6014 = vmatpush1.msra.mxu0 0.0
    %6015 = vmatprep.subr.mxu0 0.0
    %6016 = vmatpush1.msra.mxu0 0.0
    %6017 = vmatprep.subr.mxu0 0.0
    %6018 = vmatpush1.msra.mxu0 %v67
    %6019 = vmatprep.subr.mxu0 0.0
    %6020 = vmatpush1.msra.mxu0 %v66
    %6021 = vmatprep.subr.mxu0 0.0
    %6022 = vmatpush1.msra.mxu0 %v65
    %6023 = vmatprep.subr.mxu0 0.0
    %6024 = vmatpush1.msra.mxu0 %v64
    %6025 = vmatprep.subr.mxu0 0.0
    %6026 = vmatpush2.msra.mxu0 0.0
    %6027 = vmatprep.subr.mxu0 0.0
    %6028 = vmatpush2.msra.mxu0 0.0
    %6029 = vmatprep.subr.mxu0 0.0
    %6030 = vmatpush2.msra.mxu0 0.0
    %6031 = vmatprep.subr.mxu0 0.0
    %6032 = vmatpush2.msra.mxu0 0.0
    %6033 = vmatprep.subr.mxu0 0.0
    %6034 = vmatpush2.msra.mxu0 0.0
    %6035 = vmatprep.subr.mxu0 0.0
    %6036 = vmatpush2.msra.mxu0 0.0
    %6037 = vmatprep.subr.mxu0 0.0
    %6038 = vmatpush2.msra.mxu0 0.0
    %6039 = vmatprep.subr.mxu0 0.0
    %6040 = vmatpush2.msra.mxu0 0.0
    %6041 = vmatprep.subr.mxu0 0.0
    %6042 = vmatpush2.msra.mxu0 0.0
    %6043 = vmatprep.subr.mxu0 0.0
    %6044 = vmatpush2.msra.mxu0 0.0
    %6045 = vmatprep.subr.mxu0 0.0
    %6046 = vmatpush2.msra.mxu0 0.0
    %6047 = vmatprep.subr.mxu0 0.0
    %6048 = vmatpush2.msra.mxu0 0.0
    %6049 = vmatprep.subr.mxu0 0.0
    %6050 = vmatpush2.msra.mxu0 0.0
    %6051 = vmatprep.subr.mxu0 0.0
    %6052 = vmatpush2.msra.mxu0 0.0
    %6053 = vmatprep.subr.mxu0 0.0
    %6054 = vmatpush2.msra.mxu0 0.0
    %6055 = vmatprep.subr.mxu0 0.0
    %6056 = vmatpush2.msra.mxu0 0.0
    %6057 = vmatprep.mubr.f32.mxu0 0.0
    %6058 = vmatmul.mubr.f32.gmra.mxu0 %v5991
    %v6059 = vpop.f32.mrf.mxu0
    %v6060 = vadd.f32 %v80, %v6059
    %v6061 = vpop.f32.mrf.mxu0
    %6062 = vdwg.mxu0
    %v6063 = vmul.f32 %v5760, 0.108641975
    %v6064 = vmul.f32 %v5909, -0.4148148
    %v6065 = vadd.f32 %v6063, %v6064
    %v6066 = vmul.f32 %v6060, 0.39506173
    %v6067 = vadd.f32 %v6065, %v6066
    %v6068 = vadd.f32 %v5615, %v6067
    %v6070 = vsel %vm83, %v6068, 0
    %6072 = vmatprep.subr.mxu0 0.0
    %6073 = vmatpush1.msra.mxu0 0.0
    %6074 = vmatprep.subr.mxu0 0.0
    %6075 = vmatpush1.msra.mxu0 0.0
    %6076 = vmatprep.subr.mxu0 0.0
    %6077 = vmatpush1.msra.mxu0 0.0
    %6078 = vmatprep.subr.mxu0 0.0
    %6079 = vmatpush1.msra.mxu0 0.0
    %6080 = vmatprep.subr.mxu0 0.0
    %6081 = vmatpush1.msra.mxu0 0.0
    %6082 = vmatprep.subr.mxu0 0.0
    %6083 = vmatpush1.msra.mxu0 0.0
    %6084 = vmatprep.subr.mxu0 0.0
    %6085 = vmatpush1.msra.mxu0 0.0
    %6086 = vmatprep.subr.mxu0 0.0
    %6087 = vmatpush1.msra.mxu0 0.0
    %6088 = vmatprep.subr.mxu0 0.0
    %6089 = vmatpush1.msra.mxu0 0.0
    %6090 = vmatprep.subr.mxu0 0.0
    %6091 = vmatpush1.msra.mxu0 0.0
    %6092 = vmatprep.subr.mxu0 0.0
    %6093 = vmatpush1.msra.mxu0 0.0
    %6094 = vmatprep.subr.mxu0 0.0
    %6095 = vmatpush1.msra.mxu0 0.0
    %6096 = vmatprep.subr.mxu0 0.0
    %6097 = vmatpush1.msra.mxu0 %v63
    %6098 = vmatprep.subr.mxu0 0.0
    %6099 = vmatpush1.msra.mxu0 %v62
    %6100 = vmatprep.subr.mxu0 0.0
    %6101 = vmatpush1.msra.mxu0 %v61
    %6102 = vmatprep.subr.mxu0 0.0
    %6103 = vmatpush1.msra.mxu0 %v60
    %6104 = vmatprep.subr.mxu0 0.0
    %6105 = vmatpush2.msra.mxu0 0.0
    %6106 = vmatprep.subr.mxu0 0.0
    %6107 = vmatpush2.msra.mxu0 0.0
    %6108 = vmatprep.subr.mxu0 0.0
    %6109 = vmatpush2.msra.mxu0 0.0
    %6110 = vmatprep.subr.mxu0 0.0
    %6111 = vmatpush2.msra.mxu0 0.0
    %6112 = vmatprep.subr.mxu0 0.0
    %6113 = vmatpush2.msra.mxu0 0.0
    %6114 = vmatprep.subr.mxu0 0.0
    %6115 = vmatpush2.msra.mxu0 0.0
    %6116 = vmatprep.subr.mxu0 0.0
    %6117 = vmatpush2.msra.mxu0 0.0
    %6118 = vmatprep.subr.mxu0 0.0
    %6119 = vmatpush2.msra.mxu0 0.0
    %6120 = vmatprep.subr.mxu0 0.0
    %6121 = vmatpush2.msra.mxu0 0.0
    %6122 = vmatprep.subr.mxu0 0.0
    %6123 = vmatpush2.msra.mxu0 0.0
    %6124 = vmatprep.subr.mxu0 0.0
    %6125 = vmatpush2.msra.mxu0 0.0
    %6126 = vmatprep.subr.mxu0 0.0
    %6127 = vmatpush2.msra.mxu0 0.0
    %6128 = vmatprep.subr.mxu0 0.0
    %6129 = vmatpush2.msra.mxu0 0.0
    %6130 = vmatprep.subr.mxu0 0.0
    %6131 = vmatpush2.msra.mxu0 0.0
    %6132 = vmatprep.subr.mxu0 0.0
    %6133 = vmatpush2.msra.mxu0 0.0
    %6134 = vmatprep.subr.mxu0 0.0
    %6135 = vmatpush2.msra.mxu0 0.0
    %6136 = vmatprep.mubr.f32.mxu0 0.0
    %6137 = vmatmul.mubr.f32.gmra.mxu0 %v6070
    %v6138 = vpop.f32.mrf.mxu0
    %v6139 = vadd.f32 %v73, %v6138
    %v6140 = vpop.f32.mrf.mxu0
    %6141 = vdwg.mxu0
    %v6142 = vtanh.pop %v6139
    %v6144 = vsel %vm83, %v6142, 0
    %6146 = vmatprep.subr.mxu0 0.0
    %6147 = vmatpush1.msra.mxu0 0.0
    %6148 = vmatprep.subr.mxu0 0.0
    %6149 = vmatpush1.msra.mxu0 0.0
    %6150 = vmatprep.subr.mxu0 0.0
    %6151 = vmatpush1.msra.mxu0 0.0
    %6152 = vmatprep.subr.mxu0 0.0
    %6153 = vmatpush1.msra.mxu0 0.0
    %6154 = vmatprep.subr.mxu0 0.0
    %6155 = vmatpush1.msra.mxu0 0.0
    %6156 = vmatprep.subr.mxu0 0.0
    %6157 = vmatpush1.msra.mxu0 0.0
    %6158 = vmatprep.subr.mxu0 0.0
    %6159 = vmatpush1.msra.mxu0 0.0
    %6160 = vmatprep.subr.mxu0 0.0
    %6161 = vmatpush1.msra.mxu0 0.0
    %6162 = vmatprep.subr.mxu0 0.0
    %6163 = vmatpush1.msra.mxu0 0.0
    %6164 = vmatprep.subr.mxu0 0.0
    %6165 = vmatpush1.msra.mxu0 0.0
    %6166 = vmatprep.subr.mxu0 0.0
    %6167 = vmatpush1.msra.mxu0 0.0
    %6168 = vmatprep.subr.mxu0 0.0
    %6169 = vmatpush1.msra.mxu0 0.0
    %6170 = vmatprep.subr.mxu0 0.0
    %6171 = vmatpush1.msra.mxu0 %v67
    %6172 = vmatprep.subr.mxu0 0.0
    %6173 = vmatpush1.msra.mxu0 %v66
    %6174 = vmatprep.subr.mxu0 0.0
    %6175 = vmatpush1.msra.mxu0 %v65
    %6176 = vmatprep.subr.mxu0 0.0
    %6177 = vmatpush1.msra.mxu0 %v64
    %6178 = vmatprep.subr.mxu0 0.0
    %6179 = vmatpush2.msra.mxu0 0.0
    %6180 = vmatprep.subr.mxu0 0.0
    %6181 = vmatpush2.msra.mxu0 0.0
    %6182 = vmatprep.subr.mxu0 0.0
    %6183 = vmatpush2.msra.mxu0 0.0
    %6184 = vmatprep.subr.mxu0 0.0
    %6185 = vmatpush2.msra.mxu0 0.0
    %6186 = vmatprep.subr.mxu0 0.0
    %6187 = vmatpush2.msra.mxu0 0.0
    %6188 = vmatprep.subr.mxu0 0.0
    %6189 = vmatpush2.msra.mxu0 0.0
    %6190 = vmatprep.subr.mxu0 0.0
    %6191 = vmatpush2.msra.mxu0 0.0
    %6192 = vmatprep.subr.mxu0 0.0
    %6193 = vmatpush2.msra.mxu0 0.0
    %6194 = vmatprep.subr.mxu0 0.0
    %6195 = vmatpush2.msra.mxu0 0.0
    %6196 = vmatprep.subr.mxu0 0.0
    %6197 = vmatpush2.msra.mxu0 0.0
    %6198 = vmatprep.subr.mxu0 0.0
    %6199 = vmatpush2.msra.mxu0 0.0
    %6200 = vmatprep.subr.mxu0 0.0
    %6201 = vmatpush2.msra.mxu0 0.0
    %6202 = vmatprep.subr.mxu0 0.0
    %6203 = vmatpush2.msra.mxu0 0.0
    %6204 = vmatprep.subr.mxu0 0.0
    %6205 = vmatpush2.msra.mxu0 0.0
    %6206 = vmatprep.subr.mxu0 0.0
    %6207 = vmatpush2.msra.mxu0 0.0
    %6208 = vmatprep.subr.mxu0 0.0
    %6209 = vmatpush2.msra.mxu0 0.0
    %6210 = vmatprep.mubr.f32.mxu0 0.0
    %6211 = vmatmul.mubr.f32.gmra.mxu0 %v6144
    %v6212 = vpop.f32.mrf.mxu0
    %v6213 = vadd.f32 %v80, %v6212
    %v6214 = vpop.f32.mrf.mxu0
    %6215 = vdwg.mxu0
    %v6216 = vmul.f32 %v5760, 0.32806653
    %v6217 = vmul.f32 %v5909, -1.2884215
    %v6218 = vadd.f32 %v6216, %v6217
    %v6219 = vmul.f32 %v6060, 1.0914326
    %v6220 = vadd.f32 %v6218, %v6219
    %v6221 = vmul.f32 %v6213, -0.032312147
    %v6222 = vadd.f32 %v6220, %v6221
    %v6223 = vadd.f32 %v5615, %v6222
    %v6225 = vsel %vm83, %v6223, 0
    %6227 = vmatprep.subr.mxu0 0.0
    %6228 = vmatpush1.msra.mxu0 0.0
    %6229 = vmatprep.subr.mxu0 0.0
    %6230 = vmatpush1.msra.mxu0 0.0
    %6231 = vmatprep.subr.mxu0 0.0
    %6232 = vmatpush1.msra.mxu0 0.0
    %6233 = vmatprep.subr.mxu0 0.0
    %6234 = vmatpush1.msra.mxu0 0.0
    %6235 = vmatprep.subr.mxu0 0.0
    %6236 = vmatpush1.msra.mxu0 0.0
    %6237 = vmatprep.subr.mxu0 0.0
    %6238 = vmatpush1.msra.mxu0 0.0
    %6239 = vmatprep.subr.mxu0 0.0
    %6240 = vmatpush1.msra.mxu0 0.0
    %6241 = vmatprep.subr.mxu0 0.0
    %6242 = vmatpush1.msra.mxu0 0.0
    %6243 = vmatprep.subr.mxu0 0.0
    %6244 = vmatpush1.msra.mxu0 0.0
    %6245 = vmatprep.subr.mxu0 0.0
    %6246 = vmatpush1.msra.mxu0 0.0
    %6247 = vmatprep.subr.mxu0 0.0
    %6248 = vmatpush1.msra.mxu0 0.0
    %6249 = vmatprep.subr.mxu0 0.0
    %6250 = vmatpush1.msra.mxu0 0.0
    %6251 = vmatprep.subr.mxu0 0.0
    %6252 = vmatpush1.msra.mxu0 %v63
    %6253 = vmatprep.subr.mxu0 0.0
    %6254 = vmatpush1.msra.mxu0 %v62
    %6255 = vmatprep.subr.mxu0 0.0
    %6256 = vmatpush1.msra.mxu0 %v61
    %6257 = vmatprep.subr.mxu0 0.0
    %6258 = vmatpush1.msra.mxu0 %v60
    %6259 = vmatprep.subr.mxu0 0.0
    %6260 = vmatpush2.msra.mxu0 0.0
    %6261 = vmatprep.subr.mxu0 0.0
    %6262 = vmatpush2.msra.mxu0 0.0
    %6263 = vmatprep.subr.mxu0 0.0
    %6264 = vmatpush2.msra.mxu0 0.0
    %6265 = vmatprep.subr.mxu0 0.0
    %6266 = vmatpush2.msra.mxu0 0.0
    %6267 = vmatprep.subr.mxu0 0.0
    %6268 = vmatpush2.msra.mxu0 0.0
    %6269 = vmatprep.subr.mxu0 0.0
    %6270 = vmatpush2.msra.mxu0 0.0
    %6271 = vmatprep.subr.mxu0 0.0
    %6272 = vmatpush2.msra.mxu0 0.0
    %6273 = vmatprep.subr.mxu0 0.0
    %6274 = vmatpush2.msra.mxu0 0.0
    %6275 = vmatprep.subr.mxu0 0.0
    %6276 = vmatpush2.msra.mxu0 0.0
    %6277 = vmatprep.subr.mxu0 0.0
    %6278 = vmatpush2.msra.mxu0 0.0
    %6279 = vmatprep.subr.mxu0 0.0
    %6280 = vmatpush2.msra.mxu0 0.0
    %6281 = vmatprep.subr.mxu0 0.0
    %6282 = vmatpush2.msra.mxu0 0.0
    %6283 = vmatprep.subr.mxu0 0.0
    %6284 = vmatpush2.msra.mxu0 0.0
    %6285 = vmatprep.subr.mxu0 0.0
    %6286 = vmatpush2.msra.mxu0 0.0
    %6287 = vmatprep.subr.mxu0 0.0
    %6288 = vmatpush2.msra.mxu0 0.0
    %6289 = vmatprep.subr.mxu0 0.0
    %6290 = vmatpush2.msra.mxu0 0.0
    %6291 = vmatprep.mubr.f32.mxu0 0.0
    %6292 = vmatmul.mubr.f32.gmra.mxu0 %v6225
    %v6293 = vpop.f32.mrf.mxu0
    %v6294 = vadd.f32 %v73, %v6293
    %v6295 = vpop.f32.mrf.mxu0
    %6296 = vdwg.mxu0
    %v6297 = vtanh.pop %v6294
    %v6299 = vsel %vm83, %v6297, 0
    %6301 = vmatprep.subr.mxu0 0.0
    %6302 = vmatpush1.msra.mxu0 0.0
    %6303 = vmatprep.subr.mxu0 0.0
    %6304 = vmatpush1.msra.mxu0 0.0
    %6305 = vmatprep.subr.mxu0 0.0
    %6306 = vmatpush1.msra.mxu0 0.0
    %6307 = vmatprep.subr.mxu0 0.0
    %6308 = vmatpush1.msra.mxu0 0.0
    %6309 = vmatprep.subr.mxu0 0.0
    %6310 = vmatpush1.msra.mxu0 0.0
    %6311 = vmatprep.subr.mxu0 0.0
    %6312 = vmatpush1.msra.mxu0 0.0
    %6313 = vmatprep.subr.mxu0 0.0
    %6314 = vmatpush1.msra.mxu0 0.0
    %6315 = vmatprep.subr.mxu0 0.0
    %6316 = vmatpush1.msra.mxu0 0.0
    %6317 = vmatprep.subr.mxu0 0.0
    %6318 = vmatpush1.msra.mxu0 0.0
    %6319 = vmatprep.subr.mxu0 0.0
    %6320 = vmatpush1.msra.mxu0 0.0
    %6321 = vmatprep.subr.mxu0 0.0
    %6322 = vmatpush1.msra.mxu0 0.0
    %6323 = vmatprep.subr.mxu0 0.0
    %6324 = vmatpush1.msra.mxu0 0.0
    %6325 = vmatprep.subr.mxu0 0.0
    %6326 = vmatpush1.msra.mxu0 %v67
    %6327 = vmatprep.subr.mxu0 0.0
    %6328 = vmatpush1.msra.mxu0 %v66
    %6329 = vmatprep.subr.mxu0 0.0
    %6330 = vmatpush1.msra.mxu0 %v65
    %6331 = vmatprep.subr.mxu0 0.0
    %6332 = vmatpush1.msra.mxu0 %v64
    %6333 = vmatprep.subr.mxu0 0.0
    %6334 = vmatpush2.msra.mxu0 0.0
    %6335 = vmatprep.subr.mxu0 0.0
    %6336 = vmatpush2.msra.mxu0 0.0
    %6337 = vmatprep.subr.mxu0 0.0
    %6338 = vmatpush2.msra.mxu0 0.0
    %6339 = vmatprep.subr.mxu0 0.0
    %6340 = vmatpush2.msra.mxu0 0.0
    %6341 = vmatprep.subr.mxu0 0.0
    %6342 = vmatpush2.msra.mxu0 0.0
    %6343 = vmatprep.subr.mxu0 0.0
    %6344 = vmatpush2.msra.mxu0 0.0
    %6345 = vmatprep.subr.mxu0 0.0
    %6346 = vmatpush2.msra.mxu0 0.0
    %6347 = vmatprep.subr.mxu0 0.0
    %6348 = vmatpush2.msra.mxu0 0.0
    %6349 = vmatprep.subr.mxu0 0.0
    %6350 = vmatpush2.msra.mxu0 0.0
    %6351 = vmatprep.subr.mxu0 0.0
    %6352 = vmatpush2.msra.mxu0 0.0
    %6353 = vmatprep.subr.mxu0 0.0
    %6354 = vmatpush2.msra.mxu0 0.0
    %6355 = vmatprep.subr.mxu0 0.0
    %6356 = vmatpush2.msra.mxu0 0.0
    %6357 = vmatprep.subr.mxu0 0.0
    %6358 = vmatpush2.msra.mxu0 0.0
    %6359 = vmatprep.subr.mxu0 0.0
    %6360 = vmatpush2.msra.mxu0 0.0
    %6361 = vmatprep.subr.mxu0 0.0
    %6362 = vmatpush2.msra.mxu0 0.0
    %6363 = vmatprep.subr.mxu0 0.0
    %6364 = vmatpush2.msra.mxu0 0.0
    %6365 = vmatprep.mubr.f32.mxu0 0.0
    %6366 = vmatmul.mubr.f32.gmra.mxu0 %v6299
    %v6367 = vpop.f32.mrf.mxu0
    %v6368 = vadd.f32 %v80, %v6367
    %v6369 = vpop.f32.mrf.mxu0
    %6370 = vdwg.mxu0
    %v6371 = vmul.f32 %v5760, 0.3162528
    %v6372 = vmul.f32 %v5909, -1.1952862
    %v6373 = vadd.f32 %v6371, %v6372
    %v6374 = vmul.f32 %v6060, 0.9896025
    %v6375 = vadd.f32 %v6373, %v6374
    %v6376 = vmul.f32 %v6213, 0.030934343
    %v6377 = vadd.f32 %v6375, %v6376
    %v6378 = vmul.f32 %v6368, -0.030392367
    %v6379 = vadd.f32 %v6377, %v6378
    %v6380 = vadd.f32 %v5615, %v6379
    %v6382 = vsel %vm83, %v6380, 0
    %6384 = vmatprep.subr.mxu0 0.0
    %6385 = vmatpush1.msra.mxu0 0.0
    %6386 = vmatprep.subr.mxu0 0.0
    %6387 = vmatpush1.msra.mxu0 0.0
    %6388 = vmatprep.subr.mxu0 0.0
    %6389 = vmatpush1.msra.mxu0 0.0
    %6390 = vmatprep.subr.mxu0 0.0
    %6391 = vmatpush1.msra.mxu0 0.0
    %6392 = vmatprep.subr.mxu0 0.0
    %6393 = vmatpush1.msra.mxu0 0.0
    %6394 = vmatprep.subr.mxu0 0.0
    %6395 = vmatpush1.msra.mxu0 0.0
    %6396 = vmatprep.subr.mxu0 0.0
    %6397 = vmatpush1.msra.mxu0 0.0
    %6398 = vmatprep.subr.mxu0 0.0
    %6399 = vmatpush1.msra.mxu0 0.0
    %6400 = vmatprep.subr.mxu0 0.0
    %6401 = vmatpush1.msra.mxu0 0.0
    %6402 = vmatprep.subr.mxu0 0.0
    %6403 = vmatpush1.msra.mxu0 0.0
    %6404 = vmatprep.subr.mxu0 0.0
    %6405 = vmatpush1.msra.mxu0 0.0
    %6406 = vmatprep.subr.mxu0 0.0
    %6407 = vmatpush1.msra.mxu0 0.0
    %6408 = vmatprep.subr.mxu0 0.0
    %6409 = vmatpush1.msra.mxu0 %v63
    %6410 = vmatprep.subr.mxu0 0.0
    %6411 = vmatpush1.msra.mxu0 %v62
    %6412 = vmatprep.subr.mxu0 0.0
    %6413 = vmatpush1.msra.mxu0 %v61
    %6414 = vmatprep.subr.mxu0 0.0
    %6415 = vmatpush1.msra.mxu0 %v60
    %6416 = vmatprep.subr.mxu0 0.0
    %6417 = vmatpush2.msra.mxu0 0.0
    %6418 = vmatprep.subr.mxu0 0.0
    %6419 = vmatpush2.msra.mxu0 0.0
    %6420 = vmatprep.subr.mxu0 0.0
    %6421 = vmatpush2.msra.mxu0 0.0
    %6422 = vmatprep.subr.mxu0 0.0
    %6423 = vmatpush2.msra.mxu0 0.0
    %6424 = vmatprep.subr.mxu0 0.0
    %6425 = vmatpush2.msra.mxu0 0.0
    %6426 = vmatprep.subr.mxu0 0.0
    %6427 = vmatpush2.msra.mxu0 0.0
    %6428 = vmatprep.subr.mxu0 0.0
    %6429 = vmatpush2.msra.mxu0 0.0
    %6430 = vmatprep.subr.mxu0 0.0
    %6431 = vmatpush2.msra.mxu0 0.0
    %6432 = vmatprep.subr.mxu0 0.0
    %6433 = vmatpush2.msra.mxu0 0.0
    %6434 = vmatprep.subr.mxu0 0.0
    %6435 = vmatpush2.msra.mxu0 0.0
    %6436 = vmatprep.subr.mxu0 0.0
    %6437 = vmatpush2.msra.mxu0 0.0
    %6438 = vmatprep.subr.mxu0 0.0
    %6439 = vmatpush2.msra.mxu0 0.0
    %6440 = vmatprep.subr.mxu0 0.0
    %6441 = vmatpush2.msra.mxu0 0.0
    %6442 = vmatprep.subr.mxu0 0.0
    %6443 = vmatpush2.msra.mxu0 0.0
    %6444 = vmatprep.subr.mxu0 0.0
    %6445 = vmatpush2.msra.mxu0 0.0
    %6446 = vmatprep.subr.mxu0 0.0
    %6447 = vmatpush2.msra.mxu0 0.0
    %6448 = vmatprep.mubr.f32.mxu0 0.0
    %6449 = vmatmul.mubr.f32.gmra.mxu0 %v6382
    %v6450 = vpop.f32.mrf.mxu0
    %v6451 = vadd.f32 %v73, %v6450
    %v6452 = vpop.f32.mrf.mxu0
    %6453 = vdwg.mxu0
    %v6454 = vtanh.pop %v6451
    %v6456 = vsel %vm83, %v6454, 0
    %6458 = vmatprep.subr.mxu0 0.0
    %6459 = vmatpush1.msra.mxu0 0.0
    %6460 = vmatprep.subr.mxu0 0.0
    %6461 = vmatpush1.msra.mxu0 0.0
    %6462 = vmatprep.subr.mxu0 0.0
    %6463 = vmatpush1.msra.mxu0 0.0
    %6464 = vmatprep.subr.mxu0 0.0
    %6465 = vmatpush1.msra.mxu0 0.0
    %6466 = vmatprep.subr.mxu0 0.0
    %6467 = vmatpush1.msra.mxu0 0.0
    %6468 = vmatprep.subr.mxu0 0.0
    %6469 = vmatpush1.msra.mxu0 0.0
    %6470 = vmatprep.subr.mxu0 0.0
    %6471 = vmatpush1.msra.mxu0 0.0
    %6472 = vmatprep.subr.mxu0 0.0
    %6473 = vmatpush1.msra.mxu0 0.0
    %6474 = vmatprep.subr.mxu0 0.0
    %6475 = vmatpush1.msra.mxu0 0.0
    %6476 = vmatprep.subr.mxu0 0.0
    %6477 = vmatpush1.msra.mxu0 0.0
    %6478 = vmatprep.subr.mxu0 0.0
    %6479 = vmatpush1.msra.mxu0 0.0
    %6480 = vmatprep.subr.mxu0 0.0
    %6481 = vmatpush1.msra.mxu0 0.0
    %6482 = vmatprep.subr.mxu0 0.0
    %6483 = vmatpush1.msra.mxu0 %v67
    %6484 = vmatprep.subr.mxu0 0.0
    %6485 = vmatpush1.msra.mxu0 %v66
    %6486 = vmatprep.subr.mxu0 0.0
    %6487 = vmatpush1.msra.mxu0 %v65
    %6488 = vmatprep.subr.mxu0 0.0
    %6489 = vmatpush1.msra.mxu0 %v64
    %6490 = vmatprep.subr.mxu0 0.0
    %6491 = vmatpush2.msra.mxu0 0.0
    %6492 = vmatprep.subr.mxu0 0.0
    %6493 = vmatpush2.msra.mxu0 0.0
    %6494 = vmatprep.subr.mxu0 0.0
    %6495 = vmatpush2.msra.mxu0 0.0
    %6496 = vmatprep.subr.mxu0 0.0
    %6497 = vmatpush2.msra.mxu0 0.0
    %6498 = vmatprep.subr.mxu0 0.0
    %6499 = vmatpush2.msra.mxu0 0.0
    %6500 = vmatprep.subr.mxu0 0.0
    %6501 = vmatpush2.msra.mxu0 0.0
    %6502 = vmatprep.subr.mxu0 0.0
    %6503 = vmatpush2.msra.mxu0 0.0
    %6504 = vmatprep.subr.mxu0 0.0
    %6505 = vmatpush2.msra.mxu0 0.0
    %6506 = vmatprep.subr.mxu0 0.0
    %6507 = vmatpush2.msra.mxu0 0.0
    %6508 = vmatprep.subr.mxu0 0.0
    %6509 = vmatpush2.msra.mxu0 0.0
    %6510 = vmatprep.subr.mxu0 0.0
    %6511 = vmatpush2.msra.mxu0 0.0
    %6512 = vmatprep.subr.mxu0 0.0
    %6513 = vmatpush2.msra.mxu0 0.0
    %6514 = vmatprep.subr.mxu0 0.0
    %6515 = vmatpush2.msra.mxu0 0.0
    %6516 = vmatprep.subr.mxu0 0.0
    %6517 = vmatpush2.msra.mxu0 0.0
    %6518 = vmatprep.subr.mxu0 0.0
    %6519 = vmatpush2.msra.mxu0 0.0
    %6520 = vmatprep.subr.mxu0 0.0
    %6521 = vmatpush2.msra.mxu0 0.0
    %6522 = vmatprep.mubr.f32.mxu0 0.0
    %6523 = vmatmul.mubr.f32.gmra.mxu0 %v6456
    %v6524 = vpop.f32.mrf.mxu0
    %v6525 = vadd.f32 %v80, %v6524
    %v6526 = vpop.f32.mrf.mxu0
    %6527 = vdwg.mxu0
    %v6528 = vmul.f32 %v5760, 0.010127314
    %v6529 = vmul.f32 %v6060, 0.049915146
    %v6530 = vadd.f32 %v6528, %v6529
    %v6531 = vmul.f32 %v6213, 0.07233796
    %v6532 = vadd.f32 %v6530, %v6531
    %v6533 = vmul.f32 %v6368, -0.035819575
    %v6534 = vadd.f32 %v6532, %v6533
    %v6535 = vmul.f32 %v6525, 0.014550265
    %v6536 = vadd.f32 %v6534, %v6535
    %v6537 = vadd.f32 %v5615, %v6536
    %v6539 = vsel %vm83, %v6537, 0
    %6541 = vmatprep.subr.mxu0 0.0
    %6542 = vmatpush1.msra.mxu0 0.0
    %6543 = vmatprep.subr.mxu0 0.0
    %6544 = vmatpush1.msra.mxu0 0.0
    %6545 = vmatprep.subr.mxu0 0.0
    %6546 = vmatpush1.msra.mxu0 0.0
    %6547 = vmatprep.subr.mxu0 0.0
    %6548 = vmatpush1.msra.mxu0 0.0
    %6549 = vmatprep.subr.mxu0 0.0
    %6550 = vmatpush1.msra.mxu0 0.0
    %6551 = vmatprep.subr.mxu0 0.0
    %6552 = vmatpush1.msra.mxu0 0.0
    %6553 = vmatprep.subr.mxu0 0.0
    %6554 = vmatpush1.msra.mxu0 0.0
    %6555 = vmatprep.subr.mxu0 0.0
    %6556 = vmatpush1.msra.mxu0 0.0
    %6557 = vmatprep.subr.mxu0 0.0
    %6558 = vmatpush1.msra.mxu0 0.0
    %6559 = vmatprep.subr.mxu0 0.0
    %6560 = vmatpush1.msra.mxu0 0.0
    %6561 = vmatprep.subr.mxu0 0.0
    %6562 = vmatpush1.msra.mxu0 0.0
    %6563 = vmatprep.subr.mxu0 0.0
    %6564 = vmatpush1.msra.mxu0 0.0
    %6565 = vmatprep.subr.mxu0 0.0
    %6566 = vmatpush1.msra.mxu0 %v63
    %6567 = vmatprep.subr.mxu0 0.0
    %6568 = vmatpush1.msra.mxu0 %v62
    %6569 = vmatprep.subr.mxu0 0.0
    %6570 = vmatpush1.msra.mxu0 %v61
    %6571 = vmatprep.subr.mxu0 0.0
    %6572 = vmatpush1.msra.mxu0 %v60
    %6573 = vmatprep.subr.mxu0 0.0
    %6574 = vmatpush2.msra.mxu0 0.0
    %6575 = vmatprep.subr.mxu0 0.0
    %6576 = vmatpush2.msra.mxu0 0.0
    %6577 = vmatprep.subr.mxu0 0.0
    %6578 = vmatpush2.msra.mxu0 0.0
    %6579 = vmatprep.subr.mxu0 0.0
    %6580 = vmatpush2.msra.mxu0 0.0
    %6581 = vmatprep.subr.mxu0 0.0
    %6582 = vmatpush2.msra.mxu0 0.0
    %6583 = vmatprep.subr.mxu0 0.0
    %6584 = vmatpush2.msra.mxu0 0.0
    %6585 = vmatprep.subr.mxu0 0.0
    %6586 = vmatpush2.msra.mxu0 0.0
    %6587 = vmatprep.subr.mxu0 0.0
    %6588 = vmatpush2.msra.mxu0 0.0
    %6589 = vmatprep.subr.mxu0 0.0
    %6590 = vmatpush2.msra.mxu0 0.0
    %6591 = vmatprep.subr.mxu0 0.0
    %6592 = vmatpush2.msra.mxu0 0.0
    %6593 = vmatprep.subr.mxu0 0.0
    %6594 = vmatpush2.msra.mxu0 0.0
    %6595 = vmatprep.subr.mxu0 0.0
    %6596 = vmatpush2.msra.mxu0 0.0
    %6597 = vmatprep.subr.mxu0 0.0
    %6598 = vmatpush2.msra.mxu0 0.0
    %6599 = vmatprep.subr.mxu0 0.0
    %6600 = vmatpush2.msra.mxu0 0.0
    %6601 = vmatprep.subr.mxu0 0.0
    %6602 = vmatpush2.msra.mxu0 0.0
    %6603 = vmatprep.subr.mxu0 0.0
    %6604 = vmatpush2.msra.mxu0 0.0
    %6605 = vmatprep.mubr.f32.mxu0 0.0
    %6606 = vmatmul.mubr.f32.gmra.mxu0 %v6539
    %v6607 = vpop.f32.mrf.mxu0
    %v6608 = vadd.f32 %v73, %v6607
    %v6609 = vpop.f32.mrf.mxu0
    %6610 = vdwg.mxu0
    %v6611 = vtanh.pop %v6608
    %v6613 = vsel %vm83, %v6611, 0
    %6615 = vmatprep.subr.mxu0 0.0
    %6616 = vmatpush1.msra.mxu0 0.0
    %6617 = vmatprep.subr.mxu0 0.0
    %6618 = vmatpush1.msra.mxu0 0.0
    %6619 = vmatprep.subr.mxu0 0.0
    %6620 = vmatpush1.msra.mxu0 0.0
    %6621 = vmatprep.subr.mxu0 0.0
    %6622 = vmatpush1.msra.mxu0 0.0
    %6623 = vmatprep.subr.mxu0 0.0
    %6624 = vmatpush1.msra.mxu0 0.0
    %6625 = vmatprep.subr.mxu0 0.0
    %6626 = vmatpush1.msra.mxu0 0.0
    %6627 = vmatprep.subr.mxu0 0.0
    %6628 = vmatpush1.msra.mxu0 0.0
    %6629 = vmatprep.subr.mxu0 0.0
    %6630 = vmatpush1.msra.mxu0 0.0
    %6631 = vmatprep.subr.mxu0 0.0
    %6632 = vmatpush1.msra.mxu0 0.0
    %6633 = vmatprep.subr.mxu0 0.0
    %6634 = vmatpush1.msra.mxu0 0.0
    %6635 = vmatprep.subr.mxu0 0.0
    %6636 = vmatpush1.msra.mxu0 0.0
    %6637 = vmatprep.subr.mxu0 0.0
    %6638 = vmatpush1.msra.mxu0 0.0
    %6639 = vmatprep.subr.mxu0 0.0
    %6640 = vmatpush1.msra.mxu0 %v67
    %6641 = vmatprep.subr.mxu0 0.0
    %6642 = vmatpush1.msra.mxu0 %v66
    %6643 = vmatprep.subr.mxu0 0.0
    %6644 = vmatpush1.msra.mxu0 %v65
    %6645 = vmatprep.subr.mxu0 0.0
    %6646 = vmatpush1.msra.mxu0 %v64
    %6647 = vmatprep.subr.mxu0 0.0
    %6648 = vmatpush2.msra.mxu0 0.0
    %6649 = vmatprep.subr.mxu0 0.0
    %6650 = vmatpush2.msra.mxu0 0.0
    %6651 = vmatprep.subr.mxu0 0.0
    %6652 = vmatpush2.msra.mxu0 0.0
    %6653 = vmatprep.subr.mxu0 0.0
    %6654 = vmatpush2.msra.mxu0 0.0
    %6655 = vmatprep.subr.mxu0 0.0
    %6656 = vmatpush2.msra.mxu0 0.0
    %6657 = vmatprep.subr.mxu0 0.0
    %6658 = vmatpush2.msra.mxu0 0.0
    %6659 = vmatprep.subr.mxu0 0.0
    %6660 = vmatpush2.msra.mxu0 0.0
    %6661 = vmatprep.subr.mxu0 0.0
    %6662 = vmatpush2.msra.mxu0 0.0
    %6663 = vmatprep.subr.mxu0 0.0
    %6664 = vmatpush2.msra.mxu0 0.0
    %6665 = vmatprep.subr.mxu0 0.0
    %6666 = vmatpush2.msra.mxu0 0.0
    %6667 = vmatprep.subr.mxu0 0.0
    %6668 = vmatpush2.msra.mxu0 0.0
    %6669 = vmatprep.subr.mxu0 0.0
    %6670 = vmatpush2.msra.mxu0 0.0
    %6671 = vmatprep.subr.mxu0 0.0
    %6672 = vmatpush2.msra.mxu0 0.0
    %6673 = vmatprep.subr.mxu0 0.0
    %6674 = vmatpush2.msra.mxu0 0.0
    %6675 = vmatprep.subr.mxu0 0.0
    %6676 = vmatpush2.msra.mxu0 0.0
    %6677 = vmatprep.subr.mxu0 0.0
    %6678 = vmatpush2.msra.mxu0 0.0
    %6679 = vmatprep.mubr.f32.mxu0 0.0
    %6680 = vmatmul.mubr.f32.gmra.mxu0 %v6613
    %v6681 = vpop.f32.mrf.mxu0
    %v6682 = vadd.f32 %v80, %v6681
    %v6683 = vpop.f32.mrf.mxu0
    %6684 = vdwg.mxu0
    %v6685 = vmul.f32 %v6682, 0.022222223
    %v6686 = vadd.f32 %v6537, %v6685
    %v6688 = vsel %vm83, %v6686, 0
    %6690 = vmatprep.subr.mxu0 0.0
    %6691 = vmatpush1.msra.mxu0 0.0
    %6692 = vmatprep.subr.mxu0 0.0
    %6693 = vmatpush1.msra.mxu0 0.0
    %6694 = vmatprep.subr.mxu0 0.0
    %6695 = vmatpush1.msra.mxu0 0.0
    %6696 = vmatprep.subr.mxu0 0.0
    %6697 = vmatpush1.msra.mxu0 0.0
    %6698 = vmatprep.subr.mxu0 0.0
    %6699 = vmatpush1.msra.mxu0 0.0
    %6700 = vmatprep.subr.mxu0 0.0
    %6701 = vmatpush1.msra.mxu0 0.0
    %6702 = vmatprep.subr.mxu0 0.0
    %6703 = vmatpush1.msra.mxu0 0.0
    %6704 = vmatprep.subr.mxu0 0.0
    %6705 = vmatpush1.msra.mxu0 0.0
    %6706 = vmatprep.subr.mxu0 0.0
    %6707 = vmatpush1.msra.mxu0 0.0
    %6708 = vmatprep.subr.mxu0 0.0
    %6709 = vmatpush1.msra.mxu0 0.0
    %6710 = vmatprep.subr.mxu0 0.0
    %6711 = vmatpush1.msra.mxu0 0.0
    %6712 = vmatprep.subr.mxu0 0.0
    %6713 = vmatpush1.msra.mxu0 0.0
    %6714 = vmatprep.subr.mxu0 0.0
    %6715 = vmatpush1.msra.mxu0 %v63
    %6716 = vmatprep.subr.mxu0 0.0
    %6717 = vmatpush1.msra.mxu0 %v62
    %6718 = vmatprep.subr.mxu0 0.0
    %6719 = vmatpush1.msra.mxu0 %v61
    %6720 = vmatprep.subr.mxu0 0.0
    %6721 = vmatpush1.msra.mxu0 %v60
    %6722 = vmatprep.subr.mxu0 0.0
    %6723 = vmatpush2.msra.mxu0 0.0
    %6724 = vmatprep.subr.mxu0 0.0
    %6725 = vmatpush2.msra.mxu0 0.0
    %6726 = vmatprep.subr.mxu0 0.0
    %6727 = vmatpush2.msra.mxu0 0.0
    %6728 = vmatprep.subr.mxu0 0.0
    %6729 = vmatpush2.msra.mxu0 0.0
    %6730 = vmatprep.subr.mxu0 0.0
    %6731 = vmatpush2.msra.mxu0 0.0
    %6732 = vmatprep.subr.mxu0 0.0
    %6733 = vmatpush2.msra.mxu0 0.0
    %6734 = vmatprep.subr.mxu0 0.0
    %6735 = vmatpush2.msra.mxu0 0.0
    %6736 = vmatprep.subr.mxu0 0.0
    %6737 = vmatpush2.msra.mxu0 0.0
    %6738 = vmatprep.subr.mxu0 0.0
    %6739 = vmatpush2.msra.mxu0 0.0
    %6740 = vmatprep.subr.mxu0 0.0
    %6741 = vmatpush2.msra.mxu0 0.0
    %6742 = vmatprep.subr.mxu0 0.0
    %6743 = vmatpush2.msra.mxu0 0.0
    %6744 = vmatprep.subr.mxu0 0.0
    %6745 = vmatpush2.msra.mxu0 0.0
    %6746 = vmatprep.subr.mxu0 0.0
    %6747 = vmatpush2.msra.mxu0 0.0
    %6748 = vmatprep.subr.mxu0 0.0
    %6749 = vmatpush2.msra.mxu0 0.0
    %6750 = vmatprep.subr.mxu0 0.0
    %6751 = vmatpush2.msra.mxu0 0.0
    %6752 = vmatprep.subr.mxu0 0.0
    %6753 = vmatpush2.msra.mxu0 0.0
    %6754 = vmatprep.mubr.f32.mxu0 0.0
    %6755 = vmatmul.mubr.f32.gmra.mxu0 %v6688
    %v6756 = vpop.f32.mrf.mxu0
    %v6757 = vadd.f32 %v73, %v6756
    %v6758 = vpop.f32.mrf.mxu0
    %6759 = vdwg.mxu0
    %v6760 = vtanh.pop %v6757
    %v6762 = vsel %vm83, %v6760, 0
    %6764 = vmatprep.subr.mxu0 0.0
    %6765 = vmatpush1.msra.mxu0 0.0
    %6766 = vmatprep.subr.mxu0 0.0
    %6767 = vmatpush1.msra.mxu0 0.0
    %6768 = vmatprep.subr.mxu0 0.0
    %6769 = vmatpush1.msra.mxu0 0.0
    %6770 = vmatprep.subr.mxu0 0.0
    %6771 = vmatpush1.msra.mxu0 0.0
    %6772 = vmatprep.subr.mxu0 0.0
    %6773 = vmatpush1.msra.mxu0 0.0
    %6774 = vmatprep.subr.mxu0 0.0
    %6775 = vmatpush1.msra.mxu0 0.0
    %6776 = vmatprep.subr.mxu0 0.0
    %6777 = vmatpush1.msra.mxu0 0.0
    %6778 = vmatprep.subr.mxu0 0.0
    %6779 = vmatpush1.msra.mxu0 0.0
    %6780 = vmatprep.subr.mxu0 0.0
    %6781 = vmatpush1.msra.mxu0 0.0
    %6782 = vmatprep.subr.mxu0 0.0
    %6783 = vmatpush1.msra.mxu0 0.0
    %6784 = vmatprep.subr.mxu0 0.0
    %6785 = vmatpush1.msra.mxu0 0.0
    %6786 = vmatprep.subr.mxu0 0.0
    %6787 = vmatpush1.msra.mxu0 0.0
    %6788 = vmatprep.subr.mxu0 0.0
    %6789 = vmatpush1.msra.mxu0 %v67
    %6790 = vmatprep.subr.mxu0 0.0
    %6791 = vmatpush1.msra.mxu0 %v66
    %6792 = vmatprep.subr.mxu0 0.0
    %6793 = vmatpush1.msra.mxu0 %v65
    %6794 = vmatprep.subr.mxu0 0.0
    %6795 = vmatpush1.msra.mxu0 %v64
    %6796 = vmatprep.subr.mxu0 0.0
    %6797 = vmatpush2.msra.mxu0 0.0
    %6798 = vmatprep.subr.mxu0 0.0
    %6799 = vmatpush2.msra.mxu0 0.0
    %6800 = vmatprep.subr.mxu0 0.0
    %6801 = vmatpush2.msra.mxu0 0.0
    %6802 = vmatprep.subr.mxu0 0.0
    %6803 = vmatpush2.msra.mxu0 0.0
    %6804 = vmatprep.subr.mxu0 0.0
    %6805 = vmatpush2.msra.mxu0 0.0
    %6806 = vmatprep.subr.mxu0 0.0
    %6807 = vmatpush2.msra.mxu0 0.0
    %6808 = vmatprep.subr.mxu0 0.0
    %6809 = vmatpush2.msra.mxu0 0.0
    %6810 = vmatprep.subr.mxu0 0.0
    %6811 = vmatpush2.msra.mxu0 0.0
    %6812 = vmatprep.subr.mxu0 0.0
    %6813 = vmatpush2.msra.mxu0 0.0
    %6814 = vmatprep.subr.mxu0 0.0
    %6815 = vmatpush2.msra.mxu0 0.0
    %6816 = vmatprep.subr.mxu0 0.0
    %6817 = vmatpush2.msra.mxu0 0.0
    %6818 = vmatprep.subr.mxu0 0.0
    %6819 = vmatpush2.msra.mxu0 0.0
    %6820 = vmatprep.subr.mxu0 0.0
    %6821 = vmatpush2.msra.mxu0 0.0
    %6822 = vmatprep.subr.mxu0 0.0
    %6823 = vmatpush2.msra.mxu0 0.0
    %6824 = vmatprep.subr.mxu0 0.0
    %6825 = vmatpush2.msra.mxu0 0.0
    %6826 = vmatprep.subr.mxu0 0.0
    %6827 = vmatpush2.msra.mxu0 0.0
    %6828 = vmatprep.mubr.f32.mxu0 0.0
    %6829 = vmatmul.mubr.f32.gmra.mxu0 %v6762
    %v6830 = vpop.f32.mrf.mxu0
    %v6831 = vadd.f32 %v80, %v6830
    %v6832 = vpop.f32.mrf.mxu0
    %6833 = vdwg.mxu0
    %v6834 = vmul.f32 %v6682, 0.008333334
    %v6835 = vmul.f32 %v6831, 0.025
    %v6836 = vadd.f32 %v6834, %v6835
    %v6837 = vadd.f32 %v6537, %v6836
    %v6839 = vsel %vm83, %v6837, 0
    %6841 = vmatprep.subr.mxu0 0.0
    %6842 = vmatpush1.msra.mxu0 0.0
    %6843 = vmatprep.subr.mxu0 0.0
    %6844 = vmatpush1.msra.mxu0 0.0
    %6845 = vmatprep.subr.mxu0 0.0
    %6846 = vmatpush1.msra.mxu0 0.0
    %6847 = vmatprep.subr.mxu0 0.0
    %6848 = vmatpush1.msra.mxu0 0.0
    %6849 = vmatprep.subr.mxu0 0.0
    %6850 = vmatpush1.msra.mxu0 0.0
    %6851 = vmatprep.subr.mxu0 0.0
    %6852 = vmatpush1.msra.mxu0 0.0
    %6853 = vmatprep.subr.mxu0 0.0
    %6854 = vmatpush1.msra.mxu0 0.0
    %6855 = vmatprep.subr.mxu0 0.0
    %6856 = vmatpush1.msra.mxu0 0.0
    %6857 = vmatprep.subr.mxu0 0.0
    %6858 = vmatpush1.msra.mxu0 0.0
    %6859 = vmatprep.subr.mxu0 0.0
    %6860 = vmatpush1.msra.mxu0 0.0
    %6861 = vmatprep.subr.mxu0 0.0
    %6862 = vmatpush1.msra.mxu0 0.0
    %6863 = vmatprep.subr.mxu0 0.0
    %6864 = vmatpush1.msra.mxu0 0.0
    %6865 = vmatprep.subr.mxu0 0.0
    %6866 = vmatpush1.msra.mxu0 %v63
    %6867 = vmatprep.subr.mxu0 0.0
    %6868 = vmatpush1.msra.mxu0 %v62
    %6869 = vmatprep.subr.mxu0 0.0
    %6870 = vmatpush1.msra.mxu0 %v61
    %6871 = vmatprep.subr.mxu0 0.0
    %6872 = vmatpush1.msra.mxu0 %v60
    %6873 = vmatprep.subr.mxu0 0.0
    %6874 = vmatpush2.msra.mxu0 0.0
    %6875 = vmatprep.subr.mxu0 0.0
    %6876 = vmatpush2.msra.mxu0 0.0
    %6877 = vmatprep.subr.mxu0 0.0
    %6878 = vmatpush2.msra.mxu0 0.0
    %6879 = vmatprep.subr.mxu0 0.0
    %6880 = vmatpush2.msra.mxu0 0.0
    %6881 = vmatprep.subr.mxu0 0.0
    %6882 = vmatpush2.msra.mxu0 0.0
    %6883 = vmatprep.subr.mxu0 0.0
    %6884 = vmatpush2.msra.mxu0 0.0
    %6885 = vmatprep.subr.mxu0 0.0
    %6886 = vmatpush2.msra.mxu0 0.0
    %6887 = vmatprep.subr.mxu0 0.0
    %6888 = vmatpush2.msra.mxu0 0.0
    %6889 = vmatprep.subr.mxu0 0.0
    %6890 = vmatpush2.msra.mxu0 0.0
    %6891 = vmatprep.subr.mxu0 0.0
    %6892 = vmatpush2.msra.mxu0 0.0
    %6893 = vmatprep.subr.mxu0 0.0
    %6894 = vmatpush2.msra.mxu0 0.0
    %6895 = vmatprep.subr.mxu0 0.0
    %6896 = vmatpush2.msra.mxu0 0.0
    %6897 = vmatprep.subr.mxu0 0.0
    %6898 = vmatpush2.msra.mxu0 0.0
    %6899 = vmatprep.subr.mxu0 0.0
    %6900 = vmatpush2.msra.mxu0 0.0
    %6901 = vmatprep.subr.mxu0 0.0
    %6902 = vmatpush2.msra.mxu0 0.0
    %6903 = vmatprep.subr.mxu0 0.0
    %6904 = vmatpush2.msra.mxu0 0.0
    %6905 = vmatprep.mubr.f32.mxu0 0.0
    %6906 = vmatmul.mubr.f32.gmra.mxu0 %v6839
    %v6907 = vpop.f32.mrf.mxu0
    %v6908 = vadd.f32 %v73, %v6907
    %v6909 = vpop.f32.mrf.mxu0
    %6910 = vdwg.mxu0
    %v6911 = vtanh.pop %v6908
    %v6913 = vsel %vm83, %v6911, 0
    %6915 = vmatprep.subr.mxu0 0.0
    %6916 = vmatpush1.msra.mxu0 0.0
    %6917 = vmatprep.subr.mxu0 0.0
    %6918 = vmatpush1.msra.mxu0 0.0
    %6919 = vmatprep.subr.mxu0 0.0
    %6920 = vmatpush1.msra.mxu0 0.0
    %6921 = vmatprep.subr.mxu0 0.0
    %6922 = vmatpush1.msra.mxu0 0.0
    %6923 = vmatprep.subr.mxu0 0.0
    %6924 = vmatpush1.msra.mxu0 0.0
    %6925 = vmatprep.subr.mxu0 0.0
    %6926 = vmatpush1.msra.mxu0 0.0
    %6927 = vmatprep.subr.mxu0 0.0
    %6928 = vmatpush1.msra.mxu0 0.0
    %6929 = vmatprep.subr.mxu0 0.0
    %6930 = vmatpush1.msra.mxu0 0.0
    %6931 = vmatprep.subr.mxu0 0.0
    %6932 = vmatpush1.msra.mxu0 0.0
    %6933 = vmatprep.subr.mxu0 0.0
    %6934 = vmatpush1.msra.mxu0 0.0
    %6935 = vmatprep.subr.mxu0 0.0
    %6936 = vmatpush1.msra.mxu0 0.0
    %6937 = vmatprep.subr.mxu0 0.0
    %6938 = vmatpush1.msra.mxu0 0.0
    %6939 = vmatprep.subr.mxu0 0.0
    %6940 = vmatpush1.msra.mxu0 %v67
    %6941 = vmatprep.subr.mxu0 0.0
    %6942 = vmatpush1.msra.mxu0 %v66
    %6943 = vmatprep.subr.mxu0 0.0
    %6944 = vmatpush1.msra.mxu0 %v65
    %6945 = vmatprep.subr.mxu0 0.0
    %6946 = vmatpush1.msra.mxu0 %v64
    %6947 = vmatprep.subr.mxu0 0.0
    %6948 = vmatpush2.msra.mxu0 0.0
    %6949 = vmatprep.subr.mxu0 0.0
    %6950 = vmatpush2.msra.mxu0 0.0
    %6951 = vmatprep.subr.mxu0 0.0
    %6952 = vmatpush2.msra.mxu0 0.0
    %6953 = vmatprep.subr.mxu0 0.0
    %6954 = vmatpush2.msra.mxu0 0.0
    %6955 = vmatprep.subr.mxu0 0.0
    %6956 = vmatpush2.msra.mxu0 0.0
    %6957 = vmatprep.subr.mxu0 0.0
    %6958 = vmatpush2.msra.mxu0 0.0
    %6959 = vmatprep.subr.mxu0 0.0
    %6960 = vmatpush2.msra.mxu0 0.0
    %6961 = vmatprep.subr.mxu0 0.0
    %6962 = vmatpush2.msra.mxu0 0.0
    %6963 = vmatprep.subr.mxu0 0.0
    %6964 = vmatpush2.msra.mxu0 0.0
    %6965 = vmatprep.subr.mxu0 0.0
    %6966 = vmatpush2.msra.mxu0 0.0
    %6967 = vmatprep.subr.mxu0 0.0
    %6968 = vmatpush2.msra.mxu0 0.0
    %6969 = vmatprep.subr.mxu0 0.0
    %6970 = vmatpush2.msra.mxu0 0.0
    %6971 = vmatprep.subr.mxu0 0.0
    %6972 = vmatpush2.msra.mxu0 0.0
    %6973 = vmatprep.subr.mxu0 0.0
    %6974 = vmatpush2.msra.mxu0 0.0
    %6975 = vmatprep.subr.mxu0 0.0
    %6976 = vmatpush2.msra.mxu0 0.0
    %6977 = vmatprep.subr.mxu0 0.0
    %6978 = vmatpush2.msra.mxu0 0.0
    %6979 = vmatprep.mubr.f32.mxu0 0.0
    %6980 = vmatmul.mubr.f32.gmra.mxu0 %v6913
    %v6981 = vpop.f32.mrf.mxu0
    %v6982 = vadd.f32 %v80, %v6981
    %v6983 = vpop.f32.mrf.mxu0
    %6984 = vdwg.mxu0
    %v6985 = vmul.f32 %v6682, 0.108641975
    %v6986 = vmul.f32 %v6831, -0.4148148
    %v6987 = vadd.f32 %v6985, %v6986
    %v6988 = vmul.f32 %v6982, 0.39506173
    %v6989 = vadd.f32 %v6987, %v6988
    %v6990 = vadd.f32 %v6537, %v6989
    %v6992 = vsel %vm83, %v6990, 0
    %6994 = vmatprep.subr.mxu0 0.0
    %6995 = vmatpush1.msra.mxu0 0.0
    %6996 = vmatprep.subr.mxu0 0.0
    %6997 = vmatpush1.msra.mxu0 0.0
    %6998 = vmatprep.subr.mxu0 0.0
    %6999 = vmatpush1.msra.mxu0 0.0
    %7000 = vmatprep.subr.mxu0 0.0
    %7001 = vmatpush1.msra.mxu0 0.0
    %7002 = vmatprep.subr.mxu0 0.0
    %7003 = vmatpush1.msra.mxu0 0.0
    %7004 = vmatprep.subr.mxu0 0.0
    %7005 = vmatpush1.msra.mxu0 0.0
    %7006 = vmatprep.subr.mxu0 0.0
    %7007 = vmatpush1.msra.mxu0 0.0
    %7008 = vmatprep.subr.mxu0 0.0
    %7009 = vmatpush1.msra.mxu0 0.0
    %7010 = vmatprep.subr.mxu0 0.0
    %7011 = vmatpush1.msra.mxu0 0.0
    %7012 = vmatprep.subr.mxu0 0.0
    %7013 = vmatpush1.msra.mxu0 0.0
    %7014 = vmatprep.subr.mxu0 0.0
    %7015 = vmatpush1.msra.mxu0 0.0
    %7016 = vmatprep.subr.mxu0 0.0
    %7017 = vmatpush1.msra.mxu0 0.0
    %7018 = vmatprep.subr.mxu0 0.0
    %7019 = vmatpush1.msra.mxu0 %v63
    %7020 = vmatprep.subr.mxu0 0.0
    %7021 = vmatpush1.msra.mxu0 %v62
    %7022 = vmatprep.subr.mxu0 0.0
    %7023 = vmatpush1.msra.mxu0 %v61
    %7024 = vmatprep.subr.mxu0 0.0
    %7025 = vmatpush1.msra.mxu0 %v60
    %7026 = vmatprep.subr.mxu0 0.0
    %7027 = vmatpush2.msra.mxu0 0.0
    %7028 = vmatprep.subr.mxu0 0.0
    %7029 = vmatpush2.msra.mxu0 0.0
    %7030 = vmatprep.subr.mxu0 0.0
    %7031 = vmatpush2.msra.mxu0 0.0
    %7032 = vmatprep.subr.mxu0 0.0
    %7033 = vmatpush2.msra.mxu0 0.0
    %7034 = vmatprep.subr.mxu0 0.0
    %7035 = vmatpush2.msra.mxu0 0.0
    %7036 = vmatprep.subr.mxu0 0.0
    %7037 = vmatpush2.msra.mxu0 0.0
    %7038 = vmatprep.subr.mxu0 0.0
    %7039 = vmatpush2.msra.mxu0 0.0
    %7040 = vmatprep.subr.mxu0 0.0
    %7041 = vmatpush2.msra.mxu0 0.0
    %7042 = vmatprep.subr.mxu0 0.0
    %7043 = vmatpush2.msra.mxu0 0.0
    %7044 = vmatprep.subr.mxu0 0.0
    %7045 = vmatpush2.msra.mxu0 0.0
    %7046 = vmatprep.subr.mxu0 0.0
    %7047 = vmatpush2.msra.mxu0 0.0
    %7048 = vmatprep.subr.mxu0 0.0
    %7049 = vmatpush2.msra.mxu0 0.0
    %7050 = vmatprep.subr.mxu0 0.0
    %7051 = vmatpush2.msra.mxu0 0.0
    %7052 = vmatprep.subr.mxu0 0.0
    %7053 = vmatpush2.msra.mxu0 0.0
    %7054 = vmatprep.subr.mxu0 0.0
    %7055 = vmatpush2.msra.mxu0 0.0
    %7056 = vmatprep.subr.mxu0 0.0
    %7057 = vmatpush2.msra.mxu0 0.0
    %7058 = vmatprep.mubr.f32.mxu0 0.0
    %7059 = vmatmul.mubr.f32.gmra.mxu0 %v6992
    %v7060 = vpop.f32.mrf.mxu0
    %v7061 = vadd.f32 %v73, %v7060
    %v7062 = vpop.f32.mrf.mxu0
    %7063 = vdwg.mxu0
    %v7064 = vtanh.pop %v7061
    %v7066 = vsel %vm83, %v7064, 0
    %7068 = vmatprep.subr.mxu0 0.0
    %7069 = vmatpush1.msra.mxu0 0.0
    %7070 = vmatprep.subr.mxu0 0.0
    %7071 = vmatpush1.msra.mxu0 0.0
    %7072 = vmatprep.subr.mxu0 0.0
    %7073 = vmatpush1.msra.mxu0 0.0
    %7074 = vmatprep.subr.mxu0 0.0
    %7075 = vmatpush1.msra.mxu0 0.0
    %7076 = vmatprep.subr.mxu0 0.0
    %7077 = vmatpush1.msra.mxu0 0.0
    %7078 = vmatprep.subr.mxu0 0.0
    %7079 = vmatpush1.msra.mxu0 0.0
    %7080 = vmatprep.subr.mxu0 0.0
    %7081 = vmatpush1.msra.mxu0 0.0
    %7082 = vmatprep.subr.mxu0 0.0
    %7083 = vmatpush1.msra.mxu0 0.0
    %7084 = vmatprep.subr.mxu0 0.0
    %7085 = vmatpush1.msra.mxu0 0.0
    %7086 = vmatprep.subr.mxu0 0.0
    %7087 = vmatpush1.msra.mxu0 0.0
    %7088 = vmatprep.subr.mxu0 0.0
    %7089 = vmatpush1.msra.mxu0 0.0
    %7090 = vmatprep.subr.mxu0 0.0
    %7091 = vmatpush1.msra.mxu0 0.0
    %7092 = vmatprep.subr.mxu0 0.0
    %7093 = vmatpush1.msra.mxu0 %v67
    %7094 = vmatprep.subr.mxu0 0.0
    %7095 = vmatpush1.msra.mxu0 %v66
    %7096 = vmatprep.subr.mxu0 0.0
    %7097 = vmatpush1.msra.mxu0 %v65
    %7098 = vmatprep.subr.mxu0 0.0
    %7099 = vmatpush1.msra.mxu0 %v64
    %7100 = vmatprep.subr.mxu0 0.0
    %7101 = vmatpush2.msra.mxu0 0.0
    %7102 = vmatprep.subr.mxu0 0.0
    %7103 = vmatpush2.msra.mxu0 0.0
    %7104 = vmatprep.subr.mxu0 0.0
    %7105 = vmatpush2.msra.mxu0 0.0
    %7106 = vmatprep.subr.mxu0 0.0
    %7107 = vmatpush2.msra.mxu0 0.0
    %7108 = vmatprep.subr.mxu0 0.0
    %7109 = vmatpush2.msra.mxu0 0.0
    %7110 = vmatprep.subr.mxu0 0.0
    %7111 = vmatpush2.msra.mxu0 0.0
    %7112 = vmatprep.subr.mxu0 0.0
    %7113 = vmatpush2.msra.mxu0 0.0
    %7114 = vmatprep.subr.mxu0 0.0
    %7115 = vmatpush2.msra.mxu0 0.0
    %7116 = vmatprep.subr.mxu0 0.0
    %7117 = vmatpush2.msra.mxu0 0.0
    %7118 = vmatprep.subr.mxu0 0.0
    %7119 = vmatpush2.msra.mxu0 0.0
    %7120 = vmatprep.subr.mxu0 0.0
    %7121 = vmatpush2.msra.mxu0 0.0
    %7122 = vmatprep.subr.mxu0 0.0
    %7123 = vmatpush2.msra.mxu0 0.0
    %7124 = vmatprep.subr.mxu0 0.0
    %7125 = vmatpush2.msra.mxu0 0.0
    %7126 = vmatprep.subr.mxu0 0.0
    %7127 = vmatpush2.msra.mxu0 0.0
    %7128 = vmatprep.subr.mxu0 0.0
    %7129 = vmatpush2.msra.mxu0 0.0
    %7130 = vmatprep.subr.mxu0 0.0
    %7131 = vmatpush2.msra.mxu0 0.0
    %7132 = vmatprep.mubr.f32.mxu0 0.0
    %7133 = vmatmul.mubr.f32.gmra.mxu0 %v7066
    %v7134 = vpop.f32.mrf.mxu0
    %v7135 = vadd.f32 %v80, %v7134
    %v7136 = vpop.f32.mrf.mxu0
    %7137 = vdwg.mxu0
    %v7138 = vmul.f32 %v6682, 0.32806653
    %v7139 = vmul.f32 %v6831, -1.2884215
    %v7140 = vadd.f32 %v7138, %v7139
    %v7141 = vmul.f32 %v6982, 1.0914326
    %v7142 = vadd.f32 %v7140, %v7141
    %v7143 = vmul.f32 %v7135, -0.032312147
    %v7144 = vadd.f32 %v7142, %v7143
    %v7145 = vadd.f32 %v6537, %v7144
    %v7147 = vsel %vm83, %v7145, 0
    %7149 = vmatprep.subr.mxu0 0.0
    %7150 = vmatpush1.msra.mxu0 0.0
    %7151 = vmatprep.subr.mxu0 0.0
    %7152 = vmatpush1.msra.mxu0 0.0
    %7153 = vmatprep.subr.mxu0 0.0
    %7154 = vmatpush1.msra.mxu0 0.0
    %7155 = vmatprep.subr.mxu0 0.0
    %7156 = vmatpush1.msra.mxu0 0.0
    %7157 = vmatprep.subr.mxu0 0.0
    %7158 = vmatpush1.msra.mxu0 0.0
    %7159 = vmatprep.subr.mxu0 0.0
    %7160 = vmatpush1.msra.mxu0 0.0
    %7161 = vmatprep.subr.mxu0 0.0
    %7162 = vmatpush1.msra.mxu0 0.0
    %7163 = vmatprep.subr.mxu0 0.0
    %7164 = vmatpush1.msra.mxu0 0.0
    %7165 = vmatprep.subr.mxu0 0.0
    %7166 = vmatpush1.msra.mxu0 0.0
    %7167 = vmatprep.subr.mxu0 0.0
    %7168 = vmatpush1.msra.mxu0 0.0
    %7169 = vmatprep.subr.mxu0 0.0
    %7170 = vmatpush1.msra.mxu0 0.0
    %7171 = vmatprep.subr.mxu0 0.0
    %7172 = vmatpush1.msra.mxu0 0.0
    %7173 = vmatprep.subr.mxu0 0.0
    %7174 = vmatpush1.msra.mxu0 %v63
    %7175 = vmatprep.subr.mxu0 0.0
    %7176 = vmatpush1.msra.mxu0 %v62
    %7177 = vmatprep.subr.mxu0 0.0
    %7178 = vmatpush1.msra.mxu0 %v61
    %7179 = vmatprep.subr.mxu0 0.0
    %7180 = vmatpush1.msra.mxu0 %v60
    %7181 = vmatprep.subr.mxu0 0.0
    %7182 = vmatpush2.msra.mxu0 0.0
    %7183 = vmatprep.subr.mxu0 0.0
    %7184 = vmatpush2.msra.mxu0 0.0
    %7185 = vmatprep.subr.mxu0 0.0
    %7186 = vmatpush2.msra.mxu0 0.0
    %7187 = vmatprep.subr.mxu0 0.0
    %7188 = vmatpush2.msra.mxu0 0.0
    %7189 = vmatprep.subr.mxu0 0.0
    %7190 = vmatpush2.msra.mxu0 0.0
    %7191 = vmatprep.subr.mxu0 0.0
    %7192 = vmatpush2.msra.mxu0 0.0
    %7193 = vmatprep.subr.mxu0 0.0
    %7194 = vmatpush2.msra.mxu0 0.0
    %7195 = vmatprep.subr.mxu0 0.0
    %7196 = vmatpush2.msra.mxu0 0.0
    %7197 = vmatprep.subr.mxu0 0.0
    %7198 = vmatpush2.msra.mxu0 0.0
    %7199 = vmatprep.subr.mxu0 0.0
    %7200 = vmatpush2.msra.mxu0 0.0
    %7201 = vmatprep.subr.mxu0 0.0
    %7202 = vmatpush2.msra.mxu0 0.0
    %7203 = vmatprep.subr.mxu0 0.0
    %7204 = vmatpush2.msra.mxu0 0.0
    %7205 = vmatprep.subr.mxu0 0.0
    %7206 = vmatpush2.msra.mxu0 0.0
    %7207 = vmatprep.subr.mxu0 0.0
    %7208 = vmatpush2.msra.mxu0 0.0
    %7209 = vmatprep.subr.mxu0 0.0
    %7210 = vmatpush2.msra.mxu0 0.0
    %7211 = vmatprep.subr.mxu0 0.0
    %7212 = vmatpush2.msra.mxu0 0.0
    %7213 = vmatprep.mubr.f32.mxu0 0.0
    %7214 = vmatmul.mubr.f32.gmra.mxu0 %v7147
    %v7215 = vpop.f32.mrf.mxu0
    %v7216 = vadd.f32 %v73, %v7215
    %v7217 = vpop.f32.mrf.mxu0
    %7218 = vdwg.mxu0
    %v7219 = vtanh.pop %v7216
    %v7221 = vsel %vm83, %v7219, 0
    %7223 = vmatprep.subr.mxu0 0.0
    %7224 = vmatpush1.msra.mxu0 0.0
    %7225 = vmatprep.subr.mxu0 0.0
    %7226 = vmatpush1.msra.mxu0 0.0
    %7227 = vmatprep.subr.mxu0 0.0
    %7228 = vmatpush1.msra.mxu0 0.0
    %7229 = vmatprep.subr.mxu0 0.0
    %7230 = vmatpush1.msra.mxu0 0.0
    %7231 = vmatprep.subr.mxu0 0.0
    %7232 = vmatpush1.msra.mxu0 0.0
    %7233 = vmatprep.subr.mxu0 0.0
    %7234 = vmatpush1.msra.mxu0 0.0
    %7235 = vmatprep.subr.mxu0 0.0
    %7236 = vmatpush1.msra.mxu0 0.0
    %7237 = vmatprep.subr.mxu0 0.0
    %7238 = vmatpush1.msra.mxu0 0.0
    %7239 = vmatprep.subr.mxu0 0.0
    %7240 = vmatpush1.msra.mxu0 0.0
    %7241 = vmatprep.subr.mxu0 0.0
    %7242 = vmatpush1.msra.mxu0 0.0
    %7243 = vmatprep.subr.mxu0 0.0
    %7244 = vmatpush1.msra.mxu0 0.0
    %7245 = vmatprep.subr.mxu0 0.0
    %7246 = vmatpush1.msra.mxu0 0.0
    %7247 = vmatprep.subr.mxu0 0.0
    %7248 = vmatpush1.msra.mxu0 %v67
    %7249 = vmatprep.subr.mxu0 0.0
    %7250 = vmatpush1.msra.mxu0 %v66
    %7251 = vmatprep.subr.mxu0 0.0
    %7252 = vmatpush1.msra.mxu0 %v65
    %7253 = vmatprep.subr.mxu0 0.0
    %7254 = vmatpush1.msra.mxu0 %v64
    %7255 = vmatprep.subr.mxu0 0.0
    %7256 = vmatpush2.msra.mxu0 0.0
    %7257 = vmatprep.subr.mxu0 0.0
    %7258 = vmatpush2.msra.mxu0 0.0
    %7259 = vmatprep.subr.mxu0 0.0
    %7260 = vmatpush2.msra.mxu0 0.0
    %7261 = vmatprep.subr.mxu0 0.0
    %7262 = vmatpush2.msra.mxu0 0.0
    %7263 = vmatprep.subr.mxu0 0.0
    %7264 = vmatpush2.msra.mxu0 0.0
    %7265 = vmatprep.subr.mxu0 0.0
    %7266 = vmatpush2.msra.mxu0 0.0
    %7267 = vmatprep.subr.mxu0 0.0
    %7268 = vmatpush2.msra.mxu0 0.0
    %7269 = vmatprep.subr.mxu0 0.0
    %7270 = vmatpush2.msra.mxu0 0.0
    %7271 = vmatprep.subr.mxu0 0.0
    %7272 = vmatpush2.msra.mxu0 0.0
    %7273 = vmatprep.subr.mxu0 0.0
    %7274 = vmatpush2.msra.mxu0 0.0
    %7275 = vmatprep.subr.mxu0 0.0
    %7276 = vmatpush2.msra.mxu0 0.0
    %7277 = vmatprep.subr.mxu0 0.0
    %7278 = vmatpush2.msra.mxu0 0.0
    %7279 = vmatprep.subr.mxu0 0.0
    %7280 = vmatpush2.msra.mxu0 0.0
    %7281 = vmatprep.subr.mxu0 0.0
    %7282 = vmatpush2.msra.mxu0 0.0
    %7283 = vmatprep.subr.mxu0 0.0
    %7284 = vmatpush2.msra.mxu0 0.0
    %7285 = vmatprep.subr.mxu0 0.0
    %7286 = vmatpush2.msra.mxu0 0.0
    %7287 = vmatprep.mubr.f32.mxu0 0.0
    %7288 = vmatmul.mubr.f32.gmra.mxu0 %v7221
    %v7289 = vpop.f32.mrf.mxu0
    %v7290 = vadd.f32 %v80, %v7289
    %v7291 = vpop.f32.mrf.mxu0
    %7292 = vdwg.mxu0
    %v7293 = vmul.f32 %v6682, 0.3162528
    %v7294 = vmul.f32 %v6831, -1.1952862
    %v7295 = vadd.f32 %v7293, %v7294
    %v7296 = vmul.f32 %v6982, 0.9896025
    %v7297 = vadd.f32 %v7295, %v7296
    %v7298 = vmul.f32 %v7135, 0.030934343
    %v7299 = vadd.f32 %v7297, %v7298
    %v7300 = vmul.f32 %v7290, -0.030392367
    %v7301 = vadd.f32 %v7299, %v7300
    %v7302 = vadd.f32 %v6537, %v7301
    %v7304 = vsel %vm83, %v7302, 0
    %7306 = vmatprep.subr.mxu0 0.0
    %7307 = vmatpush1.msra.mxu0 0.0
    %7308 = vmatprep.subr.mxu0 0.0
    %7309 = vmatpush1.msra.mxu0 0.0
    %7310 = vmatprep.subr.mxu0 0.0
    %7311 = vmatpush1.msra.mxu0 0.0
    %7312 = vmatprep.subr.mxu0 0.0
    %7313 = vmatpush1.msra.mxu0 0.0
    %7314 = vmatprep.subr.mxu0 0.0
    %7315 = vmatpush1.msra.mxu0 0.0
    %7316 = vmatprep.subr.mxu0 0.0
    %7317 = vmatpush1.msra.mxu0 0.0
    %7318 = vmatprep.subr.mxu0 0.0
    %7319 = vmatpush1.msra.mxu0 0.0
    %7320 = vmatprep.subr.mxu0 0.0
    %7321 = vmatpush1.msra.mxu0 0.0
    %7322 = vmatprep.subr.mxu0 0.0
    %7323 = vmatpush1.msra.mxu0 0.0
    %7324 = vmatprep.subr.mxu0 0.0
    %7325 = vmatpush1.msra.mxu0 0.0
    %7326 = vmatprep.subr.mxu0 0.0
    %7327 = vmatpush1.msra.mxu0 0.0
    %7328 = vmatprep.subr.mxu0 0.0
    %7329 = vmatpush1.msra.mxu0 0.0
    %7330 = vmatprep.subr.mxu0 0.0
    %7331 = vmatpush1.msra.mxu0 %v63
    %7332 = vmatprep.subr.mxu0 0.0
    %7333 = vmatpush1.msra.mxu0 %v62
    %7334 = vmatprep.subr.mxu0 0.0
    %7335 = vmatpush1.msra.mxu0 %v61
    %7336 = vmatprep.subr.mxu0 0.0
    %7337 = vmatpush1.msra.mxu0 %v60
    %7338 = vmatprep.subr.mxu0 0.0
    %7339 = vmatpush2.msra.mxu0 0.0
    %7340 = vmatprep.subr.mxu0 0.0
    %7341 = vmatpush2.msra.mxu0 0.0
    %7342 = vmatprep.subr.mxu0 0.0
    %7343 = vmatpush2.msra.mxu0 0.0
    %7344 = vmatprep.subr.mxu0 0.0
    %7345 = vmatpush2.msra.mxu0 0.0
    %7346 = vmatprep.subr.mxu0 0.0
    %7347 = vmatpush2.msra.mxu0 0.0
    %7348 = vmatprep.subr.mxu0 0.0
    %7349 = vmatpush2.msra.mxu0 0.0
    %7350 = vmatprep.subr.mxu0 0.0
    %7351 = vmatpush2.msra.mxu0 0.0
    %7352 = vmatprep.subr.mxu0 0.0
    %7353 = vmatpush2.msra.mxu0 0.0
    %7354 = vmatprep.subr.mxu0 0.0
    %7355 = vmatpush2.msra.mxu0 0.0
    %7356 = vmatprep.subr.mxu0 0.0
    %7357 = vmatpush2.msra.mxu0 0.0
    %7358 = vmatprep.subr.mxu0 0.0
    %7359 = vmatpush2.msra.mxu0 0.0
    %7360 = vmatprep.subr.mxu0 0.0
    %7361 = vmatpush2.msra.mxu0 0.0
    %7362 = vmatprep.subr.mxu0 0.0
    %7363 = vmatpush2.msra.mxu0 0.0
    %7364 = vmatprep.subr.mxu0 0.0
    %7365 = vmatpush2.msra.mxu0 0.0
    %7366 = vmatprep.subr.mxu0 0.0
    %7367 = vmatpush2.msra.mxu0 0.0
    %7368 = vmatprep.subr.mxu0 0.0
    %7369 = vmatpush2.msra.mxu0 0.0
    %7370 = vmatprep.mubr.f32.mxu0 0.0
    %7371 = vmatmul.mubr.f32.gmra.mxu0 %v7304
    %v7372 = vpop.f32.mrf.mxu0
    %v7373 = vadd.f32 %v73, %v7372
    %v7374 = vpop.f32.mrf.mxu0
    %7375 = vdwg.mxu0
    %v7376 = vtanh.pop %v7373
    %v7378 = vsel %vm83, %v7376, 0
    %7380 = vmatprep.subr.mxu0 0.0
    %7381 = vmatpush1.msra.mxu0 0.0
    %7382 = vmatprep.subr.mxu0 0.0
    %7383 = vmatpush1.msra.mxu0 0.0
    %7384 = vmatprep.subr.mxu0 0.0
    %7385 = vmatpush1.msra.mxu0 0.0
    %7386 = vmatprep.subr.mxu0 0.0
    %7387 = vmatpush1.msra.mxu0 0.0
    %7388 = vmatprep.subr.mxu0 0.0
    %7389 = vmatpush1.msra.mxu0 0.0
    %7390 = vmatprep.subr.mxu0 0.0
    %7391 = vmatpush1.msra.mxu0 0.0
    %7392 = vmatprep.subr.mxu0 0.0
    %7393 = vmatpush1.msra.mxu0 0.0
    %7394 = vmatprep.subr.mxu0 0.0
    %7395 = vmatpush1.msra.mxu0 0.0
    %7396 = vmatprep.subr.mxu0 0.0
    %7397 = vmatpush1.msra.mxu0 0.0
    %7398 = vmatprep.subr.mxu0 0.0
    %7399 = vmatpush1.msra.mxu0 0.0
    %7400 = vmatprep.subr.mxu0 0.0
    %7401 = vmatpush1.msra.mxu0 0.0
    %7402 = vmatprep.subr.mxu0 0.0
    %7403 = vmatpush1.msra.mxu0 0.0
    %7404 = vmatprep.subr.mxu0 0.0
    %7405 = vmatpush1.msra.mxu0 %v67
    %7406 = vmatprep.subr.mxu0 0.0
    %7407 = vmatpush1.msra.mxu0 %v66
    %7408 = vmatprep.subr.mxu0 0.0
    %7409 = vmatpush1.msra.mxu0 %v65
    %7410 = vmatprep.subr.mxu0 0.0
    %7411 = vmatpush1.msra.mxu0 %v64
    %7412 = vmatprep.subr.mxu0 0.0
    %7413 = vmatpush2.msra.mxu0 0.0
    %7414 = vmatprep.subr.mxu0 0.0
    %7415 = vmatpush2.msra.mxu0 0.0
    %7416 = vmatprep.subr.mxu0 0.0
    %7417 = vmatpush2.msra.mxu0 0.0
    %7418 = vmatprep.subr.mxu0 0.0
    %7419 = vmatpush2.msra.mxu0 0.0
    %7420 = vmatprep.subr.mxu0 0.0
    %7421 = vmatpush2.msra.mxu0 0.0
    %7422 = vmatprep.subr.mxu0 0.0
    %7423 = vmatpush2.msra.mxu0 0.0
    %7424 = vmatprep.subr.mxu0 0.0
    %7425 = vmatpush2.msra.mxu0 0.0
    %7426 = vmatprep.subr.mxu0 0.0
    %7427 = vmatpush2.msra.mxu0 0.0
    %7428 = vmatprep.subr.mxu0 0.0
    %7429 = vmatpush2.msra.mxu0 0.0
    %7430 = vmatprep.subr.mxu0 0.0
    %7431 = vmatpush2.msra.mxu0 0.0
    %7432 = vmatprep.subr.mxu0 0.0
    %7433 = vmatpush2.msra.mxu0 0.0
    %7434 = vmatprep.subr.mxu0 0.0
    %7435 = vmatpush2.msra.mxu0 0.0
    %7436 = vmatprep.subr.mxu0 0.0
    %7437 = vmatpush2.msra.mxu0 0.0
    %7438 = vmatprep.subr.mxu0 0.0
    %7439 = vmatpush2.msra.mxu0 0.0
    %7440 = vmatprep.subr.mxu0 0.0
    %7441 = vmatpush2.msra.mxu0 0.0
    %7442 = vmatprep.subr.mxu0 0.0
    %7443 = vmatpush2.msra.mxu0 0.0
    %7444 = vmatprep.mubr.f32.mxu0 0.0
    %7445 = vmatmul.mubr.f32.gmra.mxu0 %v7378
    %v7446 = vpop.f32.mrf.mxu0
    %v7447 = vadd.f32 %v80, %v7446
    %v7448 = vpop.f32.mrf.mxu0
    %7449 = vdwg.mxu0
    %v7450 = vmul.f32 %v6682, 0.010127314
    %v7451 = vmul.f32 %v6982, 0.049915146
    %v7452 = vadd.f32 %v7450, %v7451
    %v7453 = vmul.f32 %v7135, 0.07233796
    %v7454 = vadd.f32 %v7452, %v7453
    %v7455 = vmul.f32 %v7290, -0.035819575
    %v7456 = vadd.f32 %v7454, %v7455
    %v7457 = vmul.f32 %v7447, 0.014550265
    %v7458 = vadd.f32 %v7456, %v7457
    %v7459 = vadd.f32 %v6537, %v7458
    %v7461 = vsel %vm83, %v7459, 0
    %7463 = vmatprep.subr.mxu0 0.0
    %7464 = vmatpush1.msra.mxu0 0.0
    %7465 = vmatprep.subr.mxu0 0.0
    %7466 = vmatpush1.msra.mxu0 0.0
    %7467 = vmatprep.subr.mxu0 0.0
    %7468 = vmatpush1.msra.mxu0 0.0
    %7469 = vmatprep.subr.mxu0 0.0
    %7470 = vmatpush1.msra.mxu0 0.0
    %7471 = vmatprep.subr.mxu0 0.0
    %7472 = vmatpush1.msra.mxu0 0.0
    %7473 = vmatprep.subr.mxu0 0.0
    %7474 = vmatpush1.msra.mxu0 0.0
    %7475 = vmatprep.subr.mxu0 0.0
    %7476 = vmatpush1.msra.mxu0 0.0
    %7477 = vmatprep.subr.mxu0 0.0
    %7478 = vmatpush1.msra.mxu0 0.0
    %7479 = vmatprep.subr.mxu0 0.0
    %7480 = vmatpush1.msra.mxu0 0.0
    %7481 = vmatprep.subr.mxu0 0.0
    %7482 = vmatpush1.msra.mxu0 0.0
    %7483 = vmatprep.subr.mxu0 0.0
    %7484 = vmatpush1.msra.mxu0 0.0
    %7485 = vmatprep.subr.mxu0 0.0
    %7486 = vmatpush1.msra.mxu0 0.0
    %7487 = vmatprep.subr.mxu0 0.0
    %7488 = vmatpush1.msra.mxu0 %v63
    %7489 = vmatprep.subr.mxu0 0.0
    %7490 = vmatpush1.msra.mxu0 %v62
    %7491 = vmatprep.subr.mxu0 0.0
    %7492 = vmatpush1.msra.mxu0 %v61
    %7493 = vmatprep.subr.mxu0 0.0
    %7494 = vmatpush1.msra.mxu0 %v60
    %7495 = vmatprep.subr.mxu0 0.0
    %7496 = vmatpush2.msra.mxu0 0.0
    %7497 = vmatprep.subr.mxu0 0.0
    %7498 = vmatpush2.msra.mxu0 0.0
    %7499 = vmatprep.subr.mxu0 0.0
    %7500 = vmatpush2.msra.mxu0 0.0
    %7501 = vmatprep.subr.mxu0 0.0
    %7502 = vmatpush2.msra.mxu0 0.0
    %7503 = vmatprep.subr.mxu0 0.0
    %7504 = vmatpush2.msra.mxu0 0.0
    %7505 = vmatprep.subr.mxu0 0.0
    %7506 = vmatpush2.msra.mxu0 0.0
    %7507 = vmatprep.subr.mxu0 0.0
    %7508 = vmatpush2.msra.mxu0 0.0
    %7509 = vmatprep.subr.mxu0 0.0
    %7510 = vmatpush2.msra.mxu0 0.0
    %7511 = vmatprep.subr.mxu0 0.0
    %7512 = vmatpush2.msra.mxu0 0.0
    %7513 = vmatprep.subr.mxu0 0.0
    %7514 = vmatpush2.msra.mxu0 0.0
    %7515 = vmatprep.subr.mxu0 0.0
    %7516 = vmatpush2.msra.mxu0 0.0
    %7517 = vmatprep.subr.mxu0 0.0
    %7518 = vmatpush2.msra.mxu0 0.0
    %7519 = vmatprep.subr.mxu0 0.0
    %7520 = vmatpush2.msra.mxu0 0.0
    %7521 = vmatprep.subr.mxu0 0.0
    %7522 = vmatpush2.msra.mxu0 0.0
    %7523 = vmatprep.subr.mxu0 0.0
    %7524 = vmatpush2.msra.mxu0 0.0
    %7525 = vmatprep.subr.mxu0 0.0
    %7526 = vmatpush2.msra.mxu0 0.0
    %7527 = vmatprep.mubr.f32.mxu0 0.0
    %7528 = vmatmul.mubr.f32.gmra.mxu0 %v7461
    %v7529 = vpop.f32.mrf.mxu0
    %v7530 = vadd.f32 %v73, %v7529
    %v7531 = vpop.f32.mrf.mxu0
    %7532 = vdwg.mxu0
    %v7533 = vtanh.pop %v7530
    %v7535 = vsel %vm83, %v7533, 0
    %7537 = vmatprep.subr.mxu0 0.0
    %7538 = vmatpush1.msra.mxu0 0.0
    %7539 = vmatprep.subr.mxu0 0.0
    %7540 = vmatpush1.msra.mxu0 0.0
    %7541 = vmatprep.subr.mxu0 0.0
    %7542 = vmatpush1.msra.mxu0 0.0
    %7543 = vmatprep.subr.mxu0 0.0
    %7544 = vmatpush1.msra.mxu0 0.0
    %7545 = vmatprep.subr.mxu0 0.0
    %7546 = vmatpush1.msra.mxu0 0.0
    %7547 = vmatprep.subr.mxu0 0.0
    %7548 = vmatpush1.msra.mxu0 0.0
    %7549 = vmatprep.subr.mxu0 0.0
    %7550 = vmatpush1.msra.mxu0 0.0
    %7551 = vmatprep.subr.mxu0 0.0
    %7552 = vmatpush1.msra.mxu0 0.0
    %7553 = vmatprep.subr.mxu0 0.0
    %7554 = vmatpush1.msra.mxu0 0.0
    %7555 = vmatprep.subr.mxu0 0.0
    %7556 = vmatpush1.msra.mxu0 0.0
    %7557 = vmatprep.subr.mxu0 0.0
    %7558 = vmatpush1.msra.mxu0 0.0
    %7559 = vmatprep.subr.mxu0 0.0
    %7560 = vmatpush1.msra.mxu0 0.0
    %7561 = vmatprep.subr.mxu0 0.0
    %7562 = vmatpush1.msra.mxu0 %v67
    %7563 = vmatprep.subr.mxu0 0.0
    %7564 = vmatpush1.msra.mxu0 %v66
    %7565 = vmatprep.subr.mxu0 0.0
    %7566 = vmatpush1.msra.mxu0 %v65
    %7567 = vmatprep.subr.mxu0 0.0
    %7568 = vmatpush1.msra.mxu0 %v64
    %7569 = vmatprep.subr.mxu0 0.0
    %7570 = vmatpush2.msra.mxu0 0.0
    %7571 = vmatprep.subr.mxu0 0.0
    %7572 = vmatpush2.msra.mxu0 0.0
    %7573 = vmatprep.subr.mxu0 0.0
    %7574 = vmatpush2.msra.mxu0 0.0
    %7575 = vmatprep.subr.mxu0 0.0
    %7576 = vmatpush2.msra.mxu0 0.0
    %7577 = vmatprep.subr.mxu0 0.0
    %7578 = vmatpush2.msra.mxu0 0.0
    %7579 = vmatprep.subr.mxu0 0.0
    %7580 = vmatpush2.msra.mxu0 0.0
    %7581 = vmatprep.subr.mxu0 0.0
    %7582 = vmatpush2.msra.mxu0 0.0
    %7583 = vmatprep.subr.mxu0 0.0
    %7584 = vmatpush2.msra.mxu0 0.0
    %7585 = vmatprep.subr.mxu0 0.0
    %7586 = vmatpush2.msra.mxu0 0.0
    %7587 = vmatprep.subr.mxu0 0.0
    %7588 = vmatpush2.msra.mxu0 0.0
    %7589 = vmatprep.subr.mxu0 0.0
    %7590 = vmatpush2.msra.mxu0 0.0
    %7591 = vmatprep.subr.mxu0 0.0
    %7592 = vmatpush2.msra.mxu0 0.0
    %7593 = vmatprep.subr.mxu0 0.0
    %7594 = vmatpush2.msra.mxu0 0.0
    %7595 = vmatprep.subr.mxu0 0.0
    %7596 = vmatpush2.msra.mxu0 0.0
    %7597 = vmatprep.subr.mxu0 0.0
    %7598 = vmatpush2.msra.mxu0 0.0
    %7599 = vmatprep.subr.mxu0 0.0
    %7600 = vmatpush2.msra.mxu0 0.0
    %7601 = vmatprep.mubr.f32.mxu0 0.0
    %7602 = vmatmul.mubr.f32.gmra.mxu0 %v7535
    %v7603 = vpop.f32.mrf.mxu0
    %v7604 = vadd.f32 %v80, %v7603
    %v7605 = vpop.f32.mrf.mxu0
    %7606 = vdwg.mxu0
    %v7607 = vmul.f32 %v7604, 0.022222223
    %v7608 = vadd.f32 %v7459, %v7607
    %v7610 = vsel %vm83, %v7608, 0
    %7612 = vmatprep.subr.mxu0 0.0
    %7613 = vmatpush1.msra.mxu0 0.0
    %7614 = vmatprep.subr.mxu0 0.0
    %7615 = vmatpush1.msra.mxu0 0.0
    %7616 = vmatprep.subr.mxu0 0.0
    %7617 = vmatpush1.msra.mxu0 0.0
    %7618 = vmatprep.subr.mxu0 0.0
    %7619 = vmatpush1.msra.mxu0 0.0
    %7620 = vmatprep.subr.mxu0 0.0
    %7621 = vmatpush1.msra.mxu0 0.0
    %7622 = vmatprep.subr.mxu0 0.0
    %7623 = vmatpush1.msra.mxu0 0.0
    %7624 = vmatprep.subr.mxu0 0.0
    %7625 = vmatpush1.msra.mxu0 0.0
    %7626 = vmatprep.subr.mxu0 0.0
    %7627 = vmatpush1.msra.mxu0 0.0
    %7628 = vmatprep.subr.mxu0 0.0
    %7629 = vmatpush1.msra.mxu0 0.0
    %7630 = vmatprep.subr.mxu0 0.0
    %7631 = vmatpush1.msra.mxu0 0.0
    %7632 = vmatprep.subr.mxu0 0.0
    %7633 = vmatpush1.msra.mxu0 0.0
    %7634 = vmatprep.subr.mxu0 0.0
    %7635 = vmatpush1.msra.mxu0 0.0
    %7636 = vmatprep.subr.mxu0 0.0
    %7637 = vmatpush1.msra.mxu0 %v63
    %7638 = vmatprep.subr.mxu0 0.0
    %7639 = vmatpush1.msra.mxu0 %v62
    %7640 = vmatprep.subr.mxu0 0.0
    %7641 = vmatpush1.msra.mxu0 %v61
    %7642 = vmatprep.subr.mxu0 0.0
    %7643 = vmatpush1.msra.mxu0 %v60
    %7644 = vmatprep.subr.mxu0 0.0
    %7645 = vmatpush2.msra.mxu0 0.0
    %7646 = vmatprep.subr.mxu0 0.0
    %7647 = vmatpush2.msra.mxu0 0.0
    %7648 = vmatprep.subr.mxu0 0.0
    %7649 = vmatpush2.msra.mxu0 0.0
    %7650 = vmatprep.subr.mxu0 0.0
    %7651 = vmatpush2.msra.mxu0 0.0
    %7652 = vmatprep.subr.mxu0 0.0
    %7653 = vmatpush2.msra.mxu0 0.0
    %7654 = vmatprep.subr.mxu0 0.0
    %7655 = vmatpush2.msra.mxu0 0.0
    %7656 = vmatprep.subr.mxu0 0.0
    %7657 = vmatpush2.msra.mxu0 0.0
    %7658 = vmatprep.subr.mxu0 0.0
    %7659 = vmatpush2.msra.mxu0 0.0
    %7660 = vmatprep.subr.mxu0 0.0
    %7661 = vmatpush2.msra.mxu0 0.0
    %7662 = vmatprep.subr.mxu0 0.0
    %7663 = vmatpush2.msra.mxu0 0.0
    %7664 = vmatprep.subr.mxu0 0.0
    %7665 = vmatpush2.msra.mxu0 0.0
    %7666 = vmatprep.subr.mxu0 0.0
    %7667 = vmatpush2.msra.mxu0 0.0
    %7668 = vmatprep.subr.mxu0 0.0
    %7669 = vmatpush2.msra.mxu0 0.0
    %7670 = vmatprep.subr.mxu0 0.0
    %7671 = vmatpush2.msra.mxu0 0.0
    %7672 = vmatprep.subr.mxu0 0.0
    %7673 = vmatpush2.msra.mxu0 0.0
    %7674 = vmatprep.subr.mxu0 0.0
    %7675 = vmatpush2.msra.mxu0 0.0
    %7676 = vmatprep.mubr.f32.mxu0 0.0
    %7677 = vmatmul.mubr.f32.gmra.mxu0 %v7610
    %v7678 = vpop.f32.mrf.mxu0
    %v7679 = vadd.f32 %v73, %v7678
    %v7680 = vpop.f32.mrf.mxu0
    %7681 = vdwg.mxu0
    %v7682 = vtanh.pop %v7679
    %v7684 = vsel %vm83, %v7682, 0
    %7686 = vmatprep.subr.mxu0 0.0
    %7687 = vmatpush1.msra.mxu0 0.0
    %7688 = vmatprep.subr.mxu0 0.0
    %7689 = vmatpush1.msra.mxu0 0.0
    %7690 = vmatprep.subr.mxu0 0.0
    %7691 = vmatpush1.msra.mxu0 0.0
    %7692 = vmatprep.subr.mxu0 0.0
    %7693 = vmatpush1.msra.mxu0 0.0
    %7694 = vmatprep.subr.mxu0 0.0
    %7695 = vmatpush1.msra.mxu0 0.0
    %7696 = vmatprep.subr.mxu0 0.0
    %7697 = vmatpush1.msra.mxu0 0.0
    %7698 = vmatprep.subr.mxu0 0.0
    %7699 = vmatpush1.msra.mxu0 0.0
    %7700 = vmatprep.subr.mxu0 0.0
    %7701 = vmatpush1.msra.mxu0 0.0
    %7702 = vmatprep.subr.mxu0 0.0
    %7703 = vmatpush1.msra.mxu0 0.0
    %7704 = vmatprep.subr.mxu0 0.0
    %7705 = vmatpush1.msra.mxu0 0.0
    %7706 = vmatprep.subr.mxu0 0.0
    %7707 = vmatpush1.msra.mxu0 0.0
    %7708 = vmatprep.subr.mxu0 0.0
    %7709 = vmatpush1.msra.mxu0 0.0
    %7710 = vmatprep.subr.mxu0 0.0
    %7711 = vmatpush1.msra.mxu0 %v67
    %7712 = vmatprep.subr.mxu0 0.0
    %7713 = vmatpush1.msra.mxu0 %v66
    %7714 = vmatprep.subr.mxu0 0.0
    %7715 = vmatpush1.msra.mxu0 %v65
    %7716 = vmatprep.subr.mxu0 0.0
    %7717 = vmatpush1.msra.mxu0 %v64
    %7718 = vmatprep.subr.mxu0 0.0
    %7719 = vmatpush2.msra.mxu0 0.0
    %7720 = vmatprep.subr.mxu0 0.0
    %7721 = vmatpush2.msra.mxu0 0.0
    %7722 = vmatprep.subr.mxu0 0.0
    %7723 = vmatpush2.msra.mxu0 0.0
    %7724 = vmatprep.subr.mxu0 0.0
    %7725 = vmatpush2.msra.mxu0 0.0
    %7726 = vmatprep.subr.mxu0 0.0
    %7727 = vmatpush2.msra.mxu0 0.0
    %7728 = vmatprep.subr.mxu0 0.0
    %7729 = vmatpush2.msra.mxu0 0.0
    %7730 = vmatprep.subr.mxu0 0.0
    %7731 = vmatpush2.msra.mxu0 0.0
    %7732 = vmatprep.subr.mxu0 0.0
    %7733 = vmatpush2.msra.mxu0 0.0
    %7734 = vmatprep.subr.mxu0 0.0
    %7735 = vmatpush2.msra.mxu0 0.0
    %7736 = vmatprep.subr.mxu0 0.0
    %7737 = vmatpush2.msra.mxu0 0.0
    %7738 = vmatprep.subr.mxu0 0.0
    %7739 = vmatpush2.msra.mxu0 0.0
    %7740 = vmatprep.subr.mxu0 0.0
    %7741 = vmatpush2.msra.mxu0 0.0
    %7742 = vmatprep.subr.mxu0 0.0
    %7743 = vmatpush2.msra.mxu0 0.0
    %7744 = vmatprep.subr.mxu0 0.0
    %7745 = vmatpush2.msra.mxu0 0.0
    %7746 = vmatprep.subr.mxu0 0.0
    %7747 = vmatpush2.msra.mxu0 0.0
    %7748 = vmatprep.subr.mxu0 0.0
    %7749 = vmatpush2.msra.mxu0 0.0
    %7750 = vmatprep.mubr.f32.mxu0 0.0
    %7751 = vmatmul.mubr.f32.gmra.mxu0 %v7684
    %v7752 = vpop.f32.mrf.mxu0
    %v7753 = vadd.f32 %v80, %v7752
    %v7754 = vpop.f32.mrf.mxu0
    %7755 = vdwg.mxu0
    %v7756 = vmul.f32 %v7604, 0.008333334
    %v7757 = vmul.f32 %v7753, 0.025
    %v7758 = vadd.f32 %v7756, %v7757
    %v7759 = vadd.f32 %v7459, %v7758
    %v7761 = vsel %vm83, %v7759, 0
    %7763 = vmatprep.subr.mxu0 0.0
    %7764 = vmatpush1.msra.mxu0 0.0
    %7765 = vmatprep.subr.mxu0 0.0
    %7766 = vmatpush1.msra.mxu0 0.0
    %7767 = vmatprep.subr.mxu0 0.0
    %7768 = vmatpush1.msra.mxu0 0.0
    %7769 = vmatprep.subr.mxu0 0.0
    %7770 = vmatpush1.msra.mxu0 0.0
    %7771 = vmatprep.subr.mxu0 0.0
    %7772 = vmatpush1.msra.mxu0 0.0
    %7773 = vmatprep.subr.mxu0 0.0
    %7774 = vmatpush1.msra.mxu0 0.0
    %7775 = vmatprep.subr.mxu0 0.0
    %7776 = vmatpush1.msra.mxu0 0.0
    %7777 = vmatprep.subr.mxu0 0.0
    %7778 = vmatpush1.msra.mxu0 0.0
    %7779 = vmatprep.subr.mxu0 0.0
    %7780 = vmatpush1.msra.mxu0 0.0
    %7781 = vmatprep.subr.mxu0 0.0
    %7782 = vmatpush1.msra.mxu0 0.0
    %7783 = vmatprep.subr.mxu0 0.0
    %7784 = vmatpush1.msra.mxu0 0.0
    %7785 = vmatprep.subr.mxu0 0.0
    %7786 = vmatpush1.msra.mxu0 0.0
    %7787 = vmatprep.subr.mxu0 0.0
    %7788 = vmatpush1.msra.mxu0 %v63
    %7789 = vmatprep.subr.mxu0 0.0
    %7790 = vmatpush1.msra.mxu0 %v62
    %7791 = vmatprep.subr.mxu0 0.0
    %7792 = vmatpush1.msra.mxu0 %v61
    %7793 = vmatprep.subr.mxu0 0.0
    %7794 = vmatpush1.msra.mxu0 %v60
    %7795 = vmatprep.subr.mxu0 0.0
    %7796 = vmatpush2.msra.mxu0 0.0
    %7797 = vmatprep.subr.mxu0 0.0
    %7798 = vmatpush2.msra.mxu0 0.0
    %7799 = vmatprep.subr.mxu0 0.0
    %7800 = vmatpush2.msra.mxu0 0.0
    %7801 = vmatprep.subr.mxu0 0.0
    %7802 = vmatpush2.msra.mxu0 0.0
    %7803 = vmatprep.subr.mxu0 0.0
    %7804 = vmatpush2.msra.mxu0 0.0
    %7805 = vmatprep.subr.mxu0 0.0
    %7806 = vmatpush2.msra.mxu0 0.0
    %7807 = vmatprep.subr.mxu0 0.0
    %7808 = vmatpush2.msra.mxu0 0.0
    %7809 = vmatprep.subr.mxu0 0.0
    %7810 = vmatpush2.msra.mxu0 0.0
    %7811 = vmatprep.subr.mxu0 0.0
    %7812 = vmatpush2.msra.mxu0 0.0
    %7813 = vmatprep.subr.mxu0 0.0
    %7814 = vmatpush2.msra.mxu0 0.0
    %7815 = vmatprep.subr.mxu0 0.0
    %7816 = vmatpush2.msra.mxu0 0.0
    %7817 = vmatprep.subr.mxu0 0.0
    %7818 = vmatpush2.msra.mxu0 0.0
    %7819 = vmatprep.subr.mxu0 0.0
    %7820 = vmatpush2.msra.mxu0 0.0
    %7821 = vmatprep.subr.mxu0 0.0
    %7822 = vmatpush2.msra.mxu0 0.0
    %7823 = vmatprep.subr.mxu0 0.0
    %7824 = vmatpush2.msra.mxu0 0.0
    %7825 = vmatprep.subr.mxu0 0.0
    %7826 = vmatpush2.msra.mxu0 0.0
    %7827 = vmatprep.mubr.f32.mxu0 0.0
    %7828 = vmatmul.mubr.f32.gmra.mxu0 %v7761
    %v7829 = vpop.f32.mrf.mxu0
    %v7830 = vadd.f32 %v73, %v7829
    %v7831 = vpop.f32.mrf.mxu0
    %7832 = vdwg.mxu0
    %v7833 = vtanh.pop %v7830
    %v7835 = vsel %vm83, %v7833, 0
    %7837 = vmatprep.subr.mxu0 0.0
    %7838 = vmatpush1.msra.mxu0 0.0
    %7839 = vmatprep.subr.mxu0 0.0
    %7840 = vmatpush1.msra.mxu0 0.0
    %7841 = vmatprep.subr.mxu0 0.0
    %7842 = vmatpush1.msra.mxu0 0.0
    %7843 = vmatprep.subr.mxu0 0.0
    %7844 = vmatpush1.msra.mxu0 0.0
    %7845 = vmatprep.subr.mxu0 0.0
    %7846 = vmatpush1.msra.mxu0 0.0
    %7847 = vmatprep.subr.mxu0 0.0
    %7848 = vmatpush1.msra.mxu0 0.0
    %7849 = vmatprep.subr.mxu0 0.0
    %7850 = vmatpush1.msra.mxu0 0.0
    %7851 = vmatprep.subr.mxu0 0.0
    %7852 = vmatpush1.msra.mxu0 0.0
    %7853 = vmatprep.subr.mxu0 0.0
    %7854 = vmatpush1.msra.mxu0 0.0
    %7855 = vmatprep.subr.mxu0 0.0
    %7856 = vmatpush1.msra.mxu0 0.0
    %7857 = vmatprep.subr.mxu0 0.0
    %7858 = vmatpush1.msra.mxu0 0.0
    %7859 = vmatprep.subr.mxu0 0.0
    %7860 = vmatpush1.msra.mxu0 0.0
    %7861 = vmatprep.subr.mxu0 0.0
    %7862 = vmatpush1.msra.mxu0 %v67
    %7863 = vmatprep.subr.mxu0 0.0
    %7864 = vmatpush1.msra.mxu0 %v66
    %7865 = vmatprep.subr.mxu0 0.0
    %7866 = vmatpush1.msra.mxu0 %v65
    %7867 = vmatprep.subr.mxu0 0.0
    %7868 = vmatpush1.msra.mxu0 %v64
    %7869 = vmatprep.subr.mxu0 0.0
    %7870 = vmatpush2.msra.mxu0 0.0
    %7871 = vmatprep.subr.mxu0 0.0
    %7872 = vmatpush2.msra.mxu0 0.0
    %7873 = vmatprep.subr.mxu0 0.0
    %7874 = vmatpush2.msra.mxu0 0.0
    %7875 = vmatprep.subr.mxu0 0.0
    %7876 = vmatpush2.msra.mxu0 0.0
    %7877 = vmatprep.subr.mxu0 0.0
    %7878 = vmatpush2.msra.mxu0 0.0
    %7879 = vmatprep.subr.mxu0 0.0
    %7880 = vmatpush2.msra.mxu0 0.0
    %7881 = vmatprep.subr.mxu0 0.0
    %7882 = vmatpush2.msra.mxu0 0.0
    %7883 = vmatprep.subr.mxu0 0.0
    %7884 = vmatpush2.msra.mxu0 0.0
    %7885 = vmatprep.subr.mxu0 0.0
    %7886 = vmatpush2.msra.mxu0 0.0
    %7887 = vmatprep.subr.mxu0 0.0
    %7888 = vmatpush2.msra.mxu0 0.0
    %7889 = vmatprep.subr.mxu0 0.0
    %7890 = vmatpush2.msra.mxu0 0.0
    %7891 = vmatprep.subr.mxu0 0.0
    %7892 = vmatpush2.msra.mxu0 0.0
    %7893 = vmatprep.subr.mxu0 0.0
    %7894 = vmatpush2.msra.mxu0 0.0
    %7895 = vmatprep.subr.mxu0 0.0
    %7896 = vmatpush2.msra.mxu0 0.0
    %7897 = vmatprep.subr.mxu0 0.0
    %7898 = vmatpush2.msra.mxu0 0.0
    %7899 = vmatprep.subr.mxu0 0.0
    %7900 = vmatpush2.msra.mxu0 0.0
    %7901 = vmatprep.mubr.f32.mxu0 0.0
    %7902 = vmatmul.mubr.f32.gmra.mxu0 %v7835
    %v7903 = vpop.f32.mrf.mxu0
    %v7904 = vadd.f32 %v80, %v7903
    %v7905 = vpop.f32.mrf.mxu0
    %7906 = vdwg.mxu0
    %v7907 = vmul.f32 %v7604, 0.108641975
    %v7908 = vmul.f32 %v7753, -0.4148148
    %v7909 = vadd.f32 %v7907, %v7908
    %v7910 = vmul.f32 %v7904, 0.39506173
    %v7911 = vadd.f32 %v7909, %v7910
    %v7912 = vadd.f32 %v7459, %v7911
    %v7914 = vsel %vm83, %v7912, 0
    %7916 = vmatprep.subr.mxu0 0.0
    %7917 = vmatpush1.msra.mxu0 0.0
    %7918 = vmatprep.subr.mxu0 0.0
    %7919 = vmatpush1.msra.mxu0 0.0
    %7920 = vmatprep.subr.mxu0 0.0
    %7921 = vmatpush1.msra.mxu0 0.0
    %7922 = vmatprep.subr.mxu0 0.0
    %7923 = vmatpush1.msra.mxu0 0.0
    %7924 = vmatprep.subr.mxu0 0.0
    %7925 = vmatpush1.msra.mxu0 0.0
    %7926 = vmatprep.subr.mxu0 0.0
    %7927 = vmatpush1.msra.mxu0 0.0
    %7928 = vmatprep.subr.mxu0 0.0
    %7929 = vmatpush1.msra.mxu0 0.0
    %7930 = vmatprep.subr.mxu0 0.0
    %7931 = vmatpush1.msra.mxu0 0.0
    %7932 = vmatprep.subr.mxu0 0.0
    %7933 = vmatpush1.msra.mxu0 0.0
    %7934 = vmatprep.subr.mxu0 0.0
    %7935 = vmatpush1.msra.mxu0 0.0
    %7936 = vmatprep.subr.mxu0 0.0
    %7937 = vmatpush1.msra.mxu0 0.0
    %7938 = vmatprep.subr.mxu0 0.0
    %7939 = vmatpush1.msra.mxu0 0.0
    %7940 = vmatprep.subr.mxu0 0.0
    %7941 = vmatpush1.msra.mxu0 %v63
    %7942 = vmatprep.subr.mxu0 0.0
    %7943 = vmatpush1.msra.mxu0 %v62
    %7944 = vmatprep.subr.mxu0 0.0
    %7945 = vmatpush1.msra.mxu0 %v61
    %7946 = vmatprep.subr.mxu0 0.0
    %7947 = vmatpush1.msra.mxu0 %v60
    %7948 = vmatprep.subr.mxu0 0.0
    %7949 = vmatpush2.msra.mxu0 0.0
    %7950 = vmatprep.subr.mxu0 0.0
    %7951 = vmatpush2.msra.mxu0 0.0
    %7952 = vmatprep.subr.mxu0 0.0
    %7953 = vmatpush2.msra.mxu0 0.0
    %7954 = vmatprep.subr.mxu0 0.0
    %7955 = vmatpush2.msra.mxu0 0.0
    %7956 = vmatprep.subr.mxu0 0.0
    %7957 = vmatpush2.msra.mxu0 0.0
    %7958 = vmatprep.subr.mxu0 0.0
    %7959 = vmatpush2.msra.mxu0 0.0
    %7960 = vmatprep.subr.mxu0 0.0
    %7961 = vmatpush2.msra.mxu0 0.0
    %7962 = vmatprep.subr.mxu0 0.0
    %7963 = vmatpush2.msra.mxu0 0.0
    %7964 = vmatprep.subr.mxu0 0.0
    %7965 = vmatpush2.msra.mxu0 0.0
    %7966 = vmatprep.subr.mxu0 0.0
    %7967 = vmatpush2.msra.mxu0 0.0
    %7968 = vmatprep.subr.mxu0 0.0
    %7969 = vmatpush2.msra.mxu0 0.0
    %7970 = vmatprep.subr.mxu0 0.0
    %7971 = vmatpush2.msra.mxu0 0.0
    %7972 = vmatprep.subr.mxu0 0.0
    %7973 = vmatpush2.msra.mxu0 0.0
    %7974 = vmatprep.subr.mxu0 0.0
    %7975 = vmatpush2.msra.mxu0 0.0
    %7976 = vmatprep.subr.mxu0 0.0
    %7977 = vmatpush2.msra.mxu0 0.0
    %7978 = vmatprep.subr.mxu0 0.0
    %7979 = vmatpush2.msra.mxu0 0.0
    %7980 = vmatprep.mubr.f32.mxu0 0.0
    %7981 = vmatmul.mubr.f32.gmra.mxu0 %v7914
    %v7982 = vpop.f32.mrf.mxu0
    %v7983 = vadd.f32 %v73, %v7982
    %v7984 = vpop.f32.mrf.mxu0
    %7985 = vdwg.mxu0
    %v7986 = vtanh.pop %v7983
    %v7988 = vsel %vm83, %v7986, 0
    %7990 = vmatprep.subr.mxu0 0.0
    %7991 = vmatpush1.msra.mxu0 0.0
    %7992 = vmatprep.subr.mxu0 0.0
    %7993 = vmatpush1.msra.mxu0 0.0
    %7994 = vmatprep.subr.mxu0 0.0
    %7995 = vmatpush1.msra.mxu0 0.0
    %7996 = vmatprep.subr.mxu0 0.0
    %7997 = vmatpush1.msra.mxu0 0.0
    %7998 = vmatprep.subr.mxu0 0.0
    %7999 = vmatpush1.msra.mxu0 0.0
    %8000 = vmatprep.subr.mxu0 0.0
    %8001 = vmatpush1.msra.mxu0 0.0
    %8002 = vmatprep.subr.mxu0 0.0
    %8003 = vmatpush1.msra.mxu0 0.0
    %8004 = vmatprep.subr.mxu0 0.0
    %8005 = vmatpush1.msra.mxu0 0.0
    %8006 = vmatprep.subr.mxu0 0.0
    %8007 = vmatpush1.msra.mxu0 0.0
    %8008 = vmatprep.subr.mxu0 0.0
    %8009 = vmatpush1.msra.mxu0 0.0
    %8010 = vmatprep.subr.mxu0 0.0
    %8011 = vmatpush1.msra.mxu0 0.0
    %8012 = vmatprep.subr.mxu0 0.0
    %8013 = vmatpush1.msra.mxu0 0.0
    %8014 = vmatprep.subr.mxu0 0.0
    %8015 = vmatpush1.msra.mxu0 %v67
    %8016 = vmatprep.subr.mxu0 0.0
    %8017 = vmatpush1.msra.mxu0 %v66
    %8018 = vmatprep.subr.mxu0 0.0
    %8019 = vmatpush1.msra.mxu0 %v65
    %8020 = vmatprep.subr.mxu0 0.0
    %8021 = vmatpush1.msra.mxu0 %v64
    %8022 = vmatprep.subr.mxu0 0.0
    %8023 = vmatpush2.msra.mxu0 0.0
    %8024 = vmatprep.subr.mxu0 0.0
    %8025 = vmatpush2.msra.mxu0 0.0
    %8026 = vmatprep.subr.mxu0 0.0
    %8027 = vmatpush2.msra.mxu0 0.0
    %8028 = vmatprep.subr.mxu0 0.0
    %8029 = vmatpush2.msra.mxu0 0.0
    %8030 = vmatprep.subr.mxu0 0.0
    %8031 = vmatpush2.msra.mxu0 0.0
    %8032 = vmatprep.subr.mxu0 0.0
    %8033 = vmatpush2.msra.mxu0 0.0
    %8034 = vmatprep.subr.mxu0 0.0
    %8035 = vmatpush2.msra.mxu0 0.0
    %8036 = vmatprep.subr.mxu0 0.0
    %8037 = vmatpush2.msra.mxu0 0.0
    %8038 = vmatprep.subr.mxu0 0.0
    %8039 = vmatpush2.msra.mxu0 0.0
    %8040 = vmatprep.subr.mxu0 0.0
    %8041 = vmatpush2.msra.mxu0 0.0
    %8042 = vmatprep.subr.mxu0 0.0
    %8043 = vmatpush2.msra.mxu0 0.0
    %8044 = vmatprep.subr.mxu0 0.0
    %8045 = vmatpush2.msra.mxu0 0.0
    %8046 = vmatprep.subr.mxu0 0.0
    %8047 = vmatpush2.msra.mxu0 0.0
    %8048 = vmatprep.subr.mxu0 0.0
    %8049 = vmatpush2.msra.mxu0 0.0
    %8050 = vmatprep.subr.mxu0 0.0
    %8051 = vmatpush2.msra.mxu0 0.0
    %8052 = vmatprep.subr.mxu0 0.0
    %8053 = vmatpush2.msra.mxu0 0.0
    %8054 = vmatprep.mubr.f32.mxu0 0.0
    %8055 = vmatmul.mubr.f32.gmra.mxu0 %v7988
    %v8056 = vpop.f32.mrf.mxu0
    %v8057 = vadd.f32 %v80, %v8056
    %v8058 = vpop.f32.mrf.mxu0
    %8059 = vdwg.mxu0
    %v8060 = vmul.f32 %v7604, 0.32806653
    %v8061 = vmul.f32 %v7753, -1.2884215
    %v8062 = vadd.f32 %v8060, %v8061
    %v8063 = vmul.f32 %v7904, 1.0914326
    %v8064 = vadd.f32 %v8062, %v8063
    %v8065 = vmul.f32 %v8057, -0.032312147
    %v8066 = vadd.f32 %v8064, %v8065
    %v8067 = vadd.f32 %v7459, %v8066
    %v8069 = vsel %vm83, %v8067, 0
    %8071 = vmatprep.subr.mxu0 0.0
    %8072 = vmatpush1.msra.mxu0 0.0
    %8073 = vmatprep.subr.mxu0 0.0
    %8074 = vmatpush1.msra.mxu0 0.0
    %8075 = vmatprep.subr.mxu0 0.0
    %8076 = vmatpush1.msra.mxu0 0.0
    %8077 = vmatprep.subr.mxu0 0.0
    %8078 = vmatpush1.msra.mxu0 0.0
    %8079 = vmatprep.subr.mxu0 0.0
    %8080 = vmatpush1.msra.mxu0 0.0
    %8081 = vmatprep.subr.mxu0 0.0
    %8082 = vmatpush1.msra.mxu0 0.0
    %8083 = vmatprep.subr.mxu0 0.0
    %8084 = vmatpush1.msra.mxu0 0.0
    %8085 = vmatprep.subr.mxu0 0.0
    %8086 = vmatpush1.msra.mxu0 0.0
    %8087 = vmatprep.subr.mxu0 0.0
    %8088 = vmatpush1.msra.mxu0 0.0
    %8089 = vmatprep.subr.mxu0 0.0
    %8090 = vmatpush1.msra.mxu0 0.0
    %8091 = vmatprep.subr.mxu0 0.0
    %8092 = vmatpush1.msra.mxu0 0.0
    %8093 = vmatprep.subr.mxu0 0.0
    %8094 = vmatpush1.msra.mxu0 0.0
    %8095 = vmatprep.subr.mxu0 0.0
    %8096 = vmatpush1.msra.mxu0 %v63
    %8097 = vmatprep.subr.mxu0 0.0
    %8098 = vmatpush1.msra.mxu0 %v62
    %8099 = vmatprep.subr.mxu0 0.0
    %8100 = vmatpush1.msra.mxu0 %v61
    %8101 = vmatprep.subr.mxu0 0.0
    %8102 = vmatpush1.msra.mxu0 %v60
    %8103 = vmatprep.subr.mxu0 0.0
    %8104 = vmatpush2.msra.mxu0 0.0
    %8105 = vmatprep.subr.mxu0 0.0
    %8106 = vmatpush2.msra.mxu0 0.0
    %8107 = vmatprep.subr.mxu0 0.0
    %8108 = vmatpush2.msra.mxu0 0.0
    %8109 = vmatprep.subr.mxu0 0.0
    %8110 = vmatpush2.msra.mxu0 0.0
    %8111 = vmatprep.subr.mxu0 0.0
    %8112 = vmatpush2.msra.mxu0 0.0
    %8113 = vmatprep.subr.mxu0 0.0
    %8114 = vmatpush2.msra.mxu0 0.0
    %8115 = vmatprep.subr.mxu0 0.0
    %8116 = vmatpush2.msra.mxu0 0.0
    %8117 = vmatprep.subr.mxu0 0.0
    %8118 = vmatpush2.msra.mxu0 0.0
    %8119 = vmatprep.subr.mxu0 0.0
    %8120 = vmatpush2.msra.mxu0 0.0
    %8121 = vmatprep.subr.mxu0 0.0
    %8122 = vmatpush2.msra.mxu0 0.0
    %8123 = vmatprep.subr.mxu0 0.0
    %8124 = vmatpush2.msra.mxu0 0.0
    %8125 = vmatprep.subr.mxu0 0.0
    %8126 = vmatpush2.msra.mxu0 0.0
    %8127 = vmatprep.subr.mxu0 0.0
    %8128 = vmatpush2.msra.mxu0 0.0
    %8129 = vmatprep.subr.mxu0 0.0
    %8130 = vmatpush2.msra.mxu0 0.0
    %8131 = vmatprep.subr.mxu0 0.0
    %8132 = vmatpush2.msra.mxu0 0.0
    %8133 = vmatprep.subr.mxu0 0.0
    %8134 = vmatpush2.msra.mxu0 0.0
    %8135 = vmatprep.mubr.f32.mxu0 0.0
    %8136 = vmatmul.mubr.f32.gmra.mxu0 %v8069
    %v8137 = vpop.f32.mrf.mxu0
    %v8138 = vadd.f32 %v73, %v8137
    %v8139 = vpop.f32.mrf.mxu0
    %8140 = vdwg.mxu0
    %v8141 = vtanh.pop %v8138
    %v8143 = vsel %vm83, %v8141, 0
    %8145 = vmatprep.subr.mxu0 0.0
    %8146 = vmatpush1.msra.mxu0 0.0
    %8147 = vmatprep.subr.mxu0 0.0
    %8148 = vmatpush1.msra.mxu0 0.0
    %8149 = vmatprep.subr.mxu0 0.0
    %8150 = vmatpush1.msra.mxu0 0.0
    %8151 = vmatprep.subr.mxu0 0.0
    %8152 = vmatpush1.msra.mxu0 0.0
    %8153 = vmatprep.subr.mxu0 0.0
    %8154 = vmatpush1.msra.mxu0 0.0
    %8155 = vmatprep.subr.mxu0 0.0
    %8156 = vmatpush1.msra.mxu0 0.0
    %8157 = vmatprep.subr.mxu0 0.0
    %8158 = vmatpush1.msra.mxu0 0.0
    %8159 = vmatprep.subr.mxu0 0.0
    %8160 = vmatpush1.msra.mxu0 0.0
    %8161 = vmatprep.subr.mxu0 0.0
    %8162 = vmatpush1.msra.mxu0 0.0
    %8163 = vmatprep.subr.mxu0 0.0
    %8164 = vmatpush1.msra.mxu0 0.0
    %8165 = vmatprep.subr.mxu0 0.0
    %8166 = vmatpush1.msra.mxu0 0.0
    %8167 = vmatprep.subr.mxu0 0.0
    %8168 = vmatpush1.msra.mxu0 0.0
    %8169 = vmatprep.subr.mxu0 0.0
    %8170 = vmatpush1.msra.mxu0 %v67
    %8171 = vmatprep.subr.mxu0 0.0
    %8172 = vmatpush1.msra.mxu0 %v66
    %8173 = vmatprep.subr.mxu0 0.0
    %8174 = vmatpush1.msra.mxu0 %v65
    %8175 = vmatprep.subr.mxu0 0.0
    %8176 = vmatpush1.msra.mxu0 %v64
    %8177 = vmatprep.subr.mxu0 0.0
    %8178 = vmatpush2.msra.mxu0 0.0
    %8179 = vmatprep.subr.mxu0 0.0
    %8180 = vmatpush2.msra.mxu0 0.0
    %8181 = vmatprep.subr.mxu0 0.0
    %8182 = vmatpush2.msra.mxu0 0.0
    %8183 = vmatprep.subr.mxu0 0.0
    %8184 = vmatpush2.msra.mxu0 0.0
    %8185 = vmatprep.subr.mxu0 0.0
    %8186 = vmatpush2.msra.mxu0 0.0
    %8187 = vmatprep.subr.mxu0 0.0
    %8188 = vmatpush2.msra.mxu0 0.0
    %8189 = vmatprep.subr.mxu0 0.0
    %8190 = vmatpush2.msra.mxu0 0.0
    %8191 = vmatprep.subr.mxu0 0.0
    %8192 = vmatpush2.msra.mxu0 0.0
    %8193 = vmatprep.subr.mxu0 0.0
    %8194 = vmatpush2.msra.mxu0 0.0
    %8195 = vmatprep.subr.mxu0 0.0
    %8196 = vmatpush2.msra.mxu0 0.0
    %8197 = vmatprep.subr.mxu0 0.0
    %8198 = vmatpush2.msra.mxu0 0.0
    %8199 = vmatprep.subr.mxu0 0.0
    %8200 = vmatpush2.msra.mxu0 0.0
    %8201 = vmatprep.subr.mxu0 0.0
    %8202 = vmatpush2.msra.mxu0 0.0
    %8203 = vmatprep.subr.mxu0 0.0
    %8204 = vmatpush2.msra.mxu0 0.0
    %8205 = vmatprep.subr.mxu0 0.0
    %8206 = vmatpush2.msra.mxu0 0.0
    %8207 = vmatprep.subr.mxu0 0.0
    %8208 = vmatpush2.msra.mxu0 0.0
    %8209 = vmatprep.mubr.f32.mxu0 0.0
    %8210 = vmatmul.mubr.f32.gmra.mxu0 %v8143
    %v8211 = vpop.f32.mrf.mxu0
    %v8212 = vadd.f32 %v80, %v8211
    %v8213 = vpop.f32.mrf.mxu0
    %8214 = vdwg.mxu0
    %v8215 = vmul.f32 %v7604, 0.3162528
    %v8216 = vmul.f32 %v7753, -1.1952862
    %v8217 = vadd.f32 %v8215, %v8216
    %v8218 = vmul.f32 %v7904, 0.9896025
    %v8219 = vadd.f32 %v8217, %v8218
    %v8220 = vmul.f32 %v8057, 0.030934343
    %v8221 = vadd.f32 %v8219, %v8220
    %v8222 = vmul.f32 %v8212, -0.030392367
    %v8223 = vadd.f32 %v8221, %v8222
    %v8224 = vadd.f32 %v7459, %v8223
    %v8226 = vsel %vm83, %v8224, 0
    %8228 = vmatprep.subr.mxu0 0.0
    %8229 = vmatpush1.msra.mxu0 0.0
    %8230 = vmatprep.subr.mxu0 0.0
    %8231 = vmatpush1.msra.mxu0 0.0
    %8232 = vmatprep.subr.mxu0 0.0
    %8233 = vmatpush1.msra.mxu0 0.0
    %8234 = vmatprep.subr.mxu0 0.0
    %8235 = vmatpush1.msra.mxu0 0.0
    %8236 = vmatprep.subr.mxu0 0.0
    %8237 = vmatpush1.msra.mxu0 0.0
    %8238 = vmatprep.subr.mxu0 0.0
    %8239 = vmatpush1.msra.mxu0 0.0
    %8240 = vmatprep.subr.mxu0 0.0
    %8241 = vmatpush1.msra.mxu0 0.0
    %8242 = vmatprep.subr.mxu0 0.0
    %8243 = vmatpush1.msra.mxu0 0.0
    %8244 = vmatprep.subr.mxu0 0.0
    %8245 = vmatpush1.msra.mxu0 0.0
    %8246 = vmatprep.subr.mxu0 0.0
    %8247 = vmatpush1.msra.mxu0 0.0
    %8248 = vmatprep.subr.mxu0 0.0
    %8249 = vmatpush1.msra.mxu0 0.0
    %8250 = vmatprep.subr.mxu0 0.0
    %8251 = vmatpush1.msra.mxu0 0.0
    %8252 = vmatprep.subr.mxu0 0.0
    %8253 = vmatpush1.msra.mxu0 %v63
    %8254 = vmatprep.subr.mxu0 0.0
    %8255 = vmatpush1.msra.mxu0 %v62
    %8256 = vmatprep.subr.mxu0 0.0
    %8257 = vmatpush1.msra.mxu0 %v61
    %8258 = vmatprep.subr.mxu0 0.0
    %8259 = vmatpush1.msra.mxu0 %v60
    %8260 = vmatprep.subr.mxu0 0.0
    %8261 = vmatpush2.msra.mxu0 0.0
    %8262 = vmatprep.subr.mxu0 0.0
    %8263 = vmatpush2.msra.mxu0 0.0
    %8264 = vmatprep.subr.mxu0 0.0
    %8265 = vmatpush2.msra.mxu0 0.0
    %8266 = vmatprep.subr.mxu0 0.0
    %8267 = vmatpush2.msra.mxu0 0.0
    %8268 = vmatprep.subr.mxu0 0.0
    %8269 = vmatpush2.msra.mxu0 0.0
    %8270 = vmatprep.subr.mxu0 0.0
    %8271 = vmatpush2.msra.mxu0 0.0
    %8272 = vmatprep.subr.mxu0 0.0
    %8273 = vmatpush2.msra.mxu0 0.0
    %8274 = vmatprep.subr.mxu0 0.0
    %8275 = vmatpush2.msra.mxu0 0.0
    %8276 = vmatprep.subr.mxu0 0.0
    %8277 = vmatpush2.msra.mxu0 0.0
    %8278 = vmatprep.subr.mxu0 0.0
    %8279 = vmatpush2.msra.mxu0 0.0
    %8280 = vmatprep.subr.mxu0 0.0
    %8281 = vmatpush2.msra.mxu0 0.0
    %8282 = vmatprep.subr.mxu0 0.0
    %8283 = vmatpush2.msra.mxu0 0.0
    %8284 = vmatprep.subr.mxu0 0.0
    %8285 = vmatpush2.msra.mxu0 0.0
    %8286 = vmatprep.subr.mxu0 0.0
    %8287 = vmatpush2.msra.mxu0 0.0
    %8288 = vmatprep.subr.mxu0 0.0
    %8289 = vmatpush2.msra.mxu0 0.0
    %8290 = vmatprep.subr.mxu0 0.0
    %8291 = vmatpush2.msra.mxu0 0.0
    %8292 = vmatprep.mubr.f32.mxu0 0.0
    %8293 = vmatmul.mubr.f32.gmra.mxu0 %v8226
    %v8294 = vpop.f32.mrf.mxu0
    %v8295 = vadd.f32 %v73, %v8294
    %v8296 = vpop.f32.mrf.mxu0
    %8297 = vdwg.mxu0
    %v8298 = vtanh.pop %v8295
    %v8300 = vsel %vm83, %v8298, 0
    %8302 = vmatprep.subr.mxu0 0.0
    %8303 = vmatpush1.msra.mxu0 0.0
    %8304 = vmatprep.subr.mxu0 0.0
    %8305 = vmatpush1.msra.mxu0 0.0
    %8306 = vmatprep.subr.mxu0 0.0
    %8307 = vmatpush1.msra.mxu0 0.0
    %8308 = vmatprep.subr.mxu0 0.0
    %8309 = vmatpush1.msra.mxu0 0.0
    %8310 = vmatprep.subr.mxu0 0.0
    %8311 = vmatpush1.msra.mxu0 0.0
    %8312 = vmatprep.subr.mxu0 0.0
    %8313 = vmatpush1.msra.mxu0 0.0
    %8314 = vmatprep.subr.mxu0 0.0
    %8315 = vmatpush1.msra.mxu0 0.0
    %8316 = vmatprep.subr.mxu0 0.0
    %8317 = vmatpush1.msra.mxu0 0.0
    %8318 = vmatprep.subr.mxu0 0.0
    %8319 = vmatpush1.msra.mxu0 0.0
    %8320 = vmatprep.subr.mxu0 0.0
    %8321 = vmatpush1.msra.mxu0 0.0
    %8322 = vmatprep.subr.mxu0 0.0
    %8323 = vmatpush1.msra.mxu0 0.0
    %8324 = vmatprep.subr.mxu0 0.0
    %8325 = vmatpush1.msra.mxu0 0.0
    %8326 = vmatprep.subr.mxu0 0.0
    %8327 = vmatpush1.msra.mxu0 %v67
    %8328 = vmatprep.subr.mxu0 0.0
    %8329 = vmatpush1.msra.mxu0 %v66
    %8330 = vmatprep.subr.mxu0 0.0
    %8331 = vmatpush1.msra.mxu0 %v65
    %8332 = vmatprep.subr.mxu0 0.0
    %8333 = vmatpush1.msra.mxu0 %v64
    %8334 = vmatprep.subr.mxu0 0.0
    %8335 = vmatpush2.msra.mxu0 0.0
    %8336 = vmatprep.subr.mxu0 0.0
    %8337 = vmatpush2.msra.mxu0 0.0
    %8338 = vmatprep.subr.mxu0 0.0
    %8339 = vmatpush2.msra.mxu0 0.0
    %8340 = vmatprep.subr.mxu0 0.0
    %8341 = vmatpush2.msra.mxu0 0.0
    %8342 = vmatprep.subr.mxu0 0.0
    %8343 = vmatpush2.msra.mxu0 0.0
    %8344 = vmatprep.subr.mxu0 0.0
    %8345 = vmatpush2.msra.mxu0 0.0
    %8346 = vmatprep.subr.mxu0 0.0
    %8347 = vmatpush2.msra.mxu0 0.0
    %8348 = vmatprep.subr.mxu0 0.0
    %8349 = vmatpush2.msra.mxu0 0.0
    %8350 = vmatprep.subr.mxu0 0.0
    %8351 = vmatpush2.msra.mxu0 0.0
    %8352 = vmatprep.subr.mxu0 0.0
    %8353 = vmatpush2.msra.mxu0 0.0
    %8354 = vmatprep.subr.mxu0 0.0
    %8355 = vmatpush2.msra.mxu0 0.0
    %8356 = vmatprep.subr.mxu0 0.0
    %8357 = vmatpush2.msra.mxu0 0.0
    %8358 = vmatprep.subr.mxu0 0.0
    %8359 = vmatpush2.msra.mxu0 0.0
    %8360 = vmatprep.subr.mxu0 0.0
    %8361 = vmatpush2.msra.mxu0 0.0
    %8362 = vmatprep.subr.mxu0 0.0
    %8363 = vmatpush2.msra.mxu0 0.0
    %8364 = vmatprep.subr.mxu0 0.0
    %8365 = vmatpush2.msra.mxu0 0.0
    %8366 = vmatprep.mubr.f32.mxu0 0.0
    %8367 = vmatmul.mubr.f32.gmra.mxu0 %v8300
    %v8368 = vpop.f32.mrf.mxu0
    %v8369 = vadd.f32 %v80, %v8368
    %v8370 = vpop.f32.mrf.mxu0
    %8371 = vdwg.mxu0
    %v8372 = vmul.f32 %v7604, 0.010127314
    %v8373 = vmul.f32 %v7904, 0.049915146
    %v8374 = vadd.f32 %v8372, %v8373
    %v8375 = vmul.f32 %v8057, 0.07233796
    %v8376 = vadd.f32 %v8374, %v8375
    %v8377 = vmul.f32 %v8212, -0.035819575
    %v8378 = vadd.f32 %v8376, %v8377
    %v8379 = vmul.f32 %v8369, 0.014550265
    %v8380 = vadd.f32 %v8378, %v8379
    %v8381 = vadd.f32 %v7459, %v8380
    %8382 = vst.msk [vmem:[#allocation8] sm:$0xff] %vm83, %v8381
    // Predicated region
    $region34: #{tpu_custom_call.1} parent=1 // pred_check
      _
    $region35: #{tpu_custom_call.1} parent=1 // pred_check_branch
      %8384 = sbr.rel (0) target = $region37
    $region36: #{tpu_custom_call.1} parent=1 // pred_region
      %s8386 = ssub.s32 128, 128
      %8387 = vsyncadd [#allocation4], %s8386
      %s8389 = sshll.u32 [#allocation8], 4
      %s8390 = int_to_ptr.vmem [resolvable:$true] %s8389
      %8392 = dma.vmem_to_hbm [thread:$0]  %s8390, 128, %s5, [#allocation4]
    $region37: #{tpu_custom_call.1} parent=1 // pred_fallthru
      _
    // Predicated region
    $region38: #{tpu_custom_call.1} parent=1 // pred_check
      _
    $region39: #{tpu_custom_call.1} parent=1 // pred_check_branch
      %8394 = sbr.rel (0) target = $region41
    $region40: #{tpu_custom_call.1} parent=1 // pred_region
      %8395 = dma.done [#allocation4], 128
    $region41: #{tpu_custom_call.1} parent=1 // pred_fallthru
      _
    %8396 = vsyncpa [#allocation3], 1
    %8397 = vsyncpa [#allocation6], 1
    %8398 = vsyncpa [#allocation4], 1

</llo_original>
